<compile_context>
chip_gen: v5e
topology: v5e:2x2
jax: 0.10.0
libtpu: 0.0.40
codegen_flags: <defaults>
</compile_context>

<pallas_src>
import functools

import jax
import jax.numpy as jnp
from jax import lax
from jax.experimental import pallas as pl
from jax.experimental.pallas import tpu as pltpu

LANE = 128
XOFF = 8          # sublane-aligned column where the image interior starts
ROFF = 2          # interior row offset (1 halo row + 1 row so flat slices stay in-bounds)


def _round_up(a, m):
    return (a + m - 1) // m * m


def _pick_vmem_limit():
    """Generation-aware scoped-VMEM limit (<= ~3/4 of physical, capped at 100 MiB)."""
    cap = 64 * 1024 * 1024
    try:
        info = pltpu.get_tpu_info()
        cap = int(getattr(info, "vmem_capacity_bytes", cap))
    except Exception:
        pass
    return max(32 * 1024 * 1024, min(3 * cap // 4, 100 * 1024 * 1024))


def basic_block_kernel(x_ref, w1_ref, b1_ref, w2_ref, b2_ref, out_ref, ypad_ref,
                       *, H, W, xoff, roff):
    """One batch element per grid step.

    x_ref   : (1, H+4, Wpa, Cp) bf16  halo-padded, width-aligned, channel-padded input
    w1_ref  : (9, Cp, Cp)       bf16  conv1 weights (BN1 scale folded), tap-major
    b1_ref  : (1, Cp)           f32   folded BN1 bias
    w2_ref  : (9, Cp, Cp)       bf16  conv2 weights (BN2 scale folded)
    b2_ref  : (1, Cp)           f32   folded BN2 bias
    out_ref : (1, H, W, Cp)     bf16
    ypad_ref: (H+4, Wpa, Cp)    bf16  scratch: halo-padded intermediate activation
    """
    Rtot, Wpa, Cp = ypad_ref.shape
    M = H * Wpa                                    # rows of the flat matmul (incl. halo cols)

    def conv3x3_flat(flat, w_ref):
        # flat: (Rtot*Wpa, Cp) bf16 view of a halo-padded activation.
        # 9 per-tap MXU matmuls (K = Cp) accumulated in f32 - no im2col slab.
        # Output row p = i*Wpa + jj maps to input row p + (roff-1+kh)*Wpa + (kw-1);
        # only jj in [xoff, xoff+W) is valid, the rest is discarded.
        acc = None
        for kh in range(3):
            for kw in range(3):
                s = (roff - 1 + kh) * Wpa + (kw - 1)         # static slice start
                tap = flat[s:s + M, :]                       # contiguous, no copy/concat
                d = jnp.dot(tap, w_ref[kh * 3 + kw],
                            preferred_element_type=jnp.float32)
                acc = d if acc is None else acc + d
        return acc                                           # (H*Wpa, Cp) f32

    x = x_ref[0]                                             # (Rtot, Wpa, Cp) bf16
    xflat = x.reshape(Rtot * Wpa, Cp)                        # layout-preserving (Wpa % 16 == 0)

    # ---- conv1 (+ folded BN1) + ReLU ----------------------------------------
    acc1 = conv3x3_flat(xflat, w1_ref)
    y1 = jnp.maximum(acc1 + b1_ref[...], 0.0).reshape(H, Wpa, Cp)

    # Zero the out-of-image columns (they hold wrap-around garbage) so ypad keeps
    # a valid zero conv halo, then do one full-width, tile-aligned store.
    col = lax.broadcasted_iota(jnp.int32, (1, Wpa, 1), 1)
    in_img = (col >= xoff) & (col < xoff + W)
    y1 = jnp.where(in_img, y1, 0.0).astype(jnp.bfloat16)

    # Thin halo rows re-zeroed every step (cheap, and safe on megacore parts
    # where this core may never see program_id == 0).
    zrow = jnp.zeros((roff, Wpa, Cp), jnp.bfloat16)
    ypad_ref[0:roff, :, :] = zrow
    ypad_ref[roff + H:Rtot, :, :] = zrow
    ypad_ref[roff:roff + H, :, :] = y1

    # ---- conv2 (+ folded BN2) ------------------------------------------------
    yflat = ypad_ref[...].reshape(Rtot * Wpa, Cp)
    acc2 = conv3x3_flat(yflat, w2_ref)

    # ---- bias + residual (from the same input stream) + ReLU, bf16 store -----
    acc2_int = acc2.reshape(H, Wpa, Cp)[:, xoff:xoff + W, :]
    res = x[roff:roff + H, xoff:xoff + W, :].astype(jnp.float32)
    out = jnp.maximum(acc2_int + b2_ref[...] + res, 0.0)
    out_ref[0] = out.astype(out_ref.dtype)


def fold_bn(gamma, beta, mean, var, eps=1e-5):
    scale = gamma / jnp.sqrt(var + eps)
    bias = beta - mean * scale
    return scale, bias


@jax.jit
def basic_block_forward(x_nchw, w1_oihw, bn1, w2_oihw, bn2):
    """x_nchw: (N, C, H, W) float32. Conv weights in PyTorch OIHW layout."""
    N, Cin, H, W = x_nchw.shape
    Cout = w1_oihw.shape[0]
    # Residual path of BasicBlock requires stride=1, Cin==Cout, no downsample.
    assert Cin == Cout, "BasicBlock without downsample requires Cin == Cout"
    assert w1_oihw.shape == (Cout, Cin, 3, 3) and w2_oihw.shape == (Cout, Cout, 3, 3)

    Cp = _round_up(max(Cin, LANE), LANE)            # lane-dense channels
    Wpa = _round_up(XOFF + W + 1, 16)               # width incl. halo, bf16 tile aligned
    Rtot = H + 2 * ROFF                             # rows incl. halo + bounds rows

    # ---- single HBM input stream: bf16, NHWC, channel-padded, halo-padded ----
    x_nhwc = jnp.transpose(x_nchw, (0, 2, 3, 1))
    x_pad = jnp.pad(
        x_nhwc,
        ((0, 0), (ROFF, ROFF), (XOFF, Wpa - XOFF - W), (0, Cp - Cin)),
    ).astype(jnp.bfloat16)                          # (N, Rtot, Wpa, Cp)

    # ---- weights: fold BN scale, pad channels, tap-major layout ---------------
    s1, b1 = fold_bn(*bn1)
    s2, b2 = fold_bn(*bn2)

    def prep_w(w_oihw, scale):
        w = jnp.transpose(w_oihw, (2, 3, 1, 0)).astype(jnp.float32)   # (3,3,in,out)
        w = w * scale[None, None, None, :]                            # fold BN scale
        w = jnp.pad(w, ((0, 0), (0, 0),
                        (0, Cp - w.shape[2]), (0, Cp - w.shape[3])))
        return w.reshape(9, Cp, Cp).astype(jnp.bfloat16)              # tap-major

    w1 = prep_w(w1_oihw, s1)
    w2 = prep_w(w2_oihw, s2)
    b1p = jnp.pad(b1, (0, Cp - Cout)).reshape(1, Cp).astype(jnp.float32)
    b2p = jnp.pad(b2, (0, Cp - Cout)).reshape(1, Cp).astype(jnp.float32)

    kernel = functools.partial(basic_block_kernel, H=H, W=W, xoff=XOFF, roff=ROFF)

    out_nhwc = pl.pallas_call(
        kernel,
        out_shape=jax.ShapeDtypeStruct((N, H, W, Cp), jnp.bfloat16),
        grid_spec=pltpu.PrefetchScalarGridSpec(
            num_scalar_prefetch=0,
            grid=(N,),
            in_specs=[
                pl.BlockSpec((1, Rtot, Wpa, Cp), lambda n: (n, 0, 0, 0)),  # x (bf16)
                pl.BlockSpec((9, Cp, Cp), lambda n: (0, 0, 0)),            # w1
                pl.BlockSpec((1, Cp), lambda n: (0, 0)),                   # b1
                pl.BlockSpec((9, Cp, Cp), lambda n: (0, 0, 0)),            # w2
                pl.BlockSpec((1, Cp), lambda n: (0, 0)),                   # b2
            ],
            out_specs=pl.BlockSpec((1, H, W, Cp), lambda n: (n, 0, 0, 0)),
            scratch_shapes=[pltpu.VMEM((Rtot, Wpa, Cp), jnp.bfloat16)],
        ),
        compiler_params=pltpu.CompilerParams(
            dimension_semantics=("parallel",),       # megacore-friendly batch axis
            vmem_limit_bytes=_pick_vmem_limit(),
        ),
    )(x_pad, w1, b1p, w2, b2p)

    # Standalone test only: strip channel padding and return NCHW f32.  A chained
    # HRNet block would consume the bf16 NHWC/Cp-padded output directly.
    out = out_nhwc[..., :Cout].astype(x_nchw.dtype)
    return jnp.transpose(out, (0, 3, 1, 2))


def reference_forward(x_nchw, w1_oihw, bn1, w2_oihw, bn2):
    """Pure-JAX f32 reference (lax conv), for correctness checking."""
    dn = lax.conv_dimension_numbers(x_nchw.shape, w1_oihw.shape,
                                    ('NCHW', 'OIHW', 'NCHW'))
    s1, b1 = fold_bn(*bn1)
    s2, b2 = fold_bn(*bn2)
    y = lax.conv_general_dilated(x_nchw, w1_oihw, (1, 1), ((1, 1), (1, 1)),
                                 dimension_numbers=dn)
    y = jnp.maximum(y * s1[None, :, None, None] + b1[None, :, None, None], 0.0)
    y = lax.conv_general_dilated(y, w2_oihw, (1, 1), ((1, 1), (1, 1)),
                                 dimension_numbers=dn)
    y = y * s2[None, :, None, None] + b2[None, :, None, None] + x_nchw
    return jnp.maximum(y, 0.0)


if __name__ == "__main__":
    # Small deterministic setup: inplanes = planes = 8, stride = 1, no downsample.
    N, C, H, W = 2, 8, 16, 16
    keys = jax.random.split(jax.random.PRNGKey(0), 11)

    x = jax.random.normal(keys[0], (N, C, H, W), jnp.float32)

    w1 = 0.1 * jax.random.normal(keys[1], (C, C, 3, 3), jnp.float32)   # OIHW
    w2 = 0.1 * jax.random.normal(keys[2], (C, C, 3, 3), jnp.float32)   # OIHW

    bn1 = (1.0 + 0.1 * jax.random.normal(keys[3], (C,), jnp.float32),  # gamma
           0.1 * jax.random.normal(keys[4], (C,), jnp.float32),        # beta
           0.1 * jax.random.normal(keys[5], (C,), jnp.float32),        # running_mean
           0.5 + jax.random.uniform(keys[6], (C,), jnp.float32))       # running_var
    bn2 = (1.0 + 0.1 * jax.random.normal(keys[7], (C,), jnp.float32),
           0.1 * jax.random.normal(keys[8], (C,), jnp.float32),
           0.1 * jax.random.normal(keys[9], (C,), jnp.float32),
           0.5 + jax.random.uniform(keys[10], (C,), jnp.float32))

    out = basic_block_forward(x, w1, bn1, w2, bn2)
    out = jax.block_until_ready(out)

    ref = reference_forward(x, w1, bn1, w2, bn2)
    assert out.shape == (N, C, H, W)
    # bf16 matmul operands, bf16 residual and bf16 output store (f32 accumulation
    # and biases) -> bf16-level tolerance vs the f32 reference.
    assert jnp.allclose(out, ref, atol=7.5e-2, rtol=5e-2), "mismatch vs JAX reference"

    print("KERNEL_OK")
</pallas_src>

<mosaic_0001>
module attributes {stable_mosaic.version = 11 : i64} {
  func.func @basic_block_kernel(%arg0: i32, %arg1: memref<1x20x32x128xbf16, #tpu.memory_space<vmem>>, %arg2: memref<9x128x128xbf16, #tpu.memory_space<vmem>>, %arg3: memref<1x128xf32, #tpu.memory_space<vmem>>, %arg4: memref<9x128x128xbf16, #tpu.memory_space<vmem>>, %arg5: memref<1x128xf32, #tpu.memory_space<vmem>>, %arg6: memref<1x16x16x128xbf16, #tpu.memory_space<vmem>>, %arg7: memref<20x32x128xbf16, #tpu.memory_space<vmem>>) attributes {dimension_semantics = [#tpu.dimension_semantics<parallel>], iteration_bounds = array<i64: 2>, scalar_prefetch = 0 : i64, scratch_operands = 1 : i64, tpu.core_type = #tpu.core_type<tc>, window_params = [{transform_indices = @transform_0, window_bounds = array<i64: 1, 20, 32, 128>}, {pipeline_mode = #tpu.pipeline_mode<synchronous>, transform_indices = @transform_1, window_bounds = array<i64: 9, 128, 128>}, {pipeline_mode = #tpu.pipeline_mode<synchronous>, transform_indices = @transform_2, window_bounds = array<i64: 1, 128>}, {pipeline_mode = #tpu.pipeline_mode<synchronous>, transform_indices = @transform_3, window_bounds = array<i64: 9, 128, 128>}, {pipeline_mode = #tpu.pipeline_mode<synchronous>, transform_indices = @transform_4, window_bounds = array<i64: 1, 128>}, {transform_indices = @transform_5, window_bounds = array<i64: 1, 16, 16, 128>}]} {
    %c0 = arith.constant 0 : index
    %c0_0 = arith.constant 0 : index
    %c0_1 = arith.constant 0 : index
    %c0_2 = arith.constant 0 : index
    %0 = vector.load %arg1[%c0, %c0_0, %c0_1, %c0_2] : memref<1x20x32x128xbf16, #tpu.memory_space<vmem>>, vector<1x20x32x128xbf16>
    %1 = vector.shape_cast %0 : vector<1x20x32x128xbf16> to vector<20x32x128xbf16>
    %2 = vector.shape_cast %1 : vector<20x32x128xbf16> to vector<640x128xbf16>
    %3 = vector.extract_strided_slice %2 {offsets = [31, 0], sizes = [512, 128], strides = [1, 1]} : vector<640x128xbf16> to vector<512x128xbf16>
    %c0_3 = arith.constant 0 : index
    %c0_4 = arith.constant 0 : index
    %c0_5 = arith.constant 0 : index
    %4 = vector.load %arg2[%c0_3, %c0_4, %c0_5] : memref<9x128x128xbf16, #tpu.memory_space<vmem>>, vector<1x128x128xbf16>
    %5 = vector.shape_cast %4 : vector<1x128x128xbf16> to vector<128x128xbf16>
    %cst = arith.constant dense<0.000000e+00> : vector<512x128xf32>
    %6 = tpu.matmul %3, %5, %cst {dimension_numbers = #tpu.dot_dimension_numbers<[1], [0], [0], [1], [0, 0, 1, 1], [], []>} : vector<512x128xbf16>, vector<128x128xbf16>, vector<512x128xf32> -> vector<512x128xf32>
    %7 = vector.extract_strided_slice %2 {offsets = [32, 0], sizes = [512, 128], strides = [1, 1]} : vector<640x128xbf16> to vector<512x128xbf16>
    %c1 = arith.constant 1 : index
    %c0_6 = arith.constant 0 : index
    %c0_7 = arith.constant 0 : index
    %8 = vector.load %arg2[%c1, %c0_6, %c0_7] : memref<9x128x128xbf16, #tpu.memory_space<vmem>>, vector<1x128x128xbf16>
    %9 = vector.shape_cast %8 : vector<1x128x128xbf16> to vector<128x128xbf16>
    %cst_8 = arith.constant dense<0.000000e+00> : vector<512x128xf32>
    %10 = tpu.matmul %7, %9, %cst_8 {dimension_numbers = #tpu.dot_dimension_numbers<[1], [0], [0], [1], [0, 0, 1, 1], [], []>} : vector<512x128xbf16>, vector<128x128xbf16>, vector<512x128xf32> -> vector<512x128xf32>
    %11 = arith.addf %6, %10 : vector<512x128xf32>
    %12 = vector.extract_strided_slice %2 {offsets = [33, 0], sizes = [512, 128], strides = [1, 1]} : vector<640x128xbf16> to vector<512x128xbf16>
    %c2 = arith.constant 2 : index
    %c0_9 = arith.constant 0 : index
    %c0_10 = arith.constant 0 : index
    %13 = vector.load %arg2[%c2, %c0_9, %c0_10] : memref<9x128x128xbf16, #tpu.memory_space<vmem>>, vector<1x128x128xbf16>
    %14 = vector.shape_cast %13 : vector<1x128x128xbf16> to vector<128x128xbf16>
    %cst_11 = arith.constant dense<0.000000e+00> : vector<512x128xf32>
    %15 = tpu.matmul %12, %14, %cst_11 {dimension_numbers = #tpu.dot_dimension_numbers<[1], [0], [0], [1], [0, 0, 1, 1], [], []>} : vector<512x128xbf16>, vector<128x128xbf16>, vector<512x128xf32> -> vector<512x128xf32>
    %16 = arith.addf %11, %15 : vector<512x128xf32>
    %17 = vector.extract_strided_slice %2 {offsets = [63, 0], sizes = [512, 128], strides = [1, 1]} : vector<640x128xbf16> to vector<512x128xbf16>
    %c3 = arith.constant 3 : index
    %c0_12 = arith.constant 0 : index
    %c0_13 = arith.constant 0 : index
    %18 = vector.load %arg2[%c3, %c0_12, %c0_13] : memref<9x128x128xbf16, #tpu.memory_space<vmem>>, vector<1x128x128xbf16>
    %19 = vector.shape_cast %18 : vector<1x128x128xbf16> to vector<128x128xbf16>
    %cst_14 = arith.constant dense<0.000000e+00> : vector<512x128xf32>
    %20 = tpu.matmul %17, %19, %cst_14 {dimension_numbers = #tpu.dot_dimension_numbers<[1], [0], [0], [1], [0, 0, 1, 1], [], []>} : vector<512x128xbf16>, vector<128x128xbf16>, vector<512x128xf32> -> vector<512x128xf32>
    %21 = arith.addf %16, %20 : vector<512x128xf32>
    %22 = vector.extract_strided_slice %2 {offsets = [64, 0], sizes = [512, 128], strides = [1, 1]} : vector<640x128xbf16> to vector<512x128xbf16>
    %c4 = arith.constant 4 : index
    %c0_15 = arith.constant 0 : index
    %c0_16 = arith.constant 0 : index
    %23 = vector.load %arg2[%c4, %c0_15, %c0_16] : memref<9x128x128xbf16, #tpu.memory_space<vmem>>, vector<1x128x128xbf16>
    %24 = vector.shape_cast %23 : vector<1x128x128xbf16> to vector<128x128xbf16>
    %cst_17 = arith.constant dense<0.000000e+00> : vector<512x128xf32>
    %25 = tpu.matmul %22, %24, %cst_17 {dimension_numbers = #tpu.dot_dimension_numbers<[1], [0], [0], [1], [0, 0, 1, 1], [], []>} : vector<512x128xbf16>, vector<128x128xbf16>, vector<512x128xf32> -> vector<512x128xf32>
    %26 = arith.addf %21, %25 : vector<512x128xf32>
    %27 = vector.extract_strided_slice %2 {offsets = [65, 0], sizes = [512, 128], strides = [1, 1]} : vector<640x128xbf16> to vector<512x128xbf16>
    %c5 = arith.constant 5 : index
    %c0_18 = arith.constant 0 : index
    %c0_19 = arith.constant 0 : index
    %28 = vector.load %arg2[%c5, %c0_18, %c0_19] : memref<9x128x128xbf16, #tpu.memory_space<vmem>>, vector<1x128x128xbf16>
    %29 = vector.shape_cast %28 : vector<1x128x128xbf16> to vector<128x128xbf16>
    %cst_20 = arith.constant dense<0.000000e+00> : vector<512x128xf32>
    %30 = tpu.matmul %27, %29, %cst_20 {dimension_numbers = #tpu.dot_dimension_numbers<[1], [0], [0], [1], [0, 0, 1, 1], [], []>} : vector<512x128xbf16>, vector<128x128xbf16>, vector<512x128xf32> -> vector<512x128xf32>
    %31 = arith.addf %26, %30 : vector<512x128xf32>
    %32 = vector.extract_strided_slice %2 {offsets = [95, 0], sizes = [512, 128], strides = [1, 1]} : vector<640x128xbf16> to vector<512x128xbf16>
    %c6 = arith.constant 6 : index
    %c0_21 = arith.constant 0 : index
    %c0_22 = arith.constant 0 : index
    %33 = vector.load %arg2[%c6, %c0_21, %c0_22] : memref<9x128x128xbf16, #tpu.memory_space<vmem>>, vector<1x128x128xbf16>
    %34 = vector.shape_cast %33 : vector<1x128x128xbf16> to vector<128x128xbf16>
    %cst_23 = arith.constant dense<0.000000e+00> : vector<512x128xf32>
    %35 = tpu.matmul %32, %34, %cst_23 {dimension_numbers = #tpu.dot_dimension_numbers<[1], [0], [0], [1], [0, 0, 1, 1], [], []>} : vector<512x128xbf16>, vector<128x128xbf16>, vector<512x128xf32> -> vector<512x128xf32>
    %36 = arith.addf %31, %35 : vector<512x128xf32>
    %37 = vector.extract_strided_slice %2 {offsets = [96, 0], sizes = [512, 128], strides = [1, 1]} : vector<640x128xbf16> to vector<512x128xbf16>
    %c7 = arith.constant 7 : index
    %c0_24 = arith.constant 0 : index
    %c0_25 = arith.constant 0 : index
    %38 = vector.load %arg2[%c7, %c0_24, %c0_25] : memref<9x128x128xbf16, #tpu.memory_space<vmem>>, vector<1x128x128xbf16>
    %39 = vector.shape_cast %38 : vector<1x128x128xbf16> to vector<128x128xbf16>
    %cst_26 = arith.constant dense<0.000000e+00> : vector<512x128xf32>
    %40 = tpu.matmul %37, %39, %cst_26 {dimension_numbers = #tpu.dot_dimension_numbers<[1], [0], [0], [1], [0, 0, 1, 1], [], []>} : vector<512x128xbf16>, vector<128x128xbf16>, vector<512x128xf32> -> vector<512x128xf32>
    %41 = arith.addf %36, %40 : vector<512x128xf32>
    %42 = vector.extract_strided_slice %2 {offsets = [97, 0], sizes = [512, 128], strides = [1, 1]} : vector<640x128xbf16> to vector<512x128xbf16>
    %c8 = arith.constant 8 : index
    %c0_27 = arith.constant 0 : index
    %c0_28 = arith.constant 0 : index
    %43 = vector.load %arg2[%c8, %c0_27, %c0_28] : memref<9x128x128xbf16, #tpu.memory_space<vmem>>, vector<1x128x128xbf16>
    %44 = vector.shape_cast %43 : vector<1x128x128xbf16> to vector<128x128xbf16>
    %cst_29 = arith.constant dense<0.000000e+00> : vector<512x128xf32>
    %45 = tpu.matmul %42, %44, %cst_29 {dimension_numbers = #tpu.dot_dimension_numbers<[1], [0], [0], [1], [0, 0, 1, 1], [], []>} : vector<512x128xbf16>, vector<128x128xbf16>, vector<512x128xf32> -> vector<512x128xf32>
    %46 = arith.addf %41, %45 : vector<512x128xf32>
    %c0_30 = arith.constant 0 : index
    %c0_31 = arith.constant 0 : index
    %47 = vector.load %arg3[%c0_30, %c0_31] : memref<1x128xf32, #tpu.memory_space<vmem>>, vector<1x128xf32>
    %48 = vector.broadcast %47 : vector<1x128xf32> to vector<512x128xf32>
    %49 = arith.addf %46, %48 : vector<512x128xf32>
    %cst_32 = arith.constant 0.000000e+00 : f32
    %50 = vector.broadcast %cst_32 : f32 to vector<512x128xf32>
    %51 = arith.maximumf %49, %50 : vector<512x128xf32>
    %52 = vector.shape_cast %51 : vector<512x128xf32> to vector<16x32x128xf32>
    %53 = tpu.iota {dimensions = array<i32: 1>} : vector<1x32x1xi32>
    %c8_i32 = arith.constant 8 : i32
    %54 = vector.broadcast %c8_i32 : i32 to vector<1x32x1xi32>
    %55 = arith.cmpi sge, %53, %54 : vector<1x32x1xi32>
    %c24_i32 = arith.constant 24 : i32
    %56 = vector.broadcast %c24_i32 : i32 to vector<1x32x1xi32>
    %57 = arith.cmpi slt, %53, %56 : vector<1x32x1xi32>
    %58 = arith.andi %55, %57 : vector<1x32x1xi1>
    %cst_33 = arith.constant 0.000000e+00 : f32
    %59 = vector.shape_cast %58 : vector<1x32x1xi1> to vector<1x32x1xi1>
    %60 = vector.broadcast %59 : vector<1x32x1xi1> to vector<16x32x128xi1>
    %61 = vector.broadcast %cst_33 : f32 to vector<16x32x128xf32>
    %62 = arith.select %60, %52, %61 : vector<16x32x128xi1>, vector<16x32x128xf32>
    %63 = arith.truncf %62 : vector<16x32x128xf32> to vector<16x32x128xbf16>
    %cst_34 = arith.constant 0.000000e+00 : bf16
    %64 = vector.broadcast %cst_34 : bf16 to vector<2x32x128xbf16>
    %c0_35 = arith.constant 0 : index
    %c0_36 = arith.constant 0 : index
    %c0_37 = arith.constant 0 : index
    %65 = vector.load %arg7[%c0_35, %c0_36, %c0_37] : memref<20x32x128xbf16, #tpu.memory_space<vmem>>, vector<2x32x128xbf16>
    tpu.vector_store %arg7[%c0_35, %c0_36, %c0_37], %64 {strides = array<i32>} : memref<20x32x128xbf16, #tpu.memory_space<vmem>>, vector<2x32x128xbf16>,
    %c18 = arith.constant 18 : index
    %c0_38 = arith.constant 0 : index
    %c0_39 = arith.constant 0 : index
    %66 = vector.load %arg7[%c18, %c0_38, %c0_39] : memref<20x32x128xbf16, #tpu.memory_space<vmem>>, vector<2x32x128xbf16>
    tpu.vector_store %arg7[%c18, %c0_38, %c0_39], %64 {strides = array<i32>} : memref<20x32x128xbf16, #tpu.memory_space<vmem>>, vector<2x32x128xbf16>,
    %c2_40 = arith.constant 2 : index
    %c0_41 = arith.constant 0 : index
    %c0_42 = arith.constant 0 : index
    %67 = vector.load %arg7[%c2_40, %c0_41, %c0_42] : memref<20x32x128xbf16, #tpu.memory_space<vmem>>, vector<16x32x128xbf16>
    tpu.vector_store %arg7[%c2_40, %c0_41, %c0_42], %63 {strides = array<i32>} : memref<20x32x128xbf16, #tpu.memory_space<vmem>>, vector<16x32x128xbf16>,
    %c0_43 = arith.constant 0 : index
    %c0_44 = arith.constant 0 : index
    %c0_45 = arith.constant 0 : index
    %68 = vector.load %arg7[%c0_43, %c0_44, %c0_45] : memref<20x32x128xbf16, #tpu.memory_space<vmem>>, vector<20x32x128xbf16>
    %69 = vector.shape_cast %68 : vector<20x32x128xbf16> to vector<640x128xbf16>
    %70 = vector.extract_strided_slice %69 {offsets = [31, 0], sizes = [512, 128], strides = [1, 1]} : vector<640x128xbf16> to vector<512x128xbf16>
    %c0_46 = arith.constant 0 : index
    %c0_47 = arith.constant 0 : index
    %c0_48 = arith.constant 0 : index
    %71 = vector.load %arg4[%c0_46, %c0_47, %c0_48] : memref<9x128x128xbf16, #tpu.memory_space<vmem>>, vector<1x128x128xbf16>
    %72 = vector.shape_cast %71 : vector<1x128x128xbf16> to vector<128x128xbf16>
    %cst_49 = arith.constant dense<0.000000e+00> : vector<512x128xf32>
    %73 = tpu.matmul %70, %72, %cst_49 {dimension_numbers = #tpu.dot_dimension_numbers<[1], [0], [0], [1], [0, 0, 1, 1], [], []>} : vector<512x128xbf16>, vector<128x128xbf16>, vector<512x128xf32> -> vector<512x128xf32>
    %74 = vector.extract_strided_slice %69 {offsets = [32, 0], sizes = [512, 128], strides = [1, 1]} : vector<640x128xbf16> to vector<512x128xbf16>
    %c1_50 = arith.constant 1 : index
    %c0_51 = arith.constant 0 : index
    %c0_52 = arith.constant 0 : index
    %75 = vector.load %arg4[%c1_50, %c0_51, %c0_52] : memref<9x128x128xbf16, #tpu.memory_space<vmem>>, vector<1x128x128xbf16>
    %76 = vector.shape_cast %75 : vector<1x128x128xbf16> to vector<128x128xbf16>
    %cst_53 = arith.constant dense<0.000000e+00> : vector<512x128xf32>
    %77 = tpu.matmul %74, %76, %cst_53 {dimension_numbers = #tpu.dot_dimension_numbers<[1], [0], [0], [1], [0, 0, 1, 1], [], []>} : vector<512x128xbf16>, vector<128x128xbf16>, vector<512x128xf32> -> vector<512x128xf32>
    %78 = arith.addf %73, %77 : vector<512x128xf32>
    %79 = vector.extract_strided_slice %69 {offsets = [33, 0], sizes = [512, 128], strides = [1, 1]} : vector<640x128xbf16> to vector<512x128xbf16>
    %c2_54 = arith.constant 2 : index
    %c0_55 = arith.constant 0 : index
    %c0_56 = arith.constant 0 : index
    %80 = vector.load %arg4[%c2_54, %c0_55, %c0_56] : memref<9x128x128xbf16, #tpu.memory_space<vmem>>, vector<1x128x128xbf16>
    %81 = vector.shape_cast %80 : vector<1x128x128xbf16> to vector<128x128xbf16>
    %cst_57 = arith.constant dense<0.000000e+00> : vector<512x128xf32>
    %82 = tpu.matmul %79, %81, %cst_57 {dimension_numbers = #tpu.dot_dimension_numbers<[1], [0], [0], [1], [0, 0, 1, 1], [], []>} : vector<512x128xbf16>, vector<128x128xbf16>, vector<512x128xf32> -> vector<512x128xf32>
    %83 = arith.addf %78, %82 : vector<512x128xf32>
    %84 = vector.extract_strided_slice %69 {offsets = [63, 0], sizes = [512, 128], strides = [1, 1]} : vector<640x128xbf16> to vector<512x128xbf16>
    %c3_58 = arith.constant 3 : index
    %c0_59 = arith.constant 0 : index
    %c0_60 = arith.constant 0 : index
    %85 = vector.load %arg4[%c3_58, %c0_59, %c0_60] : memref<9x128x128xbf16, #tpu.memory_space<vmem>>, vector<1x128x128xbf16>
    %86 = vector.shape_cast %85 : vector<1x128x128xbf16> to vector<128x128xbf16>
    %cst_61 = arith.constant dense<0.000000e+00> : vector<512x128xf32>
    %87 = tpu.matmul %84, %86, %cst_61 {dimension_numbers = #tpu.dot_dimension_numbers<[1], [0], [0], [1], [0, 0, 1, 1], [], []>} : vector<512x128xbf16>, vector<128x128xbf16>, vector<512x128xf32> -> vector<512x128xf32>
    %88 = arith.addf %83, %87 : vector<512x128xf32>
    %89 = vector.extract_strided_slice %69 {offsets = [64, 0], sizes = [512, 128], strides = [1, 1]} : vector<640x128xbf16> to vector<512x128xbf16>
    %c4_62 = arith.constant 4 : index
    %c0_63 = arith.constant 0 : index
    %c0_64 = arith.constant 0 : index
    %90 = vector.load %arg4[%c4_62, %c0_63, %c0_64] : memref<9x128x128xbf16, #tpu.memory_space<vmem>>, vector<1x128x128xbf16>
    %91 = vector.shape_cast %90 : vector<1x128x128xbf16> to vector<128x128xbf16>
    %cst_65 = arith.constant dense<0.000000e+00> : vector<512x128xf32>
    %92 = tpu.matmul %89, %91, %cst_65 {dimension_numbers = #tpu.dot_dimension_numbers<[1], [0], [0], [1], [0, 0, 1, 1], [], []>} : vector<512x128xbf16>, vector<128x128xbf16>, vector<512x128xf32> -> vector<512x128xf32>
    %93 = arith.addf %88, %92 : vector<512x128xf32>
    %94 = vector.extract_strided_slice %69 {offsets = [65, 0], sizes = [512, 128], strides = [1, 1]} : vector<640x128xbf16> to vector<512x128xbf16>
    %c5_66 = arith.constant 5 : index
    %c0_67 = arith.constant 0 : index
    %c0_68 = arith.constant 0 : index
    %95 = vector.load %arg4[%c5_66, %c0_67, %c0_68] : memref<9x128x128xbf16, #tpu.memory_space<vmem>>, vector<1x128x128xbf16>
    %96 = vector.shape_cast %95 : vector<1x128x128xbf16> to vector<128x128xbf16>
    %cst_69 = arith.constant dense<0.000000e+00> : vector<512x128xf32>
    %97 = tpu.matmul %94, %96, %cst_69 {dimension_numbers = #tpu.dot_dimension_numbers<[1], [0], [0], [1], [0, 0, 1, 1], [], []>} : vector<512x128xbf16>, vector<128x128xbf16>, vector<512x128xf32> -> vector<512x128xf32>
    %98 = arith.addf %93, %97 : vector<512x128xf32>
    %99 = vector.extract_strided_slice %69 {offsets = [95, 0], sizes = [512, 128], strides = [1, 1]} : vector<640x128xbf16> to vector<512x128xbf16>
    %c6_70 = arith.constant 6 : index
    %c0_71 = arith.constant 0 : index
    %c0_72 = arith.constant 0 : index
    %100 = vector.load %arg4[%c6_70, %c0_71, %c0_72] : memref<9x128x128xbf16, #tpu.memory_space<vmem>>, vector<1x128x128xbf16>
    %101 = vector.shape_cast %100 : vector<1x128x128xbf16> to vector<128x128xbf16>
    %cst_73 = arith.constant dense<0.000000e+00> : vector<512x128xf32>
    %102 = tpu.matmul %99, %101, %cst_73 {dimension_numbers = #tpu.dot_dimension_numbers<[1], [0], [0], [1], [0, 0, 1, 1], [], []>} : vector<512x128xbf16>, vector<128x128xbf16>, vector<512x128xf32> -> vector<512x128xf32>
    %103 = arith.addf %98, %102 : vector<512x128xf32>
    %104 = vector.extract_strided_slice %69 {offsets = [96, 0], sizes = [512, 128], strides = [1, 1]} : vector<640x128xbf16> to vector<512x128xbf16>
    %c7_74 = arith.constant 7 : index
    %c0_75 = arith.constant 0 : index
    %c0_76 = arith.constant 0 : index
    %105 = vector.load %arg4[%c7_74, %c0_75, %c0_76] : memref<9x128x128xbf16, #tpu.memory_space<vmem>>, vector<1x128x128xbf16>
    %106 = vector.shape_cast %105 : vector<1x128x128xbf16> to vector<128x128xbf16>
    %cst_77 = arith.constant dense<0.000000e+00> : vector<512x128xf32>
    %107 = tpu.matmul %104, %106, %cst_77 {dimension_numbers = #tpu.dot_dimension_numbers<[1], [0], [0], [1], [0, 0, 1, 1], [], []>} : vector<512x128xbf16>, vector<128x128xbf16>, vector<512x128xf32> -> vector<512x128xf32>
    %108 = arith.addf %103, %107 : vector<512x128xf32>
    %109 = vector.extract_strided_slice %69 {offsets = [97, 0], sizes = [512, 128], strides = [1, 1]} : vector<640x128xbf16> to vector<512x128xbf16>
    %c8_78 = arith.constant 8 : index
    %c0_79 = arith.constant 0 : index
    %c0_80 = arith.constant 0 : index
    %110 = vector.load %arg4[%c8_78, %c0_79, %c0_80] : memref<9x128x128xbf16, #tpu.memory_space<vmem>>, vector<1x128x128xbf16>
    %111 = vector.shape_cast %110 : vector<1x128x128xbf16> to vector<128x128xbf16>
    %cst_81 = arith.constant dense<0.000000e+00> : vector<512x128xf32>
    %112 = tpu.matmul %109, %111, %cst_81 {dimension_numbers = #tpu.dot_dimension_numbers<[1], [0], [0], [1], [0, 0, 1, 1], [], []>} : vector<512x128xbf16>, vector<128x128xbf16>, vector<512x128xf32> -> vector<512x128xf32>
    %113 = arith.addf %108, %112 : vector<512x128xf32>
    %114 = vector.shape_cast %113 : vector<512x128xf32> to vector<16x32x128xf32>
    %115 = vector.extract_strided_slice %114 {offsets = [0, 8, 0], sizes = [16, 16, 128], strides = [1, 1, 1]} : vector<16x32x128xf32> to vector<16x16x128xf32>
    %116 = vector.extract_strided_slice %1 {offsets = [2, 8, 0], sizes = [16, 16, 128], strides = [1, 1, 1]} : vector<20x32x128xbf16> to vector<16x16x128xbf16>
    %117 = arith.extf %116 : vector<16x16x128xbf16> to vector<16x16x128xf32>
    %c0_82 = arith.constant 0 : index
    %c0_83 = arith.constant 0 : index
    %118 = vector.load %arg5[%c0_82, %c0_83] : memref<1x128xf32, #tpu.memory_space<vmem>>, vector<1x128xf32>
    %119 = vector.shape_cast %118 : vector<1x128xf32> to vector<1x1x128xf32>
    %120 = vector.broadcast %119 : vector<1x1x128xf32> to vector<16x16x128xf32>
    %121 = arith.addf %115, %120 : vector<16x16x128xf32>
    %122 = arith.addf %121, %117 : vector<16x16x128xf32>
    %cst_84 = arith.constant 0.000000e+00 : f32
    %123 = vector.broadcast %cst_84 : f32 to vector<16x16x128xf32>
    %124 = arith.maximumf %122, %123 : vector<16x16x128xf32>
    %125 = arith.truncf %124 : vector<16x16x128xf32> to vector<16x16x128xbf16>
    %c0_85 = arith.constant 0 : index
    %c0_86 = arith.constant 0 : index
    %c0_87 = arith.constant 0 : index
    %c0_88 = arith.constant 0 : index
    %126 = vector.load %arg6[%c0_85, %c0_86, %c0_87, %c0_88] : memref<1x16x16x128xbf16, #tpu.memory_space<vmem>>, vector<1x16x16x128xbf16>
    %127 = vector.shape_cast %126 : vector<1x16x16x128xbf16> to vector<16x16x128xbf16>
    %128 = vector.shape_cast %125 : vector<16x16x128xbf16> to vector<1x16x16x128xbf16>
    tpu.vector_store %arg6[%c0_85, %c0_86, %c0_87, %c0_88], %128 {strides = array<i32>} : memref<1x16x16x128xbf16, #tpu.memory_space<vmem>>, vector<1x16x16x128xbf16>,
    return
  }
  func.func @transform_0(%arg0: i32) -> (i32, i32, i32, i32) {
    %c0_i32 = arith.constant 0 : i32
    %c0_i32_0 = arith.constant 0 : i32
    %c0_i32_1 = arith.constant 0 : i32
    %c0_i32_2 = arith.constant 0 : i32
    return %arg0, %c0_i32, %c0_i32_0, %c0_i32_1 : i32, i32, i32, i32
  }
  func.func @transform_1(%arg0: i32) -> (i32, i32, i32) {
    %c0_i32 = arith.constant 0 : i32
    %c0_i32_0 = arith.constant 0 : i32
    %c0_i32_1 = arith.constant 0 : i32
    %c0_i32_2 = arith.constant 0 : i32
    return %c0_i32, %c0_i32_0, %c0_i32_1 : i32, i32, i32
  }
  func.func @transform_2(%arg0: i32) -> (i32, i32) {
    %c0_i32 = arith.constant 0 : i32
    %c0_i32_0 = arith.constant 0 : i32
    %c0_i32_1 = arith.constant 0 : i32
    return %c0_i32, %c0_i32_0 : i32, i32
  }
  func.func @transform_3(%arg0: i32) -> (i32, i32, i32) {
    %c0_i32 = arith.constant 0 : i32
    %c0_i32_0 = arith.constant 0 : i32
    %c0_i32_1 = arith.constant 0 : i32
    %c0_i32_2 = arith.constant 0 : i32
    return %c0_i32, %c0_i32_0, %c0_i32_1 : i32, i32, i32
  }
  func.func @transform_4(%arg0: i32) -> (i32, i32) {
    %c0_i32 = arith.constant 0 : i32
    %c0_i32_0 = arith.constant 0 : i32
    %c0_i32_1 = arith.constant 0 : i32
    return %c0_i32, %c0_i32_0 : i32, i32
  }
  func.func @transform_5(%arg0: i32) -> (i32, i32, i32, i32) {
    %c0_i32 = arith.constant 0 : i32
    %c0_i32_0 = arith.constant 0 : i32
    %c0_i32_1 = arith.constant 0 : i32
    %c0_i32_2 = arith.constant 0 : i32
    return %arg0, %c0_i32, %c0_i32_0, %c0_i32_1 : i32, i32, i32, i32
  }
}

</mosaic_0001>

<llo_original>
// kernel: basic_block_forward.1
$region0: #{basic_block_forward.1}
  #allocation0 [shape = 'u32[]', space=smem, size = 0x4, offset = 0x4, fixed_abs, tag = 'smem constant byte address 0x4 - core index']
  #allocation1 [shape = 'u32[72,128]{1,0:T(1,128)}', space=vmem, size = 0x9000, scoped, tag = 'internal scratch']
  #allocation2 [shape = 'bf16[20,32,128]{2,1,0:T(8,128)(2,1)}', space=vmem, size = 0x28000, scoped, tag = 'scratch operand']
  %s0 = inlined_call_operand.vmem [shape: bf16[2,20,32,128], index: 0, kind: input, shape index: {}]
  %s1 = inlined_call_operand.vmem [shape: bf16[9,128,128], index: 1, kind: input, shape index: {}]
  %s2 = inlined_call_operand.vmem [shape: f32[1,128], index: 2, kind: input, shape index: {}]
  %s3 = inlined_call_operand.vmem [shape: bf16[9,128,128], index: 3, kind: input, shape index: {}]
  %s4 = inlined_call_operand.vmem [shape: f32[1,128], index: 4, kind: input, shape index: {}]
  %s5 = inlined_call_operand.vmem [shape: bf16[2,16,16,128], index: 5, kind: output, shape index: {}]
  %s6 = sld [smem:[#allocation0]]
  $region53: #{basic_block_forward.1} parent=0
    _
  %s8 = ssub.s32 1, %s6
  %s9 = scalar_select 0, %s8, %s6
  loop: start=0, step=1, limit=4
  $region2: #{basic_block_forward.1} parent=0 // loop_pre_header
    _
  $region3: #{basic_block_forward.1} parent=0 // loop_header
    %s11 = sphi 0, %s15
    %p12 = scmp.ge.s32.totalorder %s11, 4
    %s21 = sphi 0, %s23
    %s24 = sphi 0, %s21
    %s25 = sphi 0, %s24
    %s41 = sphi 0, %s25
    %s45 = sphi 0, %s45
    %s47 = sphi 0, %s45
    %s48 = sphi 0, %s47
    %s62 = sphi 0, %s48
    %s66 = sphi 0, %s66
    %s68 = sphi 0, %s66
    %s69 = sphi 0, %s68
    %s83 = sphi 0, %s69
    %s87 = sphi 0, %s87
    %s89 = sphi 0, %s87
    %s90 = sphi 0, %s89
    %s104 = sphi 0, %s90
    %s108 = sphi 0, %s108
    %s110 = sphi 0, %s108
    %s111 = sphi 0, %s110
    %s125 = sphi 0, %s111
    %s131 = sphi 0, %s133
    %s134 = sphi 0, %s131
    %s135 = sphi 0, %s134
    %s151 = sphi 0, %s135
  $region4: #{basic_block_forward.1} parent=0 // loop_header_branch
    %14 = sbr.rel (%p12) target = $region8
  $region5: #{basic_block_forward.1} parent=0 // loop_body
    %s16 = ssub.s32 %s11, 1
    %s17 = ssub.s32 %s11, 2
    %s18 = sadd.s32 %s11, 1
    %s19 = ssub.s32 %s11, %s18
    %p20 = scmp.eq.s32.totalorder %s19, 0
    %s22 = sadd.s32 %s21, 1
    %s23 = scalar_select %p20, %s21, %s22
    %p26 = pneg %p20
    %p27 = scmp.eq.s32.totalorder %s11, 1
    %p28 = por %p26, %p27
    %p29 = scmp.ne.s32.totalorder %s21, %s24
    %p30 = scmp.eq.s32.totalorder %s11, 0
    %p31 = por %p29, %p30
    %p32 = scmp.ne.s32.totalorder %s21, %s24
    %p33 = scmp.eq.s32.totalorder %s16, 1
    %p34 = por %p32, %p33
    %p35 = scmp.ne.s32.totalorder %s24, %s25
    %p36 = scmp.eq.s32.totalorder %s16, 0
    %p37 = por %p35, %p36
    %p38 = scmp.ne.s32.totalorder %s24, %s25
    %p39 = scmp.eq.s32.totalorder %s17, 1
    %p40 = por %p38, %p39
    %p42 = scmp.ne.s32.totalorder %s25, %s41
    %p43 = scmp.eq.s32.totalorder %s17, 0
    %p44 = por %p42, %p43
    %s46 = sadd.s32 %s45, 1
    %p49 = scmp.eq.s32.totalorder %s11, 1
    %p50 = scmp.ne.s32.totalorder %s45, %s47
    %p51 = scmp.eq.s32.totalorder %s11, 0
    %p52 = por %p50, %p51
    %p53 = scmp.ne.s32.totalorder %s45, %s47
    %p54 = scmp.eq.s32.totalorder %s16, 1
    %p55 = por %p53, %p54
    %p56 = scmp.ne.s32.totalorder %s47, %s48
    %p57 = scmp.eq.s32.totalorder %s16, 0
    %p58 = por %p56, %p57
    %p59 = scmp.ne.s32.totalorder %s47, %s48
    %p60 = scmp.eq.s32.totalorder %s17, 1
    %p61 = por %p59, %p60
    %p63 = scmp.ne.s32.totalorder %s48, %s62
    %p64 = scmp.eq.s32.totalorder %s17, 0
    %p65 = por %p63, %p64
    %s67 = sadd.s32 %s66, 1
    %p70 = scmp.eq.s32.totalorder %s11, 1
    %p71 = scmp.ne.s32.totalorder %s66, %s68
    %p72 = scmp.eq.s32.totalorder %s11, 0
    %p73 = por %p71, %p72
    %p74 = scmp.ne.s32.totalorder %s66, %s68
    %p75 = scmp.eq.s32.totalorder %s16, 1
    %p76 = por %p74, %p75
    %p77 = scmp.ne.s32.totalorder %s68, %s69
    %p78 = scmp.eq.s32.totalorder %s16, 0
    %p79 = por %p77, %p78
    %p80 = scmp.ne.s32.totalorder %s68, %s69
    %p81 = scmp.eq.s32.totalorder %s17, 1
    %p82 = por %p80, %p81
    %p84 = scmp.ne.s32.totalorder %s69, %s83
    %p85 = scmp.eq.s32.totalorder %s17, 0
    %p86 = por %p84, %p85
    %s88 = sadd.s32 %s87, 1
    %p91 = scmp.eq.s32.totalorder %s11, 1
    %p92 = scmp.ne.s32.totalorder %s87, %s89
    %p93 = scmp.eq.s32.totalorder %s11, 0
    %p94 = por %p92, %p93
    %p95 = scmp.ne.s32.totalorder %s87, %s89
    %p96 = scmp.eq.s32.totalorder %s16, 1
    %p97 = por %p95, %p96
    %p98 = scmp.ne.s32.totalorder %s89, %s90
    %p99 = scmp.eq.s32.totalorder %s16, 0
    %p100 = por %p98, %p99
    %p101 = scmp.ne.s32.totalorder %s89, %s90
    %p102 = scmp.eq.s32.totalorder %s17, 1
    %p103 = por %p101, %p102
    %p105 = scmp.ne.s32.totalorder %s90, %s104
    %p106 = scmp.eq.s32.totalorder %s17, 0
    %p107 = por %p105, %p106
    %s109 = sadd.s32 %s108, 1
    %p112 = scmp.eq.s32.totalorder %s11, 1
    %p113 = scmp.ne.s32.totalorder %s108, %s110
    %p114 = scmp.eq.s32.totalorder %s11, 0
    %p115 = por %p113, %p114
    %p116 = scmp.ne.s32.totalorder %s108, %s110
    %p117 = scmp.eq.s32.totalorder %s16, 1
    %p118 = por %p116, %p117
    %p119 = scmp.ne.s32.totalorder %s110, %s111
    %p120 = scmp.eq.s32.totalorder %s16, 0
    %p121 = por %p119, %p120
    %p122 = scmp.ne.s32.totalorder %s110, %s111
    %p123 = scmp.eq.s32.totalorder %s17, 1
    %p124 = por %p122, %p123
    %p126 = scmp.ne.s32.totalorder %s111, %s125
    %p127 = scmp.eq.s32.totalorder %s17, 0
    %p128 = por %p126, %p127
    %s129 = ssub.s32 %s11, %s18
    %p130 = scmp.eq.s32.totalorder %s129, 0
    %s132 = sadd.s32 %s131, 1
    %s133 = scalar_select %p130, %s131, %s132
    %p136 = pneg %p130
    %p137 = scmp.eq.s32.totalorder %s11, 1
    %p138 = por %p136, %p137
    %p139 = scmp.ne.s32.totalorder %s131, %s134
    %p140 = scmp.eq.s32.totalorder %s11, 0
    %p141 = por %p139, %p140
    %p142 = scmp.ne.s32.totalorder %s131, %s134
    %p143 = scmp.eq.s32.totalorder %s16, 1
    %p144 = por %p142, %p143
    %p145 = scmp.ne.s32.totalorder %s134, %s135
    %p146 = scmp.eq.s32.totalorder %s16, 0
    %p147 = por %p145, %p146
    %p148 = scmp.ne.s32.totalorder %s134, %s135
    %p149 = scmp.eq.s32.totalorder %s17, 1
    %p150 = por %p148, %p149
    %p152 = scmp.ne.s32.totalorder %s135, %s151
    %p153 = scmp.eq.s32.totalorder %s17, 0
    %p154 = por %p152, %p153
    %p155 = scmp.le.s32.totalorder 1, %s11
    %p156 = scmp.lt.s32.totalorder %s11, 3
    %p157 = pnand %p155, %p156
    %p158 = pneg %p157
    // Predicated region
    $region9: #{basic_block_forward.1} parent=5 // pred_check
      _
    $region10: #{basic_block_forward.1} parent=5 // pred_check_branch
      %160 = sbr.rel (%p157) target = $region12
    $region11: #{basic_block_forward.1} parent=5 // pred_region
      %s161 = ssub.s32 %s11, 1
      // Predicated region
      $region13: #{basic_block_forward.1} parent=11 // pred_check
        %p162 = pneg %p58
      $region14: #{basic_block_forward.1} parent=11 // pred_check_branch
        %164 = sbr.rel (%p162) target = $region16
      $region15: #{basic_block_forward.1} parent=11 // pred_region
        _
      $region16: #{basic_block_forward.1} parent=11 // pred_fallthru
        _
      // Predicated region
      $region17: #{basic_block_forward.1} parent=11 // pred_check
        %p165 = pneg %p79
      $region18: #{basic_block_forward.1} parent=11 // pred_check_branch
        %167 = sbr.rel (%p165) target = $region20
      $region19: #{basic_block_forward.1} parent=11 // pred_region
        _
      $region20: #{basic_block_forward.1} parent=11 // pred_fallthru
        _
      // Predicated region
      $region21: #{basic_block_forward.1} parent=11 // pred_check
        %p168 = pneg %p100
      $region22: #{basic_block_forward.1} parent=11 // pred_check_branch
        %170 = sbr.rel (%p168) target = $region24
      $region23: #{basic_block_forward.1} parent=11 // pred_region
        _
      $region24: #{basic_block_forward.1} parent=11 // pred_fallthru
        _
      // Predicated region
      $region25: #{basic_block_forward.1} parent=11 // pred_check
        %p171 = pneg %p121
      $region26: #{basic_block_forward.1} parent=11 // pred_check_branch
        %173 = sbr.rel (%p171) target = $region28
      $region27: #{basic_block_forward.1} parent=11 // pred_region
        _
      $region28: #{basic_block_forward.1} parent=11 // pred_fallthru
        _
    $region12: #{basic_block_forward.1} parent=5 // pred_fallthru
      _
    %p174 = scmp.lt.s32.totalorder %s11, 2
    // Predicated region
    $region29: #{basic_block_forward.1} parent=5 // pred_check
      %p175 = pneg %p174
    $region30: #{basic_block_forward.1} parent=5 // pred_check_branch
      %177 = sbr.rel (%p175) target = $region32
    $region31: #{basic_block_forward.1} parent=5 // pred_region
      // Predicated region
      $region33: #{basic_block_forward.1} parent=31 // pred_check
        %p178 = pneg %p31
      $region34: #{basic_block_forward.1} parent=31 // pred_check_branch
        %180 = sbr.rel (%p178) target = $region36
      $region35: #{basic_block_forward.1} parent=31 // pred_region
        %p181 = scmp.lt.s32.totalorder %s11, 1
        %s182 = scalar_select %p181, %s11, 1
        %s183 = smul.addr %s182, 80
        %s184 = smul.addr %s183, 4
        %s185 = scalar_lea.vmem %s0, %s184
      $region36: #{basic_block_forward.1} parent=31 // pred_fallthru
        _
    $region32: #{basic_block_forward.1} parent=5 // pred_fallthru
      _
    %p186 = scmp.le.s32.totalorder 1, %s11
    %p187 = scmp.lt.s32.totalorder %s11, 3
    %p188 = pnand %p186, %p187
    %p189 = pneg %p188
    // Predicated region
    $region37: #{basic_block_forward.1} parent=5 // pred_check
      _
    $region38: #{basic_block_forward.1} parent=5 // pred_check_branch
      %191 = sbr.rel (%p188) target = $region40
    $region39: #{basic_block_forward.1} parent=5 // pred_region
      %s192 = ssub.s32 %s11, 1
      %p193 = scmp.lt.s32.totalorder %s16, 1
      %s194 = scalar_select %p193, %s16, 1
      %s195 = smul.addr %s194, 80
      %s196 = smul.addr %s195, 4
      %s197 = scalar_lea.vmem %s0, %s196
      %p198 = pneg %p37
      %p199 = pneg %p34
      %p200 = pneg %p58
      %p201 = pneg %p55
      %p202 = pneg %p79
      %p203 = pneg %p76
      %p204 = pneg %p100
      %p205 = pneg %p97
      %p206 = pneg %p121
      %p207 = pneg %p118
      %p208 = pneg %p147
      %p209 = pneg %p144
      %p210 = scmp.lt.s32.totalorder %s16, 1
      %s211 = scalar_select %p210, %s16, 1
      %s212 = smul.addr %s211, 32
      %s213 = smul.addr %s212, 4
      %s214 = scalar_lea.vmem %s5, %s213
      %p215 = scmp.lt.s32.totalorder %s16, 1
      %s216 = scalar_select %p215, %s16, 1
      %s217 = smul.addr %s216, 80
      %s218 = smul.addr %s217, 4
      %s219 = scalar_lea.vmem %s0, %s218
      %p220 = scmp.lt.s32.totalorder %s16, 1
      %s221 = scalar_select %p220, %s16, 1
      %s222 = smul.addr %s221, 32
      %s223 = smul.addr %s222, 4
      %s224 = scalar_lea.vmem %s5, %s223
      %v226 = vld [vmem:[%s219 + $0xc] sm:$0xf]
      %v227 = vld [vmem:[%s219 + $0x10] sm:$0xf]
      %v228 = vld [vmem:[%s219 + $0x14] sm:$0xf]
      %v229 = vld [vmem:[%s219 + $0x18] sm:$0xf]
      %v230 = vld [vmem:[%s219 + $0x1c] sm:$0xf]
      %v231 = vld [vmem:[%s219 + $0x20] sm:$0xf]
      %v232 = vld [vmem:[%s219 + $0x24] sm:$0xf]
      %v233 = vld [vmem:[%s219 + $0x28] sm:$0xf]
      %v234 = vld [vmem:[%s219 + $0x2c] sm:$0xf]
      %v235 = vld [vmem:[%s219 + $0x30] sm:$0xf]
      %v236 = vld [vmem:[%s219 + $0x34] sm:$0xf]
      %v237 = vld [vmem:[%s219 + $0x38] sm:$0xf]
      %v238 = vld [vmem:[%s219 + $0x3c] sm:$0xf]
      %v239 = vld [vmem:[%s219 + $0x40] sm:$0xf]
      %v240 = vld [vmem:[%s219 + $0x44] sm:$0xf]
      %v241 = vld [vmem:[%s219 + $0x48] sm:$0xf]
      %v242 = vld [vmem:[%s219 + $0x4c] sm:$0xf]
      %v243 = vld [vmem:[%s219 + $0x50] sm:$0xf]
      %v244 = vld [vmem:[%s219 + $0x54] sm:$0xf]
      %v245 = vld [vmem:[%s219 + $0x58] sm:$0xf]
      %v246 = vld [vmem:[%s219 + $0x5c] sm:$0xf]
      %v247 = vld [vmem:[%s219 + $0x60] sm:$0xf]
      %v248 = vld [vmem:[%s219 + $0x64] sm:$0xf]
      %v249 = vld [vmem:[%s219 + $0x68] sm:$0xf]
      %v250 = vld [vmem:[%s219 + $0x6c] sm:$0xf]
      %v251 = vld [vmem:[%s219 + $0x70] sm:$0xf]
      %v252 = vld [vmem:[%s219 + $0x74] sm:$0xf]
      %v253 = vld [vmem:[%s219 + $0x78] sm:$0xf]
      %v254 = vld [vmem:[%s219 + $0x7c] sm:$0xf]
      %v255 = vld [vmem:[%s219 + $0x80] sm:$0xf]
      %v256 = vld [vmem:[%s219 + $0x84] sm:$0xf]
      %v257 = vld [vmem:[%s219 + $0x88] sm:$0xf]
      %v258 = vld [vmem:[%s219 + $0x8c] sm:$0xf]
      %v259 = vld [vmem:[%s219 + $0x90] sm:$0xf]
      %v260 = vld [vmem:[%s219 + $0x94] sm:$0xf]
      %v261 = vld [vmem:[%s219 + $0x98] sm:$0xf]
      %v262 = vld [vmem:[%s219 + $0x9c] sm:$0xf]
      %v263 = vld [vmem:[%s219 + $0xa0] sm:$0xf]
      %v264 = vld [vmem:[%s219 + $0xa4] sm:$0xf]
      %v265 = vld [vmem:[%s219 + $0xa8] sm:$0xf]
      %v266 = vld [vmem:[%s219 + $0xac] sm:$0xf]
      %v267 = vld [vmem:[%s219 + $0xb0] sm:$0xf]
      %v268 = vld [vmem:[%s219 + $0xb4] sm:$0xf]
      %v269 = vld [vmem:[%s219 + $0xb8] sm:$0xf]
      %v270 = vld [vmem:[%s219 + $0xbc] sm:$0xf]
      %v271 = vld [vmem:[%s219 + $0xc0] sm:$0xf]
      %v272 = vld [vmem:[%s219 + $0xc4] sm:$0xf]
      %v273 = vld [vmem:[%s219 + $0xc8] sm:$0xf]
      %v274 = vld [vmem:[%s219 + $0xcc] sm:$0xf]
      %v275 = vld [vmem:[%s219 + $0xd0] sm:$0xf]
      %v276 = vld [vmem:[%s219 + $0xd4] sm:$0xf]
      %v277 = vld [vmem:[%s219 + $0xd8] sm:$0xf]
      %v278 = vld [vmem:[%s219 + $0xdc] sm:$0xf]
      %v279 = vld [vmem:[%s219 + $0xe0] sm:$0xf]
      %v280 = vld [vmem:[%s219 + $0xe4] sm:$0xf]
      %v281 = vld [vmem:[%s219 + $0xe8] sm:$0xf]
      %v282 = vld [vmem:[%s219 + $0xec] sm:$0xf]
      %v283 = vld [vmem:[%s219 + $0xf0] sm:$0xf]
      %v284 = vld [vmem:[%s219 + $0xf4] sm:$0xf]
      %v285 = vld [vmem:[%s219 + $0xf8] sm:$0xf]
      %v286 = vld [vmem:[%s219 + $0xfc] sm:$0xf]
      %v287 = vld [vmem:[%s219 + $0x100] sm:$0xf]
      %v288 = vld [vmem:[%s219 + $0x104] sm:$0xf]
      %v289 = vld [vmem:[%s219 + $0x108] sm:$0xf]
      %v290 = vld [vmem:[%s219 + $0x10c] sm:$0xf]
      %v291 = vld [vmem:[%s219 + $0x110] sm:$0xf]
      %v292 = vld [vmem:[%s219 + $0x114] sm:$0xf]
      %v293 = vld [vmem:[%s219 + $0x118] sm:$0xf]
      %v294 = vld [vmem:[%s219 + $0x11c] sm:$0xf]
      %v295 = vld [vmem:[%s219 + $0x120] sm:$0xf]
      %v296 = vld [vmem:[%s219 + $0x124] sm:$0xf]
      %v297 = vld [vmem:[%s219 + $0x128] sm:$0xf]
      %v298 = vld [vmem:[%s219 + $0x12c] sm:$0xf]
      %v299 = vld [vmem:[%s219 + $0x130] sm:$0xf]
      %v300 = vld [vmem:[%s1] sm:$0xf]
      %v301 = vld [vmem:[%s1 + $0x4] sm:$0xf]
      %v302 = vld [vmem:[%s1 + $0x8] sm:$0xf]
      %v303 = vld [vmem:[%s1 + $0xc] sm:$0xf]
      %v304 = vld [vmem:[%s1 + $0x10] sm:$0xf]
      %v305 = vld [vmem:[%s1 + $0x14] sm:$0xf]
      %v306 = vld [vmem:[%s1 + $0x18] sm:$0xf]
      %v307 = vld [vmem:[%s1 + $0x1c] sm:$0xf]
      %v308 = vld [vmem:[%s1 + $0x20] sm:$0xf]
      %v309 = vld [vmem:[%s1 + $0x24] sm:$0xf]
      %v310 = vld [vmem:[%s1 + $0x28] sm:$0xf]
      %v311 = vld [vmem:[%s1 + $0x2c] sm:$0xf]
      %v312 = vld [vmem:[%s1 + $0x30] sm:$0xf]
      %v313 = vld [vmem:[%s1 + $0x34] sm:$0xf]
      %v314 = vld [vmem:[%s1 + $0x38] sm:$0xf]
      %v315 = vld [vmem:[%s1 + $0x3c] sm:$0xf]
      %s316 = scalar_lea.vmem %s1, 64
      %v317 = vld [vmem:[%s316] sm:$0xf]
      %v318 = vld [vmem:[%s316 + $0x4] sm:$0xf]
      %v319 = vld [vmem:[%s316 + $0x8] sm:$0xf]
      %v320 = vld [vmem:[%s316 + $0xc] sm:$0xf]
      %v321 = vld [vmem:[%s316 + $0x10] sm:$0xf]
      %v322 = vld [vmem:[%s316 + $0x14] sm:$0xf]
      %v323 = vld [vmem:[%s316 + $0x18] sm:$0xf]
      %v324 = vld [vmem:[%s316 + $0x1c] sm:$0xf]
      %v325 = vld [vmem:[%s316 + $0x20] sm:$0xf]
      %v326 = vld [vmem:[%s316 + $0x24] sm:$0xf]
      %v327 = vld [vmem:[%s316 + $0x28] sm:$0xf]
      %v328 = vld [vmem:[%s316 + $0x2c] sm:$0xf]
      %v329 = vld [vmem:[%s316 + $0x30] sm:$0xf]
      %v330 = vld [vmem:[%s316 + $0x34] sm:$0xf]
      %v331 = vld [vmem:[%s316 + $0x38] sm:$0xf]
      %v332 = vld [vmem:[%s316 + $0x3c] sm:$0xf]
      %v397 = vunpack.c.l.b16 %v227
      %v398 = vunpack.c.l.b16 %v228
      %v399 = vunpack.c.l.b16 %v229
      %v400 = vunpack.c.l.b16 %v230
      %v401 = vunpack.c.l.b16 %v231
      %v402 = vunpack.c.l.b16 %v232
      %v403 = vunpack.c.l.b16 %v233
      %v404 = vunpack.c.l.b16 %v234
      %v405 = vunpack.c.l.b16 %v235
      %v406 = vunpack.c.l.b16 %v236
      %v407 = vunpack.c.l.b16 %v237
      %v408 = vunpack.c.l.b16 %v238
      %v409 = vunpack.c.l.b16 %v239
      %v410 = vunpack.c.l.b16 %v240
      %v411 = vunpack.c.l.b16 %v241
      %v412 = vunpack.c.l.b16 %v242
      %v413 = vunpack.c.l.b16 %v243
      %v414 = vunpack.c.l.b16 %v244
      %v415 = vunpack.c.l.b16 %v245
      %v416 = vunpack.c.l.b16 %v246
      %v417 = vunpack.c.l.b16 %v247
      %v418 = vunpack.c.l.b16 %v248
      %v419 = vunpack.c.l.b16 %v249
      %v420 = vunpack.c.l.b16 %v250
      %v421 = vunpack.c.l.b16 %v251
      %v422 = vunpack.c.l.b16 %v252
      %v423 = vunpack.c.l.b16 %v253
      %v424 = vunpack.c.l.b16 %v254
      %v425 = vunpack.c.l.b16 %v255
      %v426 = vunpack.c.l.b16 %v256
      %v427 = vunpack.c.l.b16 %v257
      %v428 = vunpack.c.l.b16 %v258
      %v429 = vunpack.c.l.b16 %v259
      %v430 = vunpack.c.l.b16 %v260
      %v431 = vunpack.c.l.b16 %v261
      %v432 = vunpack.c.l.b16 %v262
      %v433 = vunpack.c.l.b16 %v263
      %v434 = vunpack.c.l.b16 %v264
      %v435 = vunpack.c.l.b16 %v265
      %v436 = vunpack.c.l.b16 %v266
      %v437 = vunpack.c.l.b16 %v267
      %v438 = vunpack.c.l.b16 %v268
      %v439 = vunpack.c.l.b16 %v269
      %v440 = vunpack.c.l.b16 %v270
      %v441 = vunpack.c.l.b16 %v271
      %v442 = vunpack.c.l.b16 %v272
      %v443 = vunpack.c.l.b16 %v273
      %v444 = vunpack.c.l.b16 %v274
      %v445 = vunpack.c.l.b16 %v275
      %v446 = vunpack.c.l.b16 %v276
      %v447 = vunpack.c.l.b16 %v277
      %v448 = vunpack.c.l.b16 %v278
      %v449 = vunpack.c.l.b16 %v279
      %v450 = vunpack.c.l.b16 %v280
      %v451 = vunpack.c.l.b16 %v281
      %v452 = vunpack.c.l.b16 %v282
      %v453 = vunpack.c.l.b16 %v283
      %v454 = vunpack.c.l.b16 %v284
      %v455 = vunpack.c.l.b16 %v285
      %v456 = vunpack.c.l.b16 %v286
      %v457 = vunpack.c.l.b16 %v287
      %v458 = vunpack.c.l.b16 %v288
      %v459 = vunpack.c.l.b16 %v289
      %v460 = vunpack.c.l.b16 %v290
      %v461 = vpack.c.b16 %v398, %v397
      %v462 = vpack.c.b16 %v400, %v399
      %v463 = vpack.c.b16 %v402, %v401
      %v464 = vpack.c.b16 %v404, %v403
      %v465 = vpack.c.b16 %v406, %v405
      %v466 = vpack.c.b16 %v408, %v407
      %v467 = vpack.c.b16 %v410, %v409
      %v468 = vpack.c.b16 %v412, %v411
      %v469 = vpack.c.b16 %v414, %v413
      %v470 = vpack.c.b16 %v416, %v415
      %v471 = vpack.c.b16 %v418, %v417
      %v472 = vpack.c.b16 %v420, %v419
      %v473 = vpack.c.b16 %v422, %v421
      %v474 = vpack.c.b16 %v424, %v423
      %v475 = vpack.c.b16 %v426, %v425
      %v476 = vpack.c.b16 %v428, %v427
      %v477 = vpack.c.b16 %v430, %v429
      %v478 = vpack.c.b16 %v432, %v431
      %v479 = vpack.c.b16 %v434, %v433
      %v480 = vpack.c.b16 %v436, %v435
      %v481 = vpack.c.b16 %v438, %v437
      %v482 = vpack.c.b16 %v440, %v439
      %v483 = vpack.c.b16 %v442, %v441
      %v484 = vpack.c.b16 %v444, %v443
      %v485 = vpack.c.b16 %v446, %v445
      %v486 = vpack.c.b16 %v448, %v447
      %v487 = vpack.c.b16 %v450, %v449
      %v488 = vpack.c.b16 %v452, %v451
      %v489 = vpack.c.b16 %v454, %v453
      %v490 = vpack.c.b16 %v456, %v455
      %v491 = vpack.c.b16 %v458, %v457
      %v492 = vpack.c.b16 %v460, %v459
      %v541 = vunpack.c.l.b16 %v317
      %v542 = vunpack.c.l.b16 %v318
      %v543 = vunpack.c.l.b16 %v319
      %v544 = vunpack.c.l.b16 %v320
      %v545 = vunpack.c.l.b16 %v321
      %v546 = vunpack.c.l.b16 %v322
      %v547 = vunpack.c.l.b16 %v323
      %v548 = vunpack.c.l.b16 %v324
      %v549 = vunpack.c.l.b16 %v325
      %v550 = vunpack.c.l.b16 %v326
      %v551 = vunpack.c.l.b16 %v327
      %v552 = vunpack.c.l.b16 %v328
      %v553 = vunpack.c.l.b16 %v329
      %v554 = vunpack.c.l.b16 %v330
      %v555 = vunpack.c.l.b16 %v331
      %v556 = vunpack.c.l.b16 %v332
      %v557 = vpack.c.b16 %v542, %v541
      %v558 = vpack.c.b16 %v544, %v543
      %v559 = vpack.c.b16 %v546, %v545
      %v560 = vpack.c.b16 %v548, %v547
      %v561 = vpack.c.b16 %v550, %v549
      %v562 = vpack.c.b16 %v552, %v551
      %v563 = vpack.c.b16 %v554, %v553
      %v564 = vpack.c.b16 %v556, %v555
      %573 = vmatpush.bf16.msra.mxu0 %v564
      %574 = vmatpush.bf16.msra.mxu0 %v563
      %575 = vmatpush.bf16.msra.mxu0 %v562
      %576 = vmatpush.bf16.msra.mxu0 %v561
      %577 = vmatpush.bf16.msra.mxu0 %v560
      %578 = vmatpush.bf16.msra.mxu0 %v559
      %579 = vmatpush.bf16.msra.mxu0 %v558
      %580 = vmatpush.bf16.msra.mxu0 %v557
      %581 = vmatmul.bf16.gmra.mxu0 %v461
      %v582 = vpop.f32.mrf.mxu0
      %v583 = vadd.f32 0.0, %v582
      %v584 = vpop.f32.mrf.mxu0
      %v585 = vadd.f32 0.0, %v584
      %586 = vmatmul.bf16.gmra.mxu0 %v462
      %v587 = vpop.f32.mrf.mxu0
      %v588 = vadd.f32 0.0, %v587
      %v589 = vpop.f32.mrf.mxu0
      %v590 = vadd.f32 0.0, %v589
      %591 = vmatmul.bf16.gmra.mxu0 %v463
      %v592 = vpop.f32.mrf.mxu0
      %v593 = vadd.f32 0.0, %v592
      %v594 = vpop.f32.mrf.mxu0
      %v595 = vadd.f32 0.0, %v594
      %596 = vmatmul.bf16.gmra.mxu0 %v464
      %v597 = vpop.f32.mrf.mxu0
      %v598 = vadd.f32 0.0, %v597
      %v599 = vpop.f32.mrf.mxu0
      %v600 = vadd.f32 0.0, %v599
      %601 = vmatmul.bf16.gmra.mxu0 %v465
      %v602 = vpop.f32.mrf.mxu0
      %v603 = vadd.f32 0.0, %v602
      %v604 = vpop.f32.mrf.mxu0
      %v605 = vadd.f32 0.0, %v604
      %606 = vmatmul.bf16.gmra.mxu0 %v466
      %v607 = vpop.f32.mrf.mxu0
      %v608 = vadd.f32 0.0, %v607
      %v609 = vpop.f32.mrf.mxu0
      %v610 = vadd.f32 0.0, %v609
      %611 = vmatmul.bf16.gmra.mxu0 %v467
      %v612 = vpop.f32.mrf.mxu0
      %v613 = vadd.f32 0.0, %v612
      %v614 = vpop.f32.mrf.mxu0
      %v615 = vadd.f32 0.0, %v614
      %616 = vmatmul.bf16.gmra.mxu0 %v468
      %v617 = vpop.f32.mrf.mxu0
      %v618 = vadd.f32 0.0, %v617
      %v619 = vpop.f32.mrf.mxu0
      %v620 = vadd.f32 0.0, %v619
      %621 = vmatmul.bf16.gmra.mxu0 %v469
      %v622 = vpop.f32.mrf.mxu0
      %v623 = vadd.f32 0.0, %v622
      %v624 = vpop.f32.mrf.mxu0
      %v625 = vadd.f32 0.0, %v624
      %626 = vmatmul.bf16.gmra.mxu0 %v470
      %v627 = vpop.f32.mrf.mxu0
      %v628 = vadd.f32 0.0, %v627
      %v629 = vpop.f32.mrf.mxu0
      %v630 = vadd.f32 0.0, %v629
      %631 = vmatmul.bf16.gmra.mxu0 %v471
      %v632 = vpop.f32.mrf.mxu0
      %v633 = vadd.f32 0.0, %v632
      %v634 = vpop.f32.mrf.mxu0
      %v635 = vadd.f32 0.0, %v634
      %636 = vmatmul.bf16.gmra.mxu0 %v472
      %v637 = vpop.f32.mrf.mxu0
      %v638 = vadd.f32 0.0, %v637
      %v639 = vpop.f32.mrf.mxu0
      %v640 = vadd.f32 0.0, %v639
      %641 = vmatmul.bf16.gmra.mxu0 %v473
      %v642 = vpop.f32.mrf.mxu0
      %v643 = vadd.f32 0.0, %v642
      %v644 = vpop.f32.mrf.mxu0
      %v645 = vadd.f32 0.0, %v644
      %646 = vmatmul.bf16.gmra.mxu0 %v474
      %v647 = vpop.f32.mrf.mxu0
      %v648 = vadd.f32 0.0, %v647
      %v649 = vpop.f32.mrf.mxu0
      %v650 = vadd.f32 0.0, %v649
      %651 = vmatmul.bf16.gmra.mxu0 %v475
      %v652 = vpop.f32.mrf.mxu0
      %v653 = vadd.f32 0.0, %v652
      %v654 = vpop.f32.mrf.mxu0
      %v655 = vadd.f32 0.0, %v654
      %656 = vmatmul.bf16.gmra.mxu0 %v476
      %v657 = vpop.f32.mrf.mxu0
      %v658 = vadd.f32 0.0, %v657
      %v659 = vpop.f32.mrf.mxu0
      %v660 = vadd.f32 0.0, %v659
      %661 = vmatmul.bf16.gmra.mxu0 %v477
      %v662 = vpop.f32.mrf.mxu0
      %v663 = vadd.f32 0.0, %v662
      %v664 = vpop.f32.mrf.mxu0
      %v665 = vadd.f32 0.0, %v664
      %666 = vmatmul.bf16.gmra.mxu0 %v478
      %v667 = vpop.f32.mrf.mxu0
      %v668 = vadd.f32 0.0, %v667
      %v669 = vpop.f32.mrf.mxu0
      %v670 = vadd.f32 0.0, %v669
      %671 = vmatmul.bf16.gmra.mxu0 %v479
      %v672 = vpop.f32.mrf.mxu0
      %v673 = vadd.f32 0.0, %v672
      %v674 = vpop.f32.mrf.mxu0
      %v675 = vadd.f32 0.0, %v674
      %676 = vmatmul.bf16.gmra.mxu0 %v480
      %v677 = vpop.f32.mrf.mxu0
      %v678 = vadd.f32 0.0, %v677
      %v679 = vpop.f32.mrf.mxu0
      %v680 = vadd.f32 0.0, %v679
      %681 = vmatmul.bf16.gmra.mxu0 %v481
      %v682 = vpop.f32.mrf.mxu0
      %v683 = vadd.f32 0.0, %v682
      %v684 = vpop.f32.mrf.mxu0
      %v685 = vadd.f32 0.0, %v684
      %686 = vmatmul.bf16.gmra.mxu0 %v482
      %v687 = vpop.f32.mrf.mxu0
      %v688 = vadd.f32 0.0, %v687
      %v689 = vpop.f32.mrf.mxu0
      %v690 = vadd.f32 0.0, %v689
      %691 = vmatmul.bf16.gmra.mxu0 %v483
      %v692 = vpop.f32.mrf.mxu0
      %v693 = vadd.f32 0.0, %v692
      %v694 = vpop.f32.mrf.mxu0
      %v695 = vadd.f32 0.0, %v694
      %696 = vmatmul.bf16.gmra.mxu0 %v484
      %v697 = vpop.f32.mrf.mxu0
      %v698 = vadd.f32 0.0, %v697
      %v699 = vpop.f32.mrf.mxu0
      %v700 = vadd.f32 0.0, %v699
      %701 = vmatmul.bf16.gmra.mxu0 %v485
      %v702 = vpop.f32.mrf.mxu0
      %v703 = vadd.f32 0.0, %v702
      %v704 = vpop.f32.mrf.mxu0
      %v705 = vadd.f32 0.0, %v704
      %706 = vmatmul.bf16.gmra.mxu0 %v486
      %v707 = vpop.f32.mrf.mxu0
      %v708 = vadd.f32 0.0, %v707
      %v709 = vpop.f32.mrf.mxu0
      %v710 = vadd.f32 0.0, %v709
      %711 = vmatmul.bf16.gmra.mxu0 %v487
      %v712 = vpop.f32.mrf.mxu0
      %v713 = vadd.f32 0.0, %v712
      %v714 = vpop.f32.mrf.mxu0
      %v715 = vadd.f32 0.0, %v714
      %716 = vmatmul.bf16.gmra.mxu0 %v488
      %v717 = vpop.f32.mrf.mxu0
      %v718 = vadd.f32 0.0, %v717
      %v719 = vpop.f32.mrf.mxu0
      %v720 = vadd.f32 0.0, %v719
      %721 = vmatmul.bf16.gmra.mxu0 %v489
      %v722 = vpop.f32.mrf.mxu0
      %v723 = vadd.f32 0.0, %v722
      %v724 = vpop.f32.mrf.mxu0
      %v725 = vadd.f32 0.0, %v724
      %726 = vmatmul.bf16.gmra.mxu0 %v490
      %v727 = vpop.f32.mrf.mxu0
      %v728 = vadd.f32 0.0, %v727
      %v729 = vpop.f32.mrf.mxu0
      %v730 = vadd.f32 0.0, %v729
      %731 = vmatmul.bf16.gmra.mxu0 %v491
      %v732 = vpop.f32.mrf.mxu0
      %v733 = vadd.f32 0.0, %v732
      %v734 = vpop.f32.mrf.mxu0
      %v735 = vadd.f32 0.0, %v734
      %736 = vmatmul.bf16.gmra.mxu0 %v492
      %v737 = vpop.f32.mrf.mxu0
      %v738 = vadd.f32 0.0, %v737
      %v739 = vpop.f32.mrf.mxu0
      %v740 = vadd.f32 0.0, %v739
      %741 = vdwg.mxu0
      %v743 = vunpack.c.l.b16 %v226
      %v744 = vpack.c.b16 %v397, %v743
      %v745 = vpack.c.b16 %v399, %v398
      %v746 = vpack.c.b16 %v401, %v400
      %v747 = vpack.c.b16 %v403, %v402
      %v748 = vpack.c.b16 %v405, %v404
      %v749 = vpack.c.b16 %v407, %v406
      %v750 = vpack.c.b16 %v409, %v408
      %v751 = vpack.c.b16 %v411, %v410
      %v752 = vpack.c.b16 %v413, %v412
      %v753 = vpack.c.b16 %v415, %v414
      %v754 = vpack.c.b16 %v417, %v416
      %v755 = vpack.c.b16 %v419, %v418
      %v756 = vpack.c.b16 %v421, %v420
      %v757 = vpack.c.b16 %v423, %v422
      %v758 = vpack.c.b16 %v425, %v424
      %v759 = vpack.c.b16 %v427, %v426
      %v760 = vpack.c.b16 %v429, %v428
      %v761 = vpack.c.b16 %v431, %v430
      %v762 = vpack.c.b16 %v433, %v432
      %v763 = vpack.c.b16 %v435, %v434
      %v764 = vpack.c.b16 %v437, %v436
      %v765 = vpack.c.b16 %v439, %v438
      %v766 = vpack.c.b16 %v441, %v440
      %v767 = vpack.c.b16 %v443, %v442
      %v768 = vpack.c.b16 %v445, %v444
      %v769 = vpack.c.b16 %v447, %v446
      %v770 = vpack.c.b16 %v449, %v448
      %v771 = vpack.c.b16 %v451, %v450
      %v772 = vpack.c.b16 %v453, %v452
      %v773 = vpack.c.b16 %v455, %v454
      %v774 = vpack.c.b16 %v457, %v456
      %v775 = vpack.c.b16 %v459, %v458
      %v776 = vpack.c.b16 %v460, %v460
      %vm777 = vsmask.f32 4352
      %v779 = vshrl.u32 %v744, 16
      %v781 = vrot.slane %v779, 3
      %v782 = vshll.u32 %v744, 16
      %v784 = vrot.slane %v782, 4
      %v785 = vor.u32 %v781, %v784
      %v787 = vshrl.u32 %v745, 16
      %v789 = vrot.slane %v787, 3
      %v790 = vshll.u32 %v745, 16
      %v792 = vrot.slane %v790, 4
      %v793 = vor.u32 %v789, %v792
      %v794 = vsel %vm777, %v785, %v793
      %v796 = vshrl.u32 %v746, 16
      %v798 = vrot.slane %v796, 3
      %v799 = vshll.u32 %v746, 16
      %v801 = vrot.slane %v799, 4
      %v802 = vor.u32 %v798, %v801
      %v803 = vsel %vm777, %v793, %v802
      %v805 = vshrl.u32 %v747, 16
      %v807 = vrot.slane %v805, 3
      %v808 = vshll.u32 %v747, 16
      %v810 = vrot.slane %v808, 4
      %v811 = vor.u32 %v807, %v810
      %v812 = vsel %vm777, %v802, %v811
      %v814 = vshrl.u32 %v748, 16
      %v816 = vrot.slane %v814, 3
      %v817 = vshll.u32 %v748, 16
      %v819 = vrot.slane %v817, 4
      %v820 = vor.u32 %v816, %v819
      %v821 = vsel %vm777, %v811, %v820
      %v823 = vshrl.u32 %v749, 16
      %v825 = vrot.slane %v823, 3
      %v826 = vshll.u32 %v749, 16
      %v828 = vrot.slane %v826, 4
      %v829 = vor.u32 %v825, %v828
      %v830 = vsel %vm777, %v820, %v829
      %v832 = vshrl.u32 %v750, 16
      %v834 = vrot.slane %v832, 3
      %v835 = vshll.u32 %v750, 16
      %v837 = vrot.slane %v835, 4
      %v838 = vor.u32 %v834, %v837
      %v839 = vsel %vm777, %v829, %v838
      %v841 = vshrl.u32 %v751, 16
      %v843 = vrot.slane %v841, 3
      %v844 = vshll.u32 %v751, 16
      %v846 = vrot.slane %v844, 4
      %v847 = vor.u32 %v843, %v846
      %v848 = vsel %vm777, %v838, %v847
      %v850 = vshrl.u32 %v752, 16
      %v852 = vrot.slane %v850, 3
      %v853 = vshll.u32 %v752, 16
      %v855 = vrot.slane %v853, 4
      %v856 = vor.u32 %v852, %v855
      %v857 = vsel %vm777, %v847, %v856
      %v859 = vshrl.u32 %v753, 16
      %v861 = vrot.slane %v859, 3
      %v862 = vshll.u32 %v753, 16
      %v864 = vrot.slane %v862, 4
      %v865 = vor.u32 %v861, %v864
      %v866 = vsel %vm777, %v856, %v865
      %v868 = vshrl.u32 %v754, 16
      %v870 = vrot.slane %v868, 3
      %v871 = vshll.u32 %v754, 16
      %v873 = vrot.slane %v871, 4
      %v874 = vor.u32 %v870, %v873
      %v875 = vsel %vm777, %v865, %v874
      %v877 = vshrl.u32 %v755, 16
      %v879 = vrot.slane %v877, 3
      %v880 = vshll.u32 %v755, 16
      %v882 = vrot.slane %v880, 4
      %v883 = vor.u32 %v879, %v882
      %v884 = vsel %vm777, %v874, %v883
      %v886 = vshrl.u32 %v756, 16
      %v888 = vrot.slane %v886, 3
      %v889 = vshll.u32 %v756, 16
      %v891 = vrot.slane %v889, 4
      %v892 = vor.u32 %v888, %v891
      %v893 = vsel %vm777, %v883, %v892
      %v895 = vshrl.u32 %v757, 16
      %v897 = vrot.slane %v895, 3
      %v898 = vshll.u32 %v757, 16
      %v900 = vrot.slane %v898, 4
      %v901 = vor.u32 %v897, %v900
      %v902 = vsel %vm777, %v892, %v901
      %v904 = vshrl.u32 %v758, 16
      %v906 = vrot.slane %v904, 3
      %v907 = vshll.u32 %v758, 16
      %v909 = vrot.slane %v907, 4
      %v910 = vor.u32 %v906, %v909
      %v911 = vsel %vm777, %v901, %v910
      %v913 = vshrl.u32 %v759, 16
      %v915 = vrot.slane %v913, 3
      %v916 = vshll.u32 %v759, 16
      %v918 = vrot.slane %v916, 4
      %v919 = vor.u32 %v915, %v918
      %v920 = vsel %vm777, %v910, %v919
      %v922 = vshrl.u32 %v760, 16
      %v924 = vrot.slane %v922, 3
      %v925 = vshll.u32 %v760, 16
      %v927 = vrot.slane %v925, 4
      %v928 = vor.u32 %v924, %v927
      %v929 = vsel %vm777, %v919, %v928
      %v931 = vshrl.u32 %v761, 16
      %v933 = vrot.slane %v931, 3
      %v934 = vshll.u32 %v761, 16
      %v936 = vrot.slane %v934, 4
      %v937 = vor.u32 %v933, %v936
      %v938 = vsel %vm777, %v928, %v937
      %v940 = vshrl.u32 %v762, 16
      %v942 = vrot.slane %v940, 3
      %v943 = vshll.u32 %v762, 16
      %v945 = vrot.slane %v943, 4
      %v946 = vor.u32 %v942, %v945
      %v947 = vsel %vm777, %v937, %v946
      %v949 = vshrl.u32 %v763, 16
      %v951 = vrot.slane %v949, 3
      %v952 = vshll.u32 %v763, 16
      %v954 = vrot.slane %v952, 4
      %v955 = vor.u32 %v951, %v954
      %v956 = vsel %vm777, %v946, %v955
      %v958 = vshrl.u32 %v764, 16
      %v960 = vrot.slane %v958, 3
      %v961 = vshll.u32 %v764, 16
      %v963 = vrot.slane %v961, 4
      %v964 = vor.u32 %v960, %v963
      %v965 = vsel %vm777, %v955, %v964
      %v967 = vshrl.u32 %v765, 16
      %v969 = vrot.slane %v967, 3
      %v970 = vshll.u32 %v765, 16
      %v972 = vrot.slane %v970, 4
      %v973 = vor.u32 %v969, %v972
      %v974 = vsel %vm777, %v964, %v973
      %v976 = vshrl.u32 %v766, 16
      %v978 = vrot.slane %v976, 3
      %v979 = vshll.u32 %v766, 16
      %v981 = vrot.slane %v979, 4
      %v982 = vor.u32 %v978, %v981
      %v983 = vsel %vm777, %v973, %v982
      %v985 = vshrl.u32 %v767, 16
      %v987 = vrot.slane %v985, 3
      %v988 = vshll.u32 %v767, 16
      %v990 = vrot.slane %v988, 4
      %v991 = vor.u32 %v987, %v990
      %v992 = vsel %vm777, %v982, %v991
      %v994 = vshrl.u32 %v768, 16
      %v996 = vrot.slane %v994, 3
      %v997 = vshll.u32 %v768, 16
      %v999 = vrot.slane %v997, 4
      %v1000 = vor.u32 %v996, %v999
      %v1001 = vsel %vm777, %v991, %v1000
      %v1003 = vshrl.u32 %v769, 16
      %v1005 = vrot.slane %v1003, 3
      %v1006 = vshll.u32 %v769, 16
      %v1008 = vrot.slane %v1006, 4
      %v1009 = vor.u32 %v1005, %v1008
      %v1010 = vsel %vm777, %v1000, %v1009
      %v1012 = vshrl.u32 %v770, 16
      %v1014 = vrot.slane %v1012, 3
      %v1015 = vshll.u32 %v770, 16
      %v1017 = vrot.slane %v1015, 4
      %v1018 = vor.u32 %v1014, %v1017
      %v1019 = vsel %vm777, %v1009, %v1018
      %v1021 = vshrl.u32 %v771, 16
      %v1023 = vrot.slane %v1021, 3
      %v1024 = vshll.u32 %v771, 16
      %v1026 = vrot.slane %v1024, 4
      %v1027 = vor.u32 %v1023, %v1026
      %v1028 = vsel %vm777, %v1018, %v1027
      %v1030 = vshrl.u32 %v772, 16
      %v1032 = vrot.slane %v1030, 3
      %v1033 = vshll.u32 %v772, 16
      %v1035 = vrot.slane %v1033, 4
      %v1036 = vor.u32 %v1032, %v1035
      %v1037 = vsel %vm777, %v1027, %v1036
      %v1039 = vshrl.u32 %v773, 16
      %v1041 = vrot.slane %v1039, 3
      %v1042 = vshll.u32 %v773, 16
      %v1044 = vrot.slane %v1042, 4
      %v1045 = vor.u32 %v1041, %v1044
      %v1046 = vsel %vm777, %v1036, %v1045
      %v1048 = vshrl.u32 %v774, 16
      %v1050 = vrot.slane %v1048, 3
      %v1051 = vshll.u32 %v774, 16
      %v1053 = vrot.slane %v1051, 4
      %v1054 = vor.u32 %v1050, %v1053
      %v1055 = vsel %vm777, %v1045, %v1054
      %v1057 = vshrl.u32 %v775, 16
      %v1059 = vrot.slane %v1057, 3
      %v1060 = vshll.u32 %v775, 16
      %v1062 = vrot.slane %v1060, 4
      %v1063 = vor.u32 %v1059, %v1062
      %v1064 = vsel %vm777, %v1054, %v1063
      %v1066 = vshrl.u32 %v776, 16
      %v1068 = vrot.slane %v1066, 3
      %v1069 = vshll.u32 %v776, 16
      %v1071 = vrot.slane %v1069, 4
      %v1072 = vor.u32 %v1068, %v1071
      %v1073 = vsel %vm777, %v1063, %v1072
      %v1122 = vunpack.c.l.b16 %v300
      %v1123 = vunpack.c.l.b16 %v301
      %v1124 = vunpack.c.l.b16 %v302
      %v1125 = vunpack.c.l.b16 %v303
      %v1126 = vunpack.c.l.b16 %v304
      %v1127 = vunpack.c.l.b16 %v305
      %v1128 = vunpack.c.l.b16 %v306
      %v1129 = vunpack.c.l.b16 %v307
      %v1130 = vunpack.c.l.b16 %v308
      %v1131 = vunpack.c.l.b16 %v309
      %v1132 = vunpack.c.l.b16 %v310
      %v1133 = vunpack.c.l.b16 %v311
      %v1134 = vunpack.c.l.b16 %v312
      %v1135 = vunpack.c.l.b16 %v313
      %v1136 = vunpack.c.l.b16 %v314
      %v1137 = vunpack.c.l.b16 %v315
      %v1138 = vpack.c.b16 %v1123, %v1122
      %v1139 = vpack.c.b16 %v1125, %v1124
      %v1140 = vpack.c.b16 %v1127, %v1126
      %v1141 = vpack.c.b16 %v1129, %v1128
      %v1142 = vpack.c.b16 %v1131, %v1130
      %v1143 = vpack.c.b16 %v1133, %v1132
      %v1144 = vpack.c.b16 %v1135, %v1134
      %v1145 = vpack.c.b16 %v1137, %v1136
      %1154 = vmatpush.bf16.msra.mxu0 %v1145
      %1155 = vmatpush.bf16.msra.mxu0 %v1144
      %1156 = vmatpush.bf16.msra.mxu0 %v1143
      %1157 = vmatpush.bf16.msra.mxu0 %v1142
      %1158 = vmatpush.bf16.msra.mxu0 %v1141
      %1159 = vmatpush.bf16.msra.mxu0 %v1140
      %1160 = vmatpush.bf16.msra.mxu0 %v1139
      %1161 = vmatpush.bf16.msra.mxu0 %v1138
      %1162 = vmatmul.bf16.gmra.mxu0 %v794
      %v1163 = vpop.f32.mrf.mxu0
      %v1164 = vadd.f32 %v583, %v1163
      %v1165 = vpop.f32.mrf.mxu0
      %v1166 = vadd.f32 %v585, %v1165
      %1167 = vmatmul.bf16.gmra.mxu0 %v803
      %v1168 = vpop.f32.mrf.mxu0
      %v1169 = vadd.f32 %v588, %v1168
      %v1170 = vpop.f32.mrf.mxu0
      %v1171 = vadd.f32 %v590, %v1170
      %1172 = vmatmul.bf16.gmra.mxu0 %v812
      %v1173 = vpop.f32.mrf.mxu0
      %v1174 = vadd.f32 %v593, %v1173
      %v1175 = vpop.f32.mrf.mxu0
      %v1176 = vadd.f32 %v595, %v1175
      %1177 = vmatmul.bf16.gmra.mxu0 %v821
      %v1178 = vpop.f32.mrf.mxu0
      %v1179 = vadd.f32 %v598, %v1178
      %v1180 = vpop.f32.mrf.mxu0
      %v1181 = vadd.f32 %v600, %v1180
      %1182 = vmatmul.bf16.gmra.mxu0 %v830
      %v1183 = vpop.f32.mrf.mxu0
      %v1184 = vadd.f32 %v603, %v1183
      %v1185 = vpop.f32.mrf.mxu0
      %v1186 = vadd.f32 %v605, %v1185
      %1187 = vmatmul.bf16.gmra.mxu0 %v839
      %v1188 = vpop.f32.mrf.mxu0
      %v1189 = vadd.f32 %v608, %v1188
      %v1190 = vpop.f32.mrf.mxu0
      %v1191 = vadd.f32 %v610, %v1190
      %1192 = vmatmul.bf16.gmra.mxu0 %v848
      %v1193 = vpop.f32.mrf.mxu0
      %v1194 = vadd.f32 %v613, %v1193
      %v1195 = vpop.f32.mrf.mxu0
      %v1196 = vadd.f32 %v615, %v1195
      %1197 = vmatmul.bf16.gmra.mxu0 %v857
      %v1198 = vpop.f32.mrf.mxu0
      %v1199 = vadd.f32 %v618, %v1198
      %v1200 = vpop.f32.mrf.mxu0
      %v1201 = vadd.f32 %v620, %v1200
      %1202 = vmatmul.bf16.gmra.mxu0 %v866
      %v1203 = vpop.f32.mrf.mxu0
      %v1204 = vadd.f32 %v623, %v1203
      %v1205 = vpop.f32.mrf.mxu0
      %v1206 = vadd.f32 %v625, %v1205
      %1207 = vmatmul.bf16.gmra.mxu0 %v875
      %v1208 = vpop.f32.mrf.mxu0
      %v1209 = vadd.f32 %v628, %v1208
      %v1210 = vpop.f32.mrf.mxu0
      %v1211 = vadd.f32 %v630, %v1210
      %1212 = vmatmul.bf16.gmra.mxu0 %v884
      %v1213 = vpop.f32.mrf.mxu0
      %v1214 = vadd.f32 %v633, %v1213
      %v1215 = vpop.f32.mrf.mxu0
      %v1216 = vadd.f32 %v635, %v1215
      %1217 = vmatmul.bf16.gmra.mxu0 %v893
      %v1218 = vpop.f32.mrf.mxu0
      %v1219 = vadd.f32 %v638, %v1218
      %v1220 = vpop.f32.mrf.mxu0
      %v1221 = vadd.f32 %v640, %v1220
      %1222 = vmatmul.bf16.gmra.mxu0 %v902
      %v1223 = vpop.f32.mrf.mxu0
      %v1224 = vadd.f32 %v643, %v1223
      %v1225 = vpop.f32.mrf.mxu0
      %v1226 = vadd.f32 %v645, %v1225
      %1227 = vmatmul.bf16.gmra.mxu0 %v911
      %v1228 = vpop.f32.mrf.mxu0
      %v1229 = vadd.f32 %v648, %v1228
      %v1230 = vpop.f32.mrf.mxu0
      %v1231 = vadd.f32 %v650, %v1230
      %1232 = vmatmul.bf16.gmra.mxu0 %v920
      %v1233 = vpop.f32.mrf.mxu0
      %v1234 = vadd.f32 %v653, %v1233
      %v1235 = vpop.f32.mrf.mxu0
      %v1236 = vadd.f32 %v655, %v1235
      %1237 = vmatmul.bf16.gmra.mxu0 %v929
      %v1238 = vpop.f32.mrf.mxu0
      %v1239 = vadd.f32 %v658, %v1238
      %v1240 = vpop.f32.mrf.mxu0
      %v1241 = vadd.f32 %v660, %v1240
      %1242 = vmatmul.bf16.gmra.mxu0 %v938
      %v1243 = vpop.f32.mrf.mxu0
      %v1244 = vadd.f32 %v663, %v1243
      %v1245 = vpop.f32.mrf.mxu0
      %v1246 = vadd.f32 %v665, %v1245
      %1247 = vmatmul.bf16.gmra.mxu0 %v947
      %v1248 = vpop.f32.mrf.mxu0
      %v1249 = vadd.f32 %v668, %v1248
      %v1250 = vpop.f32.mrf.mxu0
      %v1251 = vadd.f32 %v670, %v1250
      %1252 = vmatmul.bf16.gmra.mxu0 %v956
      %v1253 = vpop.f32.mrf.mxu0
      %v1254 = vadd.f32 %v673, %v1253
      %v1255 = vpop.f32.mrf.mxu0
      %v1256 = vadd.f32 %v675, %v1255
      %1257 = vmatmul.bf16.gmra.mxu0 %v965
      %v1258 = vpop.f32.mrf.mxu0
      %v1259 = vadd.f32 %v678, %v1258
      %v1260 = vpop.f32.mrf.mxu0
      %v1261 = vadd.f32 %v680, %v1260
      %1262 = vmatmul.bf16.gmra.mxu0 %v974
      %v1263 = vpop.f32.mrf.mxu0
      %v1264 = vadd.f32 %v683, %v1263
      %v1265 = vpop.f32.mrf.mxu0
      %v1266 = vadd.f32 %v685, %v1265
      %1267 = vmatmul.bf16.gmra.mxu0 %v983
      %v1268 = vpop.f32.mrf.mxu0
      %v1269 = vadd.f32 %v688, %v1268
      %v1270 = vpop.f32.mrf.mxu0
      %v1271 = vadd.f32 %v690, %v1270
      %1272 = vmatmul.bf16.gmra.mxu0 %v992
      %v1273 = vpop.f32.mrf.mxu0
      %v1274 = vadd.f32 %v693, %v1273
      %v1275 = vpop.f32.mrf.mxu0
      %v1276 = vadd.f32 %v695, %v1275
      %1277 = vmatmul.bf16.gmra.mxu0 %v1001
      %v1278 = vpop.f32.mrf.mxu0
      %v1279 = vadd.f32 %v698, %v1278
      %v1280 = vpop.f32.mrf.mxu0
      %v1281 = vadd.f32 %v700, %v1280
      %1282 = vmatmul.bf16.gmra.mxu0 %v1010
      %v1283 = vpop.f32.mrf.mxu0
      %v1284 = vadd.f32 %v703, %v1283
      %v1285 = vpop.f32.mrf.mxu0
      %v1286 = vadd.f32 %v705, %v1285
      %1287 = vmatmul.bf16.gmra.mxu0 %v1019
      %v1288 = vpop.f32.mrf.mxu0
      %v1289 = vadd.f32 %v708, %v1288
      %v1290 = vpop.f32.mrf.mxu0
      %v1291 = vadd.f32 %v710, %v1290
      %1292 = vmatmul.bf16.gmra.mxu0 %v1028
      %v1293 = vpop.f32.mrf.mxu0
      %v1294 = vadd.f32 %v713, %v1293
      %v1295 = vpop.f32.mrf.mxu0
      %v1296 = vadd.f32 %v715, %v1295
      %1297 = vmatmul.bf16.gmra.mxu0 %v1037
      %v1298 = vpop.f32.mrf.mxu0
      %v1299 = vadd.f32 %v718, %v1298
      %v1300 = vpop.f32.mrf.mxu0
      %v1301 = vadd.f32 %v720, %v1300
      %1302 = vmatmul.bf16.gmra.mxu0 %v1046
      %v1303 = vpop.f32.mrf.mxu0
      %v1304 = vadd.f32 %v723, %v1303
      %v1305 = vpop.f32.mrf.mxu0
      %v1306 = vadd.f32 %v725, %v1305
      %1307 = vmatmul.bf16.gmra.mxu0 %v1055
      %v1308 = vpop.f32.mrf.mxu0
      %v1309 = vadd.f32 %v728, %v1308
      %v1310 = vpop.f32.mrf.mxu0
      %v1311 = vadd.f32 %v730, %v1310
      %1312 = vmatmul.bf16.gmra.mxu0 %v1064
      %v1313 = vpop.f32.mrf.mxu0
      %v1314 = vadd.f32 %v733, %v1313
      %v1315 = vpop.f32.mrf.mxu0
      %v1316 = vadd.f32 %v735, %v1315
      %1317 = vmatmul.bf16.gmra.mxu0 %v1073
      %v1318 = vpop.f32.mrf.mxu0
      %v1319 = vadd.f32 %v738, %v1318
      %v1320 = vpop.f32.mrf.mxu0
      %v1321 = vadd.f32 %v740, %v1320
      %1322 = vdwg.mxu0
      %s1323 = scalar_lea.vmem %s1, 128
      %v1324 = vld [vmem:[%s1323] sm:$0xf]
      %v1325 = vld [vmem:[%s1323 + $0x4] sm:$0xf]
      %v1326 = vld [vmem:[%s1323 + $0x8] sm:$0xf]
      %v1327 = vld [vmem:[%s1323 + $0xc] sm:$0xf]
      %v1328 = vld [vmem:[%s1323 + $0x10] sm:$0xf]
      %v1329 = vld [vmem:[%s1323 + $0x14] sm:$0xf]
      %v1330 = vld [vmem:[%s1323 + $0x18] sm:$0xf]
      %v1331 = vld [vmem:[%s1323 + $0x1c] sm:$0xf]
      %v1332 = vld [vmem:[%s1323 + $0x20] sm:$0xf]
      %v1333 = vld [vmem:[%s1323 + $0x24] sm:$0xf]
      %v1334 = vld [vmem:[%s1323 + $0x28] sm:$0xf]
      %v1335 = vld [vmem:[%s1323 + $0x2c] sm:$0xf]
      %v1336 = vld [vmem:[%s1323 + $0x30] sm:$0xf]
      %v1337 = vld [vmem:[%s1323 + $0x34] sm:$0xf]
      %v1338 = vld [vmem:[%s1323 + $0x38] sm:$0xf]
      %v1339 = vld [vmem:[%s1323 + $0x3c] sm:$0xf]
      %v1341 = vunpack.c.l.b16 %v291
      %v1342 = vpack.c.b16 %v1341, %v1341
      %vm1343 = vsmask.f32 7424
      %v1345 = vshrl.u32 %v461, 16
      %v1347 = vshll.u32 %v461, 16
      %v1349 = vrot.slane %v1347, 1
      %v1350 = vor.u32 %v1345, %v1349
      %v1352 = vshll.u32 %v462, 16
      %v1354 = vrot.slane %v1352, 1
      %v1355 = vsel %vm1343, %v1350, %v1354
      %v1356 = vshrl.u32 %v462, 16
      %v1358 = vor.u32 %v1356, %v1354
      %v1360 = vshll.u32 %v463, 16
      %v1362 = vrot.slane %v1360, 1
      %v1363 = vsel %vm1343, %v1358, %v1362
      %v1364 = vshrl.u32 %v463, 16
      %v1366 = vor.u32 %v1364, %v1362
      %v1368 = vshll.u32 %v464, 16
      %v1370 = vrot.slane %v1368, 1
      %v1371 = vsel %vm1343, %v1366, %v1370
      %v1372 = vshrl.u32 %v464, 16
      %v1374 = vor.u32 %v1372, %v1370
      %v1376 = vshll.u32 %v465, 16
      %v1378 = vrot.slane %v1376, 1
      %v1379 = vsel %vm1343, %v1374, %v1378
      %v1380 = vshrl.u32 %v465, 16
      %v1382 = vor.u32 %v1380, %v1378
      %v1384 = vshll.u32 %v466, 16
      %v1386 = vrot.slane %v1384, 1
      %v1387 = vsel %vm1343, %v1382, %v1386
      %v1388 = vshrl.u32 %v466, 16
      %v1390 = vor.u32 %v1388, %v1386
      %v1392 = vshll.u32 %v467, 16
      %v1394 = vrot.slane %v1392, 1
      %v1395 = vsel %vm1343, %v1390, %v1394
      %v1396 = vshrl.u32 %v467, 16
      %v1398 = vor.u32 %v1396, %v1394
      %v1400 = vshll.u32 %v468, 16
      %v1402 = vrot.slane %v1400, 1
      %v1403 = vsel %vm1343, %v1398, %v1402
      %v1404 = vshrl.u32 %v468, 16
      %v1406 = vor.u32 %v1404, %v1402
      %v1408 = vshll.u32 %v469, 16
      %v1410 = vrot.slane %v1408, 1
      %v1411 = vsel %vm1343, %v1406, %v1410
      %v1412 = vshrl.u32 %v469, 16
      %v1414 = vor.u32 %v1412, %v1410
      %v1416 = vshll.u32 %v470, 16
      %v1418 = vrot.slane %v1416, 1
      %v1419 = vsel %vm1343, %v1414, %v1418
      %v1420 = vshrl.u32 %v470, 16
      %v1422 = vor.u32 %v1420, %v1418
      %v1424 = vshll.u32 %v471, 16
      %v1426 = vrot.slane %v1424, 1
      %v1427 = vsel %vm1343, %v1422, %v1426
      %v1428 = vshrl.u32 %v471, 16
      %v1430 = vor.u32 %v1428, %v1426
      %v1432 = vshll.u32 %v472, 16
      %v1434 = vrot.slane %v1432, 1
      %v1435 = vsel %vm1343, %v1430, %v1434
      %v1436 = vshrl.u32 %v472, 16
      %v1438 = vor.u32 %v1436, %v1434
      %v1440 = vshll.u32 %v473, 16
      %v1442 = vrot.slane %v1440, 1
      %v1443 = vsel %vm1343, %v1438, %v1442
      %v1444 = vshrl.u32 %v473, 16
      %v1446 = vor.u32 %v1444, %v1442
      %v1448 = vshll.u32 %v474, 16
      %v1450 = vrot.slane %v1448, 1
      %v1451 = vsel %vm1343, %v1446, %v1450
      %v1452 = vshrl.u32 %v474, 16
      %v1454 = vor.u32 %v1452, %v1450
      %v1456 = vshll.u32 %v475, 16
      %v1458 = vrot.slane %v1456, 1
      %v1459 = vsel %vm1343, %v1454, %v1458
      %v1460 = vshrl.u32 %v475, 16
      %v1462 = vor.u32 %v1460, %v1458
      %v1464 = vshll.u32 %v476, 16
      %v1466 = vrot.slane %v1464, 1
      %v1467 = vsel %vm1343, %v1462, %v1466
      %v1468 = vshrl.u32 %v476, 16
      %v1470 = vor.u32 %v1468, %v1466
      %v1472 = vshll.u32 %v477, 16
      %v1474 = vrot.slane %v1472, 1
      %v1475 = vsel %vm1343, %v1470, %v1474
      %v1476 = vshrl.u32 %v477, 16
      %v1478 = vor.u32 %v1476, %v1474
      %v1480 = vshll.u32 %v478, 16
      %v1482 = vrot.slane %v1480, 1
      %v1483 = vsel %vm1343, %v1478, %v1482
      %v1484 = vshrl.u32 %v478, 16
      %v1486 = vor.u32 %v1484, %v1482
      %v1488 = vshll.u32 %v479, 16
      %v1490 = vrot.slane %v1488, 1
      %v1491 = vsel %vm1343, %v1486, %v1490
      %v1492 = vshrl.u32 %v479, 16
      %v1494 = vor.u32 %v1492, %v1490
      %v1496 = vshll.u32 %v480, 16
      %v1498 = vrot.slane %v1496, 1
      %v1499 = vsel %vm1343, %v1494, %v1498
      %v1500 = vshrl.u32 %v480, 16
      %v1502 = vor.u32 %v1500, %v1498
      %v1504 = vshll.u32 %v481, 16
      %v1506 = vrot.slane %v1504, 1
      %v1507 = vsel %vm1343, %v1502, %v1506
      %v1508 = vshrl.u32 %v481, 16
      %v1510 = vor.u32 %v1508, %v1506
      %v1512 = vshll.u32 %v482, 16
      %v1514 = vrot.slane %v1512, 1
      %v1515 = vsel %vm1343, %v1510, %v1514
      %v1516 = vshrl.u32 %v482, 16
      %v1518 = vor.u32 %v1516, %v1514
      %v1520 = vshll.u32 %v483, 16
      %v1522 = vrot.slane %v1520, 1
      %v1523 = vsel %vm1343, %v1518, %v1522
      %v1524 = vshrl.u32 %v483, 16
      %v1526 = vor.u32 %v1524, %v1522
      %v1528 = vshll.u32 %v484, 16
      %v1530 = vrot.slane %v1528, 1
      %v1531 = vsel %vm1343, %v1526, %v1530
      %v1532 = vshrl.u32 %v484, 16
      %v1534 = vor.u32 %v1532, %v1530
      %v1536 = vshll.u32 %v485, 16
      %v1538 = vrot.slane %v1536, 1
      %v1539 = vsel %vm1343, %v1534, %v1538
      %v1540 = vshrl.u32 %v485, 16
      %v1542 = vor.u32 %v1540, %v1538
      %v1544 = vshll.u32 %v486, 16
      %v1546 = vrot.slane %v1544, 1
      %v1547 = vsel %vm1343, %v1542, %v1546
      %v1548 = vshrl.u32 %v486, 16
      %v1550 = vor.u32 %v1548, %v1546
      %v1552 = vshll.u32 %v487, 16
      %v1554 = vrot.slane %v1552, 1
      %v1555 = vsel %vm1343, %v1550, %v1554
      %v1556 = vshrl.u32 %v487, 16
      %v1558 = vor.u32 %v1556, %v1554
      %v1560 = vshll.u32 %v488, 16
      %v1562 = vrot.slane %v1560, 1
      %v1563 = vsel %vm1343, %v1558, %v1562
      %v1564 = vshrl.u32 %v488, 16
      %v1566 = vor.u32 %v1564, %v1562
      %v1568 = vshll.u32 %v489, 16
      %v1570 = vrot.slane %v1568, 1
      %v1571 = vsel %vm1343, %v1566, %v1570
      %v1572 = vshrl.u32 %v489, 16
      %v1574 = vor.u32 %v1572, %v1570
      %v1576 = vshll.u32 %v490, 16
      %v1578 = vrot.slane %v1576, 1
      %v1579 = vsel %vm1343, %v1574, %v1578
      %v1580 = vshrl.u32 %v490, 16
      %v1582 = vor.u32 %v1580, %v1578
      %v1584 = vshll.u32 %v491, 16
      %v1586 = vrot.slane %v1584, 1
      %v1587 = vsel %vm1343, %v1582, %v1586
      %v1588 = vshrl.u32 %v491, 16
      %v1590 = vor.u32 %v1588, %v1586
      %v1592 = vshll.u32 %v492, 16
      %v1594 = vrot.slane %v1592, 1
      %v1595 = vsel %vm1343, %v1590, %v1594
      %v1596 = vshrl.u32 %v492, 16
      %v1598 = vor.u32 %v1596, %v1594
      %v1600 = vshll.u32 %v1342, 16
      %v1602 = vrot.slane %v1600, 1
      %v1603 = vsel %vm1343, %v1598, %v1602
      %v1652 = vunpack.c.l.b16 %v1324
      %v1653 = vunpack.c.l.b16 %v1325
      %v1654 = vunpack.c.l.b16 %v1326
      %v1655 = vunpack.c.l.b16 %v1327
      %v1656 = vunpack.c.l.b16 %v1328
      %v1657 = vunpack.c.l.b16 %v1329
      %v1658 = vunpack.c.l.b16 %v1330
      %v1659 = vunpack.c.l.b16 %v1331
      %v1660 = vunpack.c.l.b16 %v1332
      %v1661 = vunpack.c.l.b16 %v1333
      %v1662 = vunpack.c.l.b16 %v1334
      %v1663 = vunpack.c.l.b16 %v1335
      %v1664 = vunpack.c.l.b16 %v1336
      %v1665 = vunpack.c.l.b16 %v1337
      %v1666 = vunpack.c.l.b16 %v1338
      %v1667 = vunpack.c.l.b16 %v1339
      %v1668 = vpack.c.b16 %v1653, %v1652
      %v1669 = vpack.c.b16 %v1655, %v1654
      %v1670 = vpack.c.b16 %v1657, %v1656
      %v1671 = vpack.c.b16 %v1659, %v1658
      %v1672 = vpack.c.b16 %v1661, %v1660
      %v1673 = vpack.c.b16 %v1663, %v1662
      %v1674 = vpack.c.b16 %v1665, %v1664
      %v1675 = vpack.c.b16 %v1667, %v1666
      %1684 = vmatpush.bf16.msra.mxu0 %v1675
      %1685 = vmatpush.bf16.msra.mxu0 %v1674
      %1686 = vmatpush.bf16.msra.mxu0 %v1673
      %1687 = vmatpush.bf16.msra.mxu0 %v1672
      %1688 = vmatpush.bf16.msra.mxu0 %v1671
      %1689 = vmatpush.bf16.msra.mxu0 %v1670
      %1690 = vmatpush.bf16.msra.mxu0 %v1669
      %1691 = vmatpush.bf16.msra.mxu0 %v1668
      %1692 = vmatmul.bf16.gmra.mxu0 %v1355
      %v1693 = vpop.f32.mrf.mxu0
      %v1694 = vadd.f32 0.0, %v1693
      %v1695 = vpop.f32.mrf.mxu0
      %v1696 = vadd.f32 0.0, %v1695
      %1697 = vmatmul.bf16.gmra.mxu0 %v1363
      %v1698 = vpop.f32.mrf.mxu0
      %v1699 = vadd.f32 0.0, %v1698
      %v1700 = vpop.f32.mrf.mxu0
      %v1701 = vadd.f32 0.0, %v1700
      %1702 = vmatmul.bf16.gmra.mxu0 %v1371
      %v1703 = vpop.f32.mrf.mxu0
      %v1704 = vadd.f32 0.0, %v1703
      %v1705 = vpop.f32.mrf.mxu0
      %v1706 = vadd.f32 0.0, %v1705
      %1707 = vmatmul.bf16.gmra.mxu0 %v1379
      %v1708 = vpop.f32.mrf.mxu0
      %v1709 = vadd.f32 0.0, %v1708
      %v1710 = vpop.f32.mrf.mxu0
      %v1711 = vadd.f32 0.0, %v1710
      %1712 = vmatmul.bf16.gmra.mxu0 %v1387
      %v1713 = vpop.f32.mrf.mxu0
      %v1714 = vadd.f32 0.0, %v1713
      %v1715 = vpop.f32.mrf.mxu0
      %v1716 = vadd.f32 0.0, %v1715
      %1717 = vmatmul.bf16.gmra.mxu0 %v1395
      %v1718 = vpop.f32.mrf.mxu0
      %v1719 = vadd.f32 0.0, %v1718
      %v1720 = vpop.f32.mrf.mxu0
      %v1721 = vadd.f32 0.0, %v1720
      %1722 = vmatmul.bf16.gmra.mxu0 %v1403
      %v1723 = vpop.f32.mrf.mxu0
      %v1724 = vadd.f32 0.0, %v1723
      %v1725 = vpop.f32.mrf.mxu0
      %v1726 = vadd.f32 0.0, %v1725
      %1727 = vmatmul.bf16.gmra.mxu0 %v1411
      %v1728 = vpop.f32.mrf.mxu0
      %v1729 = vadd.f32 0.0, %v1728
      %v1730 = vpop.f32.mrf.mxu0
      %v1731 = vadd.f32 0.0, %v1730
      %1732 = vmatmul.bf16.gmra.mxu0 %v1419
      %v1733 = vpop.f32.mrf.mxu0
      %v1734 = vadd.f32 0.0, %v1733
      %v1735 = vpop.f32.mrf.mxu0
      %v1736 = vadd.f32 0.0, %v1735
      %1737 = vmatmul.bf16.gmra.mxu0 %v1427
      %v1738 = vpop.f32.mrf.mxu0
      %v1739 = vadd.f32 0.0, %v1738
      %v1740 = vpop.f32.mrf.mxu0
      %v1741 = vadd.f32 0.0, %v1740
      %1742 = vmatmul.bf16.gmra.mxu0 %v1435
      %v1743 = vpop.f32.mrf.mxu0
      %v1744 = vadd.f32 0.0, %v1743
      %v1745 = vpop.f32.mrf.mxu0
      %v1746 = vadd.f32 0.0, %v1745
      %1747 = vmatmul.bf16.gmra.mxu0 %v1443
      %v1748 = vpop.f32.mrf.mxu0
      %v1749 = vadd.f32 0.0, %v1748
      %v1750 = vpop.f32.mrf.mxu0
      %v1751 = vadd.f32 0.0, %v1750
      %1752 = vmatmul.bf16.gmra.mxu0 %v1451
      %v1753 = vpop.f32.mrf.mxu0
      %v1754 = vadd.f32 0.0, %v1753
      %v1755 = vpop.f32.mrf.mxu0
      %v1756 = vadd.f32 0.0, %v1755
      %1757 = vmatmul.bf16.gmra.mxu0 %v1459
      %v1758 = vpop.f32.mrf.mxu0
      %v1759 = vadd.f32 0.0, %v1758
      %v1760 = vpop.f32.mrf.mxu0
      %v1761 = vadd.f32 0.0, %v1760
      %1762 = vmatmul.bf16.gmra.mxu0 %v1467
      %v1763 = vpop.f32.mrf.mxu0
      %v1764 = vadd.f32 0.0, %v1763
      %v1765 = vpop.f32.mrf.mxu0
      %v1766 = vadd.f32 0.0, %v1765
      %1767 = vmatmul.bf16.gmra.mxu0 %v1475
      %v1768 = vpop.f32.mrf.mxu0
      %v1769 = vadd.f32 0.0, %v1768
      %v1770 = vpop.f32.mrf.mxu0
      %v1771 = vadd.f32 0.0, %v1770
      %1772 = vmatmul.bf16.gmra.mxu0 %v1483
      %v1773 = vpop.f32.mrf.mxu0
      %v1774 = vadd.f32 0.0, %v1773
      %v1775 = vpop.f32.mrf.mxu0
      %v1776 = vadd.f32 0.0, %v1775
      %1777 = vmatmul.bf16.gmra.mxu0 %v1491
      %v1778 = vpop.f32.mrf.mxu0
      %v1779 = vadd.f32 0.0, %v1778
      %v1780 = vpop.f32.mrf.mxu0
      %v1781 = vadd.f32 0.0, %v1780
      %1782 = vmatmul.bf16.gmra.mxu0 %v1499
      %v1783 = vpop.f32.mrf.mxu0
      %v1784 = vadd.f32 0.0, %v1783
      %v1785 = vpop.f32.mrf.mxu0
      %v1786 = vadd.f32 0.0, %v1785
      %1787 = vmatmul.bf16.gmra.mxu0 %v1507
      %v1788 = vpop.f32.mrf.mxu0
      %v1789 = vadd.f32 0.0, %v1788
      %v1790 = vpop.f32.mrf.mxu0
      %v1791 = vadd.f32 0.0, %v1790
      %1792 = vmatmul.bf16.gmra.mxu0 %v1515
      %v1793 = vpop.f32.mrf.mxu0
      %v1794 = vadd.f32 0.0, %v1793
      %v1795 = vpop.f32.mrf.mxu0
      %v1796 = vadd.f32 0.0, %v1795
      %1797 = vmatmul.bf16.gmra.mxu0 %v1523
      %v1798 = vpop.f32.mrf.mxu0
      %v1799 = vadd.f32 0.0, %v1798
      %v1800 = vpop.f32.mrf.mxu0
      %v1801 = vadd.f32 0.0, %v1800
      %1802 = vmatmul.bf16.gmra.mxu0 %v1531
      %v1803 = vpop.f32.mrf.mxu0
      %v1804 = vadd.f32 0.0, %v1803
      %v1805 = vpop.f32.mrf.mxu0
      %v1806 = vadd.f32 0.0, %v1805
      %1807 = vmatmul.bf16.gmra.mxu0 %v1539
      %v1808 = vpop.f32.mrf.mxu0
      %v1809 = vadd.f32 0.0, %v1808
      %v1810 = vpop.f32.mrf.mxu0
      %v1811 = vadd.f32 0.0, %v1810
      %1812 = vmatmul.bf16.gmra.mxu0 %v1547
      %v1813 = vpop.f32.mrf.mxu0
      %v1814 = vadd.f32 0.0, %v1813
      %v1815 = vpop.f32.mrf.mxu0
      %v1816 = vadd.f32 0.0, %v1815
      %1817 = vmatmul.bf16.gmra.mxu0 %v1555
      %v1818 = vpop.f32.mrf.mxu0
      %v1819 = vadd.f32 0.0, %v1818
      %v1820 = vpop.f32.mrf.mxu0
      %v1821 = vadd.f32 0.0, %v1820
      %1822 = vmatmul.bf16.gmra.mxu0 %v1563
      %v1823 = vpop.f32.mrf.mxu0
      %v1824 = vadd.f32 0.0, %v1823
      %v1825 = vpop.f32.mrf.mxu0
      %v1826 = vadd.f32 0.0, %v1825
      %1827 = vmatmul.bf16.gmra.mxu0 %v1571
      %v1828 = vpop.f32.mrf.mxu0
      %v1829 = vadd.f32 0.0, %v1828
      %v1830 = vpop.f32.mrf.mxu0
      %v1831 = vadd.f32 0.0, %v1830
      %1832 = vmatmul.bf16.gmra.mxu0 %v1579
      %v1833 = vpop.f32.mrf.mxu0
      %v1834 = vadd.f32 0.0, %v1833
      %v1835 = vpop.f32.mrf.mxu0
      %v1836 = vadd.f32 0.0, %v1835
      %1837 = vmatmul.bf16.gmra.mxu0 %v1587
      %v1838 = vpop.f32.mrf.mxu0
      %v1839 = vadd.f32 0.0, %v1838
      %v1840 = vpop.f32.mrf.mxu0
      %v1841 = vadd.f32 0.0, %v1840
      %1842 = vmatmul.bf16.gmra.mxu0 %v1595
      %v1843 = vpop.f32.mrf.mxu0
      %v1844 = vadd.f32 0.0, %v1843
      %v1845 = vpop.f32.mrf.mxu0
      %v1846 = vadd.f32 0.0, %v1845
      %1847 = vmatmul.bf16.gmra.mxu0 %v1603
      %v1848 = vpop.f32.mrf.mxu0
      %v1849 = vadd.f32 0.0, %v1848
      %v1850 = vpop.f32.mrf.mxu0
      %v1851 = vadd.f32 0.0, %v1850
      %1852 = vdwg.mxu0
      %v1853 = vadd.f32 %v1164, %v1694
      %v1854 = vadd.f32 %v1166, %v1696
      %v1855 = vadd.f32 %v1169, %v1699
      %v1856 = vadd.f32 %v1171, %v1701
      %v1857 = vadd.f32 %v1174, %v1704
      %v1858 = vadd.f32 %v1176, %v1706
      %v1859 = vadd.f32 %v1179, %v1709
      %v1860 = vadd.f32 %v1181, %v1711
      %v1861 = vadd.f32 %v1184, %v1714
      %v1862 = vadd.f32 %v1186, %v1716
      %v1863 = vadd.f32 %v1189, %v1719
      %v1864 = vadd.f32 %v1191, %v1721
      %v1865 = vadd.f32 %v1194, %v1724
      %v1866 = vadd.f32 %v1196, %v1726
      %v1867 = vadd.f32 %v1199, %v1729
      %v1868 = vadd.f32 %v1201, %v1731
      %v1869 = vadd.f32 %v1204, %v1734
      %v1870 = vadd.f32 %v1206, %v1736
      %v1871 = vadd.f32 %v1209, %v1739
      %v1872 = vadd.f32 %v1211, %v1741
      %v1873 = vadd.f32 %v1214, %v1744
      %v1874 = vadd.f32 %v1216, %v1746
      %v1875 = vadd.f32 %v1219, %v1749
      %v1876 = vadd.f32 %v1221, %v1751
      %v1877 = vadd.f32 %v1224, %v1754
      %v1878 = vadd.f32 %v1226, %v1756
      %v1879 = vadd.f32 %v1229, %v1759
      %v1880 = vadd.f32 %v1231, %v1761
      %v1881 = vadd.f32 %v1234, %v1764
      %v1882 = vadd.f32 %v1236, %v1766
      %v1883 = vadd.f32 %v1239, %v1769
      %v1884 = vadd.f32 %v1241, %v1771
      %v1885 = vadd.f32 %v1244, %v1774
      %v1886 = vadd.f32 %v1246, %v1776
      %v1887 = vadd.f32 %v1249, %v1779
      %v1888 = vadd.f32 %v1251, %v1781
      %v1889 = vadd.f32 %v1254, %v1784
      %v1890 = vadd.f32 %v1256, %v1786
      %v1891 = vadd.f32 %v1259, %v1789
      %v1892 = vadd.f32 %v1261, %v1791
      %v1893 = vadd.f32 %v1264, %v1794
      %v1894 = vadd.f32 %v1266, %v1796
      %v1895 = vadd.f32 %v1269, %v1799
      %v1896 = vadd.f32 %v1271, %v1801
      %v1897 = vadd.f32 %v1274, %v1804
      %v1898 = vadd.f32 %v1276, %v1806
      %v1899 = vadd.f32 %v1279, %v1809
      %v1900 = vadd.f32 %v1281, %v1811
      %v1901 = vadd.f32 %v1284, %v1814
      %v1902 = vadd.f32 %v1286, %v1816
      %v1903 = vadd.f32 %v1289, %v1819
      %v1904 = vadd.f32 %v1291, %v1821
      %v1905 = vadd.f32 %v1294, %v1824
      %v1906 = vadd.f32 %v1296, %v1826
      %v1907 = vadd.f32 %v1299, %v1829
      %v1908 = vadd.f32 %v1301, %v1831
      %v1909 = vadd.f32 %v1304, %v1834
      %v1910 = vadd.f32 %v1306, %v1836
      %v1911 = vadd.f32 %v1309, %v1839
      %v1912 = vadd.f32 %v1311, %v1841
      %v1913 = vadd.f32 %v1314, %v1844
      %v1914 = vadd.f32 %v1316, %v1846
      %v1915 = vadd.f32 %v1319, %v1849
      %v1916 = vadd.f32 %v1321, %v1851
      %s1917 = scalar_lea.vmem %s1, 192
      %v1918 = vld [vmem:[%s1917] sm:$0xf]
      %v1919 = vld [vmem:[%s1917 + $0x4] sm:$0xf]
      %v1920 = vld [vmem:[%s1917 + $0x8] sm:$0xf]
      %v1921 = vld [vmem:[%s1917 + $0xc] sm:$0xf]
      %v1922 = vld [vmem:[%s1917 + $0x10] sm:$0xf]
      %v1923 = vld [vmem:[%s1917 + $0x14] sm:$0xf]
      %v1924 = vld [vmem:[%s1917 + $0x18] sm:$0xf]
      %v1925 = vld [vmem:[%s1917 + $0x1c] sm:$0xf]
      %v1926 = vld [vmem:[%s1917 + $0x20] sm:$0xf]
      %v1927 = vld [vmem:[%s1917 + $0x24] sm:$0xf]
      %v1928 = vld [vmem:[%s1917 + $0x28] sm:$0xf]
      %v1929 = vld [vmem:[%s1917 + $0x2c] sm:$0xf]
      %v1930 = vld [vmem:[%s1917 + $0x30] sm:$0xf]
      %v1931 = vld [vmem:[%s1917 + $0x34] sm:$0xf]
      %v1932 = vld [vmem:[%s1917 + $0x38] sm:$0xf]
      %v1933 = vld [vmem:[%s1917 + $0x3c] sm:$0xf]
      %v1937 = vunpack.c.l.b16 %v292
      %v1938 = vunpack.c.l.b16 %v293
      %v1939 = vunpack.c.l.b16 %v294
      %v1940 = vpack.c.b16 %v1341, %v460
      %v1941 = vpack.c.b16 %v1938, %v1937
      %v1942 = vpack.c.b16 %v1939, %v1939
      %v1944 = vshrl.u32 %v1940, 16
      %v1946 = vrot.slane %v1944, 3
      %v1947 = vshll.u32 %v1940, 16
      %v1949 = vrot.slane %v1947, 4
      %v1950 = vor.u32 %v1946, %v1949
      %v1951 = vsel %vm777, %v1063, %v1950
      %v1953 = vshrl.u32 %v1941, 16
      %v1955 = vrot.slane %v1953, 3
      %v1956 = vshll.u32 %v1941, 16
      %v1958 = vrot.slane %v1956, 4
      %v1959 = vor.u32 %v1955, %v1958
      %v1960 = vsel %vm777, %v1950, %v1959
      %v1962 = vshrl.u32 %v1942, 16
      %v1964 = vrot.slane %v1962, 3
      %v1965 = vshll.u32 %v1942, 16
      %v1967 = vrot.slane %v1965, 4
      %v1968 = vor.u32 %v1964, %v1967
      %v1969 = vsel %vm777, %v1959, %v1968
      %v1989 = vunpack.c.l.b16 %v1918
      %v1990 = vunpack.c.l.b16 %v1919
      %v1991 = vunpack.c.l.b16 %v1920
      %v1992 = vunpack.c.l.b16 %v1921
      %v1993 = vunpack.c.l.b16 %v1922
      %v1994 = vunpack.c.l.b16 %v1923
      %v1995 = vunpack.c.l.b16 %v1924
      %v1996 = vunpack.c.l.b16 %v1925
      %v1997 = vunpack.c.l.b16 %v1926
      %v1998 = vunpack.c.l.b16 %v1927
      %v1999 = vunpack.c.l.b16 %v1928
      %v2000 = vunpack.c.l.b16 %v1929
      %v2001 = vunpack.c.l.b16 %v1930
      %v2002 = vunpack.c.l.b16 %v1931
      %v2003 = vunpack.c.l.b16 %v1932
      %v2004 = vunpack.c.l.b16 %v1933
      %v2005 = vpack.c.b16 %v1990, %v1989
      %v2006 = vpack.c.b16 %v1992, %v1991
      %v2007 = vpack.c.b16 %v1994, %v1993
      %v2008 = vpack.c.b16 %v1996, %v1995
      %v2009 = vpack.c.b16 %v1998, %v1997
      %v2010 = vpack.c.b16 %v2000, %v1999
      %v2011 = vpack.c.b16 %v2002, %v2001
      %v2012 = vpack.c.b16 %v2004, %v2003
      %2021 = vmatpush.bf16.msra.mxu0 %v2012
      %2022 = vmatpush.bf16.msra.mxu0 %v2011
      %2023 = vmatpush.bf16.msra.mxu0 %v2010
      %2024 = vmatpush.bf16.msra.mxu0 %v2009
      %2025 = vmatpush.bf16.msra.mxu0 %v2008
      %2026 = vmatpush.bf16.msra.mxu0 %v2007
      %2027 = vmatpush.bf16.msra.mxu0 %v2006
      %2028 = vmatpush.bf16.msra.mxu0 %v2005
      %2029 = vmatmul.bf16.gmra.mxu0 %v812
      %v2030 = vpop.f32.mrf.mxu0
      %v2031 = vadd.f32 0.0, %v2030
      %v2032 = vpop.f32.mrf.mxu0
      %v2033 = vadd.f32 0.0, %v2032
      %2034 = vmatmul.bf16.gmra.mxu0 %v821
      %v2035 = vpop.f32.mrf.mxu0
      %v2036 = vadd.f32 0.0, %v2035
      %v2037 = vpop.f32.mrf.mxu0
      %v2038 = vadd.f32 0.0, %v2037
      %2039 = vmatmul.bf16.gmra.mxu0 %v830
      %v2040 = vpop.f32.mrf.mxu0
      %v2041 = vadd.f32 0.0, %v2040
      %v2042 = vpop.f32.mrf.mxu0
      %v2043 = vadd.f32 0.0, %v2042
      %2044 = vmatmul.bf16.gmra.mxu0 %v839
      %v2045 = vpop.f32.mrf.mxu0
      %v2046 = vadd.f32 0.0, %v2045
      %v2047 = vpop.f32.mrf.mxu0
      %v2048 = vadd.f32 0.0, %v2047
      %2049 = vmatmul.bf16.gmra.mxu0 %v848
      %v2050 = vpop.f32.mrf.mxu0
      %v2051 = vadd.f32 0.0, %v2050
      %v2052 = vpop.f32.mrf.mxu0
      %v2053 = vadd.f32 0.0, %v2052
      %2054 = vmatmul.bf16.gmra.mxu0 %v857
      %v2055 = vpop.f32.mrf.mxu0
      %v2056 = vadd.f32 0.0, %v2055
      %v2057 = vpop.f32.mrf.mxu0
      %v2058 = vadd.f32 0.0, %v2057
      %2059 = vmatmul.bf16.gmra.mxu0 %v866
      %v2060 = vpop.f32.mrf.mxu0
      %v2061 = vadd.f32 0.0, %v2060
      %v2062 = vpop.f32.mrf.mxu0
      %v2063 = vadd.f32 0.0, %v2062
      %2064 = vmatmul.bf16.gmra.mxu0 %v875
      %v2065 = vpop.f32.mrf.mxu0
      %v2066 = vadd.f32 0.0, %v2065
      %v2067 = vpop.f32.mrf.mxu0
      %v2068 = vadd.f32 0.0, %v2067
      %2069 = vmatmul.bf16.gmra.mxu0 %v884
      %v2070 = vpop.f32.mrf.mxu0
      %v2071 = vadd.f32 0.0, %v2070
      %v2072 = vpop.f32.mrf.mxu0
      %v2073 = vadd.f32 0.0, %v2072
      %2074 = vmatmul.bf16.gmra.mxu0 %v893
      %v2075 = vpop.f32.mrf.mxu0
      %v2076 = vadd.f32 0.0, %v2075
      %v2077 = vpop.f32.mrf.mxu0
      %v2078 = vadd.f32 0.0, %v2077
      %2079 = vmatmul.bf16.gmra.mxu0 %v902
      %v2080 = vpop.f32.mrf.mxu0
      %v2081 = vadd.f32 0.0, %v2080
      %v2082 = vpop.f32.mrf.mxu0
      %v2083 = vadd.f32 0.0, %v2082
      %2084 = vmatmul.bf16.gmra.mxu0 %v911
      %v2085 = vpop.f32.mrf.mxu0
      %v2086 = vadd.f32 0.0, %v2085
      %v2087 = vpop.f32.mrf.mxu0
      %v2088 = vadd.f32 0.0, %v2087
      %2089 = vmatmul.bf16.gmra.mxu0 %v920
      %v2090 = vpop.f32.mrf.mxu0
      %v2091 = vadd.f32 0.0, %v2090
      %v2092 = vpop.f32.mrf.mxu0
      %v2093 = vadd.f32 0.0, %v2092
      %2094 = vmatmul.bf16.gmra.mxu0 %v929
      %v2095 = vpop.f32.mrf.mxu0
      %v2096 = vadd.f32 0.0, %v2095
      %v2097 = vpop.f32.mrf.mxu0
      %v2098 = vadd.f32 0.0, %v2097
      %2099 = vmatmul.bf16.gmra.mxu0 %v938
      %v2100 = vpop.f32.mrf.mxu0
      %v2101 = vadd.f32 0.0, %v2100
      %v2102 = vpop.f32.mrf.mxu0
      %v2103 = vadd.f32 0.0, %v2102
      %2104 = vmatmul.bf16.gmra.mxu0 %v947
      %v2105 = vpop.f32.mrf.mxu0
      %v2106 = vadd.f32 0.0, %v2105
      %v2107 = vpop.f32.mrf.mxu0
      %v2108 = vadd.f32 0.0, %v2107
      %2109 = vmatmul.bf16.gmra.mxu0 %v956
      %v2110 = vpop.f32.mrf.mxu0
      %v2111 = vadd.f32 0.0, %v2110
      %v2112 = vpop.f32.mrf.mxu0
      %v2113 = vadd.f32 0.0, %v2112
      %2114 = vmatmul.bf16.gmra.mxu0 %v965
      %v2115 = vpop.f32.mrf.mxu0
      %v2116 = vadd.f32 0.0, %v2115
      %v2117 = vpop.f32.mrf.mxu0
      %v2118 = vadd.f32 0.0, %v2117
      %2119 = vmatmul.bf16.gmra.mxu0 %v974
      %v2120 = vpop.f32.mrf.mxu0
      %v2121 = vadd.f32 0.0, %v2120
      %v2122 = vpop.f32.mrf.mxu0
      %v2123 = vadd.f32 0.0, %v2122
      %2124 = vmatmul.bf16.gmra.mxu0 %v983
      %v2125 = vpop.f32.mrf.mxu0
      %v2126 = vadd.f32 0.0, %v2125
      %v2127 = vpop.f32.mrf.mxu0
      %v2128 = vadd.f32 0.0, %v2127
      %2129 = vmatmul.bf16.gmra.mxu0 %v992
      %v2130 = vpop.f32.mrf.mxu0
      %v2131 = vadd.f32 0.0, %v2130
      %v2132 = vpop.f32.mrf.mxu0
      %v2133 = vadd.f32 0.0, %v2132
      %2134 = vmatmul.bf16.gmra.mxu0 %v1001
      %v2135 = vpop.f32.mrf.mxu0
      %v2136 = vadd.f32 0.0, %v2135
      %v2137 = vpop.f32.mrf.mxu0
      %v2138 = vadd.f32 0.0, %v2137
      %2139 = vmatmul.bf16.gmra.mxu0 %v1010
      %v2140 = vpop.f32.mrf.mxu0
      %v2141 = vadd.f32 0.0, %v2140
      %v2142 = vpop.f32.mrf.mxu0
      %v2143 = vadd.f32 0.0, %v2142
      %2144 = vmatmul.bf16.gmra.mxu0 %v1019
      %v2145 = vpop.f32.mrf.mxu0
      %v2146 = vadd.f32 0.0, %v2145
      %v2147 = vpop.f32.mrf.mxu0
      %v2148 = vadd.f32 0.0, %v2147
      %2149 = vmatmul.bf16.gmra.mxu0 %v1028
      %v2150 = vpop.f32.mrf.mxu0
      %v2151 = vadd.f32 0.0, %v2150
      %v2152 = vpop.f32.mrf.mxu0
      %v2153 = vadd.f32 0.0, %v2152
      %2154 = vmatmul.bf16.gmra.mxu0 %v1037
      %v2155 = vpop.f32.mrf.mxu0
      %v2156 = vadd.f32 0.0, %v2155
      %v2157 = vpop.f32.mrf.mxu0
      %v2158 = vadd.f32 0.0, %v2157
      %2159 = vmatmul.bf16.gmra.mxu0 %v1046
      %v2160 = vpop.f32.mrf.mxu0
      %v2161 = vadd.f32 0.0, %v2160
      %v2162 = vpop.f32.mrf.mxu0
      %v2163 = vadd.f32 0.0, %v2162
      %2164 = vmatmul.bf16.gmra.mxu0 %v1055
      %v2165 = vpop.f32.mrf.mxu0
      %v2166 = vadd.f32 0.0, %v2165
      %v2167 = vpop.f32.mrf.mxu0
      %v2168 = vadd.f32 0.0, %v2167
      %2169 = vmatmul.bf16.gmra.mxu0 %v1064
      %v2170 = vpop.f32.mrf.mxu0
      %v2171 = vadd.f32 0.0, %v2170
      %v2172 = vpop.f32.mrf.mxu0
      %v2173 = vadd.f32 0.0, %v2172
      %2174 = vmatmul.bf16.gmra.mxu0 %v1951
      %v2175 = vpop.f32.mrf.mxu0
      %v2176 = vadd.f32 0.0, %v2175
      %v2177 = vpop.f32.mrf.mxu0
      %v2178 = vadd.f32 0.0, %v2177
      %2179 = vmatmul.bf16.gmra.mxu0 %v1960
      %v2180 = vpop.f32.mrf.mxu0
      %v2181 = vadd.f32 0.0, %v2180
      %v2182 = vpop.f32.mrf.mxu0
      %v2183 = vadd.f32 0.0, %v2182
      %2184 = vmatmul.bf16.gmra.mxu0 %v1969
      %v2185 = vpop.f32.mrf.mxu0
      %v2186 = vadd.f32 0.0, %v2185
      %v2187 = vpop.f32.mrf.mxu0
      %v2188 = vadd.f32 0.0, %v2187
      %2189 = vdwg.mxu0
      %v2190 = vadd.f32 %v1853, %v2031
      %v2191 = vadd.f32 %v1854, %v2033
      %v2192 = vadd.f32 %v1855, %v2036
      %v2193 = vadd.f32 %v1856, %v2038
      %v2194 = vadd.f32 %v1857, %v2041
      %v2195 = vadd.f32 %v1858, %v2043
      %v2196 = vadd.f32 %v1859, %v2046
      %v2197 = vadd.f32 %v1860, %v2048
      %v2198 = vadd.f32 %v1861, %v2051
      %v2199 = vadd.f32 %v1862, %v2053
      %v2200 = vadd.f32 %v1863, %v2056
      %v2201 = vadd.f32 %v1864, %v2058
      %v2202 = vadd.f32 %v1865, %v2061
      %v2203 = vadd.f32 %v1866, %v2063
      %v2204 = vadd.f32 %v1867, %v2066
      %v2205 = vadd.f32 %v1868, %v2068
      %v2206 = vadd.f32 %v1869, %v2071
      %v2207 = vadd.f32 %v1870, %v2073
      %v2208 = vadd.f32 %v1871, %v2076
      %v2209 = vadd.f32 %v1872, %v2078
      %v2210 = vadd.f32 %v1873, %v2081
      %v2211 = vadd.f32 %v1874, %v2083
      %v2212 = vadd.f32 %v1875, %v2086
      %v2213 = vadd.f32 %v1876, %v2088
      %v2214 = vadd.f32 %v1877, %v2091
      %v2215 = vadd.f32 %v1878, %v2093
      %v2216 = vadd.f32 %v1879, %v2096
      %v2217 = vadd.f32 %v1880, %v2098
      %v2218 = vadd.f32 %v1881, %v2101
      %v2219 = vadd.f32 %v1882, %v2103
      %v2220 = vadd.f32 %v1883, %v2106
      %v2221 = vadd.f32 %v1884, %v2108
      %v2222 = vadd.f32 %v1885, %v2111
      %v2223 = vadd.f32 %v1886, %v2113
      %v2224 = vadd.f32 %v1887, %v2116
      %v2225 = vadd.f32 %v1888, %v2118
      %v2226 = vadd.f32 %v1889, %v2121
      %v2227 = vadd.f32 %v1890, %v2123
      %v2228 = vadd.f32 %v1891, %v2126
      %v2229 = vadd.f32 %v1892, %v2128
      %v2230 = vadd.f32 %v1893, %v2131
      %v2231 = vadd.f32 %v1894, %v2133
      %v2232 = vadd.f32 %v1895, %v2136
      %v2233 = vadd.f32 %v1896, %v2138
      %v2234 = vadd.f32 %v1897, %v2141
      %v2235 = vadd.f32 %v1898, %v2143
      %v2236 = vadd.f32 %v1899, %v2146
      %v2237 = vadd.f32 %v1900, %v2148
      %v2238 = vadd.f32 %v1901, %v2151
      %v2239 = vadd.f32 %v1902, %v2153
      %v2240 = vadd.f32 %v1903, %v2156
      %v2241 = vadd.f32 %v1904, %v2158
      %v2242 = vadd.f32 %v1905, %v2161
      %v2243 = vadd.f32 %v1906, %v2163
      %v2244 = vadd.f32 %v1907, %v2166
      %v2245 = vadd.f32 %v1908, %v2168
      %v2246 = vadd.f32 %v1909, %v2171
      %v2247 = vadd.f32 %v1910, %v2173
      %v2248 = vadd.f32 %v1911, %v2176
      %v2249 = vadd.f32 %v1912, %v2178
      %v2250 = vadd.f32 %v1913, %v2181
      %v2251 = vadd.f32 %v1914, %v2183
      %v2252 = vadd.f32 %v1915, %v2186
      %v2253 = vadd.f32 %v1916, %v2188
      %s2254 = scalar_lea.vmem %s1, 256
      %v2255 = vld [vmem:[%s2254] sm:$0xf]
      %v2256 = vld [vmem:[%s2254 + $0x4] sm:$0xf]
      %v2257 = vld [vmem:[%s2254 + $0x8] sm:$0xf]
      %v2258 = vld [vmem:[%s2254 + $0xc] sm:$0xf]
      %v2259 = vld [vmem:[%s2254 + $0x10] sm:$0xf]
      %v2260 = vld [vmem:[%s2254 + $0x14] sm:$0xf]
      %v2261 = vld [vmem:[%s2254 + $0x18] sm:$0xf]
      %v2262 = vld [vmem:[%s2254 + $0x1c] sm:$0xf]
      %v2263 = vld [vmem:[%s2254 + $0x20] sm:$0xf]
      %v2264 = vld [vmem:[%s2254 + $0x24] sm:$0xf]
      %v2265 = vld [vmem:[%s2254 + $0x28] sm:$0xf]
      %v2266 = vld [vmem:[%s2254 + $0x2c] sm:$0xf]
      %v2267 = vld [vmem:[%s2254 + $0x30] sm:$0xf]
      %v2268 = vld [vmem:[%s2254 + $0x34] sm:$0xf]
      %v2269 = vld [vmem:[%s2254 + $0x38] sm:$0xf]
      %v2270 = vld [vmem:[%s2254 + $0x3c] sm:$0xf]
      %v2271 = vpack.c.b16 %v1937, %v1341
      %v2272 = vpack.c.b16 %v1939, %v1938
      %v2291 = vunpack.c.l.b16 %v2255
      %v2292 = vunpack.c.l.b16 %v2256
      %v2293 = vunpack.c.l.b16 %v2257
      %v2294 = vunpack.c.l.b16 %v2258
      %v2295 = vunpack.c.l.b16 %v2259
      %v2296 = vunpack.c.l.b16 %v2260
      %v2297 = vunpack.c.l.b16 %v2261
      %v2298 = vunpack.c.l.b16 %v2262
      %v2299 = vunpack.c.l.b16 %v2263
      %v2300 = vunpack.c.l.b16 %v2264
      %v2301 = vunpack.c.l.b16 %v2265
      %v2302 = vunpack.c.l.b16 %v2266
      %v2303 = vunpack.c.l.b16 %v2267
      %v2304 = vunpack.c.l.b16 %v2268
      %v2305 = vunpack.c.l.b16 %v2269
      %v2306 = vunpack.c.l.b16 %v2270
      %v2307 = vpack.c.b16 %v2292, %v2291
      %v2308 = vpack.c.b16 %v2294, %v2293
      %v2309 = vpack.c.b16 %v2296, %v2295
      %v2310 = vpack.c.b16 %v2298, %v2297
      %v2311 = vpack.c.b16 %v2300, %v2299
      %v2312 = vpack.c.b16 %v2302, %v2301
      %v2313 = vpack.c.b16 %v2304, %v2303
      %v2314 = vpack.c.b16 %v2306, %v2305
      %2323 = vmatpush.bf16.msra.mxu0 %v2314
      %2324 = vmatpush.bf16.msra.mxu0 %v2313
      %2325 = vmatpush.bf16.msra.mxu0 %v2312
      %2326 = vmatpush.bf16.msra.mxu0 %v2311
      %2327 = vmatpush.bf16.msra.mxu0 %v2310
      %2328 = vmatpush.bf16.msra.mxu0 %v2309
      %2329 = vmatpush.bf16.msra.mxu0 %v2308
      %2330 = vmatpush.bf16.msra.mxu0 %v2307
      %2331 = vmatmul.bf16.gmra.mxu0 %v463
      %v2332 = vpop.f32.mrf.mxu0
      %v2333 = vadd.f32 0.0, %v2332
      %v2334 = vpop.f32.mrf.mxu0
      %v2335 = vadd.f32 0.0, %v2334
      %2336 = vmatmul.bf16.gmra.mxu0 %v464
      %v2337 = vpop.f32.mrf.mxu0
      %v2338 = vadd.f32 0.0, %v2337
      %v2339 = vpop.f32.mrf.mxu0
      %v2340 = vadd.f32 0.0, %v2339
      %2341 = vmatmul.bf16.gmra.mxu0 %v465
      %v2342 = vpop.f32.mrf.mxu0
      %v2343 = vadd.f32 0.0, %v2342
      %v2344 = vpop.f32.mrf.mxu0
      %v2345 = vadd.f32 0.0, %v2344
      %2346 = vmatmul.bf16.gmra.mxu0 %v466
      %v2347 = vpop.f32.mrf.mxu0
      %v2348 = vadd.f32 0.0, %v2347
      %v2349 = vpop.f32.mrf.mxu0
      %v2350 = vadd.f32 0.0, %v2349
      %2351 = vmatmul.bf16.gmra.mxu0 %v467
      %v2352 = vpop.f32.mrf.mxu0
      %v2353 = vadd.f32 0.0, %v2352
      %v2354 = vpop.f32.mrf.mxu0
      %v2355 = vadd.f32 0.0, %v2354
      %2356 = vmatmul.bf16.gmra.mxu0 %v468
      %v2357 = vpop.f32.mrf.mxu0
      %v2358 = vadd.f32 0.0, %v2357
      %v2359 = vpop.f32.mrf.mxu0
      %v2360 = vadd.f32 0.0, %v2359
      %2361 = vmatmul.bf16.gmra.mxu0 %v469
      %v2362 = vpop.f32.mrf.mxu0
      %v2363 = vadd.f32 0.0, %v2362
      %v2364 = vpop.f32.mrf.mxu0
      %v2365 = vadd.f32 0.0, %v2364
      %2366 = vmatmul.bf16.gmra.mxu0 %v470
      %v2367 = vpop.f32.mrf.mxu0
      %v2368 = vadd.f32 0.0, %v2367
      %v2369 = vpop.f32.mrf.mxu0
      %v2370 = vadd.f32 0.0, %v2369
      %2371 = vmatmul.bf16.gmra.mxu0 %v471
      %v2372 = vpop.f32.mrf.mxu0
      %v2373 = vadd.f32 0.0, %v2372
      %v2374 = vpop.f32.mrf.mxu0
      %v2375 = vadd.f32 0.0, %v2374
      %2376 = vmatmul.bf16.gmra.mxu0 %v472
      %v2377 = vpop.f32.mrf.mxu0
      %v2378 = vadd.f32 0.0, %v2377
      %v2379 = vpop.f32.mrf.mxu0
      %v2380 = vadd.f32 0.0, %v2379
      %2381 = vmatmul.bf16.gmra.mxu0 %v473
      %v2382 = vpop.f32.mrf.mxu0
      %v2383 = vadd.f32 0.0, %v2382
      %v2384 = vpop.f32.mrf.mxu0
      %v2385 = vadd.f32 0.0, %v2384
      %2386 = vmatmul.bf16.gmra.mxu0 %v474
      %v2387 = vpop.f32.mrf.mxu0
      %v2388 = vadd.f32 0.0, %v2387
      %v2389 = vpop.f32.mrf.mxu0
      %v2390 = vadd.f32 0.0, %v2389
      %2391 = vmatmul.bf16.gmra.mxu0 %v475
      %v2392 = vpop.f32.mrf.mxu0
      %v2393 = vadd.f32 0.0, %v2392
      %v2394 = vpop.f32.mrf.mxu0
      %v2395 = vadd.f32 0.0, %v2394
      %2396 = vmatmul.bf16.gmra.mxu0 %v476
      %v2397 = vpop.f32.mrf.mxu0
      %v2398 = vadd.f32 0.0, %v2397
      %v2399 = vpop.f32.mrf.mxu0
      %v2400 = vadd.f32 0.0, %v2399
      %2401 = vmatmul.bf16.gmra.mxu0 %v477
      %v2402 = vpop.f32.mrf.mxu0
      %v2403 = vadd.f32 0.0, %v2402
      %v2404 = vpop.f32.mrf.mxu0
      %v2405 = vadd.f32 0.0, %v2404
      %2406 = vmatmul.bf16.gmra.mxu0 %v478
      %v2407 = vpop.f32.mrf.mxu0
      %v2408 = vadd.f32 0.0, %v2407
      %v2409 = vpop.f32.mrf.mxu0
      %v2410 = vadd.f32 0.0, %v2409
      %2411 = vmatmul.bf16.gmra.mxu0 %v479
      %v2412 = vpop.f32.mrf.mxu0
      %v2413 = vadd.f32 0.0, %v2412
      %v2414 = vpop.f32.mrf.mxu0
      %v2415 = vadd.f32 0.0, %v2414
      %2416 = vmatmul.bf16.gmra.mxu0 %v480
      %v2417 = vpop.f32.mrf.mxu0
      %v2418 = vadd.f32 0.0, %v2417
      %v2419 = vpop.f32.mrf.mxu0
      %v2420 = vadd.f32 0.0, %v2419
      %2421 = vmatmul.bf16.gmra.mxu0 %v481
      %v2422 = vpop.f32.mrf.mxu0
      %v2423 = vadd.f32 0.0, %v2422
      %v2424 = vpop.f32.mrf.mxu0
      %v2425 = vadd.f32 0.0, %v2424
      %2426 = vmatmul.bf16.gmra.mxu0 %v482
      %v2427 = vpop.f32.mrf.mxu0
      %v2428 = vadd.f32 0.0, %v2427
      %v2429 = vpop.f32.mrf.mxu0
      %v2430 = vadd.f32 0.0, %v2429
      %2431 = vmatmul.bf16.gmra.mxu0 %v483
      %v2432 = vpop.f32.mrf.mxu0
      %v2433 = vadd.f32 0.0, %v2432
      %v2434 = vpop.f32.mrf.mxu0
      %v2435 = vadd.f32 0.0, %v2434
      %2436 = vmatmul.bf16.gmra.mxu0 %v484
      %v2437 = vpop.f32.mrf.mxu0
      %v2438 = vadd.f32 0.0, %v2437
      %v2439 = vpop.f32.mrf.mxu0
      %v2440 = vadd.f32 0.0, %v2439
      %2441 = vmatmul.bf16.gmra.mxu0 %v485
      %v2442 = vpop.f32.mrf.mxu0
      %v2443 = vadd.f32 0.0, %v2442
      %v2444 = vpop.f32.mrf.mxu0
      %v2445 = vadd.f32 0.0, %v2444
      %2446 = vmatmul.bf16.gmra.mxu0 %v486
      %v2447 = vpop.f32.mrf.mxu0
      %v2448 = vadd.f32 0.0, %v2447
      %v2449 = vpop.f32.mrf.mxu0
      %v2450 = vadd.f32 0.0, %v2449
      %2451 = vmatmul.bf16.gmra.mxu0 %v487
      %v2452 = vpop.f32.mrf.mxu0
      %v2453 = vadd.f32 0.0, %v2452
      %v2454 = vpop.f32.mrf.mxu0
      %v2455 = vadd.f32 0.0, %v2454
      %2456 = vmatmul.bf16.gmra.mxu0 %v488
      %v2457 = vpop.f32.mrf.mxu0
      %v2458 = vadd.f32 0.0, %v2457
      %v2459 = vpop.f32.mrf.mxu0
      %v2460 = vadd.f32 0.0, %v2459
      %2461 = vmatmul.bf16.gmra.mxu0 %v489
      %v2462 = vpop.f32.mrf.mxu0
      %v2463 = vadd.f32 0.0, %v2462
      %v2464 = vpop.f32.mrf.mxu0
      %v2465 = vadd.f32 0.0, %v2464
      %2466 = vmatmul.bf16.gmra.mxu0 %v490
      %v2467 = vpop.f32.mrf.mxu0
      %v2468 = vadd.f32 0.0, %v2467
      %v2469 = vpop.f32.mrf.mxu0
      %v2470 = vadd.f32 0.0, %v2469
      %2471 = vmatmul.bf16.gmra.mxu0 %v491
      %v2472 = vpop.f32.mrf.mxu0
      %v2473 = vadd.f32 0.0, %v2472
      %v2474 = vpop.f32.mrf.mxu0
      %v2475 = vadd.f32 0.0, %v2474
      %2476 = vmatmul.bf16.gmra.mxu0 %v492
      %v2477 = vpop.f32.mrf.mxu0
      %v2478 = vadd.f32 0.0, %v2477
      %v2479 = vpop.f32.mrf.mxu0
      %v2480 = vadd.f32 0.0, %v2479
      %2481 = vmatmul.bf16.gmra.mxu0 %v2271
      %v2482 = vpop.f32.mrf.mxu0
      %v2483 = vadd.f32 0.0, %v2482
      %v2484 = vpop.f32.mrf.mxu0
      %v2485 = vadd.f32 0.0, %v2484
      %2486 = vmatmul.bf16.gmra.mxu0 %v2272
      %v2487 = vpop.f32.mrf.mxu0
      %v2488 = vadd.f32 0.0, %v2487
      %v2489 = vpop.f32.mrf.mxu0
      %v2490 = vadd.f32 0.0, %v2489
      %2491 = vdwg.mxu0
      %v2492 = vadd.f32 %v2190, %v2333
      %v2493 = vadd.f32 %v2191, %v2335
      %v2494 = vadd.f32 %v2192, %v2338
      %v2495 = vadd.f32 %v2193, %v2340
      %v2496 = vadd.f32 %v2194, %v2343
      %v2497 = vadd.f32 %v2195, %v2345
      %v2498 = vadd.f32 %v2196, %v2348
      %v2499 = vadd.f32 %v2197, %v2350
      %v2500 = vadd.f32 %v2198, %v2353
      %v2501 = vadd.f32 %v2199, %v2355
      %v2502 = vadd.f32 %v2200, %v2358
      %v2503 = vadd.f32 %v2201, %v2360
      %v2504 = vadd.f32 %v2202, %v2363
      %v2505 = vadd.f32 %v2203, %v2365
      %v2506 = vadd.f32 %v2204, %v2368
      %v2507 = vadd.f32 %v2205, %v2370
      %v2508 = vadd.f32 %v2206, %v2373
      %v2509 = vadd.f32 %v2207, %v2375
      %v2510 = vadd.f32 %v2208, %v2378
      %v2511 = vadd.f32 %v2209, %v2380
      %v2512 = vadd.f32 %v2210, %v2383
      %v2513 = vadd.f32 %v2211, %v2385
      %v2514 = vadd.f32 %v2212, %v2388
      %v2515 = vadd.f32 %v2213, %v2390
      %v2516 = vadd.f32 %v2214, %v2393
      %v2517 = vadd.f32 %v2215, %v2395
      %v2518 = vadd.f32 %v2216, %v2398
      %v2519 = vadd.f32 %v2217, %v2400
      %v2520 = vadd.f32 %v2218, %v2403
      %v2521 = vadd.f32 %v2219, %v2405
      %v2522 = vadd.f32 %v2220, %v2408
      %v2523 = vadd.f32 %v2221, %v2410
      %v2524 = vadd.f32 %v2222, %v2413
      %v2525 = vadd.f32 %v2223, %v2415
      %v2526 = vadd.f32 %v2224, %v2418
      %v2527 = vadd.f32 %v2225, %v2420
      %v2528 = vadd.f32 %v2226, %v2423
      %v2529 = vadd.f32 %v2227, %v2425
      %v2530 = vadd.f32 %v2228, %v2428
      %v2531 = vadd.f32 %v2229, %v2430
      %v2532 = vadd.f32 %v2230, %v2433
      %v2533 = vadd.f32 %v2231, %v2435
      %v2534 = vadd.f32 %v2232, %v2438
      %v2535 = vadd.f32 %v2233, %v2440
      %v2536 = vadd.f32 %v2234, %v2443
      %v2537 = vadd.f32 %v2235, %v2445
      %v2538 = vadd.f32 %v2236, %v2448
      %v2539 = vadd.f32 %v2237, %v2450
      %v2540 = vadd.f32 %v2238, %v2453
      %v2541 = vadd.f32 %v2239, %v2455
      %v2542 = vadd.f32 %v2240, %v2458
      %v2543 = vadd.f32 %v2241, %v2460
      %v2544 = vadd.f32 %v2242, %v2463
      %v2545 = vadd.f32 %v2243, %v2465
      %v2546 = vadd.f32 %v2244, %v2468
      %v2547 = vadd.f32 %v2245, %v2470
      %v2548 = vadd.f32 %v2246, %v2473
      %v2549 = vadd.f32 %v2247, %v2475
      %v2550 = vadd.f32 %v2248, %v2478
      %v2551 = vadd.f32 %v2249, %v2480
      %v2552 = vadd.f32 %v2250, %v2483
      %v2553 = vadd.f32 %v2251, %v2485
      %v2554 = vadd.f32 %v2252, %v2488
      %v2555 = vadd.f32 %v2253, %v2490
      %s2556 = scalar_lea.vmem %s1, 320
      %v2557 = vld [vmem:[%s2556] sm:$0xf]
      %v2558 = vld [vmem:[%s2556 + $0x4] sm:$0xf]
      %v2559 = vld [vmem:[%s2556 + $0x8] sm:$0xf]
      %v2560 = vld [vmem:[%s2556 + $0xc] sm:$0xf]
      %v2561 = vld [vmem:[%s2556 + $0x10] sm:$0xf]
      %v2562 = vld [vmem:[%s2556 + $0x14] sm:$0xf]
      %v2563 = vld [vmem:[%s2556 + $0x18] sm:$0xf]
      %v2564 = vld [vmem:[%s2556 + $0x1c] sm:$0xf]
      %v2565 = vld [vmem:[%s2556 + $0x20] sm:$0xf]
      %v2566 = vld [vmem:[%s2556 + $0x24] sm:$0xf]
      %v2567 = vld [vmem:[%s2556 + $0x28] sm:$0xf]
      %v2568 = vld [vmem:[%s2556 + $0x2c] sm:$0xf]
      %v2569 = vld [vmem:[%s2556 + $0x30] sm:$0xf]
      %v2570 = vld [vmem:[%s2556 + $0x34] sm:$0xf]
      %v2571 = vld [vmem:[%s2556 + $0x38] sm:$0xf]
      %v2572 = vld [vmem:[%s2556 + $0x3c] sm:$0xf]
      %v2574 = vunpack.c.l.b16 %v295
      %v2575 = vpack.c.b16 %v2574, %v2574
      %v2577 = vshll.u32 %v2271, 16
      %v2579 = vrot.slane %v2577, 1
      %v2580 = vsel %vm1343, %v1598, %v2579
      %v2581 = vshrl.u32 %v2271, 16
      %v2583 = vor.u32 %v2581, %v2579
      %v2585 = vshll.u32 %v2272, 16
      %v2587 = vrot.slane %v2585, 1
      %v2588 = vsel %vm1343, %v2583, %v2587
      %v2589 = vshrl.u32 %v2272, 16
      %v2591 = vor.u32 %v2589, %v2587
      %v2593 = vshll.u32 %v2575, 16
      %v2595 = vrot.slane %v2593, 1
      %v2596 = vsel %vm1343, %v2591, %v2595
      %v2616 = vunpack.c.l.b16 %v2557
      %v2617 = vunpack.c.l.b16 %v2558
      %v2618 = vunpack.c.l.b16 %v2559
      %v2619 = vunpack.c.l.b16 %v2560
      %v2620 = vunpack.c.l.b16 %v2561
      %v2621 = vunpack.c.l.b16 %v2562
      %v2622 = vunpack.c.l.b16 %v2563
      %v2623 = vunpack.c.l.b16 %v2564
      %v2624 = vunpack.c.l.b16 %v2565
      %v2625 = vunpack.c.l.b16 %v2566
      %v2626 = vunpack.c.l.b16 %v2567
      %v2627 = vunpack.c.l.b16 %v2568
      %v2628 = vunpack.c.l.b16 %v2569
      %v2629 = vunpack.c.l.b16 %v2570
      %v2630 = vunpack.c.l.b16 %v2571
      %v2631 = vunpack.c.l.b16 %v2572
      %v2632 = vpack.c.b16 %v2617, %v2616
      %v2633 = vpack.c.b16 %v2619, %v2618
      %v2634 = vpack.c.b16 %v2621, %v2620
      %v2635 = vpack.c.b16 %v2623, %v2622
      %v2636 = vpack.c.b16 %v2625, %v2624
      %v2637 = vpack.c.b16 %v2627, %v2626
      %v2638 = vpack.c.b16 %v2629, %v2628
      %v2639 = vpack.c.b16 %v2631, %v2630
      %2648 = vmatpush.bf16.msra.mxu0 %v2639
      %2649 = vmatpush.bf16.msra.mxu0 %v2638
      %2650 = vmatpush.bf16.msra.mxu0 %v2637
      %2651 = vmatpush.bf16.msra.mxu0 %v2636
      %2652 = vmatpush.bf16.msra.mxu0 %v2635
      %2653 = vmatpush.bf16.msra.mxu0 %v2634
      %2654 = vmatpush.bf16.msra.mxu0 %v2633
      %2655 = vmatpush.bf16.msra.mxu0 %v2632
      %2656 = vmatmul.bf16.gmra.mxu0 %v1371
      %v2657 = vpop.f32.mrf.mxu0
      %v2658 = vadd.f32 0.0, %v2657
      %v2659 = vpop.f32.mrf.mxu0
      %v2660 = vadd.f32 0.0, %v2659
      %2661 = vmatmul.bf16.gmra.mxu0 %v1379
      %v2662 = vpop.f32.mrf.mxu0
      %v2663 = vadd.f32 0.0, %v2662
      %v2664 = vpop.f32.mrf.mxu0
      %v2665 = vadd.f32 0.0, %v2664
      %2666 = vmatmul.bf16.gmra.mxu0 %v1387
      %v2667 = vpop.f32.mrf.mxu0
      %v2668 = vadd.f32 0.0, %v2667
      %v2669 = vpop.f32.mrf.mxu0
      %v2670 = vadd.f32 0.0, %v2669
      %2671 = vmatmul.bf16.gmra.mxu0 %v1395
      %v2672 = vpop.f32.mrf.mxu0
      %v2673 = vadd.f32 0.0, %v2672
      %v2674 = vpop.f32.mrf.mxu0
      %v2675 = vadd.f32 0.0, %v2674
      %2676 = vmatmul.bf16.gmra.mxu0 %v1403
      %v2677 = vpop.f32.mrf.mxu0
      %v2678 = vadd.f32 0.0, %v2677
      %v2679 = vpop.f32.mrf.mxu0
      %v2680 = vadd.f32 0.0, %v2679
      %2681 = vmatmul.bf16.gmra.mxu0 %v1411
      %v2682 = vpop.f32.mrf.mxu0
      %v2683 = vadd.f32 0.0, %v2682
      %v2684 = vpop.f32.mrf.mxu0
      %v2685 = vadd.f32 0.0, %v2684
      %2686 = vmatmul.bf16.gmra.mxu0 %v1419
      %v2687 = vpop.f32.mrf.mxu0
      %v2688 = vadd.f32 0.0, %v2687
      %v2689 = vpop.f32.mrf.mxu0
      %v2690 = vadd.f32 0.0, %v2689
      %2691 = vmatmul.bf16.gmra.mxu0 %v1427
      %v2692 = vpop.f32.mrf.mxu0
      %v2693 = vadd.f32 0.0, %v2692
      %v2694 = vpop.f32.mrf.mxu0
      %v2695 = vadd.f32 0.0, %v2694
      %2696 = vmatmul.bf16.gmra.mxu0 %v1435
      %v2697 = vpop.f32.mrf.mxu0
      %v2698 = vadd.f32 0.0, %v2697
      %v2699 = vpop.f32.mrf.mxu0
      %v2700 = vadd.f32 0.0, %v2699
      %2701 = vmatmul.bf16.gmra.mxu0 %v1443
      %v2702 = vpop.f32.mrf.mxu0
      %v2703 = vadd.f32 0.0, %v2702
      %v2704 = vpop.f32.mrf.mxu0
      %v2705 = vadd.f32 0.0, %v2704
      %2706 = vmatmul.bf16.gmra.mxu0 %v1451
      %v2707 = vpop.f32.mrf.mxu0
      %v2708 = vadd.f32 0.0, %v2707
      %v2709 = vpop.f32.mrf.mxu0
      %v2710 = vadd.f32 0.0, %v2709
      %2711 = vmatmul.bf16.gmra.mxu0 %v1459
      %v2712 = vpop.f32.mrf.mxu0
      %v2713 = vadd.f32 0.0, %v2712
      %v2714 = vpop.f32.mrf.mxu0
      %v2715 = vadd.f32 0.0, %v2714
      %2716 = vmatmul.bf16.gmra.mxu0 %v1467
      %v2717 = vpop.f32.mrf.mxu0
      %v2718 = vadd.f32 0.0, %v2717
      %v2719 = vpop.f32.mrf.mxu0
      %v2720 = vadd.f32 0.0, %v2719
      %2721 = vmatmul.bf16.gmra.mxu0 %v1475
      %v2722 = vpop.f32.mrf.mxu0
      %v2723 = vadd.f32 0.0, %v2722
      %v2724 = vpop.f32.mrf.mxu0
      %v2725 = vadd.f32 0.0, %v2724
      %2726 = vmatmul.bf16.gmra.mxu0 %v1483
      %v2727 = vpop.f32.mrf.mxu0
      %v2728 = vadd.f32 0.0, %v2727
      %v2729 = vpop.f32.mrf.mxu0
      %v2730 = vadd.f32 0.0, %v2729
      %2731 = vmatmul.bf16.gmra.mxu0 %v1491
      %v2732 = vpop.f32.mrf.mxu0
      %v2733 = vadd.f32 0.0, %v2732
      %v2734 = vpop.f32.mrf.mxu0
      %v2735 = vadd.f32 0.0, %v2734
      %2736 = vmatmul.bf16.gmra.mxu0 %v1499
      %v2737 = vpop.f32.mrf.mxu0
      %v2738 = vadd.f32 0.0, %v2737
      %v2739 = vpop.f32.mrf.mxu0
      %v2740 = vadd.f32 0.0, %v2739
      %2741 = vmatmul.bf16.gmra.mxu0 %v1507
      %v2742 = vpop.f32.mrf.mxu0
      %v2743 = vadd.f32 0.0, %v2742
      %v2744 = vpop.f32.mrf.mxu0
      %v2745 = vadd.f32 0.0, %v2744
      %2746 = vmatmul.bf16.gmra.mxu0 %v1515
      %v2747 = vpop.f32.mrf.mxu0
      %v2748 = vadd.f32 0.0, %v2747
      %v2749 = vpop.f32.mrf.mxu0
      %v2750 = vadd.f32 0.0, %v2749
      %2751 = vmatmul.bf16.gmra.mxu0 %v1523
      %v2752 = vpop.f32.mrf.mxu0
      %v2753 = vadd.f32 0.0, %v2752
      %v2754 = vpop.f32.mrf.mxu0
      %v2755 = vadd.f32 0.0, %v2754
      %2756 = vmatmul.bf16.gmra.mxu0 %v1531
      %v2757 = vpop.f32.mrf.mxu0
      %v2758 = vadd.f32 0.0, %v2757
      %v2759 = vpop.f32.mrf.mxu0
      %v2760 = vadd.f32 0.0, %v2759
      %2761 = vmatmul.bf16.gmra.mxu0 %v1539
      %v2762 = vpop.f32.mrf.mxu0
      %v2763 = vadd.f32 0.0, %v2762
      %v2764 = vpop.f32.mrf.mxu0
      %v2765 = vadd.f32 0.0, %v2764
      %2766 = vmatmul.bf16.gmra.mxu0 %v1547
      %v2767 = vpop.f32.mrf.mxu0
      %v2768 = vadd.f32 0.0, %v2767
      %v2769 = vpop.f32.mrf.mxu0
      %v2770 = vadd.f32 0.0, %v2769
      %2771 = vmatmul.bf16.gmra.mxu0 %v1555
      %v2772 = vpop.f32.mrf.mxu0
      %v2773 = vadd.f32 0.0, %v2772
      %v2774 = vpop.f32.mrf.mxu0
      %v2775 = vadd.f32 0.0, %v2774
      %2776 = vmatmul.bf16.gmra.mxu0 %v1563
      %v2777 = vpop.f32.mrf.mxu0
      %v2778 = vadd.f32 0.0, %v2777
      %v2779 = vpop.f32.mrf.mxu0
      %v2780 = vadd.f32 0.0, %v2779
      %2781 = vmatmul.bf16.gmra.mxu0 %v1571
      %v2782 = vpop.f32.mrf.mxu0
      %v2783 = vadd.f32 0.0, %v2782
      %v2784 = vpop.f32.mrf.mxu0
      %v2785 = vadd.f32 0.0, %v2784
      %2786 = vmatmul.bf16.gmra.mxu0 %v1579
      %v2787 = vpop.f32.mrf.mxu0
      %v2788 = vadd.f32 0.0, %v2787
      %v2789 = vpop.f32.mrf.mxu0
      %v2790 = vadd.f32 0.0, %v2789
      %2791 = vmatmul.bf16.gmra.mxu0 %v1587
      %v2792 = vpop.f32.mrf.mxu0
      %v2793 = vadd.f32 0.0, %v2792
      %v2794 = vpop.f32.mrf.mxu0
      %v2795 = vadd.f32 0.0, %v2794
      %2796 = vmatmul.bf16.gmra.mxu0 %v1595
      %v2797 = vpop.f32.mrf.mxu0
      %v2798 = vadd.f32 0.0, %v2797
      %v2799 = vpop.f32.mrf.mxu0
      %v2800 = vadd.f32 0.0, %v2799
      %2801 = vmatmul.bf16.gmra.mxu0 %v2580
      %v2802 = vpop.f32.mrf.mxu0
      %v2803 = vadd.f32 0.0, %v2802
      %v2804 = vpop.f32.mrf.mxu0
      %v2805 = vadd.f32 0.0, %v2804
      %2806 = vmatmul.bf16.gmra.mxu0 %v2588
      %v2807 = vpop.f32.mrf.mxu0
      %v2808 = vadd.f32 0.0, %v2807
      %v2809 = vpop.f32.mrf.mxu0
      %v2810 = vadd.f32 0.0, %v2809
      %2811 = vmatmul.bf16.gmra.mxu0 %v2596
      %v2812 = vpop.f32.mrf.mxu0
      %v2813 = vadd.f32 0.0, %v2812
      %v2814 = vpop.f32.mrf.mxu0
      %v2815 = vadd.f32 0.0, %v2814
      %2816 = vdwg.mxu0
      %v2817 = vadd.f32 %v2492, %v2658
      %v2818 = vadd.f32 %v2493, %v2660
      %v2819 = vadd.f32 %v2494, %v2663
      %v2820 = vadd.f32 %v2495, %v2665
      %v2821 = vadd.f32 %v2496, %v2668
      %v2822 = vadd.f32 %v2497, %v2670
      %v2823 = vadd.f32 %v2498, %v2673
      %v2824 = vadd.f32 %v2499, %v2675
      %v2825 = vadd.f32 %v2500, %v2678
      %v2826 = vadd.f32 %v2501, %v2680
      %v2827 = vadd.f32 %v2502, %v2683
      %v2828 = vadd.f32 %v2503, %v2685
      %v2829 = vadd.f32 %v2504, %v2688
      %v2830 = vadd.f32 %v2505, %v2690
      %v2831 = vadd.f32 %v2506, %v2693
      %v2832 = vadd.f32 %v2507, %v2695
      %v2833 = vadd.f32 %v2508, %v2698
      %v2834 = vadd.f32 %v2509, %v2700
      %v2835 = vadd.f32 %v2510, %v2703
      %v2836 = vadd.f32 %v2511, %v2705
      %v2837 = vadd.f32 %v2512, %v2708
      %v2838 = vadd.f32 %v2513, %v2710
      %v2839 = vadd.f32 %v2514, %v2713
      %v2840 = vadd.f32 %v2515, %v2715
      %v2841 = vadd.f32 %v2516, %v2718
      %v2842 = vadd.f32 %v2517, %v2720
      %v2843 = vadd.f32 %v2518, %v2723
      %v2844 = vadd.f32 %v2519, %v2725
      %v2845 = vadd.f32 %v2520, %v2728
      %v2846 = vadd.f32 %v2521, %v2730
      %v2847 = vadd.f32 %v2522, %v2733
      %v2848 = vadd.f32 %v2523, %v2735
      %v2849 = vadd.f32 %v2524, %v2738
      %v2850 = vadd.f32 %v2525, %v2740
      %v2851 = vadd.f32 %v2526, %v2743
      %v2852 = vadd.f32 %v2527, %v2745
      %v2853 = vadd.f32 %v2528, %v2748
      %v2854 = vadd.f32 %v2529, %v2750
      %v2855 = vadd.f32 %v2530, %v2753
      %v2856 = vadd.f32 %v2531, %v2755
      %v2857 = vadd.f32 %v2532, %v2758
      %v2858 = vadd.f32 %v2533, %v2760
      %v2859 = vadd.f32 %v2534, %v2763
      %v2860 = vadd.f32 %v2535, %v2765
      %v2861 = vadd.f32 %v2536, %v2768
      %v2862 = vadd.f32 %v2537, %v2770
      %v2863 = vadd.f32 %v2538, %v2773
      %v2864 = vadd.f32 %v2539, %v2775
      %v2865 = vadd.f32 %v2540, %v2778
      %v2866 = vadd.f32 %v2541, %v2780
      %v2867 = vadd.f32 %v2542, %v2783
      %v2868 = vadd.f32 %v2543, %v2785
      %v2869 = vadd.f32 %v2544, %v2788
      %v2870 = vadd.f32 %v2545, %v2790
      %v2871 = vadd.f32 %v2546, %v2793
      %v2872 = vadd.f32 %v2547, %v2795
      %v2873 = vadd.f32 %v2548, %v2798
      %v2874 = vadd.f32 %v2549, %v2800
      %v2875 = vadd.f32 %v2550, %v2803
      %v2876 = vadd.f32 %v2551, %v2805
      %v2877 = vadd.f32 %v2552, %v2808
      %v2878 = vadd.f32 %v2553, %v2810
      %v2879 = vadd.f32 %v2554, %v2813
      %v2880 = vadd.f32 %v2555, %v2815
      %s2881 = scalar_lea.vmem %s1, 384
      %v2882 = vld [vmem:[%s2881] sm:$0xf]
      %v2883 = vld [vmem:[%s2881 + $0x4] sm:$0xf]
      %v2884 = vld [vmem:[%s2881 + $0x8] sm:$0xf]
      %v2885 = vld [vmem:[%s2881 + $0xc] sm:$0xf]
      %v2886 = vld [vmem:[%s2881 + $0x10] sm:$0xf]
      %v2887 = vld [vmem:[%s2881 + $0x14] sm:$0xf]
      %v2888 = vld [vmem:[%s2881 + $0x18] sm:$0xf]
      %v2889 = vld [vmem:[%s2881 + $0x1c] sm:$0xf]
      %v2890 = vld [vmem:[%s2881 + $0x20] sm:$0xf]
      %v2891 = vld [vmem:[%s2881 + $0x24] sm:$0xf]
      %v2892 = vld [vmem:[%s2881 + $0x28] sm:$0xf]
      %v2893 = vld [vmem:[%s2881 + $0x2c] sm:$0xf]
      %v2894 = vld [vmem:[%s2881 + $0x30] sm:$0xf]
      %v2895 = vld [vmem:[%s2881 + $0x34] sm:$0xf]
      %v2896 = vld [vmem:[%s2881 + $0x38] sm:$0xf]
      %v2897 = vld [vmem:[%s2881 + $0x3c] sm:$0xf]
      %v2901 = vunpack.c.l.b16 %v296
      %v2902 = vunpack.c.l.b16 %v297
      %v2903 = vunpack.c.l.b16 %v298
      %v2904 = vpack.c.b16 %v2574, %v1939
      %v2905 = vpack.c.b16 %v2902, %v2901
      %v2906 = vpack.c.b16 %v2903, %v2903
      %v2908 = vshrl.u32 %v2904, 16
      %v2910 = vrot.slane %v2908, 3
      %v2911 = vshll.u32 %v2904, 16
      %v2913 = vrot.slane %v2911, 4
      %v2914 = vor.u32 %v2910, %v2913
      %v2915 = vsel %vm777, %v1959, %v2914
      %v2917 = vshrl.u32 %v2905, 16
      %v2919 = vrot.slane %v2917, 3
      %v2920 = vshll.u32 %v2905, 16
      %v2922 = vrot.slane %v2920, 4
      %v2923 = vor.u32 %v2919, %v2922
      %v2924 = vsel %vm777, %v2914, %v2923
      %v2926 = vshrl.u32 %v2906, 16
      %v2928 = vrot.slane %v2926, 3
      %v2929 = vshll.u32 %v2906, 16
      %v2931 = vrot.slane %v2929, 4
      %v2932 = vor.u32 %v2928, %v2931
      %v2933 = vsel %vm777, %v2923, %v2932
      %v2953 = vunpack.c.l.b16 %v2882
      %v2954 = vunpack.c.l.b16 %v2883
      %v2955 = vunpack.c.l.b16 %v2884
      %v2956 = vunpack.c.l.b16 %v2885
      %v2957 = vunpack.c.l.b16 %v2886
      %v2958 = vunpack.c.l.b16 %v2887
      %v2959 = vunpack.c.l.b16 %v2888
      %v2960 = vunpack.c.l.b16 %v2889
      %v2961 = vunpack.c.l.b16 %v2890
      %v2962 = vunpack.c.l.b16 %v2891
      %v2963 = vunpack.c.l.b16 %v2892
      %v2964 = vunpack.c.l.b16 %v2893
      %v2965 = vunpack.c.l.b16 %v2894
      %v2966 = vunpack.c.l.b16 %v2895
      %v2967 = vunpack.c.l.b16 %v2896
      %v2968 = vunpack.c.l.b16 %v2897
      %v2969 = vpack.c.b16 %v2954, %v2953
      %v2970 = vpack.c.b16 %v2956, %v2955
      %v2971 = vpack.c.b16 %v2958, %v2957
      %v2972 = vpack.c.b16 %v2960, %v2959
      %v2973 = vpack.c.b16 %v2962, %v2961
      %v2974 = vpack.c.b16 %v2964, %v2963
      %v2975 = vpack.c.b16 %v2966, %v2965
      %v2976 = vpack.c.b16 %v2968, %v2967
      %2985 = vmatpush.bf16.msra.mxu0 %v2976
      %2986 = vmatpush.bf16.msra.mxu0 %v2975
      %2987 = vmatpush.bf16.msra.mxu0 %v2974
      %2988 = vmatpush.bf16.msra.mxu0 %v2973
      %2989 = vmatpush.bf16.msra.mxu0 %v2972
      %2990 = vmatpush.bf16.msra.mxu0 %v2971
      %2991 = vmatpush.bf16.msra.mxu0 %v2970
      %2992 = vmatpush.bf16.msra.mxu0 %v2969
      %2993 = vmatmul.bf16.gmra.mxu0 %v830
      %v2994 = vpop.f32.mrf.mxu0
      %v2995 = vadd.f32 0.0, %v2994
      %v2996 = vpop.f32.mrf.mxu0
      %v2997 = vadd.f32 0.0, %v2996
      %2998 = vmatmul.bf16.gmra.mxu0 %v839
      %v2999 = vpop.f32.mrf.mxu0
      %v3000 = vadd.f32 0.0, %v2999
      %v3001 = vpop.f32.mrf.mxu0
      %v3002 = vadd.f32 0.0, %v3001
      %3003 = vmatmul.bf16.gmra.mxu0 %v848
      %v3004 = vpop.f32.mrf.mxu0
      %v3005 = vadd.f32 0.0, %v3004
      %v3006 = vpop.f32.mrf.mxu0
      %v3007 = vadd.f32 0.0, %v3006
      %3008 = vmatmul.bf16.gmra.mxu0 %v857
      %v3009 = vpop.f32.mrf.mxu0
      %v3010 = vadd.f32 0.0, %v3009
      %v3011 = vpop.f32.mrf.mxu0
      %v3012 = vadd.f32 0.0, %v3011
      %3013 = vmatmul.bf16.gmra.mxu0 %v866
      %v3014 = vpop.f32.mrf.mxu0
      %v3015 = vadd.f32 0.0, %v3014
      %v3016 = vpop.f32.mrf.mxu0
      %v3017 = vadd.f32 0.0, %v3016
      %3018 = vmatmul.bf16.gmra.mxu0 %v875
      %v3019 = vpop.f32.mrf.mxu0
      %v3020 = vadd.f32 0.0, %v3019
      %v3021 = vpop.f32.mrf.mxu0
      %v3022 = vadd.f32 0.0, %v3021
      %3023 = vmatmul.bf16.gmra.mxu0 %v884
      %v3024 = vpop.f32.mrf.mxu0
      %v3025 = vadd.f32 0.0, %v3024
      %v3026 = vpop.f32.mrf.mxu0
      %v3027 = vadd.f32 0.0, %v3026
      %3028 = vmatmul.bf16.gmra.mxu0 %v893
      %v3029 = vpop.f32.mrf.mxu0
      %v3030 = vadd.f32 0.0, %v3029
      %v3031 = vpop.f32.mrf.mxu0
      %v3032 = vadd.f32 0.0, %v3031
      %3033 = vmatmul.bf16.gmra.mxu0 %v902
      %v3034 = vpop.f32.mrf.mxu0
      %v3035 = vadd.f32 0.0, %v3034
      %v3036 = vpop.f32.mrf.mxu0
      %v3037 = vadd.f32 0.0, %v3036
      %3038 = vmatmul.bf16.gmra.mxu0 %v911
      %v3039 = vpop.f32.mrf.mxu0
      %v3040 = vadd.f32 0.0, %v3039
      %v3041 = vpop.f32.mrf.mxu0
      %v3042 = vadd.f32 0.0, %v3041
      %3043 = vmatmul.bf16.gmra.mxu0 %v920
      %v3044 = vpop.f32.mrf.mxu0
      %v3045 = vadd.f32 0.0, %v3044
      %v3046 = vpop.f32.mrf.mxu0
      %v3047 = vadd.f32 0.0, %v3046
      %3048 = vmatmul.bf16.gmra.mxu0 %v929
      %v3049 = vpop.f32.mrf.mxu0
      %v3050 = vadd.f32 0.0, %v3049
      %v3051 = vpop.f32.mrf.mxu0
      %v3052 = vadd.f32 0.0, %v3051
      %3053 = vmatmul.bf16.gmra.mxu0 %v938
      %v3054 = vpop.f32.mrf.mxu0
      %v3055 = vadd.f32 0.0, %v3054
      %v3056 = vpop.f32.mrf.mxu0
      %v3057 = vadd.f32 0.0, %v3056
      %3058 = vmatmul.bf16.gmra.mxu0 %v947
      %v3059 = vpop.f32.mrf.mxu0
      %v3060 = vadd.f32 0.0, %v3059
      %v3061 = vpop.f32.mrf.mxu0
      %v3062 = vadd.f32 0.0, %v3061
      %3063 = vmatmul.bf16.gmra.mxu0 %v956
      %v3064 = vpop.f32.mrf.mxu0
      %v3065 = vadd.f32 0.0, %v3064
      %v3066 = vpop.f32.mrf.mxu0
      %v3067 = vadd.f32 0.0, %v3066
      %3068 = vmatmul.bf16.gmra.mxu0 %v965
      %v3069 = vpop.f32.mrf.mxu0
      %v3070 = vadd.f32 0.0, %v3069
      %v3071 = vpop.f32.mrf.mxu0
      %v3072 = vadd.f32 0.0, %v3071
      %3073 = vmatmul.bf16.gmra.mxu0 %v974
      %v3074 = vpop.f32.mrf.mxu0
      %v3075 = vadd.f32 0.0, %v3074
      %v3076 = vpop.f32.mrf.mxu0
      %v3077 = vadd.f32 0.0, %v3076
      %3078 = vmatmul.bf16.gmra.mxu0 %v983
      %v3079 = vpop.f32.mrf.mxu0
      %v3080 = vadd.f32 0.0, %v3079
      %v3081 = vpop.f32.mrf.mxu0
      %v3082 = vadd.f32 0.0, %v3081
      %3083 = vmatmul.bf16.gmra.mxu0 %v992
      %v3084 = vpop.f32.mrf.mxu0
      %v3085 = vadd.f32 0.0, %v3084
      %v3086 = vpop.f32.mrf.mxu0
      %v3087 = vadd.f32 0.0, %v3086
      %3088 = vmatmul.bf16.gmra.mxu0 %v1001
      %v3089 = vpop.f32.mrf.mxu0
      %v3090 = vadd.f32 0.0, %v3089
      %v3091 = vpop.f32.mrf.mxu0
      %v3092 = vadd.f32 0.0, %v3091
      %3093 = vmatmul.bf16.gmra.mxu0 %v1010
      %v3094 = vpop.f32.mrf.mxu0
      %v3095 = vadd.f32 0.0, %v3094
      %v3096 = vpop.f32.mrf.mxu0
      %v3097 = vadd.f32 0.0, %v3096
      %3098 = vmatmul.bf16.gmra.mxu0 %v1019
      %v3099 = vpop.f32.mrf.mxu0
      %v3100 = vadd.f32 0.0, %v3099
      %v3101 = vpop.f32.mrf.mxu0
      %v3102 = vadd.f32 0.0, %v3101
      %3103 = vmatmul.bf16.gmra.mxu0 %v1028
      %v3104 = vpop.f32.mrf.mxu0
      %v3105 = vadd.f32 0.0, %v3104
      %v3106 = vpop.f32.mrf.mxu0
      %v3107 = vadd.f32 0.0, %v3106
      %3108 = vmatmul.bf16.gmra.mxu0 %v1037
      %v3109 = vpop.f32.mrf.mxu0
      %v3110 = vadd.f32 0.0, %v3109
      %v3111 = vpop.f32.mrf.mxu0
      %v3112 = vadd.f32 0.0, %v3111
      %3113 = vmatmul.bf16.gmra.mxu0 %v1046
      %v3114 = vpop.f32.mrf.mxu0
      %v3115 = vadd.f32 0.0, %v3114
      %v3116 = vpop.f32.mrf.mxu0
      %v3117 = vadd.f32 0.0, %v3116
      %3118 = vmatmul.bf16.gmra.mxu0 %v1055
      %v3119 = vpop.f32.mrf.mxu0
      %v3120 = vadd.f32 0.0, %v3119
      %v3121 = vpop.f32.mrf.mxu0
      %v3122 = vadd.f32 0.0, %v3121
      %3123 = vmatmul.bf16.gmra.mxu0 %v1064
      %v3124 = vpop.f32.mrf.mxu0
      %v3125 = vadd.f32 0.0, %v3124
      %v3126 = vpop.f32.mrf.mxu0
      %v3127 = vadd.f32 0.0, %v3126
      %3128 = vmatmul.bf16.gmra.mxu0 %v1951
      %v3129 = vpop.f32.mrf.mxu0
      %v3130 = vadd.f32 0.0, %v3129
      %v3131 = vpop.f32.mrf.mxu0
      %v3132 = vadd.f32 0.0, %v3131
      %3133 = vmatmul.bf16.gmra.mxu0 %v1960
      %v3134 = vpop.f32.mrf.mxu0
      %v3135 = vadd.f32 0.0, %v3134
      %v3136 = vpop.f32.mrf.mxu0
      %v3137 = vadd.f32 0.0, %v3136
      %3138 = vmatmul.bf16.gmra.mxu0 %v2915
      %v3139 = vpop.f32.mrf.mxu0
      %v3140 = vadd.f32 0.0, %v3139
      %v3141 = vpop.f32.mrf.mxu0
      %v3142 = vadd.f32 0.0, %v3141
      %3143 = vmatmul.bf16.gmra.mxu0 %v2924
      %v3144 = vpop.f32.mrf.mxu0
      %v3145 = vadd.f32 0.0, %v3144
      %v3146 = vpop.f32.mrf.mxu0
      %v3147 = vadd.f32 0.0, %v3146
      %3148 = vmatmul.bf16.gmra.mxu0 %v2933
      %v3149 = vpop.f32.mrf.mxu0
      %v3150 = vadd.f32 0.0, %v3149
      %v3151 = vpop.f32.mrf.mxu0
      %v3152 = vadd.f32 0.0, %v3151
      %3153 = vdwg.mxu0
      %v3154 = vadd.f32 %v2817, %v2995
      %v3155 = vadd.f32 %v2818, %v2997
      %v3156 = vadd.f32 %v2819, %v3000
      %v3157 = vadd.f32 %v2820, %v3002
      %v3158 = vadd.f32 %v2821, %v3005
      %v3159 = vadd.f32 %v2822, %v3007
      %v3160 = vadd.f32 %v2823, %v3010
      %v3161 = vadd.f32 %v2824, %v3012
      %v3162 = vadd.f32 %v2825, %v3015
      %v3163 = vadd.f32 %v2826, %v3017
      %v3164 = vadd.f32 %v2827, %v3020
      %v3165 = vadd.f32 %v2828, %v3022
      %v3166 = vadd.f32 %v2829, %v3025
      %v3167 = vadd.f32 %v2830, %v3027
      %v3168 = vadd.f32 %v2831, %v3030
      %v3169 = vadd.f32 %v2832, %v3032
      %v3170 = vadd.f32 %v2833, %v3035
      %v3171 = vadd.f32 %v2834, %v3037
      %v3172 = vadd.f32 %v2835, %v3040
      %v3173 = vadd.f32 %v2836, %v3042
      %v3174 = vadd.f32 %v2837, %v3045
      %v3175 = vadd.f32 %v2838, %v3047
      %v3176 = vadd.f32 %v2839, %v3050
      %v3177 = vadd.f32 %v2840, %v3052
      %v3178 = vadd.f32 %v2841, %v3055
      %v3179 = vadd.f32 %v2842, %v3057
      %v3180 = vadd.f32 %v2843, %v3060
      %v3181 = vadd.f32 %v2844, %v3062
      %v3182 = vadd.f32 %v2845, %v3065
      %v3183 = vadd.f32 %v2846, %v3067
      %v3184 = vadd.f32 %v2847, %v3070
      %v3185 = vadd.f32 %v2848, %v3072
      %v3186 = vadd.f32 %v2849, %v3075
      %v3187 = vadd.f32 %v2850, %v3077
      %v3188 = vadd.f32 %v2851, %v3080
      %v3189 = vadd.f32 %v2852, %v3082
      %v3190 = vadd.f32 %v2853, %v3085
      %v3191 = vadd.f32 %v2854, %v3087
      %v3192 = vadd.f32 %v2855, %v3090
      %v3193 = vadd.f32 %v2856, %v3092
      %v3194 = vadd.f32 %v2857, %v3095
      %v3195 = vadd.f32 %v2858, %v3097
      %v3196 = vadd.f32 %v2859, %v3100
      %v3197 = vadd.f32 %v2860, %v3102
      %v3198 = vadd.f32 %v2861, %v3105
      %v3199 = vadd.f32 %v2862, %v3107
      %v3200 = vadd.f32 %v2863, %v3110
      %v3201 = vadd.f32 %v2864, %v3112
      %v3202 = vadd.f32 %v2865, %v3115
      %v3203 = vadd.f32 %v2866, %v3117
      %v3204 = vadd.f32 %v2867, %v3120
      %v3205 = vadd.f32 %v2868, %v3122
      %v3206 = vadd.f32 %v2869, %v3125
      %v3207 = vadd.f32 %v2870, %v3127
      %v3208 = vadd.f32 %v2871, %v3130
      %v3209 = vadd.f32 %v2872, %v3132
      %v3210 = vadd.f32 %v2873, %v3135
      %v3211 = vadd.f32 %v2874, %v3137
      %v3212 = vadd.f32 %v2875, %v3140
      %v3213 = vadd.f32 %v2876, %v3142
      %v3214 = vadd.f32 %v2877, %v3145
      %v3215 = vadd.f32 %v2878, %v3147
      %v3216 = vadd.f32 %v2879, %v3150
      %v3217 = vadd.f32 %v2880, %v3152
      %s3218 = scalar_lea.vmem %s1, 448
      %v3219 = vld [vmem:[%s3218] sm:$0xf]
      %v3220 = vld [vmem:[%s3218 + $0x4] sm:$0xf]
      %v3221 = vld [vmem:[%s3218 + $0x8] sm:$0xf]
      %v3222 = vld [vmem:[%s3218 + $0xc] sm:$0xf]
      %v3223 = vld [vmem:[%s3218 + $0x10] sm:$0xf]
      %v3224 = vld [vmem:[%s3218 + $0x14] sm:$0xf]
      %v3225 = vld [vmem:[%s3218 + $0x18] sm:$0xf]
      %v3226 = vld [vmem:[%s3218 + $0x1c] sm:$0xf]
      %v3227 = vld [vmem:[%s3218 + $0x20] sm:$0xf]
      %v3228 = vld [vmem:[%s3218 + $0x24] sm:$0xf]
      %v3229 = vld [vmem:[%s3218 + $0x28] sm:$0xf]
      %v3230 = vld [vmem:[%s3218 + $0x2c] sm:$0xf]
      %v3231 = vld [vmem:[%s3218 + $0x30] sm:$0xf]
      %v3232 = vld [vmem:[%s3218 + $0x34] sm:$0xf]
      %v3233 = vld [vmem:[%s3218 + $0x38] sm:$0xf]
      %v3234 = vld [vmem:[%s3218 + $0x3c] sm:$0xf]
      %v3235 = vpack.c.b16 %v2901, %v2574
      %v3236 = vpack.c.b16 %v2903, %v2902
      %v3255 = vunpack.c.l.b16 %v3219
      %v3256 = vunpack.c.l.b16 %v3220
      %v3257 = vunpack.c.l.b16 %v3221
      %v3258 = vunpack.c.l.b16 %v3222
      %v3259 = vunpack.c.l.b16 %v3223
      %v3260 = vunpack.c.l.b16 %v3224
      %v3261 = vunpack.c.l.b16 %v3225
      %v3262 = vunpack.c.l.b16 %v3226
      %v3263 = vunpack.c.l.b16 %v3227
      %v3264 = vunpack.c.l.b16 %v3228
      %v3265 = vunpack.c.l.b16 %v3229
      %v3266 = vunpack.c.l.b16 %v3230
      %v3267 = vunpack.c.l.b16 %v3231
      %v3268 = vunpack.c.l.b16 %v3232
      %v3269 = vunpack.c.l.b16 %v3233
      %v3270 = vunpack.c.l.b16 %v3234
      %v3271 = vpack.c.b16 %v3256, %v3255
      %v3272 = vpack.c.b16 %v3258, %v3257
      %v3273 = vpack.c.b16 %v3260, %v3259
      %v3274 = vpack.c.b16 %v3262, %v3261
      %v3275 = vpack.c.b16 %v3264, %v3263
      %v3276 = vpack.c.b16 %v3266, %v3265
      %v3277 = vpack.c.b16 %v3268, %v3267
      %v3278 = vpack.c.b16 %v3270, %v3269
      %3287 = vmatpush.bf16.msra.mxu0 %v3278
      %3288 = vmatpush.bf16.msra.mxu0 %v3277
      %3289 = vmatpush.bf16.msra.mxu0 %v3276
      %3290 = vmatpush.bf16.msra.mxu0 %v3275
      %3291 = vmatpush.bf16.msra.mxu0 %v3274
      %3292 = vmatpush.bf16.msra.mxu0 %v3273
      %3293 = vmatpush.bf16.msra.mxu0 %v3272
      %3294 = vmatpush.bf16.msra.mxu0 %v3271
      %3295 = vmatmul.bf16.gmra.mxu0 %v465
      %v3296 = vpop.f32.mrf.mxu0
      %v3297 = vadd.f32 0.0, %v3296
      %v3298 = vpop.f32.mrf.mxu0
      %v3299 = vadd.f32 0.0, %v3298
      %3300 = vmatmul.bf16.gmra.mxu0 %v466
      %v3301 = vpop.f32.mrf.mxu0
      %v3302 = vadd.f32 0.0, %v3301
      %v3303 = vpop.f32.mrf.mxu0
      %v3304 = vadd.f32 0.0, %v3303
      %3305 = vmatmul.bf16.gmra.mxu0 %v467
      %v3306 = vpop.f32.mrf.mxu0
      %v3307 = vadd.f32 0.0, %v3306
      %v3308 = vpop.f32.mrf.mxu0
      %v3309 = vadd.f32 0.0, %v3308
      %3310 = vmatmul.bf16.gmra.mxu0 %v468
      %v3311 = vpop.f32.mrf.mxu0
      %v3312 = vadd.f32 0.0, %v3311
      %v3313 = vpop.f32.mrf.mxu0
      %v3314 = vadd.f32 0.0, %v3313
      %3315 = vmatmul.bf16.gmra.mxu0 %v469
      %v3316 = vpop.f32.mrf.mxu0
      %v3317 = vadd.f32 0.0, %v3316
      %v3318 = vpop.f32.mrf.mxu0
      %v3319 = vadd.f32 0.0, %v3318
      %3320 = vmatmul.bf16.gmra.mxu0 %v470
      %v3321 = vpop.f32.mrf.mxu0
      %v3322 = vadd.f32 0.0, %v3321
      %v3323 = vpop.f32.mrf.mxu0
      %v3324 = vadd.f32 0.0, %v3323
      %3325 = vmatmul.bf16.gmra.mxu0 %v471
      %v3326 = vpop.f32.mrf.mxu0
      %v3327 = vadd.f32 0.0, %v3326
      %v3328 = vpop.f32.mrf.mxu0
      %v3329 = vadd.f32 0.0, %v3328
      %3330 = vmatmul.bf16.gmra.mxu0 %v472
      %v3331 = vpop.f32.mrf.mxu0
      %v3332 = vadd.f32 0.0, %v3331
      %v3333 = vpop.f32.mrf.mxu0
      %v3334 = vadd.f32 0.0, %v3333
      %3335 = vmatmul.bf16.gmra.mxu0 %v473
      %v3336 = vpop.f32.mrf.mxu0
      %v3337 = vadd.f32 0.0, %v3336
      %v3338 = vpop.f32.mrf.mxu0
      %v3339 = vadd.f32 0.0, %v3338
      %3340 = vmatmul.bf16.gmra.mxu0 %v474
      %v3341 = vpop.f32.mrf.mxu0
      %v3342 = vadd.f32 0.0, %v3341
      %v3343 = vpop.f32.mrf.mxu0
      %v3344 = vadd.f32 0.0, %v3343
      %3345 = vmatmul.bf16.gmra.mxu0 %v475
      %v3346 = vpop.f32.mrf.mxu0
      %v3347 = vadd.f32 0.0, %v3346
      %v3348 = vpop.f32.mrf.mxu0
      %v3349 = vadd.f32 0.0, %v3348
      %3350 = vmatmul.bf16.gmra.mxu0 %v476
      %v3351 = vpop.f32.mrf.mxu0
      %v3352 = vadd.f32 0.0, %v3351
      %v3353 = vpop.f32.mrf.mxu0
      %v3354 = vadd.f32 0.0, %v3353
      %3355 = vmatmul.bf16.gmra.mxu0 %v477
      %v3356 = vpop.f32.mrf.mxu0
      %v3357 = vadd.f32 0.0, %v3356
      %v3358 = vpop.f32.mrf.mxu0
      %v3359 = vadd.f32 0.0, %v3358
      %3360 = vmatmul.bf16.gmra.mxu0 %v478
      %v3361 = vpop.f32.mrf.mxu0
      %v3362 = vadd.f32 0.0, %v3361
      %v3363 = vpop.f32.mrf.mxu0
      %v3364 = vadd.f32 0.0, %v3363
      %3365 = vmatmul.bf16.gmra.mxu0 %v479
      %v3366 = vpop.f32.mrf.mxu0
      %v3367 = vadd.f32 0.0, %v3366
      %v3368 = vpop.f32.mrf.mxu0
      %v3369 = vadd.f32 0.0, %v3368
      %3370 = vmatmul.bf16.gmra.mxu0 %v480
      %v3371 = vpop.f32.mrf.mxu0
      %v3372 = vadd.f32 0.0, %v3371
      %v3373 = vpop.f32.mrf.mxu0
      %v3374 = vadd.f32 0.0, %v3373
      %3375 = vmatmul.bf16.gmra.mxu0 %v481
      %v3376 = vpop.f32.mrf.mxu0
      %v3377 = vadd.f32 0.0, %v3376
      %v3378 = vpop.f32.mrf.mxu0
      %v3379 = vadd.f32 0.0, %v3378
      %3380 = vmatmul.bf16.gmra.mxu0 %v482
      %v3381 = vpop.f32.mrf.mxu0
      %v3382 = vadd.f32 0.0, %v3381
      %v3383 = vpop.f32.mrf.mxu0
      %v3384 = vadd.f32 0.0, %v3383
      %3385 = vmatmul.bf16.gmra.mxu0 %v483
      %v3386 = vpop.f32.mrf.mxu0
      %v3387 = vadd.f32 0.0, %v3386
      %v3388 = vpop.f32.mrf.mxu0
      %v3389 = vadd.f32 0.0, %v3388
      %3390 = vmatmul.bf16.gmra.mxu0 %v484
      %v3391 = vpop.f32.mrf.mxu0
      %v3392 = vadd.f32 0.0, %v3391
      %v3393 = vpop.f32.mrf.mxu0
      %v3394 = vadd.f32 0.0, %v3393
      %3395 = vmatmul.bf16.gmra.mxu0 %v485
      %v3396 = vpop.f32.mrf.mxu0
      %v3397 = vadd.f32 0.0, %v3396
      %v3398 = vpop.f32.mrf.mxu0
      %v3399 = vadd.f32 0.0, %v3398
      %3400 = vmatmul.bf16.gmra.mxu0 %v486
      %v3401 = vpop.f32.mrf.mxu0
      %v3402 = vadd.f32 0.0, %v3401
      %v3403 = vpop.f32.mrf.mxu0
      %v3404 = vadd.f32 0.0, %v3403
      %3405 = vmatmul.bf16.gmra.mxu0 %v487
      %v3406 = vpop.f32.mrf.mxu0
      %v3407 = vadd.f32 0.0, %v3406
      %v3408 = vpop.f32.mrf.mxu0
      %v3409 = vadd.f32 0.0, %v3408
      %3410 = vmatmul.bf16.gmra.mxu0 %v488
      %v3411 = vpop.f32.mrf.mxu0
      %v3412 = vadd.f32 0.0, %v3411
      %v3413 = vpop.f32.mrf.mxu0
      %v3414 = vadd.f32 0.0, %v3413
      %3415 = vmatmul.bf16.gmra.mxu0 %v489
      %v3416 = vpop.f32.mrf.mxu0
      %v3417 = vadd.f32 0.0, %v3416
      %v3418 = vpop.f32.mrf.mxu0
      %v3419 = vadd.f32 0.0, %v3418
      %3420 = vmatmul.bf16.gmra.mxu0 %v490
      %v3421 = vpop.f32.mrf.mxu0
      %v3422 = vadd.f32 0.0, %v3421
      %v3423 = vpop.f32.mrf.mxu0
      %v3424 = vadd.f32 0.0, %v3423
      %3425 = vmatmul.bf16.gmra.mxu0 %v491
      %v3426 = vpop.f32.mrf.mxu0
      %v3427 = vadd.f32 0.0, %v3426
      %v3428 = vpop.f32.mrf.mxu0
      %v3429 = vadd.f32 0.0, %v3428
      %3430 = vmatmul.bf16.gmra.mxu0 %v492
      %v3431 = vpop.f32.mrf.mxu0
      %v3432 = vadd.f32 0.0, %v3431
      %v3433 = vpop.f32.mrf.mxu0
      %v3434 = vadd.f32 0.0, %v3433
      %3435 = vmatmul.bf16.gmra.mxu0 %v2271
      %v3436 = vpop.f32.mrf.mxu0
      %v3437 = vadd.f32 0.0, %v3436
      %v3438 = vpop.f32.mrf.mxu0
      %v3439 = vadd.f32 0.0, %v3438
      %3440 = vmatmul.bf16.gmra.mxu0 %v2272
      %v3441 = vpop.f32.mrf.mxu0
      %v3442 = vadd.f32 0.0, %v3441
      %v3443 = vpop.f32.mrf.mxu0
      %v3444 = vadd.f32 0.0, %v3443
      %3445 = vmatmul.bf16.gmra.mxu0 %v3235
      %v3446 = vpop.f32.mrf.mxu0
      %v3447 = vadd.f32 0.0, %v3446
      %v3448 = vpop.f32.mrf.mxu0
      %v3449 = vadd.f32 0.0, %v3448
      %3450 = vmatmul.bf16.gmra.mxu0 %v3236
      %v3451 = vpop.f32.mrf.mxu0
      %v3452 = vadd.f32 0.0, %v3451
      %v3453 = vpop.f32.mrf.mxu0
      %v3454 = vadd.f32 0.0, %v3453
      %3455 = vdwg.mxu0
      %v3456 = vadd.f32 %v3154, %v3297
      %v3457 = vadd.f32 %v3155, %v3299
      %v3458 = vadd.f32 %v3156, %v3302
      %v3459 = vadd.f32 %v3157, %v3304
      %v3460 = vadd.f32 %v3158, %v3307
      %v3461 = vadd.f32 %v3159, %v3309
      %v3462 = vadd.f32 %v3160, %v3312
      %v3463 = vadd.f32 %v3161, %v3314
      %v3464 = vadd.f32 %v3162, %v3317
      %v3465 = vadd.f32 %v3163, %v3319
      %v3466 = vadd.f32 %v3164, %v3322
      %v3467 = vadd.f32 %v3165, %v3324
      %v3468 = vadd.f32 %v3166, %v3327
      %v3469 = vadd.f32 %v3167, %v3329
      %v3470 = vadd.f32 %v3168, %v3332
      %v3471 = vadd.f32 %v3169, %v3334
      %v3472 = vadd.f32 %v3170, %v3337
      %v3473 = vadd.f32 %v3171, %v3339
      %v3474 = vadd.f32 %v3172, %v3342
      %v3475 = vadd.f32 %v3173, %v3344
      %v3476 = vadd.f32 %v3174, %v3347
      %v3477 = vadd.f32 %v3175, %v3349
      %v3478 = vadd.f32 %v3176, %v3352
      %v3479 = vadd.f32 %v3177, %v3354
      %v3480 = vadd.f32 %v3178, %v3357
      %v3481 = vadd.f32 %v3179, %v3359
      %v3482 = vadd.f32 %v3180, %v3362
      %v3483 = vadd.f32 %v3181, %v3364
      %v3484 = vadd.f32 %v3182, %v3367
      %v3485 = vadd.f32 %v3183, %v3369
      %v3486 = vadd.f32 %v3184, %v3372
      %v3487 = vadd.f32 %v3185, %v3374
      %v3488 = vadd.f32 %v3186, %v3377
      %v3489 = vadd.f32 %v3187, %v3379
      %v3490 = vadd.f32 %v3188, %v3382
      %v3491 = vadd.f32 %v3189, %v3384
      %v3492 = vadd.f32 %v3190, %v3387
      %v3493 = vadd.f32 %v3191, %v3389
      %v3494 = vadd.f32 %v3192, %v3392
      %v3495 = vadd.f32 %v3193, %v3394
      %v3496 = vadd.f32 %v3194, %v3397
      %v3497 = vadd.f32 %v3195, %v3399
      %v3498 = vadd.f32 %v3196, %v3402
      %v3499 = vadd.f32 %v3197, %v3404
      %v3500 = vadd.f32 %v3198, %v3407
      %v3501 = vadd.f32 %v3199, %v3409
      %v3502 = vadd.f32 %v3200, %v3412
      %v3503 = vadd.f32 %v3201, %v3414
      %v3504 = vadd.f32 %v3202, %v3417
      %v3505 = vadd.f32 %v3203, %v3419
      %v3506 = vadd.f32 %v3204, %v3422
      %v3507 = vadd.f32 %v3205, %v3424
      %v3508 = vadd.f32 %v3206, %v3427
      %v3509 = vadd.f32 %v3207, %v3429
      %v3510 = vadd.f32 %v3208, %v3432
      %v3511 = vadd.f32 %v3209, %v3434
      %v3512 = vadd.f32 %v3210, %v3437
      %v3513 = vadd.f32 %v3211, %v3439
      %v3514 = vadd.f32 %v3212, %v3442
      %v3515 = vadd.f32 %v3213, %v3444
      %v3516 = vadd.f32 %v3214, %v3447
      %v3517 = vadd.f32 %v3215, %v3449
      %v3518 = vadd.f32 %v3216, %v3452
      %v3519 = vadd.f32 %v3217, %v3454
      %s3520 = scalar_lea.vmem %s1, 512
      %v3521 = vld [vmem:[%s3520] sm:$0xf]
      %v3522 = vld [vmem:[%s3520 + $0x4] sm:$0xf]
      %v3523 = vld [vmem:[%s3520 + $0x8] sm:$0xf]
      %v3524 = vld [vmem:[%s3520 + $0xc] sm:$0xf]
      %v3525 = vld [vmem:[%s3520 + $0x10] sm:$0xf]
      %v3526 = vld [vmem:[%s3520 + $0x14] sm:$0xf]
      %v3527 = vld [vmem:[%s3520 + $0x18] sm:$0xf]
      %v3528 = vld [vmem:[%s3520 + $0x1c] sm:$0xf]
      %v3529 = vld [vmem:[%s3520 + $0x20] sm:$0xf]
      %v3530 = vld [vmem:[%s3520 + $0x24] sm:$0xf]
      %v3531 = vld [vmem:[%s3520 + $0x28] sm:$0xf]
      %v3532 = vld [vmem:[%s3520 + $0x2c] sm:$0xf]
      %v3533 = vld [vmem:[%s3520 + $0x30] sm:$0xf]
      %v3534 = vld [vmem:[%s3520 + $0x34] sm:$0xf]
      %v3535 = vld [vmem:[%s3520 + $0x38] sm:$0xf]
      %v3536 = vld [vmem:[%s3520 + $0x3c] sm:$0xf]
      %v3538 = vunpack.c.l.b16 %v299
      %v3539 = vpack.c.b16 %v3538, %v3538
      %v3541 = vshll.u32 %v3235, 16
      %v3543 = vrot.slane %v3541, 1
      %v3544 = vsel %vm1343, %v2591, %v3543
      %v3545 = vshrl.u32 %v3235, 16
      %v3547 = vor.u32 %v3545, %v3543
      %v3549 = vshll.u32 %v3236, 16
      %v3551 = vrot.slane %v3549, 1
      %v3552 = vsel %vm1343, %v3547, %v3551
      %v3553 = vshrl.u32 %v3236, 16
      %v3555 = vor.u32 %v3553, %v3551
      %v3557 = vshll.u32 %v3539, 16
      %v3559 = vrot.slane %v3557, 1
      %v3560 = vsel %vm1343, %v3555, %v3559
      %v3580 = vunpack.c.l.b16 %v3521
      %v3581 = vunpack.c.l.b16 %v3522
      %v3582 = vunpack.c.l.b16 %v3523
      %v3583 = vunpack.c.l.b16 %v3524
      %v3584 = vunpack.c.l.b16 %v3525
      %v3585 = vunpack.c.l.b16 %v3526
      %v3586 = vunpack.c.l.b16 %v3527
      %v3587 = vunpack.c.l.b16 %v3528
      %v3588 = vunpack.c.l.b16 %v3529
      %v3589 = vunpack.c.l.b16 %v3530
      %v3590 = vunpack.c.l.b16 %v3531
      %v3591 = vunpack.c.l.b16 %v3532
      %v3592 = vunpack.c.l.b16 %v3533
      %v3593 = vunpack.c.l.b16 %v3534
      %v3594 = vunpack.c.l.b16 %v3535
      %v3595 = vunpack.c.l.b16 %v3536
      %v3596 = vpack.c.b16 %v3581, %v3580
      %v3597 = vpack.c.b16 %v3583, %v3582
      %v3598 = vpack.c.b16 %v3585, %v3584
      %v3599 = vpack.c.b16 %v3587, %v3586
      %v3600 = vpack.c.b16 %v3589, %v3588
      %v3601 = vpack.c.b16 %v3591, %v3590
      %v3602 = vpack.c.b16 %v3593, %v3592
      %v3603 = vpack.c.b16 %v3595, %v3594
      %3612 = vmatpush.bf16.msra.mxu0 %v3603
      %3613 = vmatpush.bf16.msra.mxu0 %v3602
      %3614 = vmatpush.bf16.msra.mxu0 %v3601
      %3615 = vmatpush.bf16.msra.mxu0 %v3600
      %3616 = vmatpush.bf16.msra.mxu0 %v3599
      %3617 = vmatpush.bf16.msra.mxu0 %v3598
      %3618 = vmatpush.bf16.msra.mxu0 %v3597
      %3619 = vmatpush.bf16.msra.mxu0 %v3596
      %3620 = vmatmul.bf16.gmra.mxu0 %v1387
      %v3621 = vpop.f32.mrf.mxu0
      %v3622 = vadd.f32 0.0, %v3621
      %v3623 = vpop.f32.mrf.mxu0
      %v3624 = vadd.f32 0.0, %v3623
      %3625 = vmatmul.bf16.gmra.mxu0 %v1395
      %v3626 = vpop.f32.mrf.mxu0
      %v3627 = vadd.f32 0.0, %v3626
      %v3628 = vpop.f32.mrf.mxu0
      %v3629 = vadd.f32 0.0, %v3628
      %3630 = vmatmul.bf16.gmra.mxu0 %v1403
      %v3631 = vpop.f32.mrf.mxu0
      %v3632 = vadd.f32 0.0, %v3631
      %v3633 = vpop.f32.mrf.mxu0
      %v3634 = vadd.f32 0.0, %v3633
      %3635 = vmatmul.bf16.gmra.mxu0 %v1411
      %v3636 = vpop.f32.mrf.mxu0
      %v3637 = vadd.f32 0.0, %v3636
      %v3638 = vpop.f32.mrf.mxu0
      %v3639 = vadd.f32 0.0, %v3638
      %3640 = vmatmul.bf16.gmra.mxu0 %v1419
      %v3641 = vpop.f32.mrf.mxu0
      %v3642 = vadd.f32 0.0, %v3641
      %v3643 = vpop.f32.mrf.mxu0
      %v3644 = vadd.f32 0.0, %v3643
      %3645 = vmatmul.bf16.gmra.mxu0 %v1427
      %v3646 = vpop.f32.mrf.mxu0
      %v3647 = vadd.f32 0.0, %v3646
      %v3648 = vpop.f32.mrf.mxu0
      %v3649 = vadd.f32 0.0, %v3648
      %3650 = vmatmul.bf16.gmra.mxu0 %v1435
      %v3651 = vpop.f32.mrf.mxu0
      %v3652 = vadd.f32 0.0, %v3651
      %v3653 = vpop.f32.mrf.mxu0
      %v3654 = vadd.f32 0.0, %v3653
      %3655 = vmatmul.bf16.gmra.mxu0 %v1443
      %v3656 = vpop.f32.mrf.mxu0
      %v3657 = vadd.f32 0.0, %v3656
      %v3658 = vpop.f32.mrf.mxu0
      %v3659 = vadd.f32 0.0, %v3658
      %3660 = vmatmul.bf16.gmra.mxu0 %v1451
      %v3661 = vpop.f32.mrf.mxu0
      %v3662 = vadd.f32 0.0, %v3661
      %v3663 = vpop.f32.mrf.mxu0
      %v3664 = vadd.f32 0.0, %v3663
      %3665 = vmatmul.bf16.gmra.mxu0 %v1459
      %v3666 = vpop.f32.mrf.mxu0
      %v3667 = vadd.f32 0.0, %v3666
      %v3668 = vpop.f32.mrf.mxu0
      %v3669 = vadd.f32 0.0, %v3668
      %3670 = vmatmul.bf16.gmra.mxu0 %v1467
      %v3671 = vpop.f32.mrf.mxu0
      %v3672 = vadd.f32 0.0, %v3671
      %v3673 = vpop.f32.mrf.mxu0
      %v3674 = vadd.f32 0.0, %v3673
      %3675 = vmatmul.bf16.gmra.mxu0 %v1475
      %v3676 = vpop.f32.mrf.mxu0
      %v3677 = vadd.f32 0.0, %v3676
      %v3678 = vpop.f32.mrf.mxu0
      %v3679 = vadd.f32 0.0, %v3678
      %3680 = vmatmul.bf16.gmra.mxu0 %v1483
      %v3681 = vpop.f32.mrf.mxu0
      %v3682 = vadd.f32 0.0, %v3681
      %v3683 = vpop.f32.mrf.mxu0
      %v3684 = vadd.f32 0.0, %v3683
      %3685 = vmatmul.bf16.gmra.mxu0 %v1491
      %v3686 = vpop.f32.mrf.mxu0
      %v3687 = vadd.f32 0.0, %v3686
      %v3688 = vpop.f32.mrf.mxu0
      %v3689 = vadd.f32 0.0, %v3688
      %3690 = vmatmul.bf16.gmra.mxu0 %v1499
      %v3691 = vpop.f32.mrf.mxu0
      %v3692 = vadd.f32 0.0, %v3691
      %v3693 = vpop.f32.mrf.mxu0
      %v3694 = vadd.f32 0.0, %v3693
      %3695 = vmatmul.bf16.gmra.mxu0 %v1507
      %v3696 = vpop.f32.mrf.mxu0
      %v3697 = vadd.f32 0.0, %v3696
      %v3698 = vpop.f32.mrf.mxu0
      %v3699 = vadd.f32 0.0, %v3698
      %3700 = vmatmul.bf16.gmra.mxu0 %v1515
      %v3701 = vpop.f32.mrf.mxu0
      %v3702 = vadd.f32 0.0, %v3701
      %v3703 = vpop.f32.mrf.mxu0
      %v3704 = vadd.f32 0.0, %v3703
      %3705 = vmatmul.bf16.gmra.mxu0 %v1523
      %v3706 = vpop.f32.mrf.mxu0
      %v3707 = vadd.f32 0.0, %v3706
      %v3708 = vpop.f32.mrf.mxu0
      %v3709 = vadd.f32 0.0, %v3708
      %3710 = vmatmul.bf16.gmra.mxu0 %v1531
      %v3711 = vpop.f32.mrf.mxu0
      %v3712 = vadd.f32 0.0, %v3711
      %v3713 = vpop.f32.mrf.mxu0
      %v3714 = vadd.f32 0.0, %v3713
      %3715 = vmatmul.bf16.gmra.mxu0 %v1539
      %v3716 = vpop.f32.mrf.mxu0
      %v3717 = vadd.f32 0.0, %v3716
      %v3718 = vpop.f32.mrf.mxu0
      %v3719 = vadd.f32 0.0, %v3718
      %3720 = vmatmul.bf16.gmra.mxu0 %v1547
      %v3721 = vpop.f32.mrf.mxu0
      %v3722 = vadd.f32 0.0, %v3721
      %v3723 = vpop.f32.mrf.mxu0
      %v3724 = vadd.f32 0.0, %v3723
      %3725 = vmatmul.bf16.gmra.mxu0 %v1555
      %v3726 = vpop.f32.mrf.mxu0
      %v3727 = vadd.f32 0.0, %v3726
      %v3728 = vpop.f32.mrf.mxu0
      %v3729 = vadd.f32 0.0, %v3728
      %3730 = vmatmul.bf16.gmra.mxu0 %v1563
      %v3731 = vpop.f32.mrf.mxu0
      %v3732 = vadd.f32 0.0, %v3731
      %v3733 = vpop.f32.mrf.mxu0
      %v3734 = vadd.f32 0.0, %v3733
      %3735 = vmatmul.bf16.gmra.mxu0 %v1571
      %v3736 = vpop.f32.mrf.mxu0
      %v3737 = vadd.f32 0.0, %v3736
      %v3738 = vpop.f32.mrf.mxu0
      %v3739 = vadd.f32 0.0, %v3738
      %3740 = vmatmul.bf16.gmra.mxu0 %v1579
      %v3741 = vpop.f32.mrf.mxu0
      %v3742 = vadd.f32 0.0, %v3741
      %v3743 = vpop.f32.mrf.mxu0
      %v3744 = vadd.f32 0.0, %v3743
      %3745 = vmatmul.bf16.gmra.mxu0 %v1587
      %v3746 = vpop.f32.mrf.mxu0
      %v3747 = vadd.f32 0.0, %v3746
      %v3748 = vpop.f32.mrf.mxu0
      %v3749 = vadd.f32 0.0, %v3748
      %3750 = vmatmul.bf16.gmra.mxu0 %v1595
      %v3751 = vpop.f32.mrf.mxu0
      %v3752 = vadd.f32 0.0, %v3751
      %v3753 = vpop.f32.mrf.mxu0
      %v3754 = vadd.f32 0.0, %v3753
      %3755 = vmatmul.bf16.gmra.mxu0 %v2580
      %v3756 = vpop.f32.mrf.mxu0
      %v3757 = vadd.f32 0.0, %v3756
      %v3758 = vpop.f32.mrf.mxu0
      %v3759 = vadd.f32 0.0, %v3758
      %3760 = vmatmul.bf16.gmra.mxu0 %v2588
      %v3761 = vpop.f32.mrf.mxu0
      %v3762 = vadd.f32 0.0, %v3761
      %v3763 = vpop.f32.mrf.mxu0
      %v3764 = vadd.f32 0.0, %v3763
      %3765 = vmatmul.bf16.gmra.mxu0 %v3544
      %v3766 = vpop.f32.mrf.mxu0
      %v3767 = vadd.f32 0.0, %v3766
      %v3768 = vpop.f32.mrf.mxu0
      %v3769 = vadd.f32 0.0, %v3768
      %3770 = vmatmul.bf16.gmra.mxu0 %v3552
      %v3771 = vpop.f32.mrf.mxu0
      %v3772 = vadd.f32 0.0, %v3771
      %v3773 = vpop.f32.mrf.mxu0
      %v3774 = vadd.f32 0.0, %v3773
      %3775 = vmatmul.bf16.gmra.mxu0 %v3560
      %v3776 = vpop.f32.mrf.mxu0
      %v3777 = vadd.f32 0.0, %v3776
      %v3778 = vpop.f32.mrf.mxu0
      %v3779 = vadd.f32 0.0, %v3778
      %3780 = vdwg.mxu0
      %v3781 = vadd.f32 %v3456, %v3622
      %v3782 = vadd.f32 %v3457, %v3624
      %v3783 = vadd.f32 %v3458, %v3627
      %v3784 = vadd.f32 %v3459, %v3629
      %v3785 = vadd.f32 %v3460, %v3632
      %v3786 = vadd.f32 %v3461, %v3634
      %v3787 = vadd.f32 %v3462, %v3637
      %v3788 = vadd.f32 %v3463, %v3639
      %v3789 = vadd.f32 %v3464, %v3642
      %v3790 = vadd.f32 %v3465, %v3644
      %v3791 = vadd.f32 %v3466, %v3647
      %v3792 = vadd.f32 %v3467, %v3649
      %v3793 = vadd.f32 %v3468, %v3652
      %v3794 = vadd.f32 %v3469, %v3654
      %v3795 = vadd.f32 %v3470, %v3657
      %v3796 = vadd.f32 %v3471, %v3659
      %v3797 = vadd.f32 %v3472, %v3662
      %v3798 = vadd.f32 %v3473, %v3664
      %v3799 = vadd.f32 %v3474, %v3667
      %v3800 = vadd.f32 %v3475, %v3669
      %v3801 = vadd.f32 %v3476, %v3672
      %v3802 = vadd.f32 %v3477, %v3674
      %v3803 = vadd.f32 %v3478, %v3677
      %v3804 = vadd.f32 %v3479, %v3679
      %v3805 = vadd.f32 %v3480, %v3682
      %v3806 = vadd.f32 %v3481, %v3684
      %v3807 = vadd.f32 %v3482, %v3687
      %v3808 = vadd.f32 %v3483, %v3689
      %v3809 = vadd.f32 %v3484, %v3692
      %v3810 = vadd.f32 %v3485, %v3694
      %v3811 = vadd.f32 %v3486, %v3697
      %v3812 = vadd.f32 %v3487, %v3699
      %v3813 = vadd.f32 %v3488, %v3702
      %v3814 = vadd.f32 %v3489, %v3704
      %v3815 = vadd.f32 %v3490, %v3707
      %v3816 = vadd.f32 %v3491, %v3709
      %v3817 = vadd.f32 %v3492, %v3712
      %v3818 = vadd.f32 %v3493, %v3714
      %v3819 = vadd.f32 %v3494, %v3717
      %v3820 = vadd.f32 %v3495, %v3719
      %v3821 = vadd.f32 %v3496, %v3722
      %v3822 = vadd.f32 %v3497, %v3724
      %v3823 = vadd.f32 %v3498, %v3727
      %v3824 = vadd.f32 %v3499, %v3729
      %v3825 = vadd.f32 %v3500, %v3732
      %v3826 = vadd.f32 %v3501, %v3734
      %v3827 = vadd.f32 %v3502, %v3737
      %v3828 = vadd.f32 %v3503, %v3739
      %v3829 = vadd.f32 %v3504, %v3742
      %v3830 = vadd.f32 %v3505, %v3744
      %v3831 = vadd.f32 %v3506, %v3747
      %v3832 = vadd.f32 %v3507, %v3749
      %v3833 = vadd.f32 %v3508, %v3752
      %v3834 = vadd.f32 %v3509, %v3754
      %v3835 = vadd.f32 %v3510, %v3757
      %v3836 = vadd.f32 %v3511, %v3759
      %v3837 = vadd.f32 %v3512, %v3762
      %v3838 = vadd.f32 %v3513, %v3764
      %v3839 = vadd.f32 %v3514, %v3767
      %v3840 = vadd.f32 %v3515, %v3769
      %v3841 = vadd.f32 %v3516, %v3772
      %v3842 = vadd.f32 %v3517, %v3774
      %v3843 = vadd.f32 %v3518, %v3777
      %v3844 = vadd.f32 %v3519, %v3779
      %v3845 = vld [vmem:[%s2] sm:$0x1]
      %v3847 = vperm.slane %v3845, 0
      %v3849 = vadd.f32 %v3781, %v3847
      %v3850 = vadd.f32 %v3782, %v3847
      %v3851 = vadd.f32 %v3783, %v3847
      %v3852 = vadd.f32 %v3784, %v3847
      %v3853 = vadd.f32 %v3785, %v3847
      %v3854 = vadd.f32 %v3786, %v3847
      %v3855 = vadd.f32 %v3787, %v3847
      %v3856 = vadd.f32 %v3788, %v3847
      %v3857 = vadd.f32 %v3789, %v3847
      %v3858 = vadd.f32 %v3790, %v3847
      %v3859 = vadd.f32 %v3791, %v3847
      %v3860 = vadd.f32 %v3792, %v3847
      %v3861 = vadd.f32 %v3793, %v3847
      %v3862 = vadd.f32 %v3794, %v3847
      %v3863 = vadd.f32 %v3795, %v3847
      %v3864 = vadd.f32 %v3796, %v3847
      %v3865 = vadd.f32 %v3797, %v3847
      %v3866 = vadd.f32 %v3798, %v3847
      %v3867 = vadd.f32 %v3799, %v3847
      %v3868 = vadd.f32 %v3800, %v3847
      %v3869 = vadd.f32 %v3801, %v3847
      %v3870 = vadd.f32 %v3802, %v3847
      %v3871 = vadd.f32 %v3803, %v3847
      %v3872 = vadd.f32 %v3804, %v3847
      %v3873 = vadd.f32 %v3805, %v3847
      %v3874 = vadd.f32 %v3806, %v3847
      %v3875 = vadd.f32 %v3807, %v3847
      %v3876 = vadd.f32 %v3808, %v3847
      %v3877 = vadd.f32 %v3809, %v3847
      %v3878 = vadd.f32 %v3810, %v3847
      %v3879 = vadd.f32 %v3811, %v3847
      %v3880 = vadd.f32 %v3812, %v3847
      %v3881 = vadd.f32 %v3813, %v3847
      %v3882 = vadd.f32 %v3814, %v3847
      %v3883 = vadd.f32 %v3815, %v3847
      %v3884 = vadd.f32 %v3816, %v3847
      %v3885 = vadd.f32 %v3817, %v3847
      %v3886 = vadd.f32 %v3818, %v3847
      %v3887 = vadd.f32 %v3819, %v3847
      %v3888 = vadd.f32 %v3820, %v3847
      %v3889 = vadd.f32 %v3821, %v3847
      %v3890 = vadd.f32 %v3822, %v3847
      %v3891 = vadd.f32 %v3823, %v3847
      %v3892 = vadd.f32 %v3824, %v3847
      %v3893 = vadd.f32 %v3825, %v3847
      %v3894 = vadd.f32 %v3826, %v3847
      %v3895 = vadd.f32 %v3827, %v3847
      %v3896 = vadd.f32 %v3828, %v3847
      %v3897 = vadd.f32 %v3829, %v3847
      %v3898 = vadd.f32 %v3830, %v3847
      %v3899 = vadd.f32 %v3831, %v3847
      %v3900 = vadd.f32 %v3832, %v3847
      %v3901 = vadd.f32 %v3833, %v3847
      %v3902 = vadd.f32 %v3834, %v3847
      %v3903 = vadd.f32 %v3835, %v3847
      %v3904 = vadd.f32 %v3836, %v3847
      %v3905 = vadd.f32 %v3837, %v3847
      %v3906 = vadd.f32 %v3838, %v3847
      %v3907 = vadd.f32 %v3839, %v3847
      %v3908 = vadd.f32 %v3840, %v3847
      %v3909 = vadd.f32 %v3841, %v3847
      %v3910 = vadd.f32 %v3842, %v3847
      %v3911 = vadd.f32 %v3843, %v3847
      %v3912 = vadd.f32 %v3844, %v3847
      %v3913 = vmax.f32 %v3849, 0.0
      %v3914 = vmax.f32 %v3850, 0.0
      %v3915 = vmax.f32 %v3851, 0.0
      %v3916 = vmax.f32 %v3852, 0.0
      %v3917 = vmax.f32 %v3853, 0.0
      %v3918 = vmax.f32 %v3854, 0.0
      %v3919 = vmax.f32 %v3855, 0.0
      %v3920 = vmax.f32 %v3856, 0.0
      %v3921 = vmax.f32 %v3857, 0.0
      %v3922 = vmax.f32 %v3858, 0.0
      %v3923 = vmax.f32 %v3859, 0.0
      %v3924 = vmax.f32 %v3860, 0.0
      %v3925 = vmax.f32 %v3861, 0.0
      %v3926 = vmax.f32 %v3862, 0.0
      %v3927 = vmax.f32 %v3863, 0.0
      %v3928 = vmax.f32 %v3864, 0.0
      %v3929 = vmax.f32 %v3865, 0.0
      %v3930 = vmax.f32 %v3866, 0.0
      %v3931 = vmax.f32 %v3867, 0.0
      %v3932 = vmax.f32 %v3868, 0.0
      %v3933 = vmax.f32 %v3869, 0.0
      %v3934 = vmax.f32 %v3870, 0.0
      %v3935 = vmax.f32 %v3871, 0.0
      %v3936 = vmax.f32 %v3872, 0.0
      %v3937 = vmax.f32 %v3873, 0.0
      %v3938 = vmax.f32 %v3874, 0.0
      %v3939 = vmax.f32 %v3875, 0.0
      %v3940 = vmax.f32 %v3876, 0.0
      %v3941 = vmax.f32 %v3877, 0.0
      %v3942 = vmax.f32 %v3878, 0.0
      %v3943 = vmax.f32 %v3879, 0.0
      %v3944 = vmax.f32 %v3880, 0.0
      %v3945 = vmax.f32 %v3881, 0.0
      %v3946 = vmax.f32 %v3882, 0.0
      %v3947 = vmax.f32 %v3883, 0.0
      %v3948 = vmax.f32 %v3884, 0.0
      %v3949 = vmax.f32 %v3885, 0.0
      %v3950 = vmax.f32 %v3886, 0.0
      %v3951 = vmax.f32 %v3887, 0.0
      %v3952 = vmax.f32 %v3888, 0.0
      %v3953 = vmax.f32 %v3889, 0.0
      %v3954 = vmax.f32 %v3890, 0.0
      %v3955 = vmax.f32 %v3891, 0.0
      %v3956 = vmax.f32 %v3892, 0.0
      %v3957 = vmax.f32 %v3893, 0.0
      %v3958 = vmax.f32 %v3894, 0.0
      %v3959 = vmax.f32 %v3895, 0.0
      %v3960 = vmax.f32 %v3896, 0.0
      %v3961 = vmax.f32 %v3897, 0.0
      %v3962 = vmax.f32 %v3898, 0.0
      %v3963 = vmax.f32 %v3899, 0.0
      %v3964 = vmax.f32 %v3900, 0.0
      %v3965 = vmax.f32 %v3901, 0.0
      %v3966 = vmax.f32 %v3902, 0.0
      %v3967 = vmax.f32 %v3903, 0.0
      %v3968 = vmax.f32 %v3904, 0.0
      %v3969 = vmax.f32 %v3905, 0.0
      %v3970 = vmax.f32 %v3906, 0.0
      %v3971 = vmax.f32 %v3907, 0.0
      %v3972 = vmax.f32 %v3908, 0.0
      %v3973 = vmax.f32 %v3909, 0.0
      %v3974 = vmax.f32 %v3910, 0.0
      %v3975 = vmax.f32 %v3911, 0.0
      %v3976 = vmax.f32 %v3912, 0.0
      %v3977 = vlaneseq
      %v3978 = vshrl.u32 %v3977, 7
      %v3979 = vadd.s32 %v3978, 8
      %v3980 = vadd.s32 %v3978, 16
      %v3981 = vadd.s32 %v3978, 24
      %vm3982 = vcmp.ge.s32.totalorder %v3978, 8
      %vm3983 = vcmp.ge.s32.totalorder %v3979, 8
      %vm3984 = vcmp.ge.s32.totalorder %v3980, 8
      %vm3985 = vcmp.ge.s32.totalorder %v3981, 8
      %vm3986 = vcmp.lt.s32.totalorder %v3978, 24
      %vm3987 = vcmp.lt.s32.totalorder %v3979, 24
      %vm3988 = vcmp.lt.s32.totalorder %v3980, 24
      %vm3989 = vcmp.lt.s32.totalorder %v3981, 24
      %vm3990 = vmand %vm3982, %vm3986
      %vm3991 = vmand %vm3983, %vm3987
      %vm3992 = vmand %vm3984, %vm3988
      %vm3993 = vmand %vm3985, %vm3989
      %v3994 = vsel %vm3990, 1, 0
      %v3995 = vsel %vm3991, 1, 0
      %v3996 = vsel %vm3992, 1, 0
      %v3997 = vsel %vm3993, 1, 0
      %vm3998 = vcmp.eq.s32.totalorder %v3994, 1
      %vm3999 = vcmp.eq.s32.totalorder %v3995, 1
      %vm4000 = vcmp.eq.s32.totalorder %v3996, 1
      %vm4001 = vcmp.eq.s32.totalorder %v3997, 1
      %v4002 = vsel %vm3998, %v3913, 0.0
      %v4003 = vsel %vm3999, %v3914, 0.0
      %v4004 = vsel %vm4000, %v3915, 0.0
      %v4005 = vsel %vm4001, %v3916, 0.0
      %v4006 = vsel %vm3998, %v3917, 0.0
      %v4007 = vsel %vm3999, %v3918, 0.0
      %v4008 = vsel %vm4000, %v3919, 0.0
      %v4009 = vsel %vm4001, %v3920, 0.0
      %v4010 = vsel %vm3998, %v3921, 0.0
      %v4011 = vsel %vm3999, %v3922, 0.0
      %v4012 = vsel %vm4000, %v3923, 0.0
      %v4013 = vsel %vm4001, %v3924, 0.0
      %v4014 = vsel %vm3998, %v3925, 0.0
      %v4015 = vsel %vm3999, %v3926, 0.0
      %v4016 = vsel %vm4000, %v3927, 0.0
      %v4017 = vsel %vm4001, %v3928, 0.0
      %v4018 = vsel %vm3998, %v3929, 0.0
      %v4019 = vsel %vm3999, %v3930, 0.0
      %v4020 = vsel %vm4000, %v3931, 0.0
      %v4021 = vsel %vm4001, %v3932, 0.0
      %v4022 = vsel %vm3998, %v3933, 0.0
      %v4023 = vsel %vm3999, %v3934, 0.0
      %v4024 = vsel %vm4000, %v3935, 0.0
      %v4025 = vsel %vm4001, %v3936, 0.0
      %v4026 = vsel %vm3998, %v3937, 0.0
      %v4027 = vsel %vm3999, %v3938, 0.0
      %v4028 = vsel %vm4000, %v3939, 0.0
      %v4029 = vsel %vm4001, %v3940, 0.0
      %v4030 = vsel %vm3998, %v3941, 0.0
      %v4031 = vsel %vm3999, %v3942, 0.0
      %v4032 = vsel %vm4000, %v3943, 0.0
      %v4033 = vsel %vm4001, %v3944, 0.0
      %v4034 = vsel %vm3998, %v3945, 0.0
      %v4035 = vsel %vm3999, %v3946, 0.0
      %v4036 = vsel %vm4000, %v3947, 0.0
      %v4037 = vsel %vm4001, %v3948, 0.0
      %v4038 = vsel %vm3998, %v3949, 0.0
      %v4039 = vsel %vm3999, %v3950, 0.0
      %v4040 = vsel %vm4000, %v3951, 0.0
      %v4041 = vsel %vm4001, %v3952, 0.0
      %v4042 = vsel %vm3998, %v3953, 0.0
      %v4043 = vsel %vm3999, %v3954, 0.0
      %v4044 = vsel %vm4000, %v3955, 0.0
      %v4045 = vsel %vm4001, %v3956, 0.0
      %v4046 = vsel %vm3998, %v3957, 0.0
      %v4047 = vsel %vm3999, %v3958, 0.0
      %v4048 = vsel %vm4000, %v3959, 0.0
      %v4049 = vsel %vm4001, %v3960, 0.0
      %v4050 = vsel %vm3998, %v3961, 0.0
      %v4051 = vsel %vm3999, %v3962, 0.0
      %v4052 = vsel %vm4000, %v3963, 0.0
      %v4053 = vsel %vm4001, %v3964, 0.0
      %v4054 = vsel %vm3998, %v3965, 0.0
      %v4055 = vsel %vm3999, %v3966, 0.0
      %v4056 = vsel %vm4000, %v3967, 0.0
      %v4057 = vsel %vm4001, %v3968, 0.0
      %v4058 = vsel %vm3998, %v3969, 0.0
      %v4059 = vsel %vm3999, %v3970, 0.0
      %v4060 = vsel %vm4000, %v3971, 0.0
      %v4061 = vsel %vm4001, %v3972, 0.0
      %v4062 = vsel %vm3998, %v3973, 0.0
      %v4063 = vsel %vm3999, %v3974, 0.0
      %v4064 = vsel %vm4000, %v3975, 0.0
      %v4065 = vsel %vm4001, %v3976, 0.0
      %v4066 = vpack.c.bf16 %v4002, %v4002
      %v4067 = vpack.c.bf16 %v4003, %v4003
      %v4068 = vpack.c.bf16 %v4004, %v4004
      %v4069 = vpack.c.bf16 %v4005, %v4005
      %v4070 = vpack.c.bf16 %v4006, %v4006
      %v4071 = vpack.c.bf16 %v4007, %v4007
      %v4072 = vpack.c.bf16 %v4008, %v4008
      %v4073 = vpack.c.bf16 %v4009, %v4009
      %v4074 = vpack.c.bf16 %v4010, %v4010
      %v4075 = vpack.c.bf16 %v4011, %v4011
      %v4076 = vpack.c.bf16 %v4012, %v4012
      %v4077 = vpack.c.bf16 %v4013, %v4013
      %v4078 = vpack.c.bf16 %v4014, %v4014
      %v4079 = vpack.c.bf16 %v4015, %v4015
      %v4080 = vpack.c.bf16 %v4016, %v4016
      %v4081 = vpack.c.bf16 %v4017, %v4017
      %v4082 = vpack.c.bf16 %v4018, %v4018
      %v4083 = vpack.c.bf16 %v4019, %v4019
      %v4084 = vpack.c.bf16 %v4020, %v4020
      %v4085 = vpack.c.bf16 %v4021, %v4021
      %v4086 = vpack.c.bf16 %v4022, %v4022
      %v4087 = vpack.c.bf16 %v4023, %v4023
      %v4088 = vpack.c.bf16 %v4024, %v4024
      %v4089 = vpack.c.bf16 %v4025, %v4025
      %v4090 = vpack.c.bf16 %v4026, %v4026
      %v4091 = vpack.c.bf16 %v4027, %v4027
      %v4092 = vpack.c.bf16 %v4028, %v4028
      %v4093 = vpack.c.bf16 %v4029, %v4029
      %v4094 = vpack.c.bf16 %v4030, %v4030
      %v4095 = vpack.c.bf16 %v4031, %v4031
      %v4096 = vpack.c.bf16 %v4032, %v4032
      %v4097 = vpack.c.bf16 %v4033, %v4033
      %v4098 = vpack.c.bf16 %v4034, %v4034
      %v4099 = vpack.c.bf16 %v4035, %v4035
      %v4100 = vpack.c.bf16 %v4036, %v4036
      %v4101 = vpack.c.bf16 %v4037, %v4037
      %v4102 = vpack.c.bf16 %v4038, %v4038
      %v4103 = vpack.c.bf16 %v4039, %v4039
      %v4104 = vpack.c.bf16 %v4040, %v4040
      %v4105 = vpack.c.bf16 %v4041, %v4041
      %v4106 = vpack.c.bf16 %v4042, %v4042
      %v4107 = vpack.c.bf16 %v4043, %v4043
      %v4108 = vpack.c.bf16 %v4044, %v4044
      %v4109 = vpack.c.bf16 %v4045, %v4045
      %v4110 = vpack.c.bf16 %v4046, %v4046
      %v4111 = vpack.c.bf16 %v4047, %v4047
      %v4112 = vpack.c.bf16 %v4048, %v4048
      %v4113 = vpack.c.bf16 %v4049, %v4049
      %v4114 = vpack.c.bf16 %v4050, %v4050
      %v4115 = vpack.c.bf16 %v4051, %v4051
      %v4116 = vpack.c.bf16 %v4052, %v4052
      %v4117 = vpack.c.bf16 %v4053, %v4053
      %v4118 = vpack.c.bf16 %v4054, %v4054
      %v4119 = vpack.c.bf16 %v4055, %v4055
      %v4120 = vpack.c.bf16 %v4056, %v4056
      %v4121 = vpack.c.bf16 %v4057, %v4057
      %v4122 = vpack.c.bf16 %v4058, %v4058
      %v4123 = vpack.c.bf16 %v4059, %v4059
      %v4124 = vpack.c.bf16 %v4060, %v4060
      %v4125 = vpack.c.bf16 %v4061, %v4061
      %v4126 = vpack.c.bf16 %v4062, %v4062
      %v4127 = vpack.c.bf16 %v4063, %v4063
      %v4128 = vpack.c.bf16 %v4064, %v4064
      %v4129 = vpack.c.bf16 %v4065, %v4065
      %4130 = vst [vmem:[#allocation2] sm:$0xf] 0
      %4131 = vst [vmem:[#allocation2 + $0x4] sm:$0xf] 0
      %4132 = vst [vmem:[#allocation2 + $0x8] sm:$0xf] 0
      %4133 = vst [vmem:[#allocation2 + $0xc] sm:$0xf] 0
      %4134 = vst [vmem:[#allocation2 + $0x10] sm:$0xf] 0
      %4135 = vst [vmem:[#allocation2 + $0x14] sm:$0xf] 0
      %4136 = vst [vmem:[#allocation2 + $0x18] sm:$0xf] 0
      %4137 = vst [vmem:[#allocation2 + $0x1c] sm:$0xf] 0
      %s4138 = scalar_lea.vmem [#allocation2], 288
      %4139 = vst [vmem:[%s4138] sm:$0xf] 0
      %4140 = vst [vmem:[%s4138 + $0x4] sm:$0xf] 0
      %4141 = vst [vmem:[%s4138 + $0x8] sm:$0xf] 0
      %4142 = vst [vmem:[%s4138 + $0xc] sm:$0xf] 0
      %4143 = vst [vmem:[%s4138 + $0x10] sm:$0xf] 0
      %4144 = vst [vmem:[%s4138 + $0x14] sm:$0xf] 0
      %4145 = vst [vmem:[%s4138 + $0x18] sm:$0xf] 0
      %4146 = vst [vmem:[%s4138 + $0x1c] sm:$0xf] 0
      %s4147 = scalar_lea.vmem [#allocation2], 32
      %4148 = vst [vmem:[%s4147] sm:$0xf] %v4066
      %4149 = vst [vmem:[%s4147 + $0x4] sm:$0xf] %v4067
      %4150 = vst [vmem:[%s4147 + $0x8] sm:$0xf] %v4068
      %4151 = vst [vmem:[%s4147 + $0xc] sm:$0xf] %v4069
      %4152 = vst [vmem:[%s4147 + $0x10] sm:$0xf] %v4070
      %4153 = vst [vmem:[%s4147 + $0x14] sm:$0xf] %v4071
      %4154 = vst [vmem:[%s4147 + $0x18] sm:$0xf] %v4072
      %4155 = vst [vmem:[%s4147 + $0x1c] sm:$0xf] %v4073
      %4156 = vst [vmem:[%s4147 + $0x20] sm:$0xf] %v4074
      %4157 = vst [vmem:[%s4147 + $0x24] sm:$0xf] %v4075
      %4158 = vst [vmem:[%s4147 + $0x28] sm:$0xf] %v4076
      %4159 = vst [vmem:[%s4147 + $0x2c] sm:$0xf] %v4077
      %4160 = vst [vmem:[%s4147 + $0x30] sm:$0xf] %v4078
      %4161 = vst [vmem:[%s4147 + $0x34] sm:$0xf] %v4079
      %4162 = vst [vmem:[%s4147 + $0x38] sm:$0xf] %v4080
      %4163 = vst [vmem:[%s4147 + $0x3c] sm:$0xf] %v4081
      %4164 = vst [vmem:[%s4147 + $0x40] sm:$0xf] %v4082
      %4165 = vst [vmem:[%s4147 + $0x44] sm:$0xf] %v4083
      %4166 = vst [vmem:[%s4147 + $0x48] sm:$0xf] %v4084
      %4167 = vst [vmem:[%s4147 + $0x4c] sm:$0xf] %v4085
      %4168 = vst [vmem:[%s4147 + $0x50] sm:$0xf] %v4086
      %4169 = vst [vmem:[%s4147 + $0x54] sm:$0xf] %v4087
      %4170 = vst [vmem:[%s4147 + $0x58] sm:$0xf] %v4088
      %4171 = vst [vmem:[%s4147 + $0x5c] sm:$0xf] %v4089
      %4172 = vst [vmem:[%s4147 + $0x60] sm:$0xf] %v4090
      %4173 = vst [vmem:[%s4147 + $0x64] sm:$0xf] %v4091
      %4174 = vst [vmem:[%s4147 + $0x68] sm:$0xf] %v4092
      %4175 = vst [vmem:[%s4147 + $0x6c] sm:$0xf] %v4093
      %4176 = vst [vmem:[%s4147 + $0x70] sm:$0xf] %v4094
      %4177 = vst [vmem:[%s4147 + $0x74] sm:$0xf] %v4095
      %4178 = vst [vmem:[%s4147 + $0x78] sm:$0xf] %v4096
      %4179 = vst [vmem:[%s4147 + $0x7c] sm:$0xf] %v4097
      %4180 = vst [vmem:[%s4147 + $0x80] sm:$0xf] %v4098
      %4181 = vst [vmem:[%s4147 + $0x84] sm:$0xf] %v4099
      %4182 = vst [vmem:[%s4147 + $0x88] sm:$0xf] %v4100
      %4183 = vst [vmem:[%s4147 + $0x8c] sm:$0xf] %v4101
      %4184 = vst [vmem:[%s4147 + $0x90] sm:$0xf] %v4102
      %4185 = vst [vmem:[%s4147 + $0x94] sm:$0xf] %v4103
      %4186 = vst [vmem:[%s4147 + $0x98] sm:$0xf] %v4104
      %4187 = vst [vmem:[%s4147 + $0x9c] sm:$0xf] %v4105
      %4188 = vst [vmem:[%s4147 + $0xa0] sm:$0xf] %v4106
      %4189 = vst [vmem:[%s4147 + $0xa4] sm:$0xf] %v4107
      %4190 = vst [vmem:[%s4147 + $0xa8] sm:$0xf] %v4108
      %4191 = vst [vmem:[%s4147 + $0xac] sm:$0xf] %v4109
      %4192 = vst [vmem:[%s4147 + $0xb0] sm:$0xf] %v4110
      %4193 = vst [vmem:[%s4147 + $0xb4] sm:$0xf] %v4111
      %4194 = vst [vmem:[%s4147 + $0xb8] sm:$0xf] %v4112
      %4195 = vst [vmem:[%s4147 + $0xbc] sm:$0xf] %v4113
      %4196 = vst [vmem:[%s4147 + $0xc0] sm:$0xf] %v4114
      %4197 = vst [vmem:[%s4147 + $0xc4] sm:$0xf] %v4115
      %4198 = vst [vmem:[%s4147 + $0xc8] sm:$0xf] %v4116
      %4199 = vst [vmem:[%s4147 + $0xcc] sm:$0xf] %v4117
      %4200 = vst [vmem:[%s4147 + $0xd0] sm:$0xf] %v4118
      %4201 = vst [vmem:[%s4147 + $0xd4] sm:$0xf] %v4119
      %4202 = vst [vmem:[%s4147 + $0xd8] sm:$0xf] %v4120
      %4203 = vst [vmem:[%s4147 + $0xdc] sm:$0xf] %v4121
      %4204 = vst [vmem:[%s4147 + $0xe0] sm:$0xf] %v4122
      %4205 = vst [vmem:[%s4147 + $0xe4] sm:$0xf] %v4123
      %4206 = vst [vmem:[%s4147 + $0xe8] sm:$0xf] %v4124
      %4207 = vst [vmem:[%s4147 + $0xec] sm:$0xf] %v4125
      %4208 = vst [vmem:[%s4147 + $0xf0] sm:$0xf] %v4126
      %4209 = vst [vmem:[%s4147 + $0xf4] sm:$0xf] %v4127
      %4210 = vst [vmem:[%s4147 + $0xf8] sm:$0xf] %v4128
      %4211 = vst [vmem:[%s4147 + $0xfc] sm:$0xf] %v4129
      %v4212 = vld [vmem:[#allocation2 + $0xc] sm:$0xf]
      %v4213 = vld [vmem:[#allocation2 + $0x10] sm:$0xf]
      %v4214 = vld [vmem:[#allocation2 + $0x14] sm:$0xf]
      %v4215 = vld [vmem:[#allocation2 + $0x18] sm:$0xf]
      %v4216 = vld [vmem:[#allocation2 + $0x1c] sm:$0xf]
      %v4217 = vld [vmem:[#allocation2 + $0x20] sm:$0xf]
      %v4218 = vld [vmem:[#allocation2 + $0x24] sm:$0xf]
      %v4219 = vld [vmem:[#allocation2 + $0x28] sm:$0xf]
      %v4220 = vld [vmem:[#allocation2 + $0x2c] sm:$0xf]
      %v4221 = vld [vmem:[#allocation2 + $0x30] sm:$0xf]
      %v4222 = vld [vmem:[#allocation2 + $0x34] sm:$0xf]
      %v4223 = vld [vmem:[#allocation2 + $0x38] sm:$0xf]
      %v4224 = vld [vmem:[#allocation2 + $0x3c] sm:$0xf]
      %v4225 = vld [vmem:[#allocation2 + $0x40] sm:$0xf]
      %v4226 = vld [vmem:[#allocation2 + $0x44] sm:$0xf]
      %v4227 = vld [vmem:[#allocation2 + $0x48] sm:$0xf]
      %v4228 = vld [vmem:[#allocation2 + $0x4c] sm:$0xf]
      %v4229 = vld [vmem:[#allocation2 + $0x50] sm:$0xf]
      %v4230 = vld [vmem:[#allocation2 + $0x54] sm:$0xf]
      %v4231 = vld [vmem:[#allocation2 + $0x58] sm:$0xf]
      %v4232 = vld [vmem:[#allocation2 + $0x5c] sm:$0xf]
      %v4233 = vld [vmem:[#allocation2 + $0x60] sm:$0xf]
      %v4234 = vld [vmem:[#allocation2 + $0x64] sm:$0xf]
      %v4235 = vld [vmem:[#allocation2 + $0x68] sm:$0xf]
      %v4236 = vld [vmem:[#allocation2 + $0x6c] sm:$0xf]
      %v4237 = vld [vmem:[#allocation2 + $0x70] sm:$0xf]
      %v4238 = vld [vmem:[#allocation2 + $0x74] sm:$0xf]
      %v4239 = vld [vmem:[#allocation2 + $0x78] sm:$0xf]
      %v4240 = vld [vmem:[#allocation2 + $0x7c] sm:$0xf]
      %v4241 = vld [vmem:[#allocation2 + $0x80] sm:$0xf]
      %v4242 = vld [vmem:[#allocation2 + $0x84] sm:$0xf]
      %v4243 = vld [vmem:[#allocation2 + $0x88] sm:$0xf]
      %v4244 = vld [vmem:[#allocation2 + $0x8c] sm:$0xf]
      %v4245 = vld [vmem:[#allocation2 + $0x90] sm:$0xf]
      %v4246 = vld [vmem:[#allocation2 + $0x94] sm:$0xf]
      %v4247 = vld [vmem:[#allocation2 + $0x98] sm:$0xf]
      %v4248 = vld [vmem:[#allocation2 + $0x9c] sm:$0xf]
      %v4249 = vld [vmem:[#allocation2 + $0xa0] sm:$0xf]
      %v4250 = vld [vmem:[#allocation2 + $0xa4] sm:$0xf]
      %v4251 = vld [vmem:[#allocation2 + $0xa8] sm:$0xf]
      %v4252 = vld [vmem:[#allocation2 + $0xac] sm:$0xf]
      %v4253 = vld [vmem:[#allocation2 + $0xb0] sm:$0xf]
      %v4254 = vld [vmem:[#allocation2 + $0xb4] sm:$0xf]
      %v4255 = vld [vmem:[#allocation2 + $0xb8] sm:$0xf]
      %v4256 = vld [vmem:[#allocation2 + $0xbc] sm:$0xf]
      %v4257 = vld [vmem:[#allocation2 + $0xc0] sm:$0xf]
      %v4258 = vld [vmem:[#allocation2 + $0xc4] sm:$0xf]
      %v4259 = vld [vmem:[#allocation2 + $0xc8] sm:$0xf]
      %v4260 = vld [vmem:[#allocation2 + $0xcc] sm:$0xf]
      %v4261 = vld [vmem:[#allocation2 + $0xd0] sm:$0xf]
      %v4262 = vld [vmem:[#allocation2 + $0xd4] sm:$0xf]
      %v4263 = vld [vmem:[#allocation2 + $0xd8] sm:$0xf]
      %v4264 = vld [vmem:[#allocation2 + $0xdc] sm:$0xf]
      %v4265 = vld [vmem:[#allocation2 + $0xe0] sm:$0xf]
      %v4266 = vld [vmem:[#allocation2 + $0xe4] sm:$0xf]
      %v4267 = vld [vmem:[#allocation2 + $0xe8] sm:$0xf]
      %v4268 = vld [vmem:[#allocation2 + $0xec] sm:$0xf]
      %v4269 = vld [vmem:[#allocation2 + $0xf0] sm:$0xf]
      %v4270 = vld [vmem:[#allocation2 + $0xf4] sm:$0xf]
      %v4271 = vld [vmem:[#allocation2 + $0xf8] sm:$0xf]
      %v4272 = vld [vmem:[#allocation2 + $0xfc] sm:$0xf]
      %v4273 = vld [vmem:[#allocation2 + $0x100] sm:$0xf]
      %v4274 = vld [vmem:[#allocation2 + $0x104] sm:$0xf]
      %v4275 = vld [vmem:[#allocation2 + $0x108] sm:$0xf]
      %v4276 = vld [vmem:[#allocation2 + $0x10c] sm:$0xf]
      %v4277 = vld [vmem:[#allocation2 + $0x110] sm:$0xf]
      %v4278 = vld [vmem:[#allocation2 + $0x114] sm:$0xf]
      %v4279 = vld [vmem:[#allocation2 + $0x118] sm:$0xf]
      %v4280 = vld [vmem:[#allocation2 + $0x11c] sm:$0xf]
      %v4281 = vld [vmem:[#allocation2 + $0x120] sm:$0xf]
      %v4282 = vld [vmem:[#allocation2 + $0x124] sm:$0xf]
      %v4283 = vld [vmem:[#allocation2 + $0x128] sm:$0xf]
      %v4284 = vld [vmem:[#allocation2 + $0x12c] sm:$0xf]
      %v4285 = vld [vmem:[#allocation2 + $0x130] sm:$0xf]
      %v4286 = vld [vmem:[%s3] sm:$0xf]
      %v4287 = vld [vmem:[%s3 + $0x4] sm:$0xf]
      %v4288 = vld [vmem:[%s3 + $0x8] sm:$0xf]
      %v4289 = vld [vmem:[%s3 + $0xc] sm:$0xf]
      %v4290 = vld [vmem:[%s3 + $0x10] sm:$0xf]
      %v4291 = vld [vmem:[%s3 + $0x14] sm:$0xf]
      %v4292 = vld [vmem:[%s3 + $0x18] sm:$0xf]
      %v4293 = vld [vmem:[%s3 + $0x1c] sm:$0xf]
      %v4294 = vld [vmem:[%s3 + $0x20] sm:$0xf]
      %v4295 = vld [vmem:[%s3 + $0x24] sm:$0xf]
      %v4296 = vld [vmem:[%s3 + $0x28] sm:$0xf]
      %v4297 = vld [vmem:[%s3 + $0x2c] sm:$0xf]
      %v4298 = vld [vmem:[%s3 + $0x30] sm:$0xf]
      %v4299 = vld [vmem:[%s3 + $0x34] sm:$0xf]
      %v4300 = vld [vmem:[%s3 + $0x38] sm:$0xf]
      %v4301 = vld [vmem:[%s3 + $0x3c] sm:$0xf]
      %s4302 = scalar_lea.vmem %s3, 64
      %v4303 = vld [vmem:[%s4302] sm:$0xf]
      %v4304 = vld [vmem:[%s4302 + $0x4] sm:$0xf]
      %v4305 = vld [vmem:[%s4302 + $0x8] sm:$0xf]
      %v4306 = vld [vmem:[%s4302 + $0xc] sm:$0xf]
      %v4307 = vld [vmem:[%s4302 + $0x10] sm:$0xf]
      %v4308 = vld [vmem:[%s4302 + $0x14] sm:$0xf]
      %v4309 = vld [vmem:[%s4302 + $0x18] sm:$0xf]
      %v4310 = vld [vmem:[%s4302 + $0x1c] sm:$0xf]
      %v4311 = vld [vmem:[%s4302 + $0x20] sm:$0xf]
      %v4312 = vld [vmem:[%s4302 + $0x24] sm:$0xf]
      %v4313 = vld [vmem:[%s4302 + $0x28] sm:$0xf]
      %v4314 = vld [vmem:[%s4302 + $0x2c] sm:$0xf]
      %v4315 = vld [vmem:[%s4302 + $0x30] sm:$0xf]
      %v4316 = vld [vmem:[%s4302 + $0x34] sm:$0xf]
      %v4317 = vld [vmem:[%s4302 + $0x38] sm:$0xf]
      %v4318 = vld [vmem:[%s4302 + $0x3c] sm:$0xf]
      %v4383 = vunpack.c.l.b16 %v4213
      %v4384 = vunpack.c.l.b16 %v4214
      %v4385 = vunpack.c.l.b16 %v4215
      %v4386 = vunpack.c.l.b16 %v4216
      %v4387 = vunpack.c.l.b16 %v4217
      %v4388 = vunpack.c.l.b16 %v4218
      %v4389 = vunpack.c.l.b16 %v4219
      %v4390 = vunpack.c.l.b16 %v4220
      %v4391 = vunpack.c.l.b16 %v4221
      %v4392 = vunpack.c.l.b16 %v4222
      %v4393 = vunpack.c.l.b16 %v4223
      %v4394 = vunpack.c.l.b16 %v4224
      %v4395 = vunpack.c.l.b16 %v4225
      %v4396 = vunpack.c.l.b16 %v4226
      %v4397 = vunpack.c.l.b16 %v4227
      %v4398 = vunpack.c.l.b16 %v4228
      %v4399 = vunpack.c.l.b16 %v4229
      %v4400 = vunpack.c.l.b16 %v4230
      %v4401 = vunpack.c.l.b16 %v4231
      %v4402 = vunpack.c.l.b16 %v4232
      %v4403 = vunpack.c.l.b16 %v4233
      %v4404 = vunpack.c.l.b16 %v4234
      %v4405 = vunpack.c.l.b16 %v4235
      %v4406 = vunpack.c.l.b16 %v4236
      %v4407 = vunpack.c.l.b16 %v4237
      %v4408 = vunpack.c.l.b16 %v4238
      %v4409 = vunpack.c.l.b16 %v4239
      %v4410 = vunpack.c.l.b16 %v4240
      %v4411 = vunpack.c.l.b16 %v4241
      %v4412 = vunpack.c.l.b16 %v4242
      %v4413 = vunpack.c.l.b16 %v4243
      %v4414 = vunpack.c.l.b16 %v4244
      %v4415 = vunpack.c.l.b16 %v4245
      %v4416 = vunpack.c.l.b16 %v4246
      %v4417 = vunpack.c.l.b16 %v4247
      %v4418 = vunpack.c.l.b16 %v4248
      %v4419 = vunpack.c.l.b16 %v4249
      %v4420 = vunpack.c.l.b16 %v4250
      %v4421 = vunpack.c.l.b16 %v4251
      %v4422 = vunpack.c.l.b16 %v4252
      %v4423 = vunpack.c.l.b16 %v4253
      %v4424 = vunpack.c.l.b16 %v4254
      %v4425 = vunpack.c.l.b16 %v4255
      %v4426 = vunpack.c.l.b16 %v4256
      %v4427 = vunpack.c.l.b16 %v4257
      %v4428 = vunpack.c.l.b16 %v4258
      %v4429 = vunpack.c.l.b16 %v4259
      %v4430 = vunpack.c.l.b16 %v4260
      %v4431 = vunpack.c.l.b16 %v4261
      %v4432 = vunpack.c.l.b16 %v4262
      %v4433 = vunpack.c.l.b16 %v4263
      %v4434 = vunpack.c.l.b16 %v4264
      %v4435 = vunpack.c.l.b16 %v4265
      %v4436 = vunpack.c.l.b16 %v4266
      %v4437 = vunpack.c.l.b16 %v4267
      %v4438 = vunpack.c.l.b16 %v4268
      %v4439 = vunpack.c.l.b16 %v4269
      %v4440 = vunpack.c.l.b16 %v4270
      %v4441 = vunpack.c.l.b16 %v4271
      %v4442 = vunpack.c.l.b16 %v4272
      %v4443 = vunpack.c.l.b16 %v4273
      %v4444 = vunpack.c.l.b16 %v4274
      %v4445 = vunpack.c.l.b16 %v4275
      %v4446 = vunpack.c.l.b16 %v4276
      %v4447 = vpack.c.b16 %v4384, %v4383
      %v4448 = vpack.c.b16 %v4386, %v4385
      %v4449 = vpack.c.b16 %v4388, %v4387
      %v4450 = vpack.c.b16 %v4390, %v4389
      %v4451 = vpack.c.b16 %v4392, %v4391
      %v4452 = vpack.c.b16 %v4394, %v4393
      %v4453 = vpack.c.b16 %v4396, %v4395
      %v4454 = vpack.c.b16 %v4398, %v4397
      %v4455 = vpack.c.b16 %v4400, %v4399
      %v4456 = vpack.c.b16 %v4402, %v4401
      %v4457 = vpack.c.b16 %v4404, %v4403
      %v4458 = vpack.c.b16 %v4406, %v4405
      %v4459 = vpack.c.b16 %v4408, %v4407
      %v4460 = vpack.c.b16 %v4410, %v4409
      %v4461 = vpack.c.b16 %v4412, %v4411
      %v4462 = vpack.c.b16 %v4414, %v4413
      %v4463 = vpack.c.b16 %v4416, %v4415
      %v4464 = vpack.c.b16 %v4418, %v4417
      %v4465 = vpack.c.b16 %v4420, %v4419
      %v4466 = vpack.c.b16 %v4422, %v4421
      %v4467 = vpack.c.b16 %v4424, %v4423
      %v4468 = vpack.c.b16 %v4426, %v4425
      %v4469 = vpack.c.b16 %v4428, %v4427
      %v4470 = vpack.c.b16 %v4430, %v4429
      %v4471 = vpack.c.b16 %v4432, %v4431
      %v4472 = vpack.c.b16 %v4434, %v4433
      %v4473 = vpack.c.b16 %v4436, %v4435
      %v4474 = vpack.c.b16 %v4438, %v4437
      %v4475 = vpack.c.b16 %v4440, %v4439
      %v4476 = vpack.c.b16 %v4442, %v4441
      %v4477 = vpack.c.b16 %v4444, %v4443
      %v4478 = vpack.c.b16 %v4446, %v4445
      %v4527 = vunpack.c.l.b16 %v4303
      %v4528 = vunpack.c.l.b16 %v4304
      %v4529 = vunpack.c.l.b16 %v4305
      %v4530 = vunpack.c.l.b16 %v4306
      %v4531 = vunpack.c.l.b16 %v4307
      %v4532 = vunpack.c.l.b16 %v4308
      %v4533 = vunpack.c.l.b16 %v4309
      %v4534 = vunpack.c.l.b16 %v4310
      %v4535 = vunpack.c.l.b16 %v4311
      %v4536 = vunpack.c.l.b16 %v4312
      %v4537 = vunpack.c.l.b16 %v4313
      %v4538 = vunpack.c.l.b16 %v4314
      %v4539 = vunpack.c.l.b16 %v4315
      %v4540 = vunpack.c.l.b16 %v4316
      %v4541 = vunpack.c.l.b16 %v4317
      %v4542 = vunpack.c.l.b16 %v4318
      %v4543 = vpack.c.b16 %v4528, %v4527
      %v4544 = vpack.c.b16 %v4530, %v4529
      %v4545 = vpack.c.b16 %v4532, %v4531
      %v4546 = vpack.c.b16 %v4534, %v4533
      %v4547 = vpack.c.b16 %v4536, %v4535
      %v4548 = vpack.c.b16 %v4538, %v4537
      %v4549 = vpack.c.b16 %v4540, %v4539
      %v4550 = vpack.c.b16 %v4542, %v4541
      %4559 = vmatpush.bf16.msra.mxu0 %v4550
      %4560 = vmatpush.bf16.msra.mxu0 %v4549
      %4561 = vmatpush.bf16.msra.mxu0 %v4548
      %4562 = vmatpush.bf16.msra.mxu0 %v4547
      %4563 = vmatpush.bf16.msra.mxu0 %v4546
      %4564 = vmatpush.bf16.msra.mxu0 %v4545
      %4565 = vmatpush.bf16.msra.mxu0 %v4544
      %4566 = vmatpush.bf16.msra.mxu0 %v4543
      %4567 = vmatmul.bf16.gmra.mxu0 %v4447
      %v4568 = vpop.f32.mrf.mxu0
      %v4569 = vpop.f32.mrf.mxu0
      %v4570 = vadd.f32 0.0, %v4569
      %4571 = vmatmul.bf16.gmra.mxu0 %v4448
      %v4572 = vpop.f32.mrf.mxu0
      %v4573 = vadd.f32 0.0, %v4572
      %v4574 = vpop.f32.mrf.mxu0
      %4575 = vmatmul.bf16.gmra.mxu0 %v4449
      %v4576 = vpop.f32.mrf.mxu0
      %v4577 = vpop.f32.mrf.mxu0
      %v4578 = vadd.f32 0.0, %v4577
      %4579 = vmatmul.bf16.gmra.mxu0 %v4450
      %v4580 = vpop.f32.mrf.mxu0
      %v4581 = vadd.f32 0.0, %v4580
      %v4582 = vpop.f32.mrf.mxu0
      %4583 = vmatmul.bf16.gmra.mxu0 %v4451
      %v4584 = vpop.f32.mrf.mxu0
      %v4585 = vpop.f32.mrf.mxu0
      %v4586 = vadd.f32 0.0, %v4585
      %4587 = vmatmul.bf16.gmra.mxu0 %v4452
      %v4588 = vpop.f32.mrf.mxu0
      %v4589 = vadd.f32 0.0, %v4588
      %v4590 = vpop.f32.mrf.mxu0
      %4591 = vmatmul.bf16.gmra.mxu0 %v4453
      %v4592 = vpop.f32.mrf.mxu0
      %v4593 = vpop.f32.mrf.mxu0
      %v4594 = vadd.f32 0.0, %v4593
      %4595 = vmatmul.bf16.gmra.mxu0 %v4454
      %v4596 = vpop.f32.mrf.mxu0
      %v4597 = vadd.f32 0.0, %v4596
      %v4598 = vpop.f32.mrf.mxu0
      %4599 = vmatmul.bf16.gmra.mxu0 %v4455
      %v4600 = vpop.f32.mrf.mxu0
      %v4601 = vpop.f32.mrf.mxu0
      %v4602 = vadd.f32 0.0, %v4601
      %4603 = vmatmul.bf16.gmra.mxu0 %v4456
      %v4604 = vpop.f32.mrf.mxu0
      %v4605 = vadd.f32 0.0, %v4604
      %v4606 = vpop.f32.mrf.mxu0
      %4607 = vmatmul.bf16.gmra.mxu0 %v4457
      %v4608 = vpop.f32.mrf.mxu0
      %v4609 = vpop.f32.mrf.mxu0
      %v4610 = vadd.f32 0.0, %v4609
      %4611 = vmatmul.bf16.gmra.mxu0 %v4458
      %v4612 = vpop.f32.mrf.mxu0
      %v4613 = vadd.f32 0.0, %v4612
      %v4614 = vpop.f32.mrf.mxu0
      %4615 = vmatmul.bf16.gmra.mxu0 %v4459
      %v4616 = vpop.f32.mrf.mxu0
      %v4617 = vpop.f32.mrf.mxu0
      %v4618 = vadd.f32 0.0, %v4617
      %4619 = vmatmul.bf16.gmra.mxu0 %v4460
      %v4620 = vpop.f32.mrf.mxu0
      %v4621 = vadd.f32 0.0, %v4620
      %v4622 = vpop.f32.mrf.mxu0
      %4623 = vmatmul.bf16.gmra.mxu0 %v4461
      %v4624 = vpop.f32.mrf.mxu0
      %v4625 = vpop.f32.mrf.mxu0
      %v4626 = vadd.f32 0.0, %v4625
      %4627 = vmatmul.bf16.gmra.mxu0 %v4462
      %v4628 = vpop.f32.mrf.mxu0
      %v4629 = vadd.f32 0.0, %v4628
      %v4630 = vpop.f32.mrf.mxu0
      %4631 = vmatmul.bf16.gmra.mxu0 %v4463
      %v4632 = vpop.f32.mrf.mxu0
      %v4633 = vpop.f32.mrf.mxu0
      %v4634 = vadd.f32 0.0, %v4633
      %4635 = vmatmul.bf16.gmra.mxu0 %v4464
      %v4636 = vpop.f32.mrf.mxu0
      %v4637 = vadd.f32 0.0, %v4636
      %v4638 = vpop.f32.mrf.mxu0
      %4639 = vmatmul.bf16.gmra.mxu0 %v4465
      %v4640 = vpop.f32.mrf.mxu0
      %v4641 = vpop.f32.mrf.mxu0
      %v4642 = vadd.f32 0.0, %v4641
      %4643 = vmatmul.bf16.gmra.mxu0 %v4466
      %v4644 = vpop.f32.mrf.mxu0
      %v4645 = vadd.f32 0.0, %v4644
      %v4646 = vpop.f32.mrf.mxu0
      %4647 = vmatmul.bf16.gmra.mxu0 %v4467
      %v4648 = vpop.f32.mrf.mxu0
      %v4649 = vpop.f32.mrf.mxu0
      %v4650 = vadd.f32 0.0, %v4649
      %4651 = vmatmul.bf16.gmra.mxu0 %v4468
      %v4652 = vpop.f32.mrf.mxu0
      %v4653 = vadd.f32 0.0, %v4652
      %v4654 = vpop.f32.mrf.mxu0
      %4655 = vmatmul.bf16.gmra.mxu0 %v4469
      %v4656 = vpop.f32.mrf.mxu0
      %v4657 = vpop.f32.mrf.mxu0
      %v4658 = vadd.f32 0.0, %v4657
      %4659 = vmatmul.bf16.gmra.mxu0 %v4470
      %v4660 = vpop.f32.mrf.mxu0
      %v4661 = vadd.f32 0.0, %v4660
      %v4662 = vpop.f32.mrf.mxu0
      %4663 = vmatmul.bf16.gmra.mxu0 %v4471
      %v4664 = vpop.f32.mrf.mxu0
      %v4665 = vpop.f32.mrf.mxu0
      %v4666 = vadd.f32 0.0, %v4665
      %4667 = vmatmul.bf16.gmra.mxu0 %v4472
      %v4668 = vpop.f32.mrf.mxu0
      %v4669 = vadd.f32 0.0, %v4668
      %v4670 = vpop.f32.mrf.mxu0
      %4671 = vmatmul.bf16.gmra.mxu0 %v4473
      %v4672 = vpop.f32.mrf.mxu0
      %v4673 = vpop.f32.mrf.mxu0
      %v4674 = vadd.f32 0.0, %v4673
      %4675 = vmatmul.bf16.gmra.mxu0 %v4474
      %v4676 = vpop.f32.mrf.mxu0
      %v4677 = vadd.f32 0.0, %v4676
      %v4678 = vpop.f32.mrf.mxu0
      %4679 = vmatmul.bf16.gmra.mxu0 %v4475
      %v4680 = vpop.f32.mrf.mxu0
      %v4681 = vpop.f32.mrf.mxu0
      %v4682 = vadd.f32 0.0, %v4681
      %4683 = vmatmul.bf16.gmra.mxu0 %v4476
      %v4684 = vpop.f32.mrf.mxu0
      %v4685 = vadd.f32 0.0, %v4684
      %v4686 = vpop.f32.mrf.mxu0
      %4687 = vmatmul.bf16.gmra.mxu0 %v4477
      %v4688 = vpop.f32.mrf.mxu0
      %v4689 = vpop.f32.mrf.mxu0
      %v4690 = vadd.f32 0.0, %v4689
      %4691 = vmatmul.bf16.gmra.mxu0 %v4478
      %v4692 = vpop.f32.mrf.mxu0
      %v4693 = vadd.f32 0.0, %v4692
      %v4694 = vpop.f32.mrf.mxu0
      %4695 = vdwg.mxu0
      %v4697 = vunpack.c.l.b16 %v4212
      %v4698 = vpack.c.b16 %v4383, %v4697
      %v4699 = vpack.c.b16 %v4385, %v4384
      %v4700 = vpack.c.b16 %v4387, %v4386
      %v4701 = vpack.c.b16 %v4389, %v4388
      %v4702 = vpack.c.b16 %v4391, %v4390
      %v4703 = vpack.c.b16 %v4393, %v4392
      %v4704 = vpack.c.b16 %v4395, %v4394
      %v4705 = vpack.c.b16 %v4397, %v4396
      %v4706 = vpack.c.b16 %v4399, %v4398
      %v4707 = vpack.c.b16 %v4401, %v4400
      %v4708 = vpack.c.b16 %v4403, %v4402
      %v4709 = vpack.c.b16 %v4405, %v4404
      %v4710 = vpack.c.b16 %v4407, %v4406
      %v4711 = vpack.c.b16 %v4409, %v4408
      %v4712 = vpack.c.b16 %v4411, %v4410
      %v4713 = vpack.c.b16 %v4413, %v4412
      %v4714 = vpack.c.b16 %v4415, %v4414
      %v4715 = vpack.c.b16 %v4417, %v4416
      %v4716 = vpack.c.b16 %v4419, %v4418
      %v4717 = vpack.c.b16 %v4421, %v4420
      %v4718 = vpack.c.b16 %v4423, %v4422
      %v4719 = vpack.c.b16 %v4425, %v4424
      %v4720 = vpack.c.b16 %v4427, %v4426
      %v4721 = vpack.c.b16 %v4429, %v4428
      %v4722 = vpack.c.b16 %v4431, %v4430
      %v4723 = vpack.c.b16 %v4433, %v4432
      %v4724 = vpack.c.b16 %v4435, %v4434
      %v4725 = vpack.c.b16 %v4437, %v4436
      %v4726 = vpack.c.b16 %v4439, %v4438
      %v4727 = vpack.c.b16 %v4441, %v4440
      %v4728 = vpack.c.b16 %v4443, %v4442
      %v4729 = vpack.c.b16 %v4445, %v4444
      %v4730 = vpack.c.b16 %v4446, %v4446
      %v4732 = vshrl.u32 %v4698, 16
      %v4734 = vrot.slane %v4732, 3
      %v4735 = vshll.u32 %v4698, 16
      %v4737 = vrot.slane %v4735, 4
      %v4738 = vor.u32 %v4734, %v4737
      %v4740 = vshrl.u32 %v4699, 16
      %v4742 = vrot.slane %v4740, 3
      %v4743 = vshll.u32 %v4699, 16
      %v4745 = vrot.slane %v4743, 4
      %v4746 = vor.u32 %v4742, %v4745
      %v4747 = vsel %vm777, %v4738, %v4746
      %v4749 = vshrl.u32 %v4700, 16
      %v4751 = vrot.slane %v4749, 3
      %v4752 = vshll.u32 %v4700, 16
      %v4754 = vrot.slane %v4752, 4
      %v4755 = vor.u32 %v4751, %v4754
      %v4756 = vsel %vm777, %v4746, %v4755
      %v4758 = vshrl.u32 %v4701, 16
      %v4760 = vrot.slane %v4758, 3
      %v4761 = vshll.u32 %v4701, 16
      %v4763 = vrot.slane %v4761, 4
      %v4764 = vor.u32 %v4760, %v4763
      %v4765 = vsel %vm777, %v4755, %v4764
      %v4767 = vshrl.u32 %v4702, 16
      %v4769 = vrot.slane %v4767, 3
      %v4770 = vshll.u32 %v4702, 16
      %v4772 = vrot.slane %v4770, 4
      %v4773 = vor.u32 %v4769, %v4772
      %v4774 = vsel %vm777, %v4764, %v4773
      %v4776 = vshrl.u32 %v4703, 16
      %v4778 = vrot.slane %v4776, 3
      %v4779 = vshll.u32 %v4703, 16
      %v4781 = vrot.slane %v4779, 4
      %v4782 = vor.u32 %v4778, %v4781
      %v4783 = vsel %vm777, %v4773, %v4782
      %v4785 = vshrl.u32 %v4704, 16
      %v4787 = vrot.slane %v4785, 3
      %v4788 = vshll.u32 %v4704, 16
      %v4790 = vrot.slane %v4788, 4
      %v4791 = vor.u32 %v4787, %v4790
      %v4792 = vsel %vm777, %v4782, %v4791
      %v4794 = vshrl.u32 %v4705, 16
      %v4796 = vrot.slane %v4794, 3
      %v4797 = vshll.u32 %v4705, 16
      %v4799 = vrot.slane %v4797, 4
      %v4800 = vor.u32 %v4796, %v4799
      %v4801 = vsel %vm777, %v4791, %v4800
      %v4803 = vshrl.u32 %v4706, 16
      %v4805 = vrot.slane %v4803, 3
      %v4806 = vshll.u32 %v4706, 16
      %v4808 = vrot.slane %v4806, 4
      %v4809 = vor.u32 %v4805, %v4808
      %v4810 = vsel %vm777, %v4800, %v4809
      %v4812 = vshrl.u32 %v4707, 16
      %v4814 = vrot.slane %v4812, 3
      %v4815 = vshll.u32 %v4707, 16
      %v4817 = vrot.slane %v4815, 4
      %v4818 = vor.u32 %v4814, %v4817
      %v4819 = vsel %vm777, %v4809, %v4818
      %v4821 = vshrl.u32 %v4708, 16
      %v4823 = vrot.slane %v4821, 3
      %v4824 = vshll.u32 %v4708, 16
      %v4826 = vrot.slane %v4824, 4
      %v4827 = vor.u32 %v4823, %v4826
      %v4828 = vsel %vm777, %v4818, %v4827
      %v4830 = vshrl.u32 %v4709, 16
      %v4832 = vrot.slane %v4830, 3
      %v4833 = vshll.u32 %v4709, 16
      %v4835 = vrot.slane %v4833, 4
      %v4836 = vor.u32 %v4832, %v4835
      %v4837 = vsel %vm777, %v4827, %v4836
      %v4839 = vshrl.u32 %v4710, 16
      %v4841 = vrot.slane %v4839, 3
      %v4842 = vshll.u32 %v4710, 16
      %v4844 = vrot.slane %v4842, 4
      %v4845 = vor.u32 %v4841, %v4844
      %v4846 = vsel %vm777, %v4836, %v4845
      %v4848 = vshrl.u32 %v4711, 16
      %v4850 = vrot.slane %v4848, 3
      %v4851 = vshll.u32 %v4711, 16
      %v4853 = vrot.slane %v4851, 4
      %v4854 = vor.u32 %v4850, %v4853
      %v4855 = vsel %vm777, %v4845, %v4854
      %v4857 = vshrl.u32 %v4712, 16
      %v4859 = vrot.slane %v4857, 3
      %v4860 = vshll.u32 %v4712, 16
      %v4862 = vrot.slane %v4860, 4
      %v4863 = vor.u32 %v4859, %v4862
      %v4864 = vsel %vm777, %v4854, %v4863
      %v4866 = vshrl.u32 %v4713, 16
      %v4868 = vrot.slane %v4866, 3
      %v4869 = vshll.u32 %v4713, 16
      %v4871 = vrot.slane %v4869, 4
      %v4872 = vor.u32 %v4868, %v4871
      %v4873 = vsel %vm777, %v4863, %v4872
      %v4875 = vshrl.u32 %v4714, 16
      %v4877 = vrot.slane %v4875, 3
      %v4878 = vshll.u32 %v4714, 16
      %v4880 = vrot.slane %v4878, 4
      %v4881 = vor.u32 %v4877, %v4880
      %v4882 = vsel %vm777, %v4872, %v4881
      %v4884 = vshrl.u32 %v4715, 16
      %v4886 = vrot.slane %v4884, 3
      %v4887 = vshll.u32 %v4715, 16
      %v4889 = vrot.slane %v4887, 4
      %v4890 = vor.u32 %v4886, %v4889
      %v4891 = vsel %vm777, %v4881, %v4890
      %v4893 = vshrl.u32 %v4716, 16
      %v4895 = vrot.slane %v4893, 3
      %v4896 = vshll.u32 %v4716, 16
      %v4898 = vrot.slane %v4896, 4
      %v4899 = vor.u32 %v4895, %v4898
      %v4900 = vsel %vm777, %v4890, %v4899
      %v4902 = vshrl.u32 %v4717, 16
      %v4904 = vrot.slane %v4902, 3
      %v4905 = vshll.u32 %v4717, 16
      %v4907 = vrot.slane %v4905, 4
      %v4908 = vor.u32 %v4904, %v4907
      %v4909 = vsel %vm777, %v4899, %v4908
      %v4911 = vshrl.u32 %v4718, 16
      %v4913 = vrot.slane %v4911, 3
      %v4914 = vshll.u32 %v4718, 16
      %v4916 = vrot.slane %v4914, 4
      %v4917 = vor.u32 %v4913, %v4916
      %v4918 = vsel %vm777, %v4908, %v4917
      %v4920 = vshrl.u32 %v4719, 16
      %v4922 = vrot.slane %v4920, 3
      %v4923 = vshll.u32 %v4719, 16
      %v4925 = vrot.slane %v4923, 4
      %v4926 = vor.u32 %v4922, %v4925
      %v4927 = vsel %vm777, %v4917, %v4926
      %v4929 = vshrl.u32 %v4720, 16
      %v4931 = vrot.slane %v4929, 3
      %v4932 = vshll.u32 %v4720, 16
      %v4934 = vrot.slane %v4932, 4
      %v4935 = vor.u32 %v4931, %v4934
      %v4936 = vsel %vm777, %v4926, %v4935
      %v4938 = vshrl.u32 %v4721, 16
      %v4940 = vrot.slane %v4938, 3
      %v4941 = vshll.u32 %v4721, 16
      %v4943 = vrot.slane %v4941, 4
      %v4944 = vor.u32 %v4940, %v4943
      %v4945 = vsel %vm777, %v4935, %v4944
      %v4947 = vshrl.u32 %v4722, 16
      %v4949 = vrot.slane %v4947, 3
      %v4950 = vshll.u32 %v4722, 16
      %v4952 = vrot.slane %v4950, 4
      %v4953 = vor.u32 %v4949, %v4952
      %v4954 = vsel %vm777, %v4944, %v4953
      %v4956 = vshrl.u32 %v4723, 16
      %v4958 = vrot.slane %v4956, 3
      %v4959 = vshll.u32 %v4723, 16
      %v4961 = vrot.slane %v4959, 4
      %v4962 = vor.u32 %v4958, %v4961
      %v4963 = vsel %vm777, %v4953, %v4962
      %v4965 = vshrl.u32 %v4724, 16
      %v4967 = vrot.slane %v4965, 3
      %v4968 = vshll.u32 %v4724, 16
      %v4970 = vrot.slane %v4968, 4
      %v4971 = vor.u32 %v4967, %v4970
      %v4972 = vsel %vm777, %v4962, %v4971
      %v4974 = vshrl.u32 %v4725, 16
      %v4976 = vrot.slane %v4974, 3
      %v4977 = vshll.u32 %v4725, 16
      %v4979 = vrot.slane %v4977, 4
      %v4980 = vor.u32 %v4976, %v4979
      %v4981 = vsel %vm777, %v4971, %v4980
      %v4983 = vshrl.u32 %v4726, 16
      %v4985 = vrot.slane %v4983, 3
      %v4986 = vshll.u32 %v4726, 16
      %v4988 = vrot.slane %v4986, 4
      %v4989 = vor.u32 %v4985, %v4988
      %v4990 = vsel %vm777, %v4980, %v4989
      %v4992 = vshrl.u32 %v4727, 16
      %v4994 = vrot.slane %v4992, 3
      %v4995 = vshll.u32 %v4727, 16
      %v4997 = vrot.slane %v4995, 4
      %v4998 = vor.u32 %v4994, %v4997
      %v4999 = vsel %vm777, %v4989, %v4998
      %v5001 = vshrl.u32 %v4728, 16
      %v5003 = vrot.slane %v5001, 3
      %v5004 = vshll.u32 %v4728, 16
      %v5006 = vrot.slane %v5004, 4
      %v5007 = vor.u32 %v5003, %v5006
      %v5008 = vsel %vm777, %v4998, %v5007
      %v5010 = vshrl.u32 %v4729, 16
      %v5012 = vrot.slane %v5010, 3
      %v5013 = vshll.u32 %v4729, 16
      %v5015 = vrot.slane %v5013, 4
      %v5016 = vor.u32 %v5012, %v5015
      %v5017 = vsel %vm777, %v5007, %v5016
      %v5019 = vshrl.u32 %v4730, 16
      %v5021 = vrot.slane %v5019, 3
      %v5022 = vshll.u32 %v4730, 16
      %v5024 = vrot.slane %v5022, 4
      %v5025 = vor.u32 %v5021, %v5024
      %v5026 = vsel %vm777, %v5016, %v5025
      %v5075 = vunpack.c.l.b16 %v4286
      %v5076 = vunpack.c.l.b16 %v4287
      %v5077 = vunpack.c.l.b16 %v4288
      %v5078 = vunpack.c.l.b16 %v4289
      %v5079 = vunpack.c.l.b16 %v4290
      %v5080 = vunpack.c.l.b16 %v4291
      %v5081 = vunpack.c.l.b16 %v4292
      %v5082 = vunpack.c.l.b16 %v4293
      %v5083 = vunpack.c.l.b16 %v4294
      %v5084 = vunpack.c.l.b16 %v4295
      %v5085 = vunpack.c.l.b16 %v4296
      %v5086 = vunpack.c.l.b16 %v4297
      %v5087 = vunpack.c.l.b16 %v4298
      %v5088 = vunpack.c.l.b16 %v4299
      %v5089 = vunpack.c.l.b16 %v4300
      %v5090 = vunpack.c.l.b16 %v4301
      %v5091 = vpack.c.b16 %v5076, %v5075
      %v5092 = vpack.c.b16 %v5078, %v5077
      %v5093 = vpack.c.b16 %v5080, %v5079
      %v5094 = vpack.c.b16 %v5082, %v5081
      %v5095 = vpack.c.b16 %v5084, %v5083
      %v5096 = vpack.c.b16 %v5086, %v5085
      %v5097 = vpack.c.b16 %v5088, %v5087
      %v5098 = vpack.c.b16 %v5090, %v5089
      %5107 = vmatpush.bf16.msra.mxu0 %v5098
      %5108 = vmatpush.bf16.msra.mxu0 %v5097
      %5109 = vmatpush.bf16.msra.mxu0 %v5096
      %5110 = vmatpush.bf16.msra.mxu0 %v5095
      %5111 = vmatpush.bf16.msra.mxu0 %v5094
      %5112 = vmatpush.bf16.msra.mxu0 %v5093
      %5113 = vmatpush.bf16.msra.mxu0 %v5092
      %5114 = vmatpush.bf16.msra.mxu0 %v5091
      %5115 = vmatmul.bf16.gmra.mxu0 %v4747
      %v5116 = vpop.f32.mrf.mxu0
      %v5117 = vpop.f32.mrf.mxu0
      %v5118 = vadd.f32 %v4570, %v5117
      %5119 = vmatmul.bf16.gmra.mxu0 %v4756
      %v5120 = vpop.f32.mrf.mxu0
      %v5121 = vadd.f32 %v4573, %v5120
      %v5122 = vpop.f32.mrf.mxu0
      %5123 = vmatmul.bf16.gmra.mxu0 %v4765
      %v5124 = vpop.f32.mrf.mxu0
      %v5125 = vpop.f32.mrf.mxu0
      %v5126 = vadd.f32 %v4578, %v5125
      %5127 = vmatmul.bf16.gmra.mxu0 %v4774
      %v5128 = vpop.f32.mrf.mxu0
      %v5129 = vadd.f32 %v4581, %v5128
      %v5130 = vpop.f32.mrf.mxu0
      %5131 = vmatmul.bf16.gmra.mxu0 %v4783
      %v5132 = vpop.f32.mrf.mxu0
      %v5133 = vpop.f32.mrf.mxu0
      %v5134 = vadd.f32 %v4586, %v5133
      %5135 = vmatmul.bf16.gmra.mxu0 %v4792
      %v5136 = vpop.f32.mrf.mxu0
      %v5137 = vadd.f32 %v4589, %v5136
      %v5138 = vpop.f32.mrf.mxu0
      %5139 = vmatmul.bf16.gmra.mxu0 %v4801
      %v5140 = vpop.f32.mrf.mxu0
      %v5141 = vpop.f32.mrf.mxu0
      %v5142 = vadd.f32 %v4594, %v5141
      %5143 = vmatmul.bf16.gmra.mxu0 %v4810
      %v5144 = vpop.f32.mrf.mxu0
      %v5145 = vadd.f32 %v4597, %v5144
      %v5146 = vpop.f32.mrf.mxu0
      %5147 = vmatmul.bf16.gmra.mxu0 %v4819
      %v5148 = vpop.f32.mrf.mxu0
      %v5149 = vpop.f32.mrf.mxu0
      %v5150 = vadd.f32 %v4602, %v5149
      %5151 = vmatmul.bf16.gmra.mxu0 %v4828
      %v5152 = vpop.f32.mrf.mxu0
      %v5153 = vadd.f32 %v4605, %v5152
      %v5154 = vpop.f32.mrf.mxu0
      %5155 = vmatmul.bf16.gmra.mxu0 %v4837
      %v5156 = vpop.f32.mrf.mxu0
      %v5157 = vpop.f32.mrf.mxu0
      %v5158 = vadd.f32 %v4610, %v5157
      %5159 = vmatmul.bf16.gmra.mxu0 %v4846
      %v5160 = vpop.f32.mrf.mxu0
      %v5161 = vadd.f32 %v4613, %v5160
      %v5162 = vpop.f32.mrf.mxu0
      %5163 = vmatmul.bf16.gmra.mxu0 %v4855
      %v5164 = vpop.f32.mrf.mxu0
      %v5165 = vpop.f32.mrf.mxu0
      %v5166 = vadd.f32 %v4618, %v5165
      %5167 = vmatmul.bf16.gmra.mxu0 %v4864
      %v5168 = vpop.f32.mrf.mxu0
      %v5169 = vadd.f32 %v4621, %v5168
      %v5170 = vpop.f32.mrf.mxu0
      %5171 = vmatmul.bf16.gmra.mxu0 %v4873
      %v5172 = vpop.f32.mrf.mxu0
      %v5173 = vpop.f32.mrf.mxu0
      %v5174 = vadd.f32 %v4626, %v5173
      %5175 = vmatmul.bf16.gmra.mxu0 %v4882
      %v5176 = vpop.f32.mrf.mxu0
      %v5177 = vadd.f32 %v4629, %v5176
      %v5178 = vpop.f32.mrf.mxu0
      %5179 = vmatmul.bf16.gmra.mxu0 %v4891
      %v5180 = vpop.f32.mrf.mxu0
      %v5181 = vpop.f32.mrf.mxu0
      %v5182 = vadd.f32 %v4634, %v5181
      %5183 = vmatmul.bf16.gmra.mxu0 %v4900
      %v5184 = vpop.f32.mrf.mxu0
      %v5185 = vadd.f32 %v4637, %v5184
      %v5186 = vpop.f32.mrf.mxu0
      %5187 = vmatmul.bf16.gmra.mxu0 %v4909
      %v5188 = vpop.f32.mrf.mxu0
      %v5189 = vpop.f32.mrf.mxu0
      %v5190 = vadd.f32 %v4642, %v5189
      %5191 = vmatmul.bf16.gmra.mxu0 %v4918
      %v5192 = vpop.f32.mrf.mxu0
      %v5193 = vadd.f32 %v4645, %v5192
      %v5194 = vpop.f32.mrf.mxu0
      %5195 = vmatmul.bf16.gmra.mxu0 %v4927
      %v5196 = vpop.f32.mrf.mxu0
      %v5197 = vpop.f32.mrf.mxu0
      %v5198 = vadd.f32 %v4650, %v5197
      %5199 = vmatmul.bf16.gmra.mxu0 %v4936
      %v5200 = vpop.f32.mrf.mxu0
      %v5201 = vadd.f32 %v4653, %v5200
      %v5202 = vpop.f32.mrf.mxu0
      %5203 = vmatmul.bf16.gmra.mxu0 %v4945
      %v5204 = vpop.f32.mrf.mxu0
      %v5205 = vpop.f32.mrf.mxu0
      %v5206 = vadd.f32 %v4658, %v5205
      %5207 = vmatmul.bf16.gmra.mxu0 %v4954
      %v5208 = vpop.f32.mrf.mxu0
      %v5209 = vadd.f32 %v4661, %v5208
      %v5210 = vpop.f32.mrf.mxu0
      %5211 = vmatmul.bf16.gmra.mxu0 %v4963
      %v5212 = vpop.f32.mrf.mxu0
      %v5213 = vpop.f32.mrf.mxu0
      %v5214 = vadd.f32 %v4666, %v5213
      %5215 = vmatmul.bf16.gmra.mxu0 %v4972
      %v5216 = vpop.f32.mrf.mxu0
      %v5217 = vadd.f32 %v4669, %v5216
      %v5218 = vpop.f32.mrf.mxu0
      %5219 = vmatmul.bf16.gmra.mxu0 %v4981
      %v5220 = vpop.f32.mrf.mxu0
      %v5221 = vpop.f32.mrf.mxu0
      %v5222 = vadd.f32 %v4674, %v5221
      %5223 = vmatmul.bf16.gmra.mxu0 %v4990
      %v5224 = vpop.f32.mrf.mxu0
      %v5225 = vadd.f32 %v4677, %v5224
      %v5226 = vpop.f32.mrf.mxu0
      %5227 = vmatmul.bf16.gmra.mxu0 %v4999
      %v5228 = vpop.f32.mrf.mxu0
      %v5229 = vpop.f32.mrf.mxu0
      %v5230 = vadd.f32 %v4682, %v5229
      %5231 = vmatmul.bf16.gmra.mxu0 %v5008
      %v5232 = vpop.f32.mrf.mxu0
      %v5233 = vadd.f32 %v4685, %v5232
      %v5234 = vpop.f32.mrf.mxu0
      %5235 = vmatmul.bf16.gmra.mxu0 %v5017
      %v5236 = vpop.f32.mrf.mxu0
      %v5237 = vpop.f32.mrf.mxu0
      %v5238 = vadd.f32 %v4690, %v5237
      %5239 = vmatmul.bf16.gmra.mxu0 %v5026
      %v5240 = vpop.f32.mrf.mxu0
      %v5241 = vadd.f32 %v4693, %v5240
      %v5242 = vpop.f32.mrf.mxu0
      %5243 = vdwg.mxu0
      %s5244 = scalar_lea.vmem %s3, 128
      %v5245 = vld [vmem:[%s5244] sm:$0xf]
      %v5246 = vld [vmem:[%s5244 + $0x4] sm:$0xf]
      %v5247 = vld [vmem:[%s5244 + $0x8] sm:$0xf]
      %v5248 = vld [vmem:[%s5244 + $0xc] sm:$0xf]
      %v5249 = vld [vmem:[%s5244 + $0x10] sm:$0xf]
      %v5250 = vld [vmem:[%s5244 + $0x14] sm:$0xf]
      %v5251 = vld [vmem:[%s5244 + $0x18] sm:$0xf]
      %v5252 = vld [vmem:[%s5244 + $0x1c] sm:$0xf]
      %v5253 = vld [vmem:[%s5244 + $0x20] sm:$0xf]
      %v5254 = vld [vmem:[%s5244 + $0x24] sm:$0xf]
      %v5255 = vld [vmem:[%s5244 + $0x28] sm:$0xf]
      %v5256 = vld [vmem:[%s5244 + $0x2c] sm:$0xf]
      %v5257 = vld [vmem:[%s5244 + $0x30] sm:$0xf]
      %v5258 = vld [vmem:[%s5244 + $0x34] sm:$0xf]
      %v5259 = vld [vmem:[%s5244 + $0x38] sm:$0xf]
      %v5260 = vld [vmem:[%s5244 + $0x3c] sm:$0xf]
      %v5262 = vunpack.c.l.b16 %v4277
      %v5263 = vpack.c.b16 %v5262, %v5262
      %v5265 = vshrl.u32 %v4447, 16
      %v5267 = vshll.u32 %v4447, 16
      %v5269 = vrot.slane %v5267, 1
      %v5270 = vor.u32 %v5265, %v5269
      %v5272 = vshll.u32 %v4448, 16
      %v5274 = vrot.slane %v5272, 1
      %v5275 = vsel %vm1343, %v5270, %v5274
      %v5276 = vshrl.u32 %v4448, 16
      %v5278 = vor.u32 %v5276, %v5274
      %v5280 = vshll.u32 %v4449, 16
      %v5282 = vrot.slane %v5280, 1
      %v5283 = vsel %vm1343, %v5278, %v5282
      %v5284 = vshrl.u32 %v4449, 16
      %v5286 = vor.u32 %v5284, %v5282
      %v5288 = vshll.u32 %v4450, 16
      %v5290 = vrot.slane %v5288, 1
      %v5291 = vsel %vm1343, %v5286, %v5290
      %v5292 = vshrl.u32 %v4450, 16
      %v5294 = vor.u32 %v5292, %v5290
      %v5296 = vshll.u32 %v4451, 16
      %v5298 = vrot.slane %v5296, 1
      %v5299 = vsel %vm1343, %v5294, %v5298
      %v5300 = vshrl.u32 %v4451, 16
      %v5302 = vor.u32 %v5300, %v5298
      %v5304 = vshll.u32 %v4452, 16
      %v5306 = vrot.slane %v5304, 1
      %v5307 = vsel %vm1343, %v5302, %v5306
      %v5308 = vshrl.u32 %v4452, 16
      %v5310 = vor.u32 %v5308, %v5306
      %v5312 = vshll.u32 %v4453, 16
      %v5314 = vrot.slane %v5312, 1
      %v5315 = vsel %vm1343, %v5310, %v5314
      %v5316 = vshrl.u32 %v4453, 16
      %v5318 = vor.u32 %v5316, %v5314
      %v5320 = vshll.u32 %v4454, 16
      %v5322 = vrot.slane %v5320, 1
      %v5323 = vsel %vm1343, %v5318, %v5322
      %v5324 = vshrl.u32 %v4454, 16
      %v5326 = vor.u32 %v5324, %v5322
      %v5328 = vshll.u32 %v4455, 16
      %v5330 = vrot.slane %v5328, 1
      %v5331 = vsel %vm1343, %v5326, %v5330
      %v5332 = vshrl.u32 %v4455, 16
      %v5334 = vor.u32 %v5332, %v5330
      %v5336 = vshll.u32 %v4456, 16
      %v5338 = vrot.slane %v5336, 1
      %v5339 = vsel %vm1343, %v5334, %v5338
      %v5340 = vshrl.u32 %v4456, 16
      %v5342 = vor.u32 %v5340, %v5338
      %v5344 = vshll.u32 %v4457, 16
      %v5346 = vrot.slane %v5344, 1
      %v5347 = vsel %vm1343, %v5342, %v5346
      %v5348 = vshrl.u32 %v4457, 16
      %v5350 = vor.u32 %v5348, %v5346
      %v5352 = vshll.u32 %v4458, 16
      %v5354 = vrot.slane %v5352, 1
      %v5355 = vsel %vm1343, %v5350, %v5354
      %v5356 = vshrl.u32 %v4458, 16
      %v5358 = vor.u32 %v5356, %v5354
      %v5360 = vshll.u32 %v4459, 16
      %v5362 = vrot.slane %v5360, 1
      %v5363 = vsel %vm1343, %v5358, %v5362
      %v5364 = vshrl.u32 %v4459, 16
      %v5366 = vor.u32 %v5364, %v5362
      %v5368 = vshll.u32 %v4460, 16
      %v5370 = vrot.slane %v5368, 1
      %v5371 = vsel %vm1343, %v5366, %v5370
      %v5372 = vshrl.u32 %v4460, 16
      %v5374 = vor.u32 %v5372, %v5370
      %v5376 = vshll.u32 %v4461, 16
      %v5378 = vrot.slane %v5376, 1
      %v5379 = vsel %vm1343, %v5374, %v5378
      %v5380 = vshrl.u32 %v4461, 16
      %v5382 = vor.u32 %v5380, %v5378
      %v5384 = vshll.u32 %v4462, 16
      %v5386 = vrot.slane %v5384, 1
      %v5387 = vsel %vm1343, %v5382, %v5386
      %v5388 = vshrl.u32 %v4462, 16
      %v5390 = vor.u32 %v5388, %v5386
      %v5392 = vshll.u32 %v4463, 16
      %v5394 = vrot.slane %v5392, 1
      %v5395 = vsel %vm1343, %v5390, %v5394
      %v5396 = vshrl.u32 %v4463, 16
      %v5398 = vor.u32 %v5396, %v5394
      %v5400 = vshll.u32 %v4464, 16
      %v5402 = vrot.slane %v5400, 1
      %v5403 = vsel %vm1343, %v5398, %v5402
      %v5404 = vshrl.u32 %v4464, 16
      %v5406 = vor.u32 %v5404, %v5402
      %v5408 = vshll.u32 %v4465, 16
      %v5410 = vrot.slane %v5408, 1
      %v5411 = vsel %vm1343, %v5406, %v5410
      %v5412 = vshrl.u32 %v4465, 16
      %v5414 = vor.u32 %v5412, %v5410
      %v5416 = vshll.u32 %v4466, 16
      %v5418 = vrot.slane %v5416, 1
      %v5419 = vsel %vm1343, %v5414, %v5418
      %v5420 = vshrl.u32 %v4466, 16
      %v5422 = vor.u32 %v5420, %v5418
      %v5424 = vshll.u32 %v4467, 16
      %v5426 = vrot.slane %v5424, 1
      %v5427 = vsel %vm1343, %v5422, %v5426
      %v5428 = vshrl.u32 %v4467, 16
      %v5430 = vor.u32 %v5428, %v5426
      %v5432 = vshll.u32 %v4468, 16
      %v5434 = vrot.slane %v5432, 1
      %v5435 = vsel %vm1343, %v5430, %v5434
      %v5436 = vshrl.u32 %v4468, 16
      %v5438 = vor.u32 %v5436, %v5434
      %v5440 = vshll.u32 %v4469, 16
      %v5442 = vrot.slane %v5440, 1
      %v5443 = vsel %vm1343, %v5438, %v5442
      %v5444 = vshrl.u32 %v4469, 16
      %v5446 = vor.u32 %v5444, %v5442
      %v5448 = vshll.u32 %v4470, 16
      %v5450 = vrot.slane %v5448, 1
      %v5451 = vsel %vm1343, %v5446, %v5450
      %v5452 = vshrl.u32 %v4470, 16
      %v5454 = vor.u32 %v5452, %v5450
      %v5456 = vshll.u32 %v4471, 16
      %v5458 = vrot.slane %v5456, 1
      %v5459 = vsel %vm1343, %v5454, %v5458
      %v5460 = vshrl.u32 %v4471, 16
      %v5462 = vor.u32 %v5460, %v5458
      %v5464 = vshll.u32 %v4472, 16
      %v5466 = vrot.slane %v5464, 1
      %v5467 = vsel %vm1343, %v5462, %v5466
      %v5468 = vshrl.u32 %v4472, 16
      %v5470 = vor.u32 %v5468, %v5466
      %v5472 = vshll.u32 %v4473, 16
      %v5474 = vrot.slane %v5472, 1
      %v5475 = vsel %vm1343, %v5470, %v5474
      %v5476 = vshrl.u32 %v4473, 16
      %v5478 = vor.u32 %v5476, %v5474
      %v5480 = vshll.u32 %v4474, 16
      %v5482 = vrot.slane %v5480, 1
      %v5483 = vsel %vm1343, %v5478, %v5482
      %v5484 = vshrl.u32 %v4474, 16
      %v5486 = vor.u32 %v5484, %v5482
      %v5488 = vshll.u32 %v4475, 16
      %v5490 = vrot.slane %v5488, 1
      %v5491 = vsel %vm1343, %v5486, %v5490
      %v5492 = vshrl.u32 %v4475, 16
      %v5494 = vor.u32 %v5492, %v5490
      %v5496 = vshll.u32 %v4476, 16
      %v5498 = vrot.slane %v5496, 1
      %v5499 = vsel %vm1343, %v5494, %v5498
      %v5500 = vshrl.u32 %v4476, 16
      %v5502 = vor.u32 %v5500, %v5498
      %v5504 = vshll.u32 %v4477, 16
      %v5506 = vrot.slane %v5504, 1
      %v5507 = vsel %vm1343, %v5502, %v5506
      %v5508 = vshrl.u32 %v4477, 16
      %v5510 = vor.u32 %v5508, %v5506
      %v5512 = vshll.u32 %v4478, 16
      %v5514 = vrot.slane %v5512, 1
      %v5515 = vsel %vm1343, %v5510, %v5514
      %v5516 = vshrl.u32 %v4478, 16
      %v5518 = vor.u32 %v5516, %v5514
      %v5520 = vshll.u32 %v5263, 16
      %v5522 = vrot.slane %v5520, 1
      %v5523 = vsel %vm1343, %v5518, %v5522
      %v5572 = vunpack.c.l.b16 %v5245
      %v5573 = vunpack.c.l.b16 %v5246
      %v5574 = vunpack.c.l.b16 %v5247
      %v5575 = vunpack.c.l.b16 %v5248
      %v5576 = vunpack.c.l.b16 %v5249
      %v5577 = vunpack.c.l.b16 %v5250
      %v5578 = vunpack.c.l.b16 %v5251
      %v5579 = vunpack.c.l.b16 %v5252
      %v5580 = vunpack.c.l.b16 %v5253
      %v5581 = vunpack.c.l.b16 %v5254
      %v5582 = vunpack.c.l.b16 %v5255
      %v5583 = vunpack.c.l.b16 %v5256
      %v5584 = vunpack.c.l.b16 %v5257
      %v5585 = vunpack.c.l.b16 %v5258
      %v5586 = vunpack.c.l.b16 %v5259
      %v5587 = vunpack.c.l.b16 %v5260
      %v5588 = vpack.c.b16 %v5573, %v5572
      %v5589 = vpack.c.b16 %v5575, %v5574
      %v5590 = vpack.c.b16 %v5577, %v5576
      %v5591 = vpack.c.b16 %v5579, %v5578
      %v5592 = vpack.c.b16 %v5581, %v5580
      %v5593 = vpack.c.b16 %v5583, %v5582
      %v5594 = vpack.c.b16 %v5585, %v5584
      %v5595 = vpack.c.b16 %v5587, %v5586
      %5604 = vmatpush.bf16.msra.mxu0 %v5595
      %5605 = vmatpush.bf16.msra.mxu0 %v5594
      %5606 = vmatpush.bf16.msra.mxu0 %v5593
      %5607 = vmatpush.bf16.msra.mxu0 %v5592
      %5608 = vmatpush.bf16.msra.mxu0 %v5591
      %5609 = vmatpush.bf16.msra.mxu0 %v5590
      %5610 = vmatpush.bf16.msra.mxu0 %v5589
      %5611 = vmatpush.bf16.msra.mxu0 %v5588
      %5612 = vmatmul.bf16.gmra.mxu0 %v5275
      %v5613 = vpop.f32.mrf.mxu0
      %v5614 = vpop.f32.mrf.mxu0
      %v5615 = vadd.f32 0.0, %v5614
      %5616 = vmatmul.bf16.gmra.mxu0 %v5283
      %v5617 = vpop.f32.mrf.mxu0
      %v5618 = vadd.f32 0.0, %v5617
      %v5619 = vpop.f32.mrf.mxu0
      %5620 = vmatmul.bf16.gmra.mxu0 %v5291
      %v5621 = vpop.f32.mrf.mxu0
      %v5622 = vpop.f32.mrf.mxu0
      %v5623 = vadd.f32 0.0, %v5622
      %5624 = vmatmul.bf16.gmra.mxu0 %v5299
      %v5625 = vpop.f32.mrf.mxu0
      %v5626 = vadd.f32 0.0, %v5625
      %v5627 = vpop.f32.mrf.mxu0
      %5628 = vmatmul.bf16.gmra.mxu0 %v5307
      %v5629 = vpop.f32.mrf.mxu0
      %v5630 = vpop.f32.mrf.mxu0
      %v5631 = vadd.f32 0.0, %v5630
      %5632 = vmatmul.bf16.gmra.mxu0 %v5315
      %v5633 = vpop.f32.mrf.mxu0
      %v5634 = vadd.f32 0.0, %v5633
      %v5635 = vpop.f32.mrf.mxu0
      %5636 = vmatmul.bf16.gmra.mxu0 %v5323
      %v5637 = vpop.f32.mrf.mxu0
      %v5638 = vpop.f32.mrf.mxu0
      %v5639 = vadd.f32 0.0, %v5638
      %5640 = vmatmul.bf16.gmra.mxu0 %v5331
      %v5641 = vpop.f32.mrf.mxu0
      %v5642 = vadd.f32 0.0, %v5641
      %v5643 = vpop.f32.mrf.mxu0
      %5644 = vmatmul.bf16.gmra.mxu0 %v5339
      %v5645 = vpop.f32.mrf.mxu0
      %v5646 = vpop.f32.mrf.mxu0
      %v5647 = vadd.f32 0.0, %v5646
      %5648 = vmatmul.bf16.gmra.mxu0 %v5347
      %v5649 = vpop.f32.mrf.mxu0
      %v5650 = vadd.f32 0.0, %v5649
      %v5651 = vpop.f32.mrf.mxu0
      %5652 = vmatmul.bf16.gmra.mxu0 %v5355
      %v5653 = vpop.f32.mrf.mxu0
      %v5654 = vpop.f32.mrf.mxu0
      %v5655 = vadd.f32 0.0, %v5654
      %5656 = vmatmul.bf16.gmra.mxu0 %v5363
      %v5657 = vpop.f32.mrf.mxu0
      %v5658 = vadd.f32 0.0, %v5657
      %v5659 = vpop.f32.mrf.mxu0
      %5660 = vmatmul.bf16.gmra.mxu0 %v5371
      %v5661 = vpop.f32.mrf.mxu0
      %v5662 = vpop.f32.mrf.mxu0
      %v5663 = vadd.f32 0.0, %v5662
      %5664 = vmatmul.bf16.gmra.mxu0 %v5379
      %v5665 = vpop.f32.mrf.mxu0
      %v5666 = vadd.f32 0.0, %v5665
      %v5667 = vpop.f32.mrf.mxu0
      %5668 = vmatmul.bf16.gmra.mxu0 %v5387
      %v5669 = vpop.f32.mrf.mxu0
      %v5670 = vpop.f32.mrf.mxu0
      %v5671 = vadd.f32 0.0, %v5670
      %5672 = vmatmul.bf16.gmra.mxu0 %v5395
      %v5673 = vpop.f32.mrf.mxu0
      %v5674 = vadd.f32 0.0, %v5673
      %v5675 = vpop.f32.mrf.mxu0
      %5676 = vmatmul.bf16.gmra.mxu0 %v5403
      %v5677 = vpop.f32.mrf.mxu0
      %v5678 = vpop.f32.mrf.mxu0
      %v5679 = vadd.f32 0.0, %v5678
      %5680 = vmatmul.bf16.gmra.mxu0 %v5411
      %v5681 = vpop.f32.mrf.mxu0
      %v5682 = vadd.f32 0.0, %v5681
      %v5683 = vpop.f32.mrf.mxu0
      %5684 = vmatmul.bf16.gmra.mxu0 %v5419
      %v5685 = vpop.f32.mrf.mxu0
      %v5686 = vpop.f32.mrf.mxu0
      %v5687 = vadd.f32 0.0, %v5686
      %5688 = vmatmul.bf16.gmra.mxu0 %v5427
      %v5689 = vpop.f32.mrf.mxu0
      %v5690 = vadd.f32 0.0, %v5689
      %v5691 = vpop.f32.mrf.mxu0
      %5692 = vmatmul.bf16.gmra.mxu0 %v5435
      %v5693 = vpop.f32.mrf.mxu0
      %v5694 = vpop.f32.mrf.mxu0
      %v5695 = vadd.f32 0.0, %v5694
      %5696 = vmatmul.bf16.gmra.mxu0 %v5443
      %v5697 = vpop.f32.mrf.mxu0
      %v5698 = vadd.f32 0.0, %v5697
      %v5699 = vpop.f32.mrf.mxu0
      %5700 = vmatmul.bf16.gmra.mxu0 %v5451
      %v5701 = vpop.f32.mrf.mxu0
      %v5702 = vpop.f32.mrf.mxu0
      %v5703 = vadd.f32 0.0, %v5702
      %5704 = vmatmul.bf16.gmra.mxu0 %v5459
      %v5705 = vpop.f32.mrf.mxu0
      %v5706 = vadd.f32 0.0, %v5705
      %v5707 = vpop.f32.mrf.mxu0
      %5708 = vmatmul.bf16.gmra.mxu0 %v5467
      %v5709 = vpop.f32.mrf.mxu0
      %v5710 = vpop.f32.mrf.mxu0
      %v5711 = vadd.f32 0.0, %v5710
      %5712 = vmatmul.bf16.gmra.mxu0 %v5475
      %v5713 = vpop.f32.mrf.mxu0
      %v5714 = vadd.f32 0.0, %v5713
      %v5715 = vpop.f32.mrf.mxu0
      %5716 = vmatmul.bf16.gmra.mxu0 %v5483
      %v5717 = vpop.f32.mrf.mxu0
      %v5718 = vpop.f32.mrf.mxu0
      %v5719 = vadd.f32 0.0, %v5718
      %5720 = vmatmul.bf16.gmra.mxu0 %v5491
      %v5721 = vpop.f32.mrf.mxu0
      %v5722 = vadd.f32 0.0, %v5721
      %v5723 = vpop.f32.mrf.mxu0
      %5724 = vmatmul.bf16.gmra.mxu0 %v5499
      %v5725 = vpop.f32.mrf.mxu0
      %v5726 = vpop.f32.mrf.mxu0
      %v5727 = vadd.f32 0.0, %v5726
      %5728 = vmatmul.bf16.gmra.mxu0 %v5507
      %v5729 = vpop.f32.mrf.mxu0
      %v5730 = vadd.f32 0.0, %v5729
      %v5731 = vpop.f32.mrf.mxu0
      %5732 = vmatmul.bf16.gmra.mxu0 %v5515
      %v5733 = vpop.f32.mrf.mxu0
      %v5734 = vpop.f32.mrf.mxu0
      %v5735 = vadd.f32 0.0, %v5734
      %5736 = vmatmul.bf16.gmra.mxu0 %v5523
      %v5737 = vpop.f32.mrf.mxu0
      %v5738 = vadd.f32 0.0, %v5737
      %v5739 = vpop.f32.mrf.mxu0
      %5740 = vdwg.mxu0
      %v5741 = vadd.f32 %v5118, %v5615
      %v5742 = vadd.f32 %v5121, %v5618
      %v5743 = vadd.f32 %v5126, %v5623
      %v5744 = vadd.f32 %v5129, %v5626
      %v5745 = vadd.f32 %v5134, %v5631
      %v5746 = vadd.f32 %v5137, %v5634
      %v5747 = vadd.f32 %v5142, %v5639
      %v5748 = vadd.f32 %v5145, %v5642
      %v5749 = vadd.f32 %v5150, %v5647
      %v5750 = vadd.f32 %v5153, %v5650
      %v5751 = vadd.f32 %v5158, %v5655
      %v5752 = vadd.f32 %v5161, %v5658
      %v5753 = vadd.f32 %v5166, %v5663
      %v5754 = vadd.f32 %v5169, %v5666
      %v5755 = vadd.f32 %v5174, %v5671
      %v5756 = vadd.f32 %v5177, %v5674
      %v5757 = vadd.f32 %v5182, %v5679
      %v5758 = vadd.f32 %v5185, %v5682
      %v5759 = vadd.f32 %v5190, %v5687
      %v5760 = vadd.f32 %v5193, %v5690
      %v5761 = vadd.f32 %v5198, %v5695
      %v5762 = vadd.f32 %v5201, %v5698
      %v5763 = vadd.f32 %v5206, %v5703
      %v5764 = vadd.f32 %v5209, %v5706
      %v5765 = vadd.f32 %v5214, %v5711
      %v5766 = vadd.f32 %v5217, %v5714
      %v5767 = vadd.f32 %v5222, %v5719
      %v5768 = vadd.f32 %v5225, %v5722
      %v5769 = vadd.f32 %v5230, %v5727
      %v5770 = vadd.f32 %v5233, %v5730
      %v5771 = vadd.f32 %v5238, %v5735
      %v5772 = vadd.f32 %v5241, %v5738
      %s5773 = scalar_lea.vmem %s3, 192
      %v5774 = vld [vmem:[%s5773] sm:$0xf]
      %v5775 = vld [vmem:[%s5773 + $0x4] sm:$0xf]
      %v5776 = vld [vmem:[%s5773 + $0x8] sm:$0xf]
      %v5777 = vld [vmem:[%s5773 + $0xc] sm:$0xf]
      %v5778 = vld [vmem:[%s5773 + $0x10] sm:$0xf]
      %v5779 = vld [vmem:[%s5773 + $0x14] sm:$0xf]
      %v5780 = vld [vmem:[%s5773 + $0x18] sm:$0xf]
      %v5781 = vld [vmem:[%s5773 + $0x1c] sm:$0xf]
      %v5782 = vld [vmem:[%s5773 + $0x20] sm:$0xf]
      %v5783 = vld [vmem:[%s5773 + $0x24] sm:$0xf]
      %v5784 = vld [vmem:[%s5773 + $0x28] sm:$0xf]
      %v5785 = vld [vmem:[%s5773 + $0x2c] sm:$0xf]
      %v5786 = vld [vmem:[%s5773 + $0x30] sm:$0xf]
      %v5787 = vld [vmem:[%s5773 + $0x34] sm:$0xf]
      %v5788 = vld [vmem:[%s5773 + $0x38] sm:$0xf]
      %v5789 = vld [vmem:[%s5773 + $0x3c] sm:$0xf]
      %v5793 = vunpack.c.l.b16 %v4278
      %v5794 = vunpack.c.l.b16 %v4279
      %v5795 = vunpack.c.l.b16 %v4280
      %v5796 = vpack.c.b16 %v5262, %v4446
      %v5797 = vpack.c.b16 %v5794, %v5793
      %v5798 = vpack.c.b16 %v5795, %v5795
      %v5800 = vshrl.u32 %v5796, 16
      %v5802 = vrot.slane %v5800, 3
      %v5803 = vshll.u32 %v5796, 16
      %v5805 = vrot.slane %v5803, 4
      %v5806 = vor.u32 %v5802, %v5805
      %v5807 = vsel %vm777, %v5016, %v5806
      %v5809 = vshrl.u32 %v5797, 16
      %v5811 = vrot.slane %v5809, 3
      %v5812 = vshll.u32 %v5797, 16
      %v5814 = vrot.slane %v5812, 4
      %v5815 = vor.u32 %v5811, %v5814
      %v5816 = vsel %vm777, %v5806, %v5815
      %v5818 = vshrl.u32 %v5798, 16
      %v5820 = vrot.slane %v5818, 3
      %v5821 = vshll.u32 %v5798, 16
      %v5823 = vrot.slane %v5821, 4
      %v5824 = vor.u32 %v5820, %v5823
      %v5825 = vsel %vm777, %v5815, %v5824
      %v5845 = vunpack.c.l.b16 %v5774
      %v5846 = vunpack.c.l.b16 %v5775
      %v5847 = vunpack.c.l.b16 %v5776
      %v5848 = vunpack.c.l.b16 %v5777
      %v5849 = vunpack.c.l.b16 %v5778
      %v5850 = vunpack.c.l.b16 %v5779
      %v5851 = vunpack.c.l.b16 %v5780
      %v5852 = vunpack.c.l.b16 %v5781
      %v5853 = vunpack.c.l.b16 %v5782
      %v5854 = vunpack.c.l.b16 %v5783
      %v5855 = vunpack.c.l.b16 %v5784
      %v5856 = vunpack.c.l.b16 %v5785
      %v5857 = vunpack.c.l.b16 %v5786
      %v5858 = vunpack.c.l.b16 %v5787
      %v5859 = vunpack.c.l.b16 %v5788
      %v5860 = vunpack.c.l.b16 %v5789
      %v5861 = vpack.c.b16 %v5846, %v5845
      %v5862 = vpack.c.b16 %v5848, %v5847
      %v5863 = vpack.c.b16 %v5850, %v5849
      %v5864 = vpack.c.b16 %v5852, %v5851
      %v5865 = vpack.c.b16 %v5854, %v5853
      %v5866 = vpack.c.b16 %v5856, %v5855
      %v5867 = vpack.c.b16 %v5858, %v5857
      %v5868 = vpack.c.b16 %v5860, %v5859
      %5877 = vmatpush.bf16.msra.mxu0 %v5868
      %5878 = vmatpush.bf16.msra.mxu0 %v5867
      %5879 = vmatpush.bf16.msra.mxu0 %v5866
      %5880 = vmatpush.bf16.msra.mxu0 %v5865
      %5881 = vmatpush.bf16.msra.mxu0 %v5864
      %5882 = vmatpush.bf16.msra.mxu0 %v5863
      %5883 = vmatpush.bf16.msra.mxu0 %v5862
      %5884 = vmatpush.bf16.msra.mxu0 %v5861
      %5885 = vmatmul.bf16.gmra.mxu0 %v4765
      %v5886 = vpop.f32.mrf.mxu0
      %v5887 = vpop.f32.mrf.mxu0
      %v5888 = vadd.f32 0.0, %v5887
      %5889 = vmatmul.bf16.gmra.mxu0 %v4774
      %v5890 = vpop.f32.mrf.mxu0
      %v5891 = vadd.f32 0.0, %v5890
      %v5892 = vpop.f32.mrf.mxu0
      %5893 = vmatmul.bf16.gmra.mxu0 %v4783
      %v5894 = vpop.f32.mrf.mxu0
      %v5895 = vpop.f32.mrf.mxu0
      %v5896 = vadd.f32 0.0, %v5895
      %5897 = vmatmul.bf16.gmra.mxu0 %v4792
      %v5898 = vpop.f32.mrf.mxu0
      %v5899 = vadd.f32 0.0, %v5898
      %v5900 = vpop.f32.mrf.mxu0
      %5901 = vmatmul.bf16.gmra.mxu0 %v4801
      %v5902 = vpop.f32.mrf.mxu0
      %v5903 = vpop.f32.mrf.mxu0
      %v5904 = vadd.f32 0.0, %v5903
      %5905 = vmatmul.bf16.gmra.mxu0 %v4810
      %v5906 = vpop.f32.mrf.mxu0
      %v5907 = vadd.f32 0.0, %v5906
      %v5908 = vpop.f32.mrf.mxu0
      %5909 = vmatmul.bf16.gmra.mxu0 %v4819
      %v5910 = vpop.f32.mrf.mxu0
      %v5911 = vpop.f32.mrf.mxu0
      %v5912 = vadd.f32 0.0, %v5911
      %5913 = vmatmul.bf16.gmra.mxu0 %v4828
      %v5914 = vpop.f32.mrf.mxu0
      %v5915 = vadd.f32 0.0, %v5914
      %v5916 = vpop.f32.mrf.mxu0
      %5917 = vmatmul.bf16.gmra.mxu0 %v4837
      %v5918 = vpop.f32.mrf.mxu0
      %v5919 = vpop.f32.mrf.mxu0
      %v5920 = vadd.f32 0.0, %v5919
      %5921 = vmatmul.bf16.gmra.mxu0 %v4846
      %v5922 = vpop.f32.mrf.mxu0
      %v5923 = vadd.f32 0.0, %v5922
      %v5924 = vpop.f32.mrf.mxu0
      %5925 = vmatmul.bf16.gmra.mxu0 %v4855
      %v5926 = vpop.f32.mrf.mxu0
      %v5927 = vpop.f32.mrf.mxu0
      %v5928 = vadd.f32 0.0, %v5927
      %5929 = vmatmul.bf16.gmra.mxu0 %v4864
      %v5930 = vpop.f32.mrf.mxu0
      %v5931 = vadd.f32 0.0, %v5930
      %v5932 = vpop.f32.mrf.mxu0
      %5933 = vmatmul.bf16.gmra.mxu0 %v4873
      %v5934 = vpop.f32.mrf.mxu0
      %v5935 = vpop.f32.mrf.mxu0
      %v5936 = vadd.f32 0.0, %v5935
      %5937 = vmatmul.bf16.gmra.mxu0 %v4882
      %v5938 = vpop.f32.mrf.mxu0
      %v5939 = vadd.f32 0.0, %v5938
      %v5940 = vpop.f32.mrf.mxu0
      %5941 = vmatmul.bf16.gmra.mxu0 %v4891
      %v5942 = vpop.f32.mrf.mxu0
      %v5943 = vpop.f32.mrf.mxu0
      %v5944 = vadd.f32 0.0, %v5943
      %5945 = vmatmul.bf16.gmra.mxu0 %v4900
      %v5946 = vpop.f32.mrf.mxu0
      %v5947 = vadd.f32 0.0, %v5946
      %v5948 = vpop.f32.mrf.mxu0
      %5949 = vmatmul.bf16.gmra.mxu0 %v4909
      %v5950 = vpop.f32.mrf.mxu0
      %v5951 = vpop.f32.mrf.mxu0
      %v5952 = vadd.f32 0.0, %v5951
      %5953 = vmatmul.bf16.gmra.mxu0 %v4918
      %v5954 = vpop.f32.mrf.mxu0
      %v5955 = vadd.f32 0.0, %v5954
      %v5956 = vpop.f32.mrf.mxu0
      %5957 = vmatmul.bf16.gmra.mxu0 %v4927
      %v5958 = vpop.f32.mrf.mxu0
      %v5959 = vpop.f32.mrf.mxu0
      %v5960 = vadd.f32 0.0, %v5959
      %5961 = vmatmul.bf16.gmra.mxu0 %v4936
      %v5962 = vpop.f32.mrf.mxu0
      %v5963 = vadd.f32 0.0, %v5962
      %v5964 = vpop.f32.mrf.mxu0
      %5965 = vmatmul.bf16.gmra.mxu0 %v4945
      %v5966 = vpop.f32.mrf.mxu0
      %v5967 = vpop.f32.mrf.mxu0
      %v5968 = vadd.f32 0.0, %v5967
      %5969 = vmatmul.bf16.gmra.mxu0 %v4954
      %v5970 = vpop.f32.mrf.mxu0
      %v5971 = vadd.f32 0.0, %v5970
      %v5972 = vpop.f32.mrf.mxu0
      %5973 = vmatmul.bf16.gmra.mxu0 %v4963
      %v5974 = vpop.f32.mrf.mxu0
      %v5975 = vpop.f32.mrf.mxu0
      %v5976 = vadd.f32 0.0, %v5975
      %5977 = vmatmul.bf16.gmra.mxu0 %v4972
      %v5978 = vpop.f32.mrf.mxu0
      %v5979 = vadd.f32 0.0, %v5978
      %v5980 = vpop.f32.mrf.mxu0
      %5981 = vmatmul.bf16.gmra.mxu0 %v4981
      %v5982 = vpop.f32.mrf.mxu0
      %v5983 = vpop.f32.mrf.mxu0
      %v5984 = vadd.f32 0.0, %v5983
      %5985 = vmatmul.bf16.gmra.mxu0 %v4990
      %v5986 = vpop.f32.mrf.mxu0
      %v5987 = vadd.f32 0.0, %v5986
      %v5988 = vpop.f32.mrf.mxu0
      %5989 = vmatmul.bf16.gmra.mxu0 %v4999
      %v5990 = vpop.f32.mrf.mxu0
      %v5991 = vpop.f32.mrf.mxu0
      %v5992 = vadd.f32 0.0, %v5991
      %5993 = vmatmul.bf16.gmra.mxu0 %v5008
      %v5994 = vpop.f32.mrf.mxu0
      %v5995 = vadd.f32 0.0, %v5994
      %v5996 = vpop.f32.mrf.mxu0
      %5997 = vmatmul.bf16.gmra.mxu0 %v5017
      %v5998 = vpop.f32.mrf.mxu0
      %v5999 = vpop.f32.mrf.mxu0
      %v6000 = vadd.f32 0.0, %v5999
      %6001 = vmatmul.bf16.gmra.mxu0 %v5807
      %v6002 = vpop.f32.mrf.mxu0
      %v6003 = vadd.f32 0.0, %v6002
      %v6004 = vpop.f32.mrf.mxu0
      %6005 = vmatmul.bf16.gmra.mxu0 %v5816
      %v6006 = vpop.f32.mrf.mxu0
      %v6007 = vpop.f32.mrf.mxu0
      %v6008 = vadd.f32 0.0, %v6007
      %6009 = vmatmul.bf16.gmra.mxu0 %v5825
      %v6010 = vpop.f32.mrf.mxu0
      %v6011 = vadd.f32 0.0, %v6010
      %v6012 = vpop.f32.mrf.mxu0
      %6013 = vdwg.mxu0
      %v6014 = vadd.f32 %v5741, %v5888
      %v6015 = vadd.f32 %v5742, %v5891
      %v6016 = vadd.f32 %v5743, %v5896
      %v6017 = vadd.f32 %v5744, %v5899
      %v6018 = vadd.f32 %v5745, %v5904
      %v6019 = vadd.f32 %v5746, %v5907
      %v6020 = vadd.f32 %v5747, %v5912
      %v6021 = vadd.f32 %v5748, %v5915
      %v6022 = vadd.f32 %v5749, %v5920
      %v6023 = vadd.f32 %v5750, %v5923
      %v6024 = vadd.f32 %v5751, %v5928
      %v6025 = vadd.f32 %v5752, %v5931
      %v6026 = vadd.f32 %v5753, %v5936
      %v6027 = vadd.f32 %v5754, %v5939
      %v6028 = vadd.f32 %v5755, %v5944
      %v6029 = vadd.f32 %v5756, %v5947
      %v6030 = vadd.f32 %v5757, %v5952
      %v6031 = vadd.f32 %v5758, %v5955
      %v6032 = vadd.f32 %v5759, %v5960
      %v6033 = vadd.f32 %v5760, %v5963
      %v6034 = vadd.f32 %v5761, %v5968
      %v6035 = vadd.f32 %v5762, %v5971
      %v6036 = vadd.f32 %v5763, %v5976
      %v6037 = vadd.f32 %v5764, %v5979
      %v6038 = vadd.f32 %v5765, %v5984
      %v6039 = vadd.f32 %v5766, %v5987
      %v6040 = vadd.f32 %v5767, %v5992
      %v6041 = vadd.f32 %v5768, %v5995
      %v6042 = vadd.f32 %v5769, %v6000
      %v6043 = vadd.f32 %v5770, %v6003
      %v6044 = vadd.f32 %v5771, %v6008
      %v6045 = vadd.f32 %v5772, %v6011
      %s6046 = scalar_lea.vmem %s3, 256
      %v6047 = vld [vmem:[%s6046] sm:$0xf]
      %v6048 = vld [vmem:[%s6046 + $0x4] sm:$0xf]
      %v6049 = vld [vmem:[%s6046 + $0x8] sm:$0xf]
      %v6050 = vld [vmem:[%s6046 + $0xc] sm:$0xf]
      %v6051 = vld [vmem:[%s6046 + $0x10] sm:$0xf]
      %v6052 = vld [vmem:[%s6046 + $0x14] sm:$0xf]
      %v6053 = vld [vmem:[%s6046 + $0x18] sm:$0xf]
      %v6054 = vld [vmem:[%s6046 + $0x1c] sm:$0xf]
      %v6055 = vld [vmem:[%s6046 + $0x20] sm:$0xf]
      %v6056 = vld [vmem:[%s6046 + $0x24] sm:$0xf]
      %v6057 = vld [vmem:[%s6046 + $0x28] sm:$0xf]
      %v6058 = vld [vmem:[%s6046 + $0x2c] sm:$0xf]
      %v6059 = vld [vmem:[%s6046 + $0x30] sm:$0xf]
      %v6060 = vld [vmem:[%s6046 + $0x34] sm:$0xf]
      %v6061 = vld [vmem:[%s6046 + $0x38] sm:$0xf]
      %v6062 = vld [vmem:[%s6046 + $0x3c] sm:$0xf]
      %v6063 = vpack.c.b16 %v5793, %v5262
      %v6064 = vpack.c.b16 %v5795, %v5794
      %v6083 = vunpack.c.l.b16 %v6047
      %v6084 = vunpack.c.l.b16 %v6048
      %v6085 = vunpack.c.l.b16 %v6049
      %v6086 = vunpack.c.l.b16 %v6050
      %v6087 = vunpack.c.l.b16 %v6051
      %v6088 = vunpack.c.l.b16 %v6052
      %v6089 = vunpack.c.l.b16 %v6053
      %v6090 = vunpack.c.l.b16 %v6054
      %v6091 = vunpack.c.l.b16 %v6055
      %v6092 = vunpack.c.l.b16 %v6056
      %v6093 = vunpack.c.l.b16 %v6057
      %v6094 = vunpack.c.l.b16 %v6058
      %v6095 = vunpack.c.l.b16 %v6059
      %v6096 = vunpack.c.l.b16 %v6060
      %v6097 = vunpack.c.l.b16 %v6061
      %v6098 = vunpack.c.l.b16 %v6062
      %v6099 = vpack.c.b16 %v6084, %v6083
      %v6100 = vpack.c.b16 %v6086, %v6085
      %v6101 = vpack.c.b16 %v6088, %v6087
      %v6102 = vpack.c.b16 %v6090, %v6089
      %v6103 = vpack.c.b16 %v6092, %v6091
      %v6104 = vpack.c.b16 %v6094, %v6093
      %v6105 = vpack.c.b16 %v6096, %v6095
      %v6106 = vpack.c.b16 %v6098, %v6097
      %6115 = vmatpush.bf16.msra.mxu0 %v6106
      %6116 = vmatpush.bf16.msra.mxu0 %v6105
      %6117 = vmatpush.bf16.msra.mxu0 %v6104
      %6118 = vmatpush.bf16.msra.mxu0 %v6103
      %6119 = vmatpush.bf16.msra.mxu0 %v6102
      %6120 = vmatpush.bf16.msra.mxu0 %v6101
      %6121 = vmatpush.bf16.msra.mxu0 %v6100
      %6122 = vmatpush.bf16.msra.mxu0 %v6099
      %6123 = vmatmul.bf16.gmra.mxu0 %v4449
      %v6124 = vpop.f32.mrf.mxu0
      %v6125 = vpop.f32.mrf.mxu0
      %v6126 = vadd.f32 0.0, %v6125
      %6127 = vmatmul.bf16.gmra.mxu0 %v4450
      %v6128 = vpop.f32.mrf.mxu0
      %v6129 = vadd.f32 0.0, %v6128
      %v6130 = vpop.f32.mrf.mxu0
      %6131 = vmatmul.bf16.gmra.mxu0 %v4451
      %v6132 = vpop.f32.mrf.mxu0
      %v6133 = vpop.f32.mrf.mxu0
      %v6134 = vadd.f32 0.0, %v6133
      %6135 = vmatmul.bf16.gmra.mxu0 %v4452
      %v6136 = vpop.f32.mrf.mxu0
      %v6137 = vadd.f32 0.0, %v6136
      %v6138 = vpop.f32.mrf.mxu0
      %6139 = vmatmul.bf16.gmra.mxu0 %v4453
      %v6140 = vpop.f32.mrf.mxu0
      %v6141 = vpop.f32.mrf.mxu0
      %v6142 = vadd.f32 0.0, %v6141
      %6143 = vmatmul.bf16.gmra.mxu0 %v4454
      %v6144 = vpop.f32.mrf.mxu0
      %v6145 = vadd.f32 0.0, %v6144
      %v6146 = vpop.f32.mrf.mxu0
      %6147 = vmatmul.bf16.gmra.mxu0 %v4455
      %v6148 = vpop.f32.mrf.mxu0
      %v6149 = vpop.f32.mrf.mxu0
      %v6150 = vadd.f32 0.0, %v6149
      %6151 = vmatmul.bf16.gmra.mxu0 %v4456
      %v6152 = vpop.f32.mrf.mxu0
      %v6153 = vadd.f32 0.0, %v6152
      %v6154 = vpop.f32.mrf.mxu0
      %6155 = vmatmul.bf16.gmra.mxu0 %v4457
      %v6156 = vpop.f32.mrf.mxu0
      %v6157 = vpop.f32.mrf.mxu0
      %v6158 = vadd.f32 0.0, %v6157
      %6159 = vmatmul.bf16.gmra.mxu0 %v4458
      %v6160 = vpop.f32.mrf.mxu0
      %v6161 = vadd.f32 0.0, %v6160
      %v6162 = vpop.f32.mrf.mxu0
      %6163 = vmatmul.bf16.gmra.mxu0 %v4459
      %v6164 = vpop.f32.mrf.mxu0
      %v6165 = vpop.f32.mrf.mxu0
      %v6166 = vadd.f32 0.0, %v6165
      %6167 = vmatmul.bf16.gmra.mxu0 %v4460
      %v6168 = vpop.f32.mrf.mxu0
      %v6169 = vadd.f32 0.0, %v6168
      %v6170 = vpop.f32.mrf.mxu0
      %6171 = vmatmul.bf16.gmra.mxu0 %v4461
      %v6172 = vpop.f32.mrf.mxu0
      %v6173 = vpop.f32.mrf.mxu0
      %v6174 = vadd.f32 0.0, %v6173
      %6175 = vmatmul.bf16.gmra.mxu0 %v4462
      %v6176 = vpop.f32.mrf.mxu0
      %v6177 = vadd.f32 0.0, %v6176
      %v6178 = vpop.f32.mrf.mxu0
      %6179 = vmatmul.bf16.gmra.mxu0 %v4463
      %v6180 = vpop.f32.mrf.mxu0
      %v6181 = vpop.f32.mrf.mxu0
      %v6182 = vadd.f32 0.0, %v6181
      %6183 = vmatmul.bf16.gmra.mxu0 %v4464
      %v6184 = vpop.f32.mrf.mxu0
      %v6185 = vadd.f32 0.0, %v6184
      %v6186 = vpop.f32.mrf.mxu0
      %6187 = vmatmul.bf16.gmra.mxu0 %v4465
      %v6188 = vpop.f32.mrf.mxu0
      %v6189 = vpop.f32.mrf.mxu0
      %v6190 = vadd.f32 0.0, %v6189
      %6191 = vmatmul.bf16.gmra.mxu0 %v4466
      %v6192 = vpop.f32.mrf.mxu0
      %v6193 = vadd.f32 0.0, %v6192
      %v6194 = vpop.f32.mrf.mxu0
      %6195 = vmatmul.bf16.gmra.mxu0 %v4467
      %v6196 = vpop.f32.mrf.mxu0
      %v6197 = vpop.f32.mrf.mxu0
      %v6198 = vadd.f32 0.0, %v6197
      %6199 = vmatmul.bf16.gmra.mxu0 %v4468
      %v6200 = vpop.f32.mrf.mxu0
      %v6201 = vadd.f32 0.0, %v6200
      %v6202 = vpop.f32.mrf.mxu0
      %6203 = vmatmul.bf16.gmra.mxu0 %v4469
      %v6204 = vpop.f32.mrf.mxu0
      %v6205 = vpop.f32.mrf.mxu0
      %v6206 = vadd.f32 0.0, %v6205
      %6207 = vmatmul.bf16.gmra.mxu0 %v4470
      %v6208 = vpop.f32.mrf.mxu0
      %v6209 = vadd.f32 0.0, %v6208
      %v6210 = vpop.f32.mrf.mxu0
      %6211 = vmatmul.bf16.gmra.mxu0 %v4471
      %v6212 = vpop.f32.mrf.mxu0
      %v6213 = vpop.f32.mrf.mxu0
      %v6214 = vadd.f32 0.0, %v6213
      %6215 = vmatmul.bf16.gmra.mxu0 %v4472
      %v6216 = vpop.f32.mrf.mxu0
      %v6217 = vadd.f32 0.0, %v6216
      %v6218 = vpop.f32.mrf.mxu0
      %6219 = vmatmul.bf16.gmra.mxu0 %v4473
      %v6220 = vpop.f32.mrf.mxu0
      %v6221 = vpop.f32.mrf.mxu0
      %v6222 = vadd.f32 0.0, %v6221
      %6223 = vmatmul.bf16.gmra.mxu0 %v4474
      %v6224 = vpop.f32.mrf.mxu0
      %v6225 = vadd.f32 0.0, %v6224
      %v6226 = vpop.f32.mrf.mxu0
      %6227 = vmatmul.bf16.gmra.mxu0 %v4475
      %v6228 = vpop.f32.mrf.mxu0
      %v6229 = vpop.f32.mrf.mxu0
      %v6230 = vadd.f32 0.0, %v6229
      %6231 = vmatmul.bf16.gmra.mxu0 %v4476
      %v6232 = vpop.f32.mrf.mxu0
      %v6233 = vadd.f32 0.0, %v6232
      %v6234 = vpop.f32.mrf.mxu0
      %6235 = vmatmul.bf16.gmra.mxu0 %v4477
      %v6236 = vpop.f32.mrf.mxu0
      %v6237 = vpop.f32.mrf.mxu0
      %v6238 = vadd.f32 0.0, %v6237
      %6239 = vmatmul.bf16.gmra.mxu0 %v4478
      %v6240 = vpop.f32.mrf.mxu0
      %v6241 = vadd.f32 0.0, %v6240
      %v6242 = vpop.f32.mrf.mxu0
      %6243 = vmatmul.bf16.gmra.mxu0 %v6063
      %v6244 = vpop.f32.mrf.mxu0
      %v6245 = vpop.f32.mrf.mxu0
      %v6246 = vadd.f32 0.0, %v6245
      %6247 = vmatmul.bf16.gmra.mxu0 %v6064
      %v6248 = vpop.f32.mrf.mxu0
      %v6249 = vadd.f32 0.0, %v6248
      %v6250 = vpop.f32.mrf.mxu0
      %6251 = vdwg.mxu0
      %v6252 = vadd.f32 %v6014, %v6126
      %v6253 = vadd.f32 %v6015, %v6129
      %v6254 = vadd.f32 %v6016, %v6134
      %v6255 = vadd.f32 %v6017, %v6137
      %v6256 = vadd.f32 %v6018, %v6142
      %v6257 = vadd.f32 %v6019, %v6145
      %v6258 = vadd.f32 %v6020, %v6150
      %v6259 = vadd.f32 %v6021, %v6153
      %v6260 = vadd.f32 %v6022, %v6158
      %v6261 = vadd.f32 %v6023, %v6161
      %v6262 = vadd.f32 %v6024, %v6166
      %v6263 = vadd.f32 %v6025, %v6169
      %v6264 = vadd.f32 %v6026, %v6174
      %v6265 = vadd.f32 %v6027, %v6177
      %v6266 = vadd.f32 %v6028, %v6182
      %v6267 = vadd.f32 %v6029, %v6185
      %v6268 = vadd.f32 %v6030, %v6190
      %v6269 = vadd.f32 %v6031, %v6193
      %v6270 = vadd.f32 %v6032, %v6198
      %v6271 = vadd.f32 %v6033, %v6201
      %v6272 = vadd.f32 %v6034, %v6206
      %v6273 = vadd.f32 %v6035, %v6209
      %v6274 = vadd.f32 %v6036, %v6214
      %v6275 = vadd.f32 %v6037, %v6217
      %v6276 = vadd.f32 %v6038, %v6222
      %v6277 = vadd.f32 %v6039, %v6225
      %v6278 = vadd.f32 %v6040, %v6230
      %v6279 = vadd.f32 %v6041, %v6233
      %v6280 = vadd.f32 %v6042, %v6238
      %v6281 = vadd.f32 %v6043, %v6241
      %v6282 = vadd.f32 %v6044, %v6246
      %v6283 = vadd.f32 %v6045, %v6249
      %s6284 = scalar_lea.vmem %s3, 320
      %v6285 = vld [vmem:[%s6284] sm:$0xf]
      %v6286 = vld [vmem:[%s6284 + $0x4] sm:$0xf]
      %v6287 = vld [vmem:[%s6284 + $0x8] sm:$0xf]
      %v6288 = vld [vmem:[%s6284 + $0xc] sm:$0xf]
      %v6289 = vld [vmem:[%s6284 + $0x10] sm:$0xf]
      %v6290 = vld [vmem:[%s6284 + $0x14] sm:$0xf]
      %v6291 = vld [vmem:[%s6284 + $0x18] sm:$0xf]
      %v6292 = vld [vmem:[%s6284 + $0x1c] sm:$0xf]
      %v6293 = vld [vmem:[%s6284 + $0x20] sm:$0xf]
      %v6294 = vld [vmem:[%s6284 + $0x24] sm:$0xf]
      %v6295 = vld [vmem:[%s6284 + $0x28] sm:$0xf]
      %v6296 = vld [vmem:[%s6284 + $0x2c] sm:$0xf]
      %v6297 = vld [vmem:[%s6284 + $0x30] sm:$0xf]
      %v6298 = vld [vmem:[%s6284 + $0x34] sm:$0xf]
      %v6299 = vld [vmem:[%s6284 + $0x38] sm:$0xf]
      %v6300 = vld [vmem:[%s6284 + $0x3c] sm:$0xf]
      %v6302 = vunpack.c.l.b16 %v4281
      %v6303 = vpack.c.b16 %v6302, %v6302
      %v6305 = vshll.u32 %v6063, 16
      %v6307 = vrot.slane %v6305, 1
      %v6308 = vsel %vm1343, %v5518, %v6307
      %v6309 = vshrl.u32 %v6063, 16
      %v6311 = vor.u32 %v6309, %v6307
      %v6313 = vshll.u32 %v6064, 16
      %v6315 = vrot.slane %v6313, 1
      %v6316 = vsel %vm1343, %v6311, %v6315
      %v6317 = vshrl.u32 %v6064, 16
      %v6319 = vor.u32 %v6317, %v6315
      %v6321 = vshll.u32 %v6303, 16
      %v6323 = vrot.slane %v6321, 1
      %v6324 = vsel %vm1343, %v6319, %v6323
      %v6344 = vunpack.c.l.b16 %v6285
      %v6345 = vunpack.c.l.b16 %v6286
      %v6346 = vunpack.c.l.b16 %v6287
      %v6347 = vunpack.c.l.b16 %v6288
      %v6348 = vunpack.c.l.b16 %v6289
      %v6349 = vunpack.c.l.b16 %v6290
      %v6350 = vunpack.c.l.b16 %v6291
      %v6351 = vunpack.c.l.b16 %v6292
      %v6352 = vunpack.c.l.b16 %v6293
      %v6353 = vunpack.c.l.b16 %v6294
      %v6354 = vunpack.c.l.b16 %v6295
      %v6355 = vunpack.c.l.b16 %v6296
      %v6356 = vunpack.c.l.b16 %v6297
      %v6357 = vunpack.c.l.b16 %v6298
      %v6358 = vunpack.c.l.b16 %v6299
      %v6359 = vunpack.c.l.b16 %v6300
      %v6360 = vpack.c.b16 %v6345, %v6344
      %v6361 = vpack.c.b16 %v6347, %v6346
      %v6362 = vpack.c.b16 %v6349, %v6348
      %v6363 = vpack.c.b16 %v6351, %v6350
      %v6364 = vpack.c.b16 %v6353, %v6352
      %v6365 = vpack.c.b16 %v6355, %v6354
      %v6366 = vpack.c.b16 %v6357, %v6356
      %v6367 = vpack.c.b16 %v6359, %v6358
      %6376 = vmatpush.bf16.msra.mxu0 %v6367
      %6377 = vmatpush.bf16.msra.mxu0 %v6366
      %6378 = vmatpush.bf16.msra.mxu0 %v6365
      %6379 = vmatpush.bf16.msra.mxu0 %v6364
      %6380 = vmatpush.bf16.msra.mxu0 %v6363
      %6381 = vmatpush.bf16.msra.mxu0 %v6362
      %6382 = vmatpush.bf16.msra.mxu0 %v6361
      %6383 = vmatpush.bf16.msra.mxu0 %v6360
      %6384 = vmatmul.bf16.gmra.mxu0 %v5291
      %v6385 = vpop.f32.mrf.mxu0
      %v6386 = vpop.f32.mrf.mxu0
      %v6387 = vadd.f32 0.0, %v6386
      %6388 = vmatmul.bf16.gmra.mxu0 %v5299
      %v6389 = vpop.f32.mrf.mxu0
      %v6390 = vadd.f32 0.0, %v6389
      %v6391 = vpop.f32.mrf.mxu0
      %6392 = vmatmul.bf16.gmra.mxu0 %v5307
      %v6393 = vpop.f32.mrf.mxu0
      %v6394 = vpop.f32.mrf.mxu0
      %v6395 = vadd.f32 0.0, %v6394
      %6396 = vmatmul.bf16.gmra.mxu0 %v5315
      %v6397 = vpop.f32.mrf.mxu0
      %v6398 = vadd.f32 0.0, %v6397
      %v6399 = vpop.f32.mrf.mxu0
      %6400 = vmatmul.bf16.gmra.mxu0 %v5323
      %v6401 = vpop.f32.mrf.mxu0
      %v6402 = vpop.f32.mrf.mxu0
      %v6403 = vadd.f32 0.0, %v6402
      %6404 = vmatmul.bf16.gmra.mxu0 %v5331
      %v6405 = vpop.f32.mrf.mxu0
      %v6406 = vadd.f32 0.0, %v6405
      %v6407 = vpop.f32.mrf.mxu0
      %6408 = vmatmul.bf16.gmra.mxu0 %v5339
      %v6409 = vpop.f32.mrf.mxu0
      %v6410 = vpop.f32.mrf.mxu0
      %v6411 = vadd.f32 0.0, %v6410
      %6412 = vmatmul.bf16.gmra.mxu0 %v5347
      %v6413 = vpop.f32.mrf.mxu0
      %v6414 = vadd.f32 0.0, %v6413
      %v6415 = vpop.f32.mrf.mxu0
      %6416 = vmatmul.bf16.gmra.mxu0 %v5355
      %v6417 = vpop.f32.mrf.mxu0
      %v6418 = vpop.f32.mrf.mxu0
      %v6419 = vadd.f32 0.0, %v6418
      %6420 = vmatmul.bf16.gmra.mxu0 %v5363
      %v6421 = vpop.f32.mrf.mxu0
      %v6422 = vadd.f32 0.0, %v6421
      %v6423 = vpop.f32.mrf.mxu0
      %6424 = vmatmul.bf16.gmra.mxu0 %v5371
      %v6425 = vpop.f32.mrf.mxu0
      %v6426 = vpop.f32.mrf.mxu0
      %v6427 = vadd.f32 0.0, %v6426
      %6428 = vmatmul.bf16.gmra.mxu0 %v5379
      %v6429 = vpop.f32.mrf.mxu0
      %v6430 = vadd.f32 0.0, %v6429
      %v6431 = vpop.f32.mrf.mxu0
      %6432 = vmatmul.bf16.gmra.mxu0 %v5387
      %v6433 = vpop.f32.mrf.mxu0
      %v6434 = vpop.f32.mrf.mxu0
      %v6435 = vadd.f32 0.0, %v6434
      %6436 = vmatmul.bf16.gmra.mxu0 %v5395
      %v6437 = vpop.f32.mrf.mxu0
      %v6438 = vadd.f32 0.0, %v6437
      %v6439 = vpop.f32.mrf.mxu0
      %6440 = vmatmul.bf16.gmra.mxu0 %v5403
      %v6441 = vpop.f32.mrf.mxu0
      %v6442 = vpop.f32.mrf.mxu0
      %v6443 = vadd.f32 0.0, %v6442
      %6444 = vmatmul.bf16.gmra.mxu0 %v5411
      %v6445 = vpop.f32.mrf.mxu0
      %v6446 = vadd.f32 0.0, %v6445
      %v6447 = vpop.f32.mrf.mxu0
      %6448 = vmatmul.bf16.gmra.mxu0 %v5419
      %v6449 = vpop.f32.mrf.mxu0
      %v6450 = vpop.f32.mrf.mxu0
      %v6451 = vadd.f32 0.0, %v6450
      %6452 = vmatmul.bf16.gmra.mxu0 %v5427
      %v6453 = vpop.f32.mrf.mxu0
      %v6454 = vadd.f32 0.0, %v6453
      %v6455 = vpop.f32.mrf.mxu0
      %6456 = vmatmul.bf16.gmra.mxu0 %v5435
      %v6457 = vpop.f32.mrf.mxu0
      %v6458 = vpop.f32.mrf.mxu0
      %v6459 = vadd.f32 0.0, %v6458
      %6460 = vmatmul.bf16.gmra.mxu0 %v5443
      %v6461 = vpop.f32.mrf.mxu0
      %v6462 = vadd.f32 0.0, %v6461
      %v6463 = vpop.f32.mrf.mxu0
      %6464 = vmatmul.bf16.gmra.mxu0 %v5451
      %v6465 = vpop.f32.mrf.mxu0
      %v6466 = vpop.f32.mrf.mxu0
      %v6467 = vadd.f32 0.0, %v6466
      %6468 = vmatmul.bf16.gmra.mxu0 %v5459
      %v6469 = vpop.f32.mrf.mxu0
      %v6470 = vadd.f32 0.0, %v6469
      %v6471 = vpop.f32.mrf.mxu0
      %6472 = vmatmul.bf16.gmra.mxu0 %v5467
      %v6473 = vpop.f32.mrf.mxu0
      %v6474 = vpop.f32.mrf.mxu0
      %v6475 = vadd.f32 0.0, %v6474
      %6476 = vmatmul.bf16.gmra.mxu0 %v5475
      %v6477 = vpop.f32.mrf.mxu0
      %v6478 = vadd.f32 0.0, %v6477
      %v6479 = vpop.f32.mrf.mxu0
      %6480 = vmatmul.bf16.gmra.mxu0 %v5483
      %v6481 = vpop.f32.mrf.mxu0
      %v6482 = vpop.f32.mrf.mxu0
      %v6483 = vadd.f32 0.0, %v6482
      %6484 = vmatmul.bf16.gmra.mxu0 %v5491
      %v6485 = vpop.f32.mrf.mxu0
      %v6486 = vadd.f32 0.0, %v6485
      %v6487 = vpop.f32.mrf.mxu0
      %6488 = vmatmul.bf16.gmra.mxu0 %v5499
      %v6489 = vpop.f32.mrf.mxu0
      %v6490 = vpop.f32.mrf.mxu0
      %v6491 = vadd.f32 0.0, %v6490
      %6492 = vmatmul.bf16.gmra.mxu0 %v5507
      %v6493 = vpop.f32.mrf.mxu0
      %v6494 = vadd.f32 0.0, %v6493
      %v6495 = vpop.f32.mrf.mxu0
      %6496 = vmatmul.bf16.gmra.mxu0 %v5515
      %v6497 = vpop.f32.mrf.mxu0
      %v6498 = vpop.f32.mrf.mxu0
      %v6499 = vadd.f32 0.0, %v6498
      %6500 = vmatmul.bf16.gmra.mxu0 %v6308
      %v6501 = vpop.f32.mrf.mxu0
      %v6502 = vadd.f32 0.0, %v6501
      %v6503 = vpop.f32.mrf.mxu0
      %6504 = vmatmul.bf16.gmra.mxu0 %v6316
      %v6505 = vpop.f32.mrf.mxu0
      %v6506 = vpop.f32.mrf.mxu0
      %v6507 = vadd.f32 0.0, %v6506
      %6508 = vmatmul.bf16.gmra.mxu0 %v6324
      %v6509 = vpop.f32.mrf.mxu0
      %v6510 = vadd.f32 0.0, %v6509
      %v6511 = vpop.f32.mrf.mxu0
      %6512 = vdwg.mxu0
      %v6513 = vadd.f32 %v6252, %v6387
      %v6514 = vadd.f32 %v6253, %v6390
      %v6515 = vadd.f32 %v6254, %v6395
      %v6516 = vadd.f32 %v6255, %v6398
      %v6517 = vadd.f32 %v6256, %v6403
      %v6518 = vadd.f32 %v6257, %v6406
      %v6519 = vadd.f32 %v6258, %v6411
      %v6520 = vadd.f32 %v6259, %v6414
      %v6521 = vadd.f32 %v6260, %v6419
      %v6522 = vadd.f32 %v6261, %v6422
      %v6523 = vadd.f32 %v6262, %v6427
      %v6524 = vadd.f32 %v6263, %v6430
      %v6525 = vadd.f32 %v6264, %v6435
      %v6526 = vadd.f32 %v6265, %v6438
      %v6527 = vadd.f32 %v6266, %v6443
      %v6528 = vadd.f32 %v6267, %v6446
      %v6529 = vadd.f32 %v6268, %v6451
      %v6530 = vadd.f32 %v6269, %v6454
      %v6531 = vadd.f32 %v6270, %v6459
      %v6532 = vadd.f32 %v6271, %v6462
      %v6533 = vadd.f32 %v6272, %v6467
      %v6534 = vadd.f32 %v6273, %v6470
      %v6535 = vadd.f32 %v6274, %v6475
      %v6536 = vadd.f32 %v6275, %v6478
      %v6537 = vadd.f32 %v6276, %v6483
      %v6538 = vadd.f32 %v6277, %v6486
      %v6539 = vadd.f32 %v6278, %v6491
      %v6540 = vadd.f32 %v6279, %v6494
      %v6541 = vadd.f32 %v6280, %v6499
      %v6542 = vadd.f32 %v6281, %v6502
      %v6543 = vadd.f32 %v6282, %v6507
      %v6544 = vadd.f32 %v6283, %v6510
      %s6545 = scalar_lea.vmem %s3, 384
      %v6546 = vld [vmem:[%s6545] sm:$0xf]
      %v6547 = vld [vmem:[%s6545 + $0x4] sm:$0xf]
      %v6548 = vld [vmem:[%s6545 + $0x8] sm:$0xf]
      %v6549 = vld [vmem:[%s6545 + $0xc] sm:$0xf]
      %v6550 = vld [vmem:[%s6545 + $0x10] sm:$0xf]
      %v6551 = vld [vmem:[%s6545 + $0x14] sm:$0xf]
      %v6552 = vld [vmem:[%s6545 + $0x18] sm:$0xf]
      %v6553 = vld [vmem:[%s6545 + $0x1c] sm:$0xf]
      %v6554 = vld [vmem:[%s6545 + $0x20] sm:$0xf]
      %v6555 = vld [vmem:[%s6545 + $0x24] sm:$0xf]
      %v6556 = vld [vmem:[%s6545 + $0x28] sm:$0xf]
      %v6557 = vld [vmem:[%s6545 + $0x2c] sm:$0xf]
      %v6558 = vld [vmem:[%s6545 + $0x30] sm:$0xf]
      %v6559 = vld [vmem:[%s6545 + $0x34] sm:$0xf]
      %v6560 = vld [vmem:[%s6545 + $0x38] sm:$0xf]
      %v6561 = vld [vmem:[%s6545 + $0x3c] sm:$0xf]
      %v6565 = vunpack.c.l.b16 %v4282
      %v6566 = vunpack.c.l.b16 %v4283
      %v6567 = vunpack.c.l.b16 %v4284
      %v6568 = vpack.c.b16 %v6302, %v5795
      %v6569 = vpack.c.b16 %v6566, %v6565
      %v6570 = vpack.c.b16 %v6567, %v6567
      %v6572 = vshrl.u32 %v6568, 16
      %v6574 = vrot.slane %v6572, 3
      %v6575 = vshll.u32 %v6568, 16
      %v6577 = vrot.slane %v6575, 4
      %v6578 = vor.u32 %v6574, %v6577
      %v6579 = vsel %vm777, %v5815, %v6578
      %v6581 = vshrl.u32 %v6569, 16
      %v6583 = vrot.slane %v6581, 3
      %v6584 = vshll.u32 %v6569, 16
      %v6586 = vrot.slane %v6584, 4
      %v6587 = vor.u32 %v6583, %v6586
      %v6588 = vsel %vm777, %v6578, %v6587
      %v6590 = vshrl.u32 %v6570, 16
      %v6592 = vrot.slane %v6590, 3
      %v6593 = vshll.u32 %v6570, 16
      %v6595 = vrot.slane %v6593, 4
      %v6596 = vor.u32 %v6592, %v6595
      %v6597 = vsel %vm777, %v6587, %v6596
      %v6617 = vunpack.c.l.b16 %v6546
      %v6618 = vunpack.c.l.b16 %v6547
      %v6619 = vunpack.c.l.b16 %v6548
      %v6620 = vunpack.c.l.b16 %v6549
      %v6621 = vunpack.c.l.b16 %v6550
      %v6622 = vunpack.c.l.b16 %v6551
      %v6623 = vunpack.c.l.b16 %v6552
      %v6624 = vunpack.c.l.b16 %v6553
      %v6625 = vunpack.c.l.b16 %v6554
      %v6626 = vunpack.c.l.b16 %v6555
      %v6627 = vunpack.c.l.b16 %v6556
      %v6628 = vunpack.c.l.b16 %v6557
      %v6629 = vunpack.c.l.b16 %v6558
      %v6630 = vunpack.c.l.b16 %v6559
      %v6631 = vunpack.c.l.b16 %v6560
      %v6632 = vunpack.c.l.b16 %v6561
      %v6633 = vpack.c.b16 %v6618, %v6617
      %v6634 = vpack.c.b16 %v6620, %v6619
      %v6635 = vpack.c.b16 %v6622, %v6621
      %v6636 = vpack.c.b16 %v6624, %v6623
      %v6637 = vpack.c.b16 %v6626, %v6625
      %v6638 = vpack.c.b16 %v6628, %v6627
      %v6639 = vpack.c.b16 %v6630, %v6629
      %v6640 = vpack.c.b16 %v6632, %v6631
      %6649 = vmatpush.bf16.msra.mxu0 %v6640
      %6650 = vmatpush.bf16.msra.mxu0 %v6639
      %6651 = vmatpush.bf16.msra.mxu0 %v6638
      %6652 = vmatpush.bf16.msra.mxu0 %v6637
      %6653 = vmatpush.bf16.msra.mxu0 %v6636
      %6654 = vmatpush.bf16.msra.mxu0 %v6635
      %6655 = vmatpush.bf16.msra.mxu0 %v6634
      %6656 = vmatpush.bf16.msra.mxu0 %v6633
      %6657 = vmatmul.bf16.gmra.mxu0 %v4783
      %v6658 = vpop.f32.mrf.mxu0
      %v6659 = vpop.f32.mrf.mxu0
      %v6660 = vadd.f32 0.0, %v6659
      %6661 = vmatmul.bf16.gmra.mxu0 %v4792
      %v6662 = vpop.f32.mrf.mxu0
      %v6663 = vadd.f32 0.0, %v6662
      %v6664 = vpop.f32.mrf.mxu0
      %6665 = vmatmul.bf16.gmra.mxu0 %v4801
      %v6666 = vpop.f32.mrf.mxu0
      %v6667 = vpop.f32.mrf.mxu0
      %v6668 = vadd.f32 0.0, %v6667
      %6669 = vmatmul.bf16.gmra.mxu0 %v4810
      %v6670 = vpop.f32.mrf.mxu0
      %v6671 = vadd.f32 0.0, %v6670
      %v6672 = vpop.f32.mrf.mxu0
      %6673 = vmatmul.bf16.gmra.mxu0 %v4819
      %v6674 = vpop.f32.mrf.mxu0
      %v6675 = vpop.f32.mrf.mxu0
      %v6676 = vadd.f32 0.0, %v6675
      %6677 = vmatmul.bf16.gmra.mxu0 %v4828
      %v6678 = vpop.f32.mrf.mxu0
      %v6679 = vadd.f32 0.0, %v6678
      %v6680 = vpop.f32.mrf.mxu0
      %6681 = vmatmul.bf16.gmra.mxu0 %v4837
      %v6682 = vpop.f32.mrf.mxu0
      %v6683 = vpop.f32.mrf.mxu0
      %v6684 = vadd.f32 0.0, %v6683
      %6685 = vmatmul.bf16.gmra.mxu0 %v4846
      %v6686 = vpop.f32.mrf.mxu0
      %v6687 = vadd.f32 0.0, %v6686
      %v6688 = vpop.f32.mrf.mxu0
      %6689 = vmatmul.bf16.gmra.mxu0 %v4855
      %v6690 = vpop.f32.mrf.mxu0
      %v6691 = vpop.f32.mrf.mxu0
      %v6692 = vadd.f32 0.0, %v6691
      %6693 = vmatmul.bf16.gmra.mxu0 %v4864
      %v6694 = vpop.f32.mrf.mxu0
      %v6695 = vadd.f32 0.0, %v6694
      %v6696 = vpop.f32.mrf.mxu0
      %6697 = vmatmul.bf16.gmra.mxu0 %v4873
      %v6698 = vpop.f32.mrf.mxu0
      %v6699 = vpop.f32.mrf.mxu0
      %v6700 = vadd.f32 0.0, %v6699
      %6701 = vmatmul.bf16.gmra.mxu0 %v4882
      %v6702 = vpop.f32.mrf.mxu0
      %v6703 = vadd.f32 0.0, %v6702
      %v6704 = vpop.f32.mrf.mxu0
      %6705 = vmatmul.bf16.gmra.mxu0 %v4891
      %v6706 = vpop.f32.mrf.mxu0
      %v6707 = vpop.f32.mrf.mxu0
      %v6708 = vadd.f32 0.0, %v6707
      %6709 = vmatmul.bf16.gmra.mxu0 %v4900
      %v6710 = vpop.f32.mrf.mxu0
      %v6711 = vadd.f32 0.0, %v6710
      %v6712 = vpop.f32.mrf.mxu0
      %6713 = vmatmul.bf16.gmra.mxu0 %v4909
      %v6714 = vpop.f32.mrf.mxu0
      %v6715 = vpop.f32.mrf.mxu0
      %v6716 = vadd.f32 0.0, %v6715
      %6717 = vmatmul.bf16.gmra.mxu0 %v4918
      %v6718 = vpop.f32.mrf.mxu0
      %v6719 = vadd.f32 0.0, %v6718
      %v6720 = vpop.f32.mrf.mxu0
      %6721 = vmatmul.bf16.gmra.mxu0 %v4927
      %v6722 = vpop.f32.mrf.mxu0
      %v6723 = vpop.f32.mrf.mxu0
      %v6724 = vadd.f32 0.0, %v6723
      %6725 = vmatmul.bf16.gmra.mxu0 %v4936
      %v6726 = vpop.f32.mrf.mxu0
      %v6727 = vadd.f32 0.0, %v6726
      %v6728 = vpop.f32.mrf.mxu0
      %6729 = vmatmul.bf16.gmra.mxu0 %v4945
      %v6730 = vpop.f32.mrf.mxu0
      %v6731 = vpop.f32.mrf.mxu0
      %v6732 = vadd.f32 0.0, %v6731
      %6733 = vmatmul.bf16.gmra.mxu0 %v4954
      %v6734 = vpop.f32.mrf.mxu0
      %v6735 = vadd.f32 0.0, %v6734
      %v6736 = vpop.f32.mrf.mxu0
      %6737 = vmatmul.bf16.gmra.mxu0 %v4963
      %v6738 = vpop.f32.mrf.mxu0
      %v6739 = vpop.f32.mrf.mxu0
      %v6740 = vadd.f32 0.0, %v6739
      %6741 = vmatmul.bf16.gmra.mxu0 %v4972
      %v6742 = vpop.f32.mrf.mxu0
      %v6743 = vadd.f32 0.0, %v6742
      %v6744 = vpop.f32.mrf.mxu0
      %6745 = vmatmul.bf16.gmra.mxu0 %v4981
      %v6746 = vpop.f32.mrf.mxu0
      %v6747 = vpop.f32.mrf.mxu0
      %v6748 = vadd.f32 0.0, %v6747
      %6749 = vmatmul.bf16.gmra.mxu0 %v4990
      %v6750 = vpop.f32.mrf.mxu0
      %v6751 = vadd.f32 0.0, %v6750
      %v6752 = vpop.f32.mrf.mxu0
      %6753 = vmatmul.bf16.gmra.mxu0 %v4999
      %v6754 = vpop.f32.mrf.mxu0
      %v6755 = vpop.f32.mrf.mxu0
      %v6756 = vadd.f32 0.0, %v6755
      %6757 = vmatmul.bf16.gmra.mxu0 %v5008
      %v6758 = vpop.f32.mrf.mxu0
      %v6759 = vadd.f32 0.0, %v6758
      %v6760 = vpop.f32.mrf.mxu0
      %6761 = vmatmul.bf16.gmra.mxu0 %v5017
      %v6762 = vpop.f32.mrf.mxu0
      %v6763 = vpop.f32.mrf.mxu0
      %v6764 = vadd.f32 0.0, %v6763
      %6765 = vmatmul.bf16.gmra.mxu0 %v5807
      %v6766 = vpop.f32.mrf.mxu0
      %v6767 = vadd.f32 0.0, %v6766
      %v6768 = vpop.f32.mrf.mxu0
      %6769 = vmatmul.bf16.gmra.mxu0 %v5816
      %v6770 = vpop.f32.mrf.mxu0
      %v6771 = vpop.f32.mrf.mxu0
      %v6772 = vadd.f32 0.0, %v6771
      %6773 = vmatmul.bf16.gmra.mxu0 %v6579
      %v6774 = vpop.f32.mrf.mxu0
      %v6775 = vadd.f32 0.0, %v6774
      %v6776 = vpop.f32.mrf.mxu0
      %6777 = vmatmul.bf16.gmra.mxu0 %v6588
      %v6778 = vpop.f32.mrf.mxu0
      %v6779 = vpop.f32.mrf.mxu0
      %v6780 = vadd.f32 0.0, %v6779
      %6781 = vmatmul.bf16.gmra.mxu0 %v6597
      %v6782 = vpop.f32.mrf.mxu0
      %v6783 = vadd.f32 0.0, %v6782
      %v6784 = vpop.f32.mrf.mxu0
      %6785 = vdwg.mxu0
      %v6786 = vadd.f32 %v6513, %v6660
      %v6787 = vadd.f32 %v6514, %v6663
      %v6788 = vadd.f32 %v6515, %v6668
      %v6789 = vadd.f32 %v6516, %v6671
      %v6790 = vadd.f32 %v6517, %v6676
      %v6791 = vadd.f32 %v6518, %v6679
      %v6792 = vadd.f32 %v6519, %v6684
      %v6793 = vadd.f32 %v6520, %v6687
      %v6794 = vadd.f32 %v6521, %v6692
      %v6795 = vadd.f32 %v6522, %v6695
      %v6796 = vadd.f32 %v6523, %v6700
      %v6797 = vadd.f32 %v6524, %v6703
      %v6798 = vadd.f32 %v6525, %v6708
      %v6799 = vadd.f32 %v6526, %v6711
      %v6800 = vadd.f32 %v6527, %v6716
      %v6801 = vadd.f32 %v6528, %v6719
      %v6802 = vadd.f32 %v6529, %v6724
      %v6803 = vadd.f32 %v6530, %v6727
      %v6804 = vadd.f32 %v6531, %v6732
      %v6805 = vadd.f32 %v6532, %v6735
      %v6806 = vadd.f32 %v6533, %v6740
      %v6807 = vadd.f32 %v6534, %v6743
      %v6808 = vadd.f32 %v6535, %v6748
      %v6809 = vadd.f32 %v6536, %v6751
      %v6810 = vadd.f32 %v6537, %v6756
      %v6811 = vadd.f32 %v6538, %v6759
      %v6812 = vadd.f32 %v6539, %v6764
      %v6813 = vadd.f32 %v6540, %v6767
      %v6814 = vadd.f32 %v6541, %v6772
      %v6815 = vadd.f32 %v6542, %v6775
      %v6816 = vadd.f32 %v6543, %v6780
      %v6817 = vadd.f32 %v6544, %v6783
      %s6818 = scalar_lea.vmem %s3, 448
      %v6819 = vld [vmem:[%s6818] sm:$0xf]
      %v6820 = vld [vmem:[%s6818 + $0x4] sm:$0xf]
      %v6821 = vld [vmem:[%s6818 + $0x8] sm:$0xf]
      %v6822 = vld [vmem:[%s6818 + $0xc] sm:$0xf]
      %v6823 = vld [vmem:[%s6818 + $0x10] sm:$0xf]
      %v6824 = vld [vmem:[%s6818 + $0x14] sm:$0xf]
      %v6825 = vld [vmem:[%s6818 + $0x18] sm:$0xf]
      %v6826 = vld [vmem:[%s6818 + $0x1c] sm:$0xf]
      %v6827 = vld [vmem:[%s6818 + $0x20] sm:$0xf]
      %v6828 = vld [vmem:[%s6818 + $0x24] sm:$0xf]
      %v6829 = vld [vmem:[%s6818 + $0x28] sm:$0xf]
      %v6830 = vld [vmem:[%s6818 + $0x2c] sm:$0xf]
      %v6831 = vld [vmem:[%s6818 + $0x30] sm:$0xf]
      %v6832 = vld [vmem:[%s6818 + $0x34] sm:$0xf]
      %v6833 = vld [vmem:[%s6818 + $0x38] sm:$0xf]
      %v6834 = vld [vmem:[%s6818 + $0x3c] sm:$0xf]
      %v6835 = vpack.c.b16 %v6565, %v6302
      %v6836 = vpack.c.b16 %v6567, %v6566
      %v6855 = vunpack.c.l.b16 %v6819
      %v6856 = vunpack.c.l.b16 %v6820
      %v6857 = vunpack.c.l.b16 %v6821
      %v6858 = vunpack.c.l.b16 %v6822
      %v6859 = vunpack.c.l.b16 %v6823
      %v6860 = vunpack.c.l.b16 %v6824
      %v6861 = vunpack.c.l.b16 %v6825
      %v6862 = vunpack.c.l.b16 %v6826
      %v6863 = vunpack.c.l.b16 %v6827
      %v6864 = vunpack.c.l.b16 %v6828
      %v6865 = vunpack.c.l.b16 %v6829
      %v6866 = vunpack.c.l.b16 %v6830
      %v6867 = vunpack.c.l.b16 %v6831
      %v6868 = vunpack.c.l.b16 %v6832
      %v6869 = vunpack.c.l.b16 %v6833
      %v6870 = vunpack.c.l.b16 %v6834
      %v6871 = vpack.c.b16 %v6856, %v6855
      %v6872 = vpack.c.b16 %v6858, %v6857
      %v6873 = vpack.c.b16 %v6860, %v6859
      %v6874 = vpack.c.b16 %v6862, %v6861
      %v6875 = vpack.c.b16 %v6864, %v6863
      %v6876 = vpack.c.b16 %v6866, %v6865
      %v6877 = vpack.c.b16 %v6868, %v6867
      %v6878 = vpack.c.b16 %v6870, %v6869
      %6887 = vmatpush.bf16.msra.mxu0 %v6878
      %6888 = vmatpush.bf16.msra.mxu0 %v6877
      %6889 = vmatpush.bf16.msra.mxu0 %v6876
      %6890 = vmatpush.bf16.msra.mxu0 %v6875
      %6891 = vmatpush.bf16.msra.mxu0 %v6874
      %6892 = vmatpush.bf16.msra.mxu0 %v6873
      %6893 = vmatpush.bf16.msra.mxu0 %v6872
      %6894 = vmatpush.bf16.msra.mxu0 %v6871
      %6895 = vmatmul.bf16.gmra.mxu0 %v4451
      %v6896 = vpop.f32.mrf.mxu0
      %v6897 = vpop.f32.mrf.mxu0
      %v6898 = vadd.f32 0.0, %v6897
      %6899 = vmatmul.bf16.gmra.mxu0 %v4452
      %v6900 = vpop.f32.mrf.mxu0
      %v6901 = vadd.f32 0.0, %v6900
      %v6902 = vpop.f32.mrf.mxu0
      %6903 = vmatmul.bf16.gmra.mxu0 %v4453
      %v6904 = vpop.f32.mrf.mxu0
      %v6905 = vpop.f32.mrf.mxu0
      %v6906 = vadd.f32 0.0, %v6905
      %6907 = vmatmul.bf16.gmra.mxu0 %v4454
      %v6908 = vpop.f32.mrf.mxu0
      %v6909 = vadd.f32 0.0, %v6908
      %v6910 = vpop.f32.mrf.mxu0
      %6911 = vmatmul.bf16.gmra.mxu0 %v4455
      %v6912 = vpop.f32.mrf.mxu0
      %v6913 = vpop.f32.mrf.mxu0
      %v6914 = vadd.f32 0.0, %v6913
      %6915 = vmatmul.bf16.gmra.mxu0 %v4456
      %v6916 = vpop.f32.mrf.mxu0
      %v6917 = vadd.f32 0.0, %v6916
      %v6918 = vpop.f32.mrf.mxu0
      %6919 = vmatmul.bf16.gmra.mxu0 %v4457
      %v6920 = vpop.f32.mrf.mxu0
      %v6921 = vpop.f32.mrf.mxu0
      %v6922 = vadd.f32 0.0, %v6921
      %6923 = vmatmul.bf16.gmra.mxu0 %v4458
      %v6924 = vpop.f32.mrf.mxu0
      %v6925 = vadd.f32 0.0, %v6924
      %v6926 = vpop.f32.mrf.mxu0
      %6927 = vmatmul.bf16.gmra.mxu0 %v4459
      %v6928 = vpop.f32.mrf.mxu0
      %v6929 = vpop.f32.mrf.mxu0
      %v6930 = vadd.f32 0.0, %v6929
      %6931 = vmatmul.bf16.gmra.mxu0 %v4460
      %v6932 = vpop.f32.mrf.mxu0
      %v6933 = vadd.f32 0.0, %v6932
      %v6934 = vpop.f32.mrf.mxu0
      %6935 = vmatmul.bf16.gmra.mxu0 %v4461
      %v6936 = vpop.f32.mrf.mxu0
      %v6937 = vpop.f32.mrf.mxu0
      %v6938 = vadd.f32 0.0, %v6937
      %6939 = vmatmul.bf16.gmra.mxu0 %v4462
      %v6940 = vpop.f32.mrf.mxu0
      %v6941 = vadd.f32 0.0, %v6940
      %v6942 = vpop.f32.mrf.mxu0
      %6943 = vmatmul.bf16.gmra.mxu0 %v4463
      %v6944 = vpop.f32.mrf.mxu0
      %v6945 = vpop.f32.mrf.mxu0
      %v6946 = vadd.f32 0.0, %v6945
      %6947 = vmatmul.bf16.gmra.mxu0 %v4464
      %v6948 = vpop.f32.mrf.mxu0
      %v6949 = vadd.f32 0.0, %v6948
      %v6950 = vpop.f32.mrf.mxu0
      %6951 = vmatmul.bf16.gmra.mxu0 %v4465
      %v6952 = vpop.f32.mrf.mxu0
      %v6953 = vpop.f32.mrf.mxu0
      %v6954 = vadd.f32 0.0, %v6953
      %6955 = vmatmul.bf16.gmra.mxu0 %v4466
      %v6956 = vpop.f32.mrf.mxu0
      %v6957 = vadd.f32 0.0, %v6956
      %v6958 = vpop.f32.mrf.mxu0
      %6959 = vmatmul.bf16.gmra.mxu0 %v4467
      %v6960 = vpop.f32.mrf.mxu0
      %v6961 = vpop.f32.mrf.mxu0
      %v6962 = vadd.f32 0.0, %v6961
      %6963 = vmatmul.bf16.gmra.mxu0 %v4468
      %v6964 = vpop.f32.mrf.mxu0
      %v6965 = vadd.f32 0.0, %v6964
      %v6966 = vpop.f32.mrf.mxu0
      %6967 = vmatmul.bf16.gmra.mxu0 %v4469
      %v6968 = vpop.f32.mrf.mxu0
      %v6969 = vpop.f32.mrf.mxu0
      %v6970 = vadd.f32 0.0, %v6969
      %6971 = vmatmul.bf16.gmra.mxu0 %v4470
      %v6972 = vpop.f32.mrf.mxu0
      %v6973 = vadd.f32 0.0, %v6972
      %v6974 = vpop.f32.mrf.mxu0
      %6975 = vmatmul.bf16.gmra.mxu0 %v4471
      %v6976 = vpop.f32.mrf.mxu0
      %v6977 = vpop.f32.mrf.mxu0
      %v6978 = vadd.f32 0.0, %v6977
      %6979 = vmatmul.bf16.gmra.mxu0 %v4472
      %v6980 = vpop.f32.mrf.mxu0
      %v6981 = vadd.f32 0.0, %v6980
      %v6982 = vpop.f32.mrf.mxu0
      %6983 = vmatmul.bf16.gmra.mxu0 %v4473
      %v6984 = vpop.f32.mrf.mxu0
      %v6985 = vpop.f32.mrf.mxu0
      %v6986 = vadd.f32 0.0, %v6985
      %6987 = vmatmul.bf16.gmra.mxu0 %v4474
      %v6988 = vpop.f32.mrf.mxu0
      %v6989 = vadd.f32 0.0, %v6988
      %v6990 = vpop.f32.mrf.mxu0
      %6991 = vmatmul.bf16.gmra.mxu0 %v4475
      %v6992 = vpop.f32.mrf.mxu0
      %v6993 = vpop.f32.mrf.mxu0
      %v6994 = vadd.f32 0.0, %v6993
      %6995 = vmatmul.bf16.gmra.mxu0 %v4476
      %v6996 = vpop.f32.mrf.mxu0
      %v6997 = vadd.f32 0.0, %v6996
      %v6998 = vpop.f32.mrf.mxu0
      %6999 = vmatmul.bf16.gmra.mxu0 %v4477
      %v7000 = vpop.f32.mrf.mxu0
      %v7001 = vpop.f32.mrf.mxu0
      %v7002 = vadd.f32 0.0, %v7001
      %7003 = vmatmul.bf16.gmra.mxu0 %v4478
      %v7004 = vpop.f32.mrf.mxu0
      %v7005 = vadd.f32 0.0, %v7004
      %v7006 = vpop.f32.mrf.mxu0
      %7007 = vmatmul.bf16.gmra.mxu0 %v6063
      %v7008 = vpop.f32.mrf.mxu0
      %v7009 = vpop.f32.mrf.mxu0
      %v7010 = vadd.f32 0.0, %v7009
      %7011 = vmatmul.bf16.gmra.mxu0 %v6064
      %v7012 = vpop.f32.mrf.mxu0
      %v7013 = vadd.f32 0.0, %v7012
      %v7014 = vpop.f32.mrf.mxu0
      %7015 = vmatmul.bf16.gmra.mxu0 %v6835
      %v7016 = vpop.f32.mrf.mxu0
      %v7017 = vpop.f32.mrf.mxu0
      %v7018 = vadd.f32 0.0, %v7017
      %7019 = vmatmul.bf16.gmra.mxu0 %v6836
      %v7020 = vpop.f32.mrf.mxu0
      %v7021 = vadd.f32 0.0, %v7020
      %v7022 = vpop.f32.mrf.mxu0
      %7023 = vdwg.mxu0
      %v7024 = vadd.f32 %v6786, %v6898
      %v7025 = vadd.f32 %v6787, %v6901
      %v7026 = vadd.f32 %v6788, %v6906
      %v7027 = vadd.f32 %v6789, %v6909
      %v7028 = vadd.f32 %v6790, %v6914
      %v7029 = vadd.f32 %v6791, %v6917
      %v7030 = vadd.f32 %v6792, %v6922
      %v7031 = vadd.f32 %v6793, %v6925
      %v7032 = vadd.f32 %v6794, %v6930
      %v7033 = vadd.f32 %v6795, %v6933
      %v7034 = vadd.f32 %v6796, %v6938
      %v7035 = vadd.f32 %v6797, %v6941
      %v7036 = vadd.f32 %v6798, %v6946
      %v7037 = vadd.f32 %v6799, %v6949
      %v7038 = vadd.f32 %v6800, %v6954
      %v7039 = vadd.f32 %v6801, %v6957
      %v7040 = vadd.f32 %v6802, %v6962
      %v7041 = vadd.f32 %v6803, %v6965
      %v7042 = vadd.f32 %v6804, %v6970
      %v7043 = vadd.f32 %v6805, %v6973
      %v7044 = vadd.f32 %v6806, %v6978
      %v7045 = vadd.f32 %v6807, %v6981
      %v7046 = vadd.f32 %v6808, %v6986
      %v7047 = vadd.f32 %v6809, %v6989
      %v7048 = vadd.f32 %v6810, %v6994
      %v7049 = vadd.f32 %v6811, %v6997
      %v7050 = vadd.f32 %v6812, %v7002
      %v7051 = vadd.f32 %v6813, %v7005
      %v7052 = vadd.f32 %v6814, %v7010
      %v7053 = vadd.f32 %v6815, %v7013
      %v7054 = vadd.f32 %v6816, %v7018
      %v7055 = vadd.f32 %v6817, %v7021
      %s7056 = scalar_lea.vmem %s3, 512
      %v7057 = vld [vmem:[%s7056] sm:$0xf]
      %v7058 = vld [vmem:[%s7056 + $0x4] sm:$0xf]
      %v7059 = vld [vmem:[%s7056 + $0x8] sm:$0xf]
      %v7060 = vld [vmem:[%s7056 + $0xc] sm:$0xf]
      %v7061 = vld [vmem:[%s7056 + $0x10] sm:$0xf]
      %v7062 = vld [vmem:[%s7056 + $0x14] sm:$0xf]
      %v7063 = vld [vmem:[%s7056 + $0x18] sm:$0xf]
      %v7064 = vld [vmem:[%s7056 + $0x1c] sm:$0xf]
      %v7065 = vld [vmem:[%s7056 + $0x20] sm:$0xf]
      %v7066 = vld [vmem:[%s7056 + $0x24] sm:$0xf]
      %v7067 = vld [vmem:[%s7056 + $0x28] sm:$0xf]
      %v7068 = vld [vmem:[%s7056 + $0x2c] sm:$0xf]
      %v7069 = vld [vmem:[%s7056 + $0x30] sm:$0xf]
      %v7070 = vld [vmem:[%s7056 + $0x34] sm:$0xf]
      %v7071 = vld [vmem:[%s7056 + $0x38] sm:$0xf]
      %v7072 = vld [vmem:[%s7056 + $0x3c] sm:$0xf]
      %v7074 = vunpack.c.l.b16 %v4285
      %v7075 = vpack.c.b16 %v7074, %v7074
      %v7077 = vshll.u32 %v6835, 16
      %v7079 = vrot.slane %v7077, 1
      %v7080 = vsel %vm1343, %v6319, %v7079
      %v7081 = vshrl.u32 %v6835, 16
      %v7083 = vor.u32 %v7081, %v7079
      %v7085 = vshll.u32 %v6836, 16
      %v7087 = vrot.slane %v7085, 1
      %v7088 = vsel %vm1343, %v7083, %v7087
      %v7089 = vshrl.u32 %v6836, 16
      %v7091 = vor.u32 %v7089, %v7087
      %v7093 = vshll.u32 %v7075, 16
      %v7095 = vrot.slane %v7093, 1
      %v7096 = vsel %vm1343, %v7091, %v7095
      %v7116 = vunpack.c.l.b16 %v7057
      %v7117 = vunpack.c.l.b16 %v7058
      %v7118 = vunpack.c.l.b16 %v7059
      %v7119 = vunpack.c.l.b16 %v7060
      %v7120 = vunpack.c.l.b16 %v7061
      %v7121 = vunpack.c.l.b16 %v7062
      %v7122 = vunpack.c.l.b16 %v7063
      %v7123 = vunpack.c.l.b16 %v7064
      %v7124 = vunpack.c.l.b16 %v7065
      %v7125 = vunpack.c.l.b16 %v7066
      %v7126 = vunpack.c.l.b16 %v7067
      %v7127 = vunpack.c.l.b16 %v7068
      %v7128 = vunpack.c.l.b16 %v7069
      %v7129 = vunpack.c.l.b16 %v7070
      %v7130 = vunpack.c.l.b16 %v7071
      %v7131 = vunpack.c.l.b16 %v7072
      %v7132 = vpack.c.b16 %v7117, %v7116
      %v7133 = vpack.c.b16 %v7119, %v7118
      %v7134 = vpack.c.b16 %v7121, %v7120
      %v7135 = vpack.c.b16 %v7123, %v7122
      %v7136 = vpack.c.b16 %v7125, %v7124
      %v7137 = vpack.c.b16 %v7127, %v7126
      %v7138 = vpack.c.b16 %v7129, %v7128
      %v7139 = vpack.c.b16 %v7131, %v7130
      %7148 = vmatpush.bf16.msra.mxu0 %v7139
      %7149 = vmatpush.bf16.msra.mxu0 %v7138
      %7150 = vmatpush.bf16.msra.mxu0 %v7137
      %7151 = vmatpush.bf16.msra.mxu0 %v7136
      %7152 = vmatpush.bf16.msra.mxu0 %v7135
      %7153 = vmatpush.bf16.msra.mxu0 %v7134
      %7154 = vmatpush.bf16.msra.mxu0 %v7133
      %7155 = vmatpush.bf16.msra.mxu0 %v7132
      %7156 = vmatmul.bf16.gmra.mxu0 %v5307
      %v7157 = vpop.f32.mrf.mxu0
      %v7158 = vpop.f32.mrf.mxu0
      %v7159 = vadd.f32 0.0, %v7158
      %7160 = vmatmul.bf16.gmra.mxu0 %v5315
      %v7161 = vpop.f32.mrf.mxu0
      %v7162 = vadd.f32 0.0, %v7161
      %v7163 = vpop.f32.mrf.mxu0
      %7164 = vmatmul.bf16.gmra.mxu0 %v5323
      %v7165 = vpop.f32.mrf.mxu0
      %v7166 = vpop.f32.mrf.mxu0
      %v7167 = vadd.f32 0.0, %v7166
      %7168 = vmatmul.bf16.gmra.mxu0 %v5331
      %v7169 = vpop.f32.mrf.mxu0
      %v7170 = vadd.f32 0.0, %v7169
      %v7171 = vpop.f32.mrf.mxu0
      %7172 = vmatmul.bf16.gmra.mxu0 %v5339
      %v7173 = vpop.f32.mrf.mxu0
      %v7174 = vpop.f32.mrf.mxu0
      %v7175 = vadd.f32 0.0, %v7174
      %7176 = vmatmul.bf16.gmra.mxu0 %v5347
      %v7177 = vpop.f32.mrf.mxu0
      %v7178 = vadd.f32 0.0, %v7177
      %v7179 = vpop.f32.mrf.mxu0
      %7180 = vmatmul.bf16.gmra.mxu0 %v5355
      %v7181 = vpop.f32.mrf.mxu0
      %v7182 = vpop.f32.mrf.mxu0
      %v7183 = vadd.f32 0.0, %v7182
      %7184 = vmatmul.bf16.gmra.mxu0 %v5363
      %v7185 = vpop.f32.mrf.mxu0
      %v7186 = vadd.f32 0.0, %v7185
      %v7187 = vpop.f32.mrf.mxu0
      %7188 = vmatmul.bf16.gmra.mxu0 %v5371
      %v7189 = vpop.f32.mrf.mxu0
      %v7190 = vpop.f32.mrf.mxu0
      %v7191 = vadd.f32 0.0, %v7190
      %7192 = vmatmul.bf16.gmra.mxu0 %v5379
      %v7193 = vpop.f32.mrf.mxu0
      %v7194 = vadd.f32 0.0, %v7193
      %v7195 = vpop.f32.mrf.mxu0
      %7196 = vmatmul.bf16.gmra.mxu0 %v5387
      %v7197 = vpop.f32.mrf.mxu0
      %v7198 = vpop.f32.mrf.mxu0
      %v7199 = vadd.f32 0.0, %v7198
      %7200 = vmatmul.bf16.gmra.mxu0 %v5395
      %v7201 = vpop.f32.mrf.mxu0
      %v7202 = vadd.f32 0.0, %v7201
      %v7203 = vpop.f32.mrf.mxu0
      %7204 = vmatmul.bf16.gmra.mxu0 %v5403
      %v7205 = vpop.f32.mrf.mxu0
      %v7206 = vpop.f32.mrf.mxu0
      %v7207 = vadd.f32 0.0, %v7206
      %7208 = vmatmul.bf16.gmra.mxu0 %v5411
      %v7209 = vpop.f32.mrf.mxu0
      %v7210 = vadd.f32 0.0, %v7209
      %v7211 = vpop.f32.mrf.mxu0
      %7212 = vmatmul.bf16.gmra.mxu0 %v5419
      %v7213 = vpop.f32.mrf.mxu0
      %v7214 = vpop.f32.mrf.mxu0
      %v7215 = vadd.f32 0.0, %v7214
      %7216 = vmatmul.bf16.gmra.mxu0 %v5427
      %v7217 = vpop.f32.mrf.mxu0
      %v7218 = vadd.f32 0.0, %v7217
      %v7219 = vpop.f32.mrf.mxu0
      %7220 = vmatmul.bf16.gmra.mxu0 %v5435
      %v7221 = vpop.f32.mrf.mxu0
      %v7222 = vpop.f32.mrf.mxu0
      %v7223 = vadd.f32 0.0, %v7222
      %7224 = vmatmul.bf16.gmra.mxu0 %v5443
      %v7225 = vpop.f32.mrf.mxu0
      %v7226 = vadd.f32 0.0, %v7225
      %v7227 = vpop.f32.mrf.mxu0
      %7228 = vmatmul.bf16.gmra.mxu0 %v5451
      %v7229 = vpop.f32.mrf.mxu0
      %v7230 = vpop.f32.mrf.mxu0
      %v7231 = vadd.f32 0.0, %v7230
      %7232 = vmatmul.bf16.gmra.mxu0 %v5459
      %v7233 = vpop.f32.mrf.mxu0
      %v7234 = vadd.f32 0.0, %v7233
      %v7235 = vpop.f32.mrf.mxu0
      %7236 = vmatmul.bf16.gmra.mxu0 %v5467
      %v7237 = vpop.f32.mrf.mxu0
      %v7238 = vpop.f32.mrf.mxu0
      %v7239 = vadd.f32 0.0, %v7238
      %7240 = vmatmul.bf16.gmra.mxu0 %v5475
      %v7241 = vpop.f32.mrf.mxu0
      %v7242 = vadd.f32 0.0, %v7241
      %v7243 = vpop.f32.mrf.mxu0
      %7244 = vmatmul.bf16.gmra.mxu0 %v5483
      %v7245 = vpop.f32.mrf.mxu0
      %v7246 = vpop.f32.mrf.mxu0
      %v7247 = vadd.f32 0.0, %v7246
      %7248 = vmatmul.bf16.gmra.mxu0 %v5491
      %v7249 = vpop.f32.mrf.mxu0
      %v7250 = vadd.f32 0.0, %v7249
      %v7251 = vpop.f32.mrf.mxu0
      %7252 = vmatmul.bf16.gmra.mxu0 %v5499
      %v7253 = vpop.f32.mrf.mxu0
      %v7254 = vpop.f32.mrf.mxu0
      %v7255 = vadd.f32 0.0, %v7254
      %7256 = vmatmul.bf16.gmra.mxu0 %v5507
      %v7257 = vpop.f32.mrf.mxu0
      %v7258 = vadd.f32 0.0, %v7257
      %v7259 = vpop.f32.mrf.mxu0
      %7260 = vmatmul.bf16.gmra.mxu0 %v5515
      %v7261 = vpop.f32.mrf.mxu0
      %v7262 = vpop.f32.mrf.mxu0
      %v7263 = vadd.f32 0.0, %v7262
      %7264 = vmatmul.bf16.gmra.mxu0 %v6308
      %v7265 = vpop.f32.mrf.mxu0
      %v7266 = vadd.f32 0.0, %v7265
      %v7267 = vpop.f32.mrf.mxu0
      %7268 = vmatmul.bf16.gmra.mxu0 %v6316
      %v7269 = vpop.f32.mrf.mxu0
      %v7270 = vpop.f32.mrf.mxu0
      %v7271 = vadd.f32 0.0, %v7270
      %7272 = vmatmul.bf16.gmra.mxu0 %v7080
      %v7273 = vpop.f32.mrf.mxu0
      %v7274 = vadd.f32 0.0, %v7273
      %v7275 = vpop.f32.mrf.mxu0
      %7276 = vmatmul.bf16.gmra.mxu0 %v7088
      %v7277 = vpop.f32.mrf.mxu0
      %v7278 = vpop.f32.mrf.mxu0
      %v7279 = vadd.f32 0.0, %v7278
      %7280 = vmatmul.bf16.gmra.mxu0 %v7096
      %v7281 = vpop.f32.mrf.mxu0
      %v7282 = vadd.f32 0.0, %v7281
      %v7283 = vpop.f32.mrf.mxu0
      %7284 = vdwg.mxu0
      %v7285 = vadd.f32 %v7024, %v7159
      %v7286 = vadd.f32 %v7025, %v7162
      %v7287 = vadd.f32 %v7026, %v7167
      %v7288 = vadd.f32 %v7027, %v7170
      %v7289 = vadd.f32 %v7028, %v7175
      %v7290 = vadd.f32 %v7029, %v7178
      %v7291 = vadd.f32 %v7030, %v7183
      %v7292 = vadd.f32 %v7031, %v7186
      %v7293 = vadd.f32 %v7032, %v7191
      %v7294 = vadd.f32 %v7033, %v7194
      %v7295 = vadd.f32 %v7034, %v7199
      %v7296 = vadd.f32 %v7035, %v7202
      %v7297 = vadd.f32 %v7036, %v7207
      %v7298 = vadd.f32 %v7037, %v7210
      %v7299 = vadd.f32 %v7038, %v7215
      %v7300 = vadd.f32 %v7039, %v7218
      %v7301 = vadd.f32 %v7040, %v7223
      %v7302 = vadd.f32 %v7041, %v7226
      %v7303 = vadd.f32 %v7042, %v7231
      %v7304 = vadd.f32 %v7043, %v7234
      %v7305 = vadd.f32 %v7044, %v7239
      %v7306 = vadd.f32 %v7045, %v7242
      %v7307 = vadd.f32 %v7046, %v7247
      %v7308 = vadd.f32 %v7047, %v7250
      %v7309 = vadd.f32 %v7048, %v7255
      %v7310 = vadd.f32 %v7049, %v7258
      %v7311 = vadd.f32 %v7050, %v7263
      %v7312 = vadd.f32 %v7051, %v7266
      %v7313 = vadd.f32 %v7052, %v7271
      %v7314 = vadd.f32 %v7053, %v7274
      %v7315 = vadd.f32 %v7054, %v7279
      %v7316 = vadd.f32 %v7055, %v7282
      %v7317 = vunpack.c.l.bf16 %v232
      %v7318 = vunpack.c.l.bf16 %v233
      %v7319 = vunpack.c.l.bf16 %v236
      %v7320 = vunpack.c.l.bf16 %v237
      %v7321 = vunpack.c.l.bf16 %v240
      %v7322 = vunpack.c.l.bf16 %v241
      %v7323 = vunpack.c.l.bf16 %v244
      %v7324 = vunpack.c.l.bf16 %v245
      %v7325 = vunpack.c.l.bf16 %v248
      %v7326 = vunpack.c.l.bf16 %v249
      %v7327 = vunpack.c.l.bf16 %v252
      %v7328 = vunpack.c.l.bf16 %v253
      %v7329 = vunpack.c.l.bf16 %v256
      %v7330 = vunpack.c.l.bf16 %v257
      %v7331 = vunpack.c.l.bf16 %v260
      %v7332 = vunpack.c.l.bf16 %v261
      %v7333 = vunpack.c.l.bf16 %v264
      %v7334 = vunpack.c.l.bf16 %v265
      %v7335 = vunpack.c.l.bf16 %v268
      %v7336 = vunpack.c.l.bf16 %v269
      %v7337 = vunpack.c.l.bf16 %v272
      %v7338 = vunpack.c.l.bf16 %v273
      %v7339 = vunpack.c.l.bf16 %v276
      %v7340 = vunpack.c.l.bf16 %v277
      %v7341 = vunpack.c.l.bf16 %v280
      %v7342 = vunpack.c.l.bf16 %v281
      %v7343 = vunpack.c.l.bf16 %v284
      %v7344 = vunpack.c.l.bf16 %v285
      %v7345 = vunpack.c.l.bf16 %v288
      %v7346 = vunpack.c.l.bf16 %v289
      %v7347 = vunpack.c.l.bf16 %v292
      %v7348 = vunpack.c.l.bf16 %v293
      %v7349 = vld [vmem:[%s4] sm:$0x1]
      %v7351 = vperm.slane %v7349, 0
      %v7353 = vadd.f32 %v7285, %v7351
      %v7354 = vadd.f32 %v7286, %v7351
      %v7355 = vadd.f32 %v7287, %v7351
      %v7356 = vadd.f32 %v7288, %v7351
      %v7357 = vadd.f32 %v7289, %v7351
      %v7358 = vadd.f32 %v7290, %v7351
      %v7359 = vadd.f32 %v7291, %v7351
      %v7360 = vadd.f32 %v7292, %v7351
      %v7361 = vadd.f32 %v7293, %v7351
      %v7362 = vadd.f32 %v7294, %v7351
      %v7363 = vadd.f32 %v7295, %v7351
      %v7364 = vadd.f32 %v7296, %v7351
      %v7365 = vadd.f32 %v7297, %v7351
      %v7366 = vadd.f32 %v7298, %v7351
      %v7367 = vadd.f32 %v7299, %v7351
      %v7368 = vadd.f32 %v7300, %v7351
      %v7369 = vadd.f32 %v7301, %v7351
      %v7370 = vadd.f32 %v7302, %v7351
      %v7371 = vadd.f32 %v7303, %v7351
      %v7372 = vadd.f32 %v7304, %v7351
      %v7373 = vadd.f32 %v7305, %v7351
      %v7374 = vadd.f32 %v7306, %v7351
      %v7375 = vadd.f32 %v7307, %v7351
      %v7376 = vadd.f32 %v7308, %v7351
      %v7377 = vadd.f32 %v7309, %v7351
      %v7378 = vadd.f32 %v7310, %v7351
      %v7379 = vadd.f32 %v7311, %v7351
      %v7380 = vadd.f32 %v7312, %v7351
      %v7381 = vadd.f32 %v7313, %v7351
      %v7382 = vadd.f32 %v7314, %v7351
      %v7383 = vadd.f32 %v7315, %v7351
      %v7384 = vadd.f32 %v7316, %v7351
      %v7385 = vadd.f32 %v7353, %v7317
      %v7386 = vadd.f32 %v7354, %v7318
      %v7387 = vadd.f32 %v7355, %v7319
      %v7388 = vadd.f32 %v7356, %v7320
      %v7389 = vadd.f32 %v7357, %v7321
      %v7390 = vadd.f32 %v7358, %v7322
      %v7391 = vadd.f32 %v7359, %v7323
      %v7392 = vadd.f32 %v7360, %v7324
      %v7393 = vadd.f32 %v7361, %v7325
      %v7394 = vadd.f32 %v7362, %v7326
      %v7395 = vadd.f32 %v7363, %v7327
      %v7396 = vadd.f32 %v7364, %v7328
      %v7397 = vadd.f32 %v7365, %v7329
      %v7398 = vadd.f32 %v7366, %v7330
      %v7399 = vadd.f32 %v7367, %v7331
      %v7400 = vadd.f32 %v7368, %v7332
      %v7401 = vadd.f32 %v7369, %v7333
      %v7402 = vadd.f32 %v7370, %v7334
      %v7403 = vadd.f32 %v7371, %v7335
      %v7404 = vadd.f32 %v7372, %v7336
      %v7405 = vadd.f32 %v7373, %v7337
      %v7406 = vadd.f32 %v7374, %v7338
      %v7407 = vadd.f32 %v7375, %v7339
      %v7408 = vadd.f32 %v7376, %v7340
      %v7409 = vadd.f32 %v7377, %v7341
      %v7410 = vadd.f32 %v7378, %v7342
      %v7411 = vadd.f32 %v7379, %v7343
      %v7412 = vadd.f32 %v7380, %v7344
      %v7413 = vadd.f32 %v7381, %v7345
      %v7414 = vadd.f32 %v7382, %v7346
      %v7415 = vadd.f32 %v7383, %v7347
      %v7416 = vadd.f32 %v7384, %v7348
      %v7417 = vmax.f32 %v7385, 0.0
      %v7418 = vmax.f32 %v7386, 0.0
      %v7419 = vmax.f32 %v7387, 0.0
      %v7420 = vmax.f32 %v7388, 0.0
      %v7421 = vmax.f32 %v7389, 0.0
      %v7422 = vmax.f32 %v7390, 0.0
      %v7423 = vmax.f32 %v7391, 0.0
      %v7424 = vmax.f32 %v7392, 0.0
      %v7425 = vmax.f32 %v7393, 0.0
      %v7426 = vmax.f32 %v7394, 0.0
      %v7427 = vmax.f32 %v7395, 0.0
      %v7428 = vmax.f32 %v7396, 0.0
      %v7429 = vmax.f32 %v7397, 0.0
      %v7430 = vmax.f32 %v7398, 0.0
      %v7431 = vmax.f32 %v7399, 0.0
      %v7432 = vmax.f32 %v7400, 0.0
      %v7433 = vmax.f32 %v7401, 0.0
      %v7434 = vmax.f32 %v7402, 0.0
      %v7435 = vmax.f32 %v7403, 0.0
      %v7436 = vmax.f32 %v7404, 0.0
      %v7437 = vmax.f32 %v7405, 0.0
      %v7438 = vmax.f32 %v7406, 0.0
      %v7439 = vmax.f32 %v7407, 0.0
      %v7440 = vmax.f32 %v7408, 0.0
      %v7441 = vmax.f32 %v7409, 0.0
      %v7442 = vmax.f32 %v7410, 0.0
      %v7443 = vmax.f32 %v7411, 0.0
      %v7444 = vmax.f32 %v7412, 0.0
      %v7445 = vmax.f32 %v7413, 0.0
      %v7446 = vmax.f32 %v7414, 0.0
      %v7447 = vmax.f32 %v7415, 0.0
      %v7448 = vmax.f32 %v7416, 0.0
      %v7449 = vpack.c.bf16 %v7417, %v7417
      %v7450 = vpack.c.bf16 %v7418, %v7418
      %v7451 = vpack.c.bf16 %v7419, %v7419
      %v7452 = vpack.c.bf16 %v7420, %v7420
      %v7453 = vpack.c.bf16 %v7421, %v7421
      %v7454 = vpack.c.bf16 %v7422, %v7422
      %v7455 = vpack.c.bf16 %v7423, %v7423
      %v7456 = vpack.c.bf16 %v7424, %v7424
      %v7457 = vpack.c.bf16 %v7425, %v7425
      %v7458 = vpack.c.bf16 %v7426, %v7426
      %v7459 = vpack.c.bf16 %v7427, %v7427
      %v7460 = vpack.c.bf16 %v7428, %v7428
      %v7461 = vpack.c.bf16 %v7429, %v7429
      %v7462 = vpack.c.bf16 %v7430, %v7430
      %v7463 = vpack.c.bf16 %v7431, %v7431
      %v7464 = vpack.c.bf16 %v7432, %v7432
      %v7465 = vpack.c.bf16 %v7433, %v7433
      %v7466 = vpack.c.bf16 %v7434, %v7434
      %v7467 = vpack.c.bf16 %v7435, %v7435
      %v7468 = vpack.c.bf16 %v7436, %v7436
      %v7469 = vpack.c.bf16 %v7437, %v7437
      %v7470 = vpack.c.bf16 %v7438, %v7438
      %v7471 = vpack.c.bf16 %v7439, %v7439
      %v7472 = vpack.c.bf16 %v7440, %v7440
      %v7473 = vpack.c.bf16 %v7441, %v7441
      %v7474 = vpack.c.bf16 %v7442, %v7442
      %v7475 = vpack.c.bf16 %v7443, %v7443
      %v7476 = vpack.c.bf16 %v7444, %v7444
      %v7477 = vpack.c.bf16 %v7445, %v7445
      %v7478 = vpack.c.bf16 %v7446, %v7446
      %v7479 = vpack.c.bf16 %v7447, %v7447
      %v7480 = vpack.c.bf16 %v7448, %v7448
      %7481 = vst [vmem:[%s224] sm:$0xf] %v7449
      %7482 = vst [vmem:[%s224 + $0x4] sm:$0xf] %v7450
      %7483 = vst [vmem:[%s224 + $0x8] sm:$0xf] %v7451
      %7484 = vst [vmem:[%s224 + $0xc] sm:$0xf] %v7452
      %7485 = vst [vmem:[%s224 + $0x10] sm:$0xf] %v7453
      %7486 = vst [vmem:[%s224 + $0x14] sm:$0xf] %v7454
      %7487 = vst [vmem:[%s224 + $0x18] sm:$0xf] %v7455
      %7488 = vst [vmem:[%s224 + $0x1c] sm:$0xf] %v7456
      %7489 = vst [vmem:[%s224 + $0x20] sm:$0xf] %v7457
      %7490 = vst [vmem:[%s224 + $0x24] sm:$0xf] %v7458
      %7491 = vst [vmem:[%s224 + $0x28] sm:$0xf] %v7459
      %7492 = vst [vmem:[%s224 + $0x2c] sm:$0xf] %v7460
      %7493 = vst [vmem:[%s224 + $0x30] sm:$0xf] %v7461
      %7494 = vst [vmem:[%s224 + $0x34] sm:$0xf] %v7462
      %7495 = vst [vmem:[%s224 + $0x38] sm:$0xf] %v7463
      %7496 = vst [vmem:[%s224 + $0x3c] sm:$0xf] %v7464
      %7497 = vst [vmem:[%s224 + $0x40] sm:$0xf] %v7465
      %7498 = vst [vmem:[%s224 + $0x44] sm:$0xf] %v7466
      %7499 = vst [vmem:[%s224 + $0x48] sm:$0xf] %v7467
      %7500 = vst [vmem:[%s224 + $0x4c] sm:$0xf] %v7468
      %7501 = vst [vmem:[%s224 + $0x50] sm:$0xf] %v7469
      %7502 = vst [vmem:[%s224 + $0x54] sm:$0xf] %v7470
      %7503 = vst [vmem:[%s224 + $0x58] sm:$0xf] %v7471
      %7504 = vst [vmem:[%s224 + $0x5c] sm:$0xf] %v7472
      %7505 = vst [vmem:[%s224 + $0x60] sm:$0xf] %v7473
      %7506 = vst [vmem:[%s224 + $0x64] sm:$0xf] %v7474
      %7507 = vst [vmem:[%s224 + $0x68] sm:$0xf] %v7475
      %7508 = vst [vmem:[%s224 + $0x6c] sm:$0xf] %v7476
      %7509 = vst [vmem:[%s224 + $0x70] sm:$0xf] %v7477
      %7510 = vst [vmem:[%s224 + $0x74] sm:$0xf] %v7478
      %7511 = vst [vmem:[%s224 + $0x78] sm:$0xf] %v7479
      %7512 = vst [vmem:[%s224 + $0x7c] sm:$0xf] %v7480
      %p7513 = scmp.lt.s32.totalorder %s16, 1
      %s7514 = scalar_select %p7513, %s16, 1
      %s7515 = smul.addr %s7514, 32
      %s7516 = smul.addr %s7515, 4
      %s7517 = scalar_lea.vmem %s5, %s7516
      // Predicated region
      $region41: #{basic_block_forward.1} parent=39 // pred_check
        %p7518 = pneg %p144
      $region42: #{basic_block_forward.1} parent=39 // pred_check_branch
        %7520 = sbr.rel (%p7518) target = $region44
      $region43: #{basic_block_forward.1} parent=39 // pred_region
        _
      $region44: #{basic_block_forward.1} parent=39 // pred_fallthru
        _
    $region40: #{basic_block_forward.1} parent=5 // pred_fallthru
      _
    %p7521 = scmp.le.s32.totalorder 2, %s11
    // Predicated region
    $region45: #{basic_block_forward.1} parent=5 // pred_check
      %p7522 = pneg %p7521
    $region46: #{basic_block_forward.1} parent=5 // pred_check_branch
      %7524 = sbr.rel (%p7522) target = $region48
    $region47: #{basic_block_forward.1} parent=5 // pred_region
      %s7525 = ssub.s32 %s11, 2
      // Predicated region
      $region49: #{basic_block_forward.1} parent=47 // pred_check
        %p7526 = pneg %p150
      $region50: #{basic_block_forward.1} parent=47 // pred_check_branch
        %7528 = sbr.rel (%p7526) target = $region52
      $region51: #{basic_block_forward.1} parent=47 // pred_region
        %p7529 = scmp.lt.s32.totalorder %s17, 1
        %s7530 = scalar_select %p7529, %s17, 1
        %s7531 = smul.addr %s7530, 32
        %s7532 = smul.addr %s7531, 4
        %s7533 = scalar_lea.vmem %s5, %s7532
      $region52: #{basic_block_forward.1} parent=47 // pred_fallthru
        _
    $region48: #{basic_block_forward.1} parent=5 // pred_fallthru
      _
  $region6: #{basic_block_forward.1} parent=0 // loop_footer
    %s15 = sadd.s32 1, %s11
  $region7: #{basic_block_forward.1} parent=0 // loop_footer_branch
    %10 = sbr.rel target = $region3
  $region8: #{basic_block_forward.1} parent=0 // loop_exit
    _

</llo_original>
